<compile_context>
chip_gen: v6e
topology: v6e:2x2x1
jax: 0.10.0
libtpu: 0.0.40
codegen_flags: <defaults>
</compile_context>

<pallas_src>
import functools

import jax
import jax.numpy as jnp
from jax import lax
from jax.experimental import pallas as pl
from jax.experimental.pallas import tpu as pltpu

EPS = 1e-5
LANE = 128


def _round_up(n, m):
    return ((n + m - 1) // m) * m


# ---------------------------------------------------------------------------
# Fused Pallas kernel (single invocation, everything VMEM resident)
# ---------------------------------------------------------------------------
def fused_block_kernel(x_ref, w1_ref, g1_ref, b1_ref, w2_ref, g2_ref, b2_ref,
                       o_ref, pad_scr, *, use_residual, cin1, cin2):
    N, H, W, Cp = x_ref.shape
    NHW = N * H * W
    inv_n = jnp.float32(1.0 / NHW)

    def conv3x3(w_ref, c_real):
        """3x3 'SAME' conv of the scratch interior against w_ref.

        Packed path (9*c_real <= Cp): the 9 taps are rolled into disjoint lane
        groups of one (NHW, Cp) operand; the per-tap (transposed) weights are
        rolled into the matching groups with the SAME pltpu.roll, so the result
        is independent of the roll direction convention.  One MXU matmul, K=Cp.
        Fallback: 9 accumulated K=Cp matmuls (no materialized im2col either).
        """
        packed = 9 * c_real <= Cp
        xcol = None       # packed operand (NHW, Cp) or f32 accumulator
        wp_t = None       # packed weight, laid out as (Cout_pad, K)
        j = 0
        # TODO(synk): the dw = 1,2 slices are sublane-misaligned copies; a
        # sublane-aligned scratch width / sublane roll would move this onto the
        # XLU, but the straightforward slice is kept for lowering robustness.
        for dh in range(3):
            for dw in range(3):
                slab = pad_scr[:, dh:dh + H, dw:dw + W, :].reshape(NHW, Cp)
                if packed:
                    wj = w_ref[j]                     # (Cp, Cp) = (co, ci)
                    if j:
                        shift = j * c_real
                        slab = pltpu.roll(slab, shift, axis=1)
                        wj = pltpu.roll(wj, shift, axis=1)
                    xcol = slab if xcol is None else xcol + slab
                    wp_t = wj if wp_t is None else wp_t + wj
                else:
                    part = jnp.dot(slab, w_ref[j],    # (Cp, Cp) = (ci, co)
                                   preferred_element_type=jnp.float32)
                    xcol = part if xcol is None else xcol + part
                j += 1
        if packed:
            return jnp.dot(xcol, wp_t.T, preferred_element_type=jnp.float32)
        return xcol

    def batchnorm(y, gamma, beta):
        # Training-mode batch stats, single pass (sum + sum of squares), folded
        # into one scale/shift.  Padded channels have gamma = beta = 0 and
        # exactly-zero activations, so their output stays exactly 0.
        mean = jnp.sum(y, axis=0, keepdims=True) * inv_n
        msq = jnp.sum(y * y, axis=0, keepdims=True) * inv_n
        var = msq - mean * mean
        scale = gamma * lax.rsqrt(var + EPS)
        return y * scale + (beta - mean * scale)

    # ---- stage 0: zero ONLY the 1-wide halo strips of the scratch (the
    # interior is fully overwritten below; the halo is reused for conv2).
    zrow = jnp.zeros((N, 1, W + 2, Cp), jnp.float32)
    zcol = jnp.zeros((N, H + 2, 1, Cp), jnp.float32)
    pad_scr[:, 0:1, :, :] = zrow
    pad_scr[:, H + 1:H + 2, :, :] = zrow
    pad_scr[:, :, 0:1, :] = zcol
    pad_scr[:, :, W + 1:W + 2, :] = zcol

    # ---- stage 1: x -> conv1 -> BN -> ReLU.  (Conv bias is omitted: it is
    # cancelled exactly by training-mode BN mean subtraction.)
    pad_scr[:, 1:H + 1, 1:W + 1, :] = x_ref[...]
    h = batchnorm(conv3x3(w1_ref, cin1), g1_ref[...], b1_ref[...])
    h = jnp.maximum(h, 0.0)

    # ---- stage 2: overwrite only the interior with h (halo stays zero),
    # conv2 -> BN (+ residual).
    pad_scr[:, 1:H + 1, 1:W + 1, :] = h.reshape(N, H, W, Cp)
    y = batchnorm(conv3x3(w2_ref, cin2), g2_ref[...], b2_ref[...])
    y = y.reshape(N, H, W, Cp)
    if use_residual:                     # static (trace-time) branch
        y = y + x_ref[...]
    # TODO(synk): output is stored lane-padded to Cp; a (N, H, W*Cout)-packed
    # store would cut HBM writeback ~Cp/Cout-x when Cout << 128.
    o_ref[...] = y.astype(o_ref.dtype)   # lane-dense (Cp = multiple of 128)


# ---------------------------------------------------------------------------
# Wrapper: layout transpose, lane-padding of channels, single pallas_call
# ---------------------------------------------------------------------------
_VMEM = pl.BlockSpec(memory_space=pltpu.MemorySpace.VMEM)


def block_forward(x_nchw, params, num_filters, prev_out_channels):
    w1, b1, g1, be1, w2, b2, g2, be2 = params
    del b1, b2  # conv biases are exactly cancelled by training-mode BatchNorm

    N, Cin, H, W = x_nchw.shape
    Cout = num_filters
    Cp = max(_round_up(Cin, LANE), _round_up(Cout, LANE))

    # NCHW -> NHWC (channels on lanes); zero-pad channels to a full lane width
    # so all loads/stores/MXU columns are lane-dense and padded lanes stay 0.
    x = jnp.transpose(x_nchw, (0, 2, 3, 1)).astype(jnp.float32)
    x = jnp.pad(x, ((0, 0), (0, 0), (0, 0), (0, Cp - Cin)))

    def pack_weight(w):
        # HWIO (3,3,ci,co) -> per-tap stack, zero-padded to (9, Cp, Cp).
        #  * packed path (9*ci <= Cp): per-tap TRANSPOSED layout [tap, co, ci]
        #    (the kernel folds the taps into lane groups with pltpu.roll).
        #  * fallback:                 per-tap layout [tap, ci, co].
        ci, co = w.shape[2], w.shape[3]
        wt = w.astype(jnp.float32).reshape(9, ci, co)
        if 9 * ci <= Cp:
            wt = jnp.transpose(wt, (0, 2, 1))                     # (9, co, ci)
            return jnp.pad(wt, ((0, 0), (0, Cp - co), (0, Cp - ci)))
        return jnp.pad(wt, ((0, 0), (0, Cp - ci), (0, Cp - co)))

    def pad_vec(v):  # (c,) -> zero-padded (1, Cp)
        return jnp.pad(v.astype(jnp.float32), (0, Cp - v.shape[0])).reshape(1, Cp)

    args = (x, pack_weight(w1), pad_vec(g1), pad_vec(be1),
            pack_weight(w2), pad_vec(g2), pad_vec(be2))

    kernel = functools.partial(
        fused_block_kernel,
        use_residual=(num_filters == prev_out_channels),
        cin1=Cin, cin2=Cout)

    # VMEM budget from the actual resident buffers (+ conv/BN temporaries),
    # capped at 64 MiB so the request is valid on v7x as well as v5e/v6e.
    nhw = N * H * W
    est_bytes = 4 * (2 * nhw * Cp                    # x + out
                     + N * (H + 2) * (W + 2) * Cp    # padded scratch
                     + 2 * 9 * Cp * Cp               # weight stacks
                     + 6 * nhw * Cp)                 # h / packed operand / y / slack
    vmem_limit = int(min(64 << 20, max(2 * est_bytes, 16 << 20)))

    # TODO(synk): BN needs whole-batch statistics, so this stays a single
    # grid-less call at these small shapes; sharding NHW across v7x's two
    # TensorCores needs a cross-tile (sum, sumsq) reduction + barrier.
    out = pl.pallas_call(
        kernel,
        out_shape=jax.ShapeDtypeStruct((N, H, W, Cp), jnp.float32),
        in_specs=[_VMEM] * len(args),
        out_specs=_VMEM,
        scratch_shapes=[pltpu.VMEM((N, H + 2, W + 2, Cp), jnp.float32)],
        compiler_params=pltpu.CompilerParams(vmem_limit_bytes=vmem_limit),
    )(*args)

    return jnp.transpose(out[..., :Cout], (0, 3, 1, 2))     # NHWC -> NCHW


# ---------------------------------------------------------------------------
# Pure-JAX reference (keeps the conv biases -> validates the cancellation)
# ---------------------------------------------------------------------------
def ref_forward(x_nchw, params, num_filters, prev_out_channels):
    w1, b1, g1, be1, w2, b2, g2, be2 = params
    x = jnp.transpose(x_nchw, (0, 2, 3, 1)).astype(jnp.float32)

    def conv(t, w, b):
        y = lax.conv_general_dilated(
            t, w, window_strides=(1, 1), padding="SAME",
            dimension_numbers=("NHWC", "HWIO", "NHWC"))
        return y + b

    def bn(y, g, be):
        m = y.mean(axis=(0, 1, 2), keepdims=True)
        v = ((y - m) ** 2).mean(axis=(0, 1, 2), keepdims=True)
        return g * (y - m) * lax.rsqrt(v + EPS) + be

    h = jnp.maximum(bn(conv(x, w1, b1), g1, be1), 0.0)
    y = bn(conv(h, w2, b2), g2, be2)
    if num_filters == prev_out_channels:
        y = y + x
    return jnp.transpose(y, (0, 3, 1, 2))


# ---------------------------------------------------------------------------
# Deterministic parameter init + driver
# ---------------------------------------------------------------------------
def init_params(key, num_filters, prev_out_channels):
    ks = jax.random.split(key, 8)
    w1 = 0.1 * jax.random.normal(ks[0], (3, 3, prev_out_channels, num_filters), jnp.float32)
    b1 = 0.1 * jax.random.normal(ks[1], (num_filters,), jnp.float32)
    g1 = 1.0 + 0.1 * jax.random.normal(ks[2], (num_filters,), jnp.float32)
    be1 = 0.1 * jax.random.normal(ks[3], (num_filters,), jnp.float32)
    w2 = 0.1 * jax.random.normal(ks[4], (3, 3, num_filters, num_filters), jnp.float32)
    b2 = 0.1 * jax.random.normal(ks[5], (num_filters,), jnp.float32)
    g2 = 1.0 + 0.1 * jax.random.normal(ks[6], (num_filters,), jnp.float32)
    be2 = 0.1 * jax.random.normal(ks[7], (num_filters,), jnp.float32)
    return (w1, b1, g1, be1, w2, b2, g2, be2)


if __name__ == "__main__":
    key = jax.random.PRNGKey(0)
    k_x, k_p, k_x2, k_p2 = jax.random.split(key, 4)

    # --- residual branch: num_filters == prev_out_channels
    N, C, H, W = 2, 4, 16, 16
    num_filters, prev_out_channels = 4, 4
    x = jax.random.normal(k_x, (N, C, H, W), jnp.float32)
    params = init_params(k_p, num_filters, prev_out_channels)

    out = jax.block_until_ready(block_forward(x, params, num_filters, prev_out_channels))
    ref = jax.block_until_ready(ref_forward(x, params, num_filters, prev_out_channels))
    assert out.shape == (N, num_filters, H, W)
    assert jnp.allclose(out, ref, atol=1e-3, rtol=1e-3)

    # --- non-residual branch: num_filters != prev_out_channels
    nf2, pc2 = 4, 8
    x2 = jax.random.normal(k_x2, (N, pc2, H, W), jnp.float32)
    params2 = init_params(k_p2, nf2, pc2)
    out2 = jax.block_until_ready(block_forward(x2, params2, nf2, pc2))
    ref2 = jax.block_until_ready(ref_forward(x2, params2, nf2, pc2))
    assert out2.shape == (N, nf2, H, W)
    assert jnp.allclose(out2, ref2, atol=1e-3, rtol=1e-3)

    print("KERNEL_OK")
</pallas_src>

<mosaic_0001>
module attributes {stable_mosaic.version = 11 : i64} {
  func.func @fused_block_kernel(%arg0: memref<2x16x16x128xf32, #tpu.memory_space<vmem>>, %arg1: memref<9x128x128xf32, #tpu.memory_space<vmem>>, %arg2: memref<1x128xf32, #tpu.memory_space<vmem>>, %arg3: memref<1x128xf32, #tpu.memory_space<vmem>>, %arg4: memref<9x128x128xf32, #tpu.memory_space<vmem>>, %arg5: memref<1x128xf32, #tpu.memory_space<vmem>>, %arg6: memref<1x128xf32, #tpu.memory_space<vmem>>, %arg7: memref<2x16x16x128xf32, #tpu.memory_space<vmem>>, %arg8: memref<2x18x18x128xf32, #tpu.memory_space<vmem>>) attributes {dimension_semantics = [], scalar_prefetch = 0 : i64, scratch_operands = 1 : i64, tpu.core_type = #tpu.core_type<tc>} {
    %cst = arith.constant 0.000000e+00 : f32
    %0 = vector.broadcast %cst : f32 to vector<2x1x18x128xf32>
    %cst_0 = arith.constant 0.000000e+00 : f32
    %1 = vector.broadcast %cst_0 : f32 to vector<2x18x1x128xf32>
    %c0 = arith.constant 0 : index
    %c0_1 = arith.constant 0 : index
    %c0_2 = arith.constant 0 : index
    %c0_3 = arith.constant 0 : index
    %2 = vector.load %arg8[%c0, %c0_1, %c0_2, %c0_3] : memref<2x18x18x128xf32, #tpu.memory_space<vmem>>, vector<2x1x18x128xf32>
    tpu.vector_store %arg8[%c0, %c0_1, %c0_2, %c0_3], %0 {strides = array<i32>} : memref<2x18x18x128xf32, #tpu.memory_space<vmem>>, vector<2x1x18x128xf32>,
    %c0_4 = arith.constant 0 : index
    %c17 = arith.constant 17 : index
    %c0_5 = arith.constant 0 : index
    %c0_6 = arith.constant 0 : index
    %3 = vector.load %arg8[%c0_4, %c17, %c0_5, %c0_6] : memref<2x18x18x128xf32, #tpu.memory_space<vmem>>, vector<2x1x18x128xf32>
    tpu.vector_store %arg8[%c0_4, %c17, %c0_5, %c0_6], %0 {strides = array<i32>} : memref<2x18x18x128xf32, #tpu.memory_space<vmem>>, vector<2x1x18x128xf32>,
    %c0_7 = arith.constant 0 : index
    %c0_8 = arith.constant 0 : index
    %c0_9 = arith.constant 0 : index
    %c0_10 = arith.constant 0 : index
    %4 = vector.load %arg8[%c0_7, %c0_8, %c0_9, %c0_10] : memref<2x18x18x128xf32, #tpu.memory_space<vmem>>, vector<2x18x1x128xf32>
    tpu.vector_store %arg8[%c0_7, %c0_8, %c0_9, %c0_10], %1 {strides = array<i32>} : memref<2x18x18x128xf32, #tpu.memory_space<vmem>>, vector<2x18x1x128xf32>,
    %c0_11 = arith.constant 0 : index
    %c0_12 = arith.constant 0 : index
    %c17_13 = arith.constant 17 : index
    %c0_14 = arith.constant 0 : index
    %5 = vector.load %arg8[%c0_11, %c0_12, %c17_13, %c0_14] : memref<2x18x18x128xf32, #tpu.memory_space<vmem>>, vector<2x18x1x128xf32>
    tpu.vector_store %arg8[%c0_11, %c0_12, %c17_13, %c0_14], %1 {strides = array<i32>} : memref<2x18x18x128xf32, #tpu.memory_space<vmem>>, vector<2x18x1x128xf32>,
    %c0_15 = arith.constant 0 : index
    %c0_16 = arith.constant 0 : index
    %c0_17 = arith.constant 0 : index
    %c0_18 = arith.constant 0 : index
    %6 = vector.load %arg0[%c0_15, %c0_16, %c0_17, %c0_18] : memref<2x16x16x128xf32, #tpu.memory_space<vmem>>, vector<2x16x16x128xf32>
    %c0_19 = arith.constant 0 : index
    %c1 = arith.constant 1 : index
    %c1_20 = arith.constant 1 : index
    %c0_21 = arith.constant 0 : index
    %7 = vector.load %arg8[%c0_19, %c1, %c1_20, %c0_21] : memref<2x18x18x128xf32, #tpu.memory_space<vmem>>, vector<2x16x16x128xf32>
    tpu.vector_store %arg8[%c0_19, %c1, %c1_20, %c0_21], %6 {strides = array<i32>} : memref<2x18x18x128xf32, #tpu.memory_space<vmem>>, vector<2x16x16x128xf32>,
    %c0_22 = arith.constant 0 : index
    %c0_23 = arith.constant 0 : index
    %c0_24 = arith.constant 0 : index
    %c0_25 = arith.constant 0 : index
    %8 = vector.load %arg8[%c0_22, %c0_23, %c0_24, %c0_25] : memref<2x18x18x128xf32, #tpu.memory_space<vmem>>, vector<2x16x16x128xf32>
    %9 = vector.shape_cast %8 : vector<2x16x16x128xf32> to vector<512x128xf32>
    %c0_26 = arith.constant 0 : index
    %c0_27 = arith.constant 0 : index
    %c0_28 = arith.constant 0 : index
    %10 = vector.load %arg1[%c0_26, %c0_27, %c0_28] : memref<9x128x128xf32, #tpu.memory_space<vmem>>, vector<1x128x128xf32>
    %11 = vector.shape_cast %10 : vector<1x128x128xf32> to vector<128x128xf32>
    %c0_29 = arith.constant 0 : index
    %c0_30 = arith.constant 0 : index
    %c1_31 = arith.constant 1 : index
    %c0_32 = arith.constant 0 : index
    %12 = vector.load %arg8[%c0_29, %c0_30, %c1_31, %c0_32] : memref<2x18x18x128xf32, #tpu.memory_space<vmem>>, vector<2x16x16x128xf32>
    %13 = vector.shape_cast %12 : vector<2x16x16x128xf32> to vector<512x128xf32>
    %c1_33 = arith.constant 1 : index
    %c0_34 = arith.constant 0 : index
    %c0_35 = arith.constant 0 : index
    %14 = vector.load %arg1[%c1_33, %c0_34, %c0_35] : memref<9x128x128xf32, #tpu.memory_space<vmem>>, vector<1x128x128xf32>
    %15 = vector.shape_cast %14 : vector<1x128x128xf32> to vector<128x128xf32>
    %c4_i32 = arith.constant 4 : i32
    %16 = tpu.dynamic_rotate %13 by %c4_i32 dim 1 : vector<512x128xf32>, i32 -> vector<512x128xf32>
    %c4_i32_36 = arith.constant 4 : i32
    %17 = tpu.dynamic_rotate %15 by %c4_i32_36 dim 1 : vector<128x128xf32>, i32 -> vector<128x128xf32>
    %18 = arith.addf %9, %16 : vector<512x128xf32>
    %19 = arith.addf %11, %17 : vector<128x128xf32>
    %c0_37 = arith.constant 0 : index
    %c0_38 = arith.constant 0 : index
    %c2 = arith.constant 2 : index
    %c0_39 = arith.constant 0 : index
    %20 = vector.load %arg8[%c0_37, %c0_38, %c2, %c0_39] : memref<2x18x18x128xf32, #tpu.memory_space<vmem>>, vector<2x16x16x128xf32>
    %21 = vector.shape_cast %20 : vector<2x16x16x128xf32> to vector<512x128xf32>
    %c2_40 = arith.constant 2 : index
    %c0_41 = arith.constant 0 : index
    %c0_42 = arith.constant 0 : index
    %22 = vector.load %arg1[%c2_40, %c0_41, %c0_42] : memref<9x128x128xf32, #tpu.memory_space<vmem>>, vector<1x128x128xf32>
    %23 = vector.shape_cast %22 : vector<1x128x128xf32> to vector<128x128xf32>
    %c8_i32 = arith.constant 8 : i32
    %24 = tpu.dynamic_rotate %21 by %c8_i32 dim 1 : vector<512x128xf32>, i32 -> vector<512x128xf32>
    %c8_i32_43 = arith.constant 8 : i32
    %25 = tpu.dynamic_rotate %23 by %c8_i32_43 dim 1 : vector<128x128xf32>, i32 -> vector<128x128xf32>
    %26 = arith.addf %18, %24 : vector<512x128xf32>
    %27 = arith.addf %19, %25 : vector<128x128xf32>
    %c0_44 = arith.constant 0 : index
    %c1_45 = arith.constant 1 : index
    %c0_46 = arith.constant 0 : index
    %c0_47 = arith.constant 0 : index
    %28 = vector.load %arg8[%c0_44, %c1_45, %c0_46, %c0_47] : memref<2x18x18x128xf32, #tpu.memory_space<vmem>>, vector<2x16x16x128xf32>
    %29 = vector.shape_cast %28 : vector<2x16x16x128xf32> to vector<512x128xf32>
    %c3 = arith.constant 3 : index
    %c0_48 = arith.constant 0 : index
    %c0_49 = arith.constant 0 : index
    %30 = vector.load %arg1[%c3, %c0_48, %c0_49] : memref<9x128x128xf32, #tpu.memory_space<vmem>>, vector<1x128x128xf32>
    %31 = vector.shape_cast %30 : vector<1x128x128xf32> to vector<128x128xf32>
    %c12_i32 = arith.constant 12 : i32
    %32 = tpu.dynamic_rotate %29 by %c12_i32 dim 1 : vector<512x128xf32>, i32 -> vector<512x128xf32>
    %c12_i32_50 = arith.constant 12 : i32
    %33 = tpu.dynamic_rotate %31 by %c12_i32_50 dim 1 : vector<128x128xf32>, i32 -> vector<128x128xf32>
    %34 = arith.addf %26, %32 : vector<512x128xf32>
    %35 = arith.addf %27, %33 : vector<128x128xf32>
    %c0_51 = arith.constant 0 : index
    %c1_52 = arith.constant 1 : index
    %c1_53 = arith.constant 1 : index
    %c0_54 = arith.constant 0 : index
    %36 = vector.load %arg8[%c0_51, %c1_52, %c1_53, %c0_54] : memref<2x18x18x128xf32, #tpu.memory_space<vmem>>, vector<2x16x16x128xf32>
    %37 = vector.shape_cast %36 : vector<2x16x16x128xf32> to vector<512x128xf32>
    %c4 = arith.constant 4 : index
    %c0_55 = arith.constant 0 : index
    %c0_56 = arith.constant 0 : index
    %38 = vector.load %arg1[%c4, %c0_55, %c0_56] : memref<9x128x128xf32, #tpu.memory_space<vmem>>, vector<1x128x128xf32>
    %39 = vector.shape_cast %38 : vector<1x128x128xf32> to vector<128x128xf32>
    %c16_i32 = arith.constant 16 : i32
    %40 = tpu.dynamic_rotate %37 by %c16_i32 dim 1 : vector<512x128xf32>, i32 -> vector<512x128xf32>
    %c16_i32_57 = arith.constant 16 : i32
    %41 = tpu.dynamic_rotate %39 by %c16_i32_57 dim 1 : vector<128x128xf32>, i32 -> vector<128x128xf32>
    %42 = arith.addf %34, %40 : vector<512x128xf32>
    %43 = arith.addf %35, %41 : vector<128x128xf32>
    %c0_58 = arith.constant 0 : index
    %c1_59 = arith.constant 1 : index
    %c2_60 = arith.constant 2 : index
    %c0_61 = arith.constant 0 : index
    %44 = vector.load %arg8[%c0_58, %c1_59, %c2_60, %c0_61] : memref<2x18x18x128xf32, #tpu.memory_space<vmem>>, vector<2x16x16x128xf32>
    %45 = vector.shape_cast %44 : vector<2x16x16x128xf32> to vector<512x128xf32>
    %c5 = arith.constant 5 : index
    %c0_62 = arith.constant 0 : index
    %c0_63 = arith.constant 0 : index
    %46 = vector.load %arg1[%c5, %c0_62, %c0_63] : memref<9x128x128xf32, #tpu.memory_space<vmem>>, vector<1x128x128xf32>
    %47 = vector.shape_cast %46 : vector<1x128x128xf32> to vector<128x128xf32>
    %c20_i32 = arith.constant 20 : i32
    %48 = tpu.dynamic_rotate %45 by %c20_i32 dim 1 : vector<512x128xf32>, i32 -> vector<512x128xf32>
    %c20_i32_64 = arith.constant 20 : i32
    %49 = tpu.dynamic_rotate %47 by %c20_i32_64 dim 1 : vector<128x128xf32>, i32 -> vector<128x128xf32>
    %50 = arith.addf %42, %48 : vector<512x128xf32>
    %51 = arith.addf %43, %49 : vector<128x128xf32>
    %c0_65 = arith.constant 0 : index
    %c2_66 = arith.constant 2 : index
    %c0_67 = arith.constant 0 : index
    %c0_68 = arith.constant 0 : index
    %52 = vector.load %arg8[%c0_65, %c2_66, %c0_67, %c0_68] : memref<2x18x18x128xf32, #tpu.memory_space<vmem>>, vector<2x16x16x128xf32>
    %53 = vector.shape_cast %52 : vector<2x16x16x128xf32> to vector<512x128xf32>
    %c6 = arith.constant 6 : index
    %c0_69 = arith.constant 0 : index
    %c0_70 = arith.constant 0 : index
    %54 = vector.load %arg1[%c6, %c0_69, %c0_70] : memref<9x128x128xf32, #tpu.memory_space<vmem>>, vector<1x128x128xf32>
    %55 = vector.shape_cast %54 : vector<1x128x128xf32> to vector<128x128xf32>
    %c24_i32 = arith.constant 24 : i32
    %56 = tpu.dynamic_rotate %53 by %c24_i32 dim 1 : vector<512x128xf32>, i32 -> vector<512x128xf32>
    %c24_i32_71 = arith.constant 24 : i32
    %57 = tpu.dynamic_rotate %55 by %c24_i32_71 dim 1 : vector<128x128xf32>, i32 -> vector<128x128xf32>
    %58 = arith.addf %50, %56 : vector<512x128xf32>
    %59 = arith.addf %51, %57 : vector<128x128xf32>
    %c0_72 = arith.constant 0 : index
    %c2_73 = arith.constant 2 : index
    %c1_74 = arith.constant 1 : index
    %c0_75 = arith.constant 0 : index
    %60 = vector.load %arg8[%c0_72, %c2_73, %c1_74, %c0_75] : memref<2x18x18x128xf32, #tpu.memory_space<vmem>>, vector<2x16x16x128xf32>
    %61 = vector.shape_cast %60 : vector<2x16x16x128xf32> to vector<512x128xf32>
    %c7 = arith.constant 7 : index
    %c0_76 = arith.constant 0 : index
    %c0_77 = arith.constant 0 : index
    %62 = vector.load %arg1[%c7, %c0_76, %c0_77] : memref<9x128x128xf32, #tpu.memory_space<vmem>>, vector<1x128x128xf32>
    %63 = vector.shape_cast %62 : vector<1x128x128xf32> to vector<128x128xf32>
    %c28_i32 = arith.constant 28 : i32
    %64 = tpu.dynamic_rotate %61 by %c28_i32 dim 1 : vector<512x128xf32>, i32 -> vector<512x128xf32>
    %c28_i32_78 = arith.constant 28 : i32
    %65 = tpu.dynamic_rotate %63 by %c28_i32_78 dim 1 : vector<128x128xf32>, i32 -> vector<128x128xf32>
    %66 = arith.addf %58, %64 : vector<512x128xf32>
    %67 = arith.addf %59, %65 : vector<128x128xf32>
    %c0_79 = arith.constant 0 : index
    %c2_80 = arith.constant 2 : index
    %c2_81 = arith.constant 2 : index
    %c0_82 = arith.constant 0 : index
    %68 = vector.load %arg8[%c0_79, %c2_80, %c2_81, %c0_82] : memref<2x18x18x128xf32, #tpu.memory_space<vmem>>, vector<2x16x16x128xf32>
    %69 = vector.shape_cast %68 : vector<2x16x16x128xf32> to vector<512x128xf32>
    %c8 = arith.constant 8 : index
    %c0_83 = arith.constant 0 : index
    %c0_84 = arith.constant 0 : index
    %70 = vector.load %arg1[%c8, %c0_83, %c0_84] : memref<9x128x128xf32, #tpu.memory_space<vmem>>, vector<1x128x128xf32>
    %71 = vector.shape_cast %70 : vector<1x128x128xf32> to vector<128x128xf32>
    %c32_i32 = arith.constant 32 : i32
    %72 = tpu.dynamic_rotate %69 by %c32_i32 dim 1 : vector<512x128xf32>, i32 -> vector<512x128xf32>
    %c32_i32_85 = arith.constant 32 : i32
    %73 = tpu.dynamic_rotate %71 by %c32_i32_85 dim 1 : vector<128x128xf32>, i32 -> vector<128x128xf32>
    %74 = arith.addf %66, %72 : vector<512x128xf32>
    %75 = arith.addf %67, %73 : vector<128x128xf32>
    %76 = tpu.transpose %75, [1, 0] : vector<128x128xf32> -> vector<128x128xf32>
    %cst_86 = arith.constant dense<0.000000e+00> : vector<512x128xf32>
    %77 = tpu.matmul %74, %76, %cst_86 {dimension_numbers = #tpu.dot_dimension_numbers<[1], [0], [0], [1], [0, 0, 1, 1], [], []>} : vector<512x128xf32>, vector<128x128xf32>, vector<512x128xf32> -> vector<512x128xf32>
    %c0_87 = arith.constant 0 : index
    %c0_88 = arith.constant 0 : index
    %78 = vector.load %arg2[%c0_87, %c0_88] : memref<1x128xf32, #tpu.memory_space<vmem>>, vector<1x128xf32>
    %c0_89 = arith.constant 0 : index
    %c0_90 = arith.constant 0 : index
    %79 = vector.load %arg3[%c0_89, %c0_90] : memref<1x128xf32, #tpu.memory_space<vmem>>, vector<1x128xf32>
    %cst_91 = arith.constant dense<0.000000e+00> : vector<128xf32>
    %80 = vector.multi_reduction <add>, %77, %cst_91 [0] : vector<512x128xf32> to vector<128xf32>
    %81 = vector.shape_cast %80 : vector<128xf32> to vector<1x128xf32>
    %cst_92 = arith.constant 0.001953125 : f32
    %82 = vector.broadcast %cst_92 : f32 to vector<1x128xf32>
    %83 = arith.mulf %81, %82 : vector<1x128xf32>
    %84 = arith.mulf %77, %77 : vector<512x128xf32>
    %cst_93 = arith.constant dense<0.000000e+00> : vector<128xf32>
    %85 = vector.multi_reduction <add>, %84, %cst_93 [0] : vector<512x128xf32> to vector<128xf32>
    %86 = vector.shape_cast %85 : vector<128xf32> to vector<1x128xf32>
    %cst_94 = arith.constant 0.001953125 : f32
    %87 = vector.broadcast %cst_94 : f32 to vector<1x128xf32>
    %88 = arith.mulf %86, %87 : vector<1x128xf32>
    %89 = arith.mulf %83, %83 : vector<1x128xf32>
    %90 = arith.subf %88, %89 : vector<1x128xf32>
    %cst_95 = arith.constant 9.99999974E-6 : f32
    %91 = vector.broadcast %cst_95 : f32 to vector<1x128xf32>
    %92 = arith.addf %90, %91 : vector<1x128xf32>
    %93 = math.rsqrt %92 : vector<1x128xf32>
    %94 = arith.mulf %78, %93 : vector<1x128xf32>
    %95 = vector.broadcast %94 : vector<1x128xf32> to vector<512x128xf32>
    %96 = arith.mulf %77, %95 : vector<512x128xf32>
    %97 = arith.mulf %83, %94 : vector<1x128xf32>
    %98 = arith.subf %79, %97 : vector<1x128xf32>
    %99 = vector.broadcast %98 : vector<1x128xf32> to vector<512x128xf32>
    %100 = arith.addf %96, %99 : vector<512x128xf32>
    %cst_96 = arith.constant 0.000000e+00 : f32
    %101 = vector.broadcast %cst_96 : f32 to vector<512x128xf32>
    %102 = arith.maximumf %100, %101 : vector<512x128xf32>
    %103 = vector.shape_cast %102 : vector<512x128xf32> to vector<2x16x16x128xf32>
    %c0_97 = arith.constant 0 : index
    %c1_98 = arith.constant 1 : index
    %c1_99 = arith.constant 1 : index
    %c0_100 = arith.constant 0 : index
    %104 = vector.load %arg8[%c0_97, %c1_98, %c1_99, %c0_100] : memref<2x18x18x128xf32, #tpu.memory_space<vmem>>, vector<2x16x16x128xf32>
    tpu.vector_store %arg8[%c0_97, %c1_98, %c1_99, %c0_100], %103 {strides = array<i32>} : memref<2x18x18x128xf32, #tpu.memory_space<vmem>>, vector<2x16x16x128xf32>,
    %c0_101 = arith.constant 0 : index
    %c0_102 = arith.constant 0 : index
    %c0_103 = arith.constant 0 : index
    %c0_104 = arith.constant 0 : index
    %105 = vector.load %arg8[%c0_101, %c0_102, %c0_103, %c0_104] : memref<2x18x18x128xf32, #tpu.memory_space<vmem>>, vector<2x16x16x128xf32>
    %106 = vector.shape_cast %105 : vector<2x16x16x128xf32> to vector<512x128xf32>
    %c0_105 = arith.constant 0 : index
    %c0_106 = arith.constant 0 : index
    %c0_107 = arith.constant 0 : index
    %107 = vector.load %arg4[%c0_105, %c0_106, %c0_107] : memref<9x128x128xf32, #tpu.memory_space<vmem>>, vector<1x128x128xf32>
    %108 = vector.shape_cast %107 : vector<1x128x128xf32> to vector<128x128xf32>
    %c0_108 = arith.constant 0 : index
    %c0_109 = arith.constant 0 : index
    %c1_110 = arith.constant 1 : index
    %c0_111 = arith.constant 0 : index
    %109 = vector.load %arg8[%c0_108, %c0_109, %c1_110, %c0_111] : memref<2x18x18x128xf32, #tpu.memory_space<vmem>>, vector<2x16x16x128xf32>
    %110 = vector.shape_cast %109 : vector<2x16x16x128xf32> to vector<512x128xf32>
    %c1_112 = arith.constant 1 : index
    %c0_113 = arith.constant 0 : index
    %c0_114 = arith.constant 0 : index
    %111 = vector.load %arg4[%c1_112, %c0_113, %c0_114] : memref<9x128x128xf32, #tpu.memory_space<vmem>>, vector<1x128x128xf32>
    %112 = vector.shape_cast %111 : vector<1x128x128xf32> to vector<128x128xf32>
    %c4_i32_115 = arith.constant 4 : i32
    %113 = tpu.dynamic_rotate %110 by %c4_i32_115 dim 1 : vector<512x128xf32>, i32 -> vector<512x128xf32>
    %c4_i32_116 = arith.constant 4 : i32
    %114 = tpu.dynamic_rotate %112 by %c4_i32_116 dim 1 : vector<128x128xf32>, i32 -> vector<128x128xf32>
    %115 = arith.addf %106, %113 : vector<512x128xf32>
    %116 = arith.addf %108, %114 : vector<128x128xf32>
    %c0_117 = arith.constant 0 : index
    %c0_118 = arith.constant 0 : index
    %c2_119 = arith.constant 2 : index
    %c0_120 = arith.constant 0 : index
    %117 = vector.load %arg8[%c0_117, %c0_118, %c2_119, %c0_120] : memref<2x18x18x128xf32, #tpu.memory_space<vmem>>, vector<2x16x16x128xf32>
    %118 = vector.shape_cast %117 : vector<2x16x16x128xf32> to vector<512x128xf32>
    %c2_121 = arith.constant 2 : index
    %c0_122 = arith.constant 0 : index
    %c0_123 = arith.constant 0 : index
    %119 = vector.load %arg4[%c2_121, %c0_122, %c0_123] : memref<9x128x128xf32, #tpu.memory_space<vmem>>, vector<1x128x128xf32>
    %120 = vector.shape_cast %119 : vector<1x128x128xf32> to vector<128x128xf32>
    %c8_i32_124 = arith.constant 8 : i32
    %121 = tpu.dynamic_rotate %118 by %c8_i32_124 dim 1 : vector<512x128xf32>, i32 -> vector<512x128xf32>
    %c8_i32_125 = arith.constant 8 : i32
    %122 = tpu.dynamic_rotate %120 by %c8_i32_125 dim 1 : vector<128x128xf32>, i32 -> vector<128x128xf32>
    %123 = arith.addf %115, %121 : vector<512x128xf32>
    %124 = arith.addf %116, %122 : vector<128x128xf32>
    %c0_126 = arith.constant 0 : index
    %c1_127 = arith.constant 1 : index
    %c0_128 = arith.constant 0 : index
    %c0_129 = arith.constant 0 : index
    %125 = vector.load %arg8[%c0_126, %c1_127, %c0_128, %c0_129] : memref<2x18x18x128xf32, #tpu.memory_space<vmem>>, vector<2x16x16x128xf32>
    %126 = vector.shape_cast %125 : vector<2x16x16x128xf32> to vector<512x128xf32>
    %c3_130 = arith.constant 3 : index
    %c0_131 = arith.constant 0 : index
    %c0_132 = arith.constant 0 : index
    %127 = vector.load %arg4[%c3_130, %c0_131, %c0_132] : memref<9x128x128xf32, #tpu.memory_space<vmem>>, vector<1x128x128xf32>
    %128 = vector.shape_cast %127 : vector<1x128x128xf32> to vector<128x128xf32>
    %c12_i32_133 = arith.constant 12 : i32
    %129 = tpu.dynamic_rotate %126 by %c12_i32_133 dim 1 : vector<512x128xf32>, i32 -> vector<512x128xf32>
    %c12_i32_134 = arith.constant 12 : i32
    %130 = tpu.dynamic_rotate %128 by %c12_i32_134 dim 1 : vector<128x128xf32>, i32 -> vector<128x128xf32>
    %131 = arith.addf %123, %129 : vector<512x128xf32>
    %132 = arith.addf %124, %130 : vector<128x128xf32>
    %c0_135 = arith.constant 0 : index
    %c1_136 = arith.constant 1 : index
    %c1_137 = arith.constant 1 : index
    %c0_138 = arith.constant 0 : index
    %133 = vector.load %arg8[%c0_135, %c1_136, %c1_137, %c0_138] : memref<2x18x18x128xf32, #tpu.memory_space<vmem>>, vector<2x16x16x128xf32>
    %134 = vector.shape_cast %133 : vector<2x16x16x128xf32> to vector<512x128xf32>
    %c4_139 = arith.constant 4 : index
    %c0_140 = arith.constant 0 : index
    %c0_141 = arith.constant 0 : index
    %135 = vector.load %arg4[%c4_139, %c0_140, %c0_141] : memref<9x128x128xf32, #tpu.memory_space<vmem>>, vector<1x128x128xf32>
    %136 = vector.shape_cast %135 : vector<1x128x128xf32> to vector<128x128xf32>
    %c16_i32_142 = arith.constant 16 : i32
    %137 = tpu.dynamic_rotate %134 by %c16_i32_142 dim 1 : vector<512x128xf32>, i32 -> vector<512x128xf32>
    %c16_i32_143 = arith.constant 16 : i32
    %138 = tpu.dynamic_rotate %136 by %c16_i32_143 dim 1 : vector<128x128xf32>, i32 -> vector<128x128xf32>
    %139 = arith.addf %131, %137 : vector<512x128xf32>
    %140 = arith.addf %132, %138 : vector<128x128xf32>
    %c0_144 = arith.constant 0 : index
    %c1_145 = arith.constant 1 : index
    %c2_146 = arith.constant 2 : index
    %c0_147 = arith.constant 0 : index
    %141 = vector.load %arg8[%c0_144, %c1_145, %c2_146, %c0_147] : memref<2x18x18x128xf32, #tpu.memory_space<vmem>>, vector<2x16x16x128xf32>
    %142 = vector.shape_cast %141 : vector<2x16x16x128xf32> to vector<512x128xf32>
    %c5_148 = arith.constant 5 : index
    %c0_149 = arith.constant 0 : index
    %c0_150 = arith.constant 0 : index
    %143 = vector.load %arg4[%c5_148, %c0_149, %c0_150] : memref<9x128x128xf32, #tpu.memory_space<vmem>>, vector<1x128x128xf32>
    %144 = vector.shape_cast %143 : vector<1x128x128xf32> to vector<128x128xf32>
    %c20_i32_151 = arith.constant 20 : i32
    %145 = tpu.dynamic_rotate %142 by %c20_i32_151 dim 1 : vector<512x128xf32>, i32 -> vector<512x128xf32>
    %c20_i32_152 = arith.constant 20 : i32
    %146 = tpu.dynamic_rotate %144 by %c20_i32_152 dim 1 : vector<128x128xf32>, i32 -> vector<128x128xf32>
    %147 = arith.addf %139, %145 : vector<512x128xf32>
    %148 = arith.addf %140, %146 : vector<128x128xf32>
    %c0_153 = arith.constant 0 : index
    %c2_154 = arith.constant 2 : index
    %c0_155 = arith.constant 0 : index
    %c0_156 = arith.constant 0 : index
    %149 = vector.load %arg8[%c0_153, %c2_154, %c0_155, %c0_156] : memref<2x18x18x128xf32, #tpu.memory_space<vmem>>, vector<2x16x16x128xf32>
    %150 = vector.shape_cast %149 : vector<2x16x16x128xf32> to vector<512x128xf32>
    %c6_157 = arith.constant 6 : index
    %c0_158 = arith.constant 0 : index
    %c0_159 = arith.constant 0 : index
    %151 = vector.load %arg4[%c6_157, %c0_158, %c0_159] : memref<9x128x128xf32, #tpu.memory_space<vmem>>, vector<1x128x128xf32>
    %152 = vector.shape_cast %151 : vector<1x128x128xf32> to vector<128x128xf32>
    %c24_i32_160 = arith.constant 24 : i32
    %153 = tpu.dynamic_rotate %150 by %c24_i32_160 dim 1 : vector<512x128xf32>, i32 -> vector<512x128xf32>
    %c24_i32_161 = arith.constant 24 : i32
    %154 = tpu.dynamic_rotate %152 by %c24_i32_161 dim 1 : vector<128x128xf32>, i32 -> vector<128x128xf32>
    %155 = arith.addf %147, %153 : vector<512x128xf32>
    %156 = arith.addf %148, %154 : vector<128x128xf32>
    %c0_162 = arith.constant 0 : index
    %c2_163 = arith.constant 2 : index
    %c1_164 = arith.constant 1 : index
    %c0_165 = arith.constant 0 : index
    %157 = vector.load %arg8[%c0_162, %c2_163, %c1_164, %c0_165] : memref<2x18x18x128xf32, #tpu.memory_space<vmem>>, vector<2x16x16x128xf32>
    %158 = vector.shape_cast %157 : vector<2x16x16x128xf32> to vector<512x128xf32>
    %c7_166 = arith.constant 7 : index
    %c0_167 = arith.constant 0 : index
    %c0_168 = arith.constant 0 : index
    %159 = vector.load %arg4[%c7_166, %c0_167, %c0_168] : memref<9x128x128xf32, #tpu.memory_space<vmem>>, vector<1x128x128xf32>
    %160 = vector.shape_cast %159 : vector<1x128x128xf32> to vector<128x128xf32>
    %c28_i32_169 = arith.constant 28 : i32
    %161 = tpu.dynamic_rotate %158 by %c28_i32_169 dim 1 : vector<512x128xf32>, i32 -> vector<512x128xf32>
    %c28_i32_170 = arith.constant 28 : i32
    %162 = tpu.dynamic_rotate %160 by %c28_i32_170 dim 1 : vector<128x128xf32>, i32 -> vector<128x128xf32>
    %163 = arith.addf %155, %161 : vector<512x128xf32>
    %164 = arith.addf %156, %162 : vector<128x128xf32>
    %c0_171 = arith.constant 0 : index
    %c2_172 = arith.constant 2 : index
    %c2_173 = arith.constant 2 : index
    %c0_174 = arith.constant 0 : index
    %165 = vector.load %arg8[%c0_171, %c2_172, %c2_173, %c0_174] : memref<2x18x18x128xf32, #tpu.memory_space<vmem>>, vector<2x16x16x128xf32>
    %166 = vector.shape_cast %165 : vector<2x16x16x128xf32> to vector<512x128xf32>
    %c8_175 = arith.constant 8 : index
    %c0_176 = arith.constant 0 : index
    %c0_177 = arith.constant 0 : index
    %167 = vector.load %arg4[%c8_175, %c0_176, %c0_177] : memref<9x128x128xf32, #tpu.memory_space<vmem>>, vector<1x128x128xf32>
    %168 = vector.shape_cast %167 : vector<1x128x128xf32> to vector<128x128xf32>
    %c32_i32_178 = arith.constant 32 : i32
    %169 = tpu.dynamic_rotate %166 by %c32_i32_178 dim 1 : vector<512x128xf32>, i32 -> vector<512x128xf32>
    %c32_i32_179 = arith.constant 32 : i32
    %170 = tpu.dynamic_rotate %168 by %c32_i32_179 dim 1 : vector<128x128xf32>, i32 -> vector<128x128xf32>
    %171 = arith.addf %163, %169 : vector<512x128xf32>
    %172 = arith.addf %164, %170 : vector<128x128xf32>
    %173 = tpu.transpose %172, [1, 0] : vector<128x128xf32> -> vector<128x128xf32>
    %cst_180 = arith.constant dense<0.000000e+00> : vector<512x128xf32>
    %174 = tpu.matmul %171, %173, %cst_180 {dimension_numbers = #tpu.dot_dimension_numbers<[1], [0], [0], [1], [0, 0, 1, 1], [], []>} : vector<512x128xf32>, vector<128x128xf32>, vector<512x128xf32> -> vector<512x128xf32>
    %c0_181 = arith.constant 0 : index
    %c0_182 = arith.constant 0 : index
    %175 = vector.load %arg5[%c0_181, %c0_182] : memref<1x128xf32, #tpu.memory_space<vmem>>, vector<1x128xf32>
    %c0_183 = arith.constant 0 : index
    %c0_184 = arith.constant 0 : index
    %176 = vector.load %arg6[%c0_183, %c0_184] : memref<1x128xf32, #tpu.memory_space<vmem>>, vector<1x128xf32>
    %cst_185 = arith.constant dense<0.000000e+00> : vector<128xf32>
    %177 = vector.multi_reduction <add>, %174, %cst_185 [0] : vector<512x128xf32> to vector<128xf32>
    %178 = vector.shape_cast %177 : vector<128xf32> to vector<1x128xf32>
    %cst_186 = arith.constant 0.001953125 : f32
    %179 = vector.broadcast %cst_186 : f32 to vector<1x128xf32>
    %180 = arith.mulf %178, %179 : vector<1x128xf32>
    %181 = arith.mulf %174, %174 : vector<512x128xf32>
    %cst_187 = arith.constant dense<0.000000e+00> : vector<128xf32>
    %182 = vector.multi_reduction <add>, %181, %cst_187 [0] : vector<512x128xf32> to vector<128xf32>
    %183 = vector.shape_cast %182 : vector<128xf32> to vector<1x128xf32>
    %cst_188 = arith.constant 0.001953125 : f32
    %184 = vector.broadcast %cst_188 : f32 to vector<1x128xf32>
    %185 = arith.mulf %183, %184 : vector<1x128xf32>
    %186 = arith.mulf %180, %180 : vector<1x128xf32>
    %187 = arith.subf %185, %186 : vector<1x128xf32>
    %cst_189 = arith.constant 9.99999974E-6 : f32
    %188 = vector.broadcast %cst_189 : f32 to vector<1x128xf32>
    %189 = arith.addf %187, %188 : vector<1x128xf32>
    %190 = math.rsqrt %189 : vector<1x128xf32>
    %191 = arith.mulf %175, %190 : vector<1x128xf32>
    %192 = vector.broadcast %191 : vector<1x128xf32> to vector<512x128xf32>
    %193 = arith.mulf %174, %192 : vector<512x128xf32>
    %194 = arith.mulf %180, %191 : vector<1x128xf32>
    %195 = arith.subf %176, %194 : vector<1x128xf32>
    %196 = vector.broadcast %195 : vector<1x128xf32> to vector<512x128xf32>
    %197 = arith.addf %193, %196 : vector<512x128xf32>
    %198 = vector.shape_cast %197 : vector<512x128xf32> to vector<2x16x16x128xf32>
    %c0_190 = arith.constant 0 : index
    %c0_191 = arith.constant 0 : index
    %c0_192 = arith.constant 0 : index
    %c0_193 = arith.constant 0 : index
    %199 = vector.load %arg0[%c0_190, %c0_191, %c0_192, %c0_193] : memref<2x16x16x128xf32, #tpu.memory_space<vmem>>, vector<2x16x16x128xf32>
    %200 = arith.addf %198, %199 : vector<2x16x16x128xf32>
    %c0_194 = arith.constant 0 : index
    %c0_195 = arith.constant 0 : index
    %c0_196 = arith.constant 0 : index
    %c0_197 = arith.constant 0 : index
    %201 = vector.load %arg7[%c0_194, %c0_195, %c0_196, %c0_197] : memref<2x16x16x128xf32, #tpu.memory_space<vmem>>, vector<2x16x16x128xf32>
    tpu.vector_store %arg7[%c0_194, %c0_195, %c0_196, %c0_197], %200 {strides = array<i32>} : memref<2x16x16x128xf32, #tpu.memory_space<vmem>>, vector<2x16x16x128xf32>,
    return
  }
}

</mosaic_0001>

<llo_original>
// kernel: tpu_custom_call.1
$region0: #{tpu_custom_call.1}
  #allocation0 [shape = 'u32[]', space=smem, size = 0x4, offset = 0x4, fixed_abs, tag = 'smem constant byte address 0x4 - core index']
  #allocation1 [shape = 'u32[144,128]{1,0:T(1,128)}', space=vmem, size = 0x12000, scoped, tag = 'internal scratch']
  #allocation2 [shape = 'f32[2,18,18,128]{3,2,1,0:T(8,128)}', space=vmem, size = 0x6c000, scoped, tag = 'scratch operand']
  %s0 = inlined_call_operand.hbm [shape: f32[2,16,16,128], index: 0, kind: input, shape index: {}]
  %s1 = inlined_call_operand.hbm [shape: f32[9,128,128], index: 1, kind: input, shape index: {}]
  %s2 = inlined_call_operand.vmem [shape: f32[1,128], index: 2, kind: input, shape index: {}]
  %s3 = inlined_call_operand.vmem [shape: f32[1,128], index: 3, kind: input, shape index: {}]
  %s4 = inlined_call_operand.hbm [shape: f32[9,128,128], index: 4, kind: input, shape index: {}]
  %s5 = inlined_call_operand.vmem [shape: f32[1,128], index: 5, kind: input, shape index: {}]
  %s6 = inlined_call_operand.vmem [shape: f32[1,128], index: 6, kind: input, shape index: {}]
  %s7 = inlined_call_operand.hbm [shape: f32[2,16,16,128], index: 7, kind: output, shape index: {}]
  %s8 = sld [smem:[#allocation0]]
  $region50: #{tpu_custom_call.1} parent=0
    _
  %s10 = ssub.s32 1, %s8
  %s11 = scalar_select 0, %s10, %s8
  $region1: #{tpu_custom_call.1} parent=0
    #allocation3 [shape = 'u8[262144]{0}', space=vmem, size = 0x40000, scoped, tag = 'input window, operand 0, single buffered']
    #allocation4 [shape = 's32[1]{0}', space=sflag, size = 0x4, scoped, tag = 'scoped memory for tpu_custom_call.1']
    #allocation5 [shape = 's32[1]{0}', space=sflag, size = 0x4, scoped, tag = 'scoped memory for tpu_custom_call.1']
    #allocation6 [shape = 'u8[589824]{0}', space=vmem, size = 0x90000, scoped, tag = 'input window, operand 1, single buffered']
    #allocation7 [shape = 's32[1]{0}', space=sflag, size = 0x4, scoped, tag = 'scoped memory for tpu_custom_call.1']
    #allocation8 [shape = 'u8[589824]{0}', space=vmem, size = 0x90000, scoped, tag = 'input window, operand 4, single buffered']
    #allocation9 [shape = 'u8[262144]{0}', space=vmem, size = 0x40000, scoped, tag = 'output window, operand 0, single buffered']
    %12 = vsyncpa [#allocation4], 0
    %13 = vsyncpa [#allocation7], 0
    %14 = vsyncpa [#allocation5], 0
    // Predicated region
    $region2: #{tpu_custom_call.1} parent=1 // pred_check
      _
    $region3: #{tpu_custom_call.1} parent=1 // pred_check_branch
      %16 = sbr.rel (0) target = $region5
    $region4: #{tpu_custom_call.1} parent=1 // pred_region
      %s18 = ssub.s32 8192, 8192
      %19 = vsyncadd [#allocation4], %s18
      %s20 = sshll.u32 [#allocation3], 4
      %s21 = int_to_ptr.vmem [resolvable:$true] %s20
      %26 = dma.hbm_to_vmem [thread:$0]  %s0, 8192, %s21, [#allocation4], 128, 128, 8
    $region5: #{tpu_custom_call.1} parent=1 // pred_fallthru
      _
    // Predicated region
    $region6: #{tpu_custom_call.1} parent=1 // pred_check
      _
    $region7: #{tpu_custom_call.1} parent=1 // pred_check_branch
      %28 = sbr.rel (0) target = $region9
    $region8: #{tpu_custom_call.1} parent=1 // pred_region
      %s30 = ssub.s32 18432, 18432
      %31 = vsyncadd [#allocation7], %s30
      %s32 = sshll.u32 [#allocation6], 4
      %s33 = int_to_ptr.vmem [resolvable:$true] %s32
      %38 = dma.hbm_to_vmem [thread:$0]  %s1, 18432, %s33, [#allocation7], 128, 128, 8
    $region9: #{tpu_custom_call.1} parent=1 // pred_fallthru
      _
    // Predicated region
    $region10: #{tpu_custom_call.1} parent=1 // pred_check
      _
    $region11: #{tpu_custom_call.1} parent=1 // pred_check_branch
      %40 = sbr.rel (0) target = $region13
    $region12: #{tpu_custom_call.1} parent=1 // pred_region
      _
    $region13: #{tpu_custom_call.1} parent=1 // pred_fallthru
      _
    // Predicated region
    $region14: #{tpu_custom_call.1} parent=1 // pred_check
      _
    $region15: #{tpu_custom_call.1} parent=1 // pred_check_branch
      %42 = sbr.rel (0) target = $region17
    $region16: #{tpu_custom_call.1} parent=1 // pred_region
      _
    $region17: #{tpu_custom_call.1} parent=1 // pred_fallthru
      _
    // Predicated region
    $region18: #{tpu_custom_call.1} parent=1 // pred_check
      _
    $region19: #{tpu_custom_call.1} parent=1 // pred_check_branch
      %44 = sbr.rel (0) target = $region21
    $region20: #{tpu_custom_call.1} parent=1 // pred_region
      %s46 = ssub.s32 18432, 18432
      %47 = vsyncadd [#allocation7], %s46
      %s48 = sshll.u32 [#allocation8], 4
      %s49 = int_to_ptr.vmem [resolvable:$true] %s48
      %54 = dma.hbm_to_vmem [thread:$0]  %s4, 18432, %s49, [#allocation7], 128, 128, 8
    $region21: #{tpu_custom_call.1} parent=1 // pred_fallthru
      _
    // Predicated region
    $region22: #{tpu_custom_call.1} parent=1 // pred_check
      _
    $region23: #{tpu_custom_call.1} parent=1 // pred_check_branch
      %56 = sbr.rel (0) target = $region25
    $region24: #{tpu_custom_call.1} parent=1 // pred_region
      _
    $region25: #{tpu_custom_call.1} parent=1 // pred_fallthru
      _
    // Predicated region
    $region26: #{tpu_custom_call.1} parent=1 // pred_check
      _
    $region27: #{tpu_custom_call.1} parent=1 // pred_check_branch
      %58 = sbr.rel (0) target = $region29
    $region28: #{tpu_custom_call.1} parent=1 // pred_region
      _
    $region29: #{tpu_custom_call.1} parent=1 // pred_fallthru
      _
    // Predicated region
    $region30: #{tpu_custom_call.1} parent=1 // pred_check
      _
    $region31: #{tpu_custom_call.1} parent=1 // pred_check_branch
      %60 = sbr.rel (0) target = $region33
    $region32: #{tpu_custom_call.1} parent=1 // pred_region
      %61 = dma.done [#allocation4], 8192
    $region33: #{tpu_custom_call.1} parent=1 // pred_fallthru
      _
    // Predicated region
    $region34: #{tpu_custom_call.1} parent=1 // pred_check
      _
    $region35: #{tpu_custom_call.1} parent=1 // pred_check_branch
      %63 = sbr.rel (0) target = $region37
    $region36: #{tpu_custom_call.1} parent=1 // pred_region
      %64 = dma.done [#allocation7], 18432
    $region37: #{tpu_custom_call.1} parent=1 // pred_fallthru
      _
    // Predicated region
    $region38: #{tpu_custom_call.1} parent=1 // pred_check
      _
    $region39: #{tpu_custom_call.1} parent=1 // pred_check_branch
      %66 = sbr.rel (0) target = $region41
    $region40: #{tpu_custom_call.1} parent=1 // pred_region
      %67 = dma.done [#allocation7], 18432
    $region41: #{tpu_custom_call.1} parent=1 // pred_fallthru
      _
    %68 = vst [vmem:[#allocation2] sm:$0xff] 0.0
    %69 = vst [vmem:[#allocation2 + $0x8] sm:$0xff] 0.0
    %70 = vst [vmem:[#allocation2 + $0x10] sm:$0x3] 0.0
    %71 = vst [vmem:[#allocation2 + $0x1b0] sm:$0xff] 0.0
    %72 = vst [vmem:[#allocation2 + $0x1b8] sm:$0xff] 0.0
    %73 = vst [vmem:[#allocation2 + $0x1c0] sm:$0x3] 0.0
    %s74 = scalar_lea.vmem [#allocation2], 408
    %75 = vst [vmem:[%s74] sm:$0xff] 0.0
    %76 = vst [vmem:[%s74 + $0x8] sm:$0xff] 0.0
    %77 = vst [vmem:[%s74 + $0x10] sm:$0x3] 0.0
    %78 = vst [vmem:[%s74 + $0x1b0] sm:$0xff] 0.0
    %79 = vst [vmem:[%s74 + $0x1b8] sm:$0xff] 0.0
    %80 = vst [vmem:[%s74 + $0x1c0] sm:$0x3] 0.0
    %81 = vst [vmem:[#allocation2] sm:$0x1] 0.0
    %82 = vst [vmem:[#allocation2 + $0x18] sm:$0x1] 0.0
    %83 = vst [vmem:[#allocation2 + $0x30] sm:$0x1] 0.0
    %84 = vst [vmem:[#allocation2 + $0x48] sm:$0x1] 0.0
    %85 = vst [vmem:[#allocation2 + $0x60] sm:$0x1] 0.0
    %86 = vst [vmem:[#allocation2 + $0x78] sm:$0x1] 0.0
    %87 = vst [vmem:[#allocation2 + $0x90] sm:$0x1] 0.0
    %88 = vst [vmem:[#allocation2 + $0xa8] sm:$0x1] 0.0
    %89 = vst [vmem:[#allocation2 + $0xc0] sm:$0x1] 0.0
    %90 = vst [vmem:[#allocation2 + $0xd8] sm:$0x1] 0.0
    %91 = vst [vmem:[#allocation2 + $0xf0] sm:$0x1] 0.0
    %92 = vst [vmem:[#allocation2 + $0x108] sm:$0x1] 0.0
    %93 = vst [vmem:[#allocation2 + $0x120] sm:$0x1] 0.0
    %94 = vst [vmem:[#allocation2 + $0x138] sm:$0x1] 0.0
    %95 = vst [vmem:[#allocation2 + $0x150] sm:$0x1] 0.0
    %96 = vst [vmem:[#allocation2 + $0x168] sm:$0x1] 0.0
    %97 = vst [vmem:[#allocation2 + $0x180] sm:$0x1] 0.0
    %98 = vst [vmem:[#allocation2 + $0x198] sm:$0x1] 0.0
    %99 = vst [vmem:[#allocation2 + $0x1b0] sm:$0x1] 0.0
    %100 = vst [vmem:[#allocation2 + $0x1c8] sm:$0x1] 0.0
    %101 = vst [vmem:[#allocation2 + $0x1e0] sm:$0x1] 0.0
    %102 = vst [vmem:[#allocation2 + $0x1f8] sm:$0x1] 0.0
    %103 = vst [vmem:[#allocation2 + $0x210] sm:$0x1] 0.0
    %104 = vst [vmem:[#allocation2 + $0x228] sm:$0x1] 0.0
    %105 = vst [vmem:[#allocation2 + $0x240] sm:$0x1] 0.0
    %106 = vst [vmem:[#allocation2 + $0x258] sm:$0x1] 0.0
    %107 = vst [vmem:[#allocation2 + $0x270] sm:$0x1] 0.0
    %108 = vst [vmem:[#allocation2 + $0x288] sm:$0x1] 0.0
    %109 = vst [vmem:[#allocation2 + $0x2a0] sm:$0x1] 0.0
    %110 = vst [vmem:[#allocation2 + $0x2b8] sm:$0x1] 0.0
    %111 = vst [vmem:[#allocation2 + $0x2d0] sm:$0x1] 0.0
    %112 = vst [vmem:[#allocation2 + $0x2e8] sm:$0x1] 0.0
    %113 = vst [vmem:[#allocation2 + $0x300] sm:$0x1] 0.0
    %114 = vst [vmem:[#allocation2 + $0x318] sm:$0x1] 0.0
    %115 = vst [vmem:[#allocation2 + $0x330] sm:$0x1] 0.0
    %116 = vst [vmem:[#allocation2 + $0x348] sm:$0x1] 0.0
    %117 = vst [vmem:[#allocation2 + $0x11] sm:$0x1] 0.0
    %118 = vst [vmem:[#allocation2 + $0x29] sm:$0x1] 0.0
    %119 = vst [vmem:[#allocation2 + $0x41] sm:$0x1] 0.0
    %120 = vst [vmem:[#allocation2 + $0x59] sm:$0x1] 0.0
    %121 = vst [vmem:[#allocation2 + $0x71] sm:$0x1] 0.0
    %122 = vst [vmem:[#allocation2 + $0x89] sm:$0x1] 0.0
    %123 = vst [vmem:[#allocation2 + $0xa1] sm:$0x1] 0.0
    %124 = vst [vmem:[#allocation2 + $0xb9] sm:$0x1] 0.0
    %125 = vst [vmem:[#allocation2 + $0xd1] sm:$0x1] 0.0
    %126 = vst [vmem:[#allocation2 + $0xe9] sm:$0x1] 0.0
    %127 = vst [vmem:[#allocation2 + $0x101] sm:$0x1] 0.0
    %128 = vst [vmem:[#allocation2 + $0x119] sm:$0x1] 0.0
    %129 = vst [vmem:[#allocation2 + $0x131] sm:$0x1] 0.0
    %130 = vst [vmem:[#allocation2 + $0x149] sm:$0x1] 0.0
    %131 = vst [vmem:[#allocation2 + $0x161] sm:$0x1] 0.0
    %132 = vst [vmem:[#allocation2 + $0x179] sm:$0x1] 0.0
    %133 = vst [vmem:[#allocation2 + $0x191] sm:$0x1] 0.0
    %134 = vst [vmem:[#allocation2 + $0x1a9] sm:$0x1] 0.0
    %135 = vst [vmem:[#allocation2 + $0x1c1] sm:$0x1] 0.0
    %136 = vst [vmem:[#allocation2 + $0x1d9] sm:$0x1] 0.0
    %137 = vst [vmem:[#allocation2 + $0x1f1] sm:$0x1] 0.0
    %138 = vst [vmem:[#allocation2 + $0x209] sm:$0x1] 0.0
    %139 = vst [vmem:[#allocation2 + $0x221] sm:$0x1] 0.0
    %140 = vst [vmem:[#allocation2 + $0x239] sm:$0x1] 0.0
    %141 = vst [vmem:[#allocation2 + $0x251] sm:$0x1] 0.0
    %142 = vst [vmem:[#allocation2 + $0x269] sm:$0x1] 0.0
    %143 = vst [vmem:[#allocation2 + $0x281] sm:$0x1] 0.0
    %144 = vst [vmem:[#allocation2 + $0x299] sm:$0x1] 0.0
    %145 = vst [vmem:[#allocation2 + $0x2b1] sm:$0x1] 0.0
    %146 = vst [vmem:[#allocation2 + $0x2c9] sm:$0x1] 0.0
    %147 = vst [vmem:[#allocation2 + $0x2e1] sm:$0x1] 0.0
    %148 = vst [vmem:[#allocation2 + $0x2f9] sm:$0x1] 0.0
    %149 = vst [vmem:[#allocation2 + $0x311] sm:$0x1] 0.0
    %150 = vst [vmem:[#allocation2 + $0x329] sm:$0x1] 0.0
    %151 = vst [vmem:[#allocation2 + $0x341] sm:$0x1] 0.0
    %152 = vst [vmem:[#allocation2 + $0x359] sm:$0x1] 0.0
    %v153 = vld [vmem:[#allocation3] sm:$0xff]
    %v154 = vld [vmem:[#allocation3 + $0x8] sm:$0xff]
    %v155 = vld [vmem:[#allocation3 + $0x10] sm:$0xff]
    %v156 = vld [vmem:[#allocation3 + $0x18] sm:$0xff]
    %v157 = vld [vmem:[#allocation3 + $0x20] sm:$0xff]
    %v158 = vld [vmem:[#allocation3 + $0x28] sm:$0xff]
    %v159 = vld [vmem:[#allocation3 + $0x30] sm:$0xff]
    %v160 = vld [vmem:[#allocation3 + $0x38] sm:$0xff]
    %v161 = vld [vmem:[#allocation3 + $0x40] sm:$0xff]
    %v162 = vld [vmem:[#allocation3 + $0x48] sm:$0xff]
    %v163 = vld [vmem:[#allocation3 + $0x50] sm:$0xff]
    %v164 = vld [vmem:[#allocation3 + $0x58] sm:$0xff]
    %v165 = vld [vmem:[#allocation3 + $0x60] sm:$0xff]
    %v166 = vld [vmem:[#allocation3 + $0x68] sm:$0xff]
    %v167 = vld [vmem:[#allocation3 + $0x70] sm:$0xff]
    %v168 = vld [vmem:[#allocation3 + $0x78] sm:$0xff]
    %v169 = vld [vmem:[#allocation3 + $0x80] sm:$0xff]
    %v170 = vld [vmem:[#allocation3 + $0x88] sm:$0xff]
    %v171 = vld [vmem:[#allocation3 + $0x90] sm:$0xff]
    %v172 = vld [vmem:[#allocation3 + $0x98] sm:$0xff]
    %v173 = vld [vmem:[#allocation3 + $0xa0] sm:$0xff]
    %v174 = vld [vmem:[#allocation3 + $0xa8] sm:$0xff]
    %v175 = vld [vmem:[#allocation3 + $0xb0] sm:$0xff]
    %v176 = vld [vmem:[#allocation3 + $0xb8] sm:$0xff]
    %v177 = vld [vmem:[#allocation3 + $0xc0] sm:$0xff]
    %v178 = vld [vmem:[#allocation3 + $0xc8] sm:$0xff]
    %v179 = vld [vmem:[#allocation3 + $0xd0] sm:$0xff]
    %v180 = vld [vmem:[#allocation3 + $0xd8] sm:$0xff]
    %v181 = vld [vmem:[#allocation3 + $0xe0] sm:$0xff]
    %v182 = vld [vmem:[#allocation3 + $0xe8] sm:$0xff]
    %v183 = vld [vmem:[#allocation3 + $0xf0] sm:$0xff]
    %v184 = vld [vmem:[#allocation3 + $0xf8] sm:$0xff]
    %v185 = vld [vmem:[#allocation3 + $0x100] sm:$0xff]
    %v186 = vld [vmem:[#allocation3 + $0x108] sm:$0xff]
    %v187 = vld [vmem:[#allocation3 + $0x110] sm:$0xff]
    %v188 = vld [vmem:[#allocation3 + $0x118] sm:$0xff]
    %v189 = vld [vmem:[#allocation3 + $0x120] sm:$0xff]
    %v190 = vld [vmem:[#allocation3 + $0x128] sm:$0xff]
    %v191 = vld [vmem:[#allocation3 + $0x130] sm:$0xff]
    %v192 = vld [vmem:[#allocation3 + $0x138] sm:$0xff]
    %v193 = vld [vmem:[#allocation3 + $0x140] sm:$0xff]
    %v194 = vld [vmem:[#allocation3 + $0x148] sm:$0xff]
    %v195 = vld [vmem:[#allocation3 + $0x150] sm:$0xff]
    %v196 = vld [vmem:[#allocation3 + $0x158] sm:$0xff]
    %v197 = vld [vmem:[#allocation3 + $0x160] sm:$0xff]
    %v198 = vld [vmem:[#allocation3 + $0x168] sm:$0xff]
    %v199 = vld [vmem:[#allocation3 + $0x170] sm:$0xff]
    %v200 = vld [vmem:[#allocation3 + $0x178] sm:$0xff]
    %v201 = vld [vmem:[#allocation3 + $0x180] sm:$0xff]
    %v202 = vld [vmem:[#allocation3 + $0x188] sm:$0xff]
    %v203 = vld [vmem:[#allocation3 + $0x190] sm:$0xff]
    %v204 = vld [vmem:[#allocation3 + $0x198] sm:$0xff]
    %v205 = vld [vmem:[#allocation3 + $0x1a0] sm:$0xff]
    %v206 = vld [vmem:[#allocation3 + $0x1a8] sm:$0xff]
    %v207 = vld [vmem:[#allocation3 + $0x1b0] sm:$0xff]
    %v208 = vld [vmem:[#allocation3 + $0x1b8] sm:$0xff]
    %v209 = vld [vmem:[#allocation3 + $0x1c0] sm:$0xff]
    %v210 = vld [vmem:[#allocation3 + $0x1c8] sm:$0xff]
    %v211 = vld [vmem:[#allocation3 + $0x1d0] sm:$0xff]
    %v212 = vld [vmem:[#allocation3 + $0x1d8] sm:$0xff]
    %v213 = vld [vmem:[#allocation3 + $0x1e0] sm:$0xff]
    %v214 = vld [vmem:[#allocation3 + $0x1e8] sm:$0xff]
    %v215 = vld [vmem:[#allocation3 + $0x1f0] sm:$0xff]
    %v216 = vld [vmem:[#allocation3 + $0x1f8] sm:$0xff]
    %s217 = scalar_lea.vmem [#allocation2], 24
    %218 = vst [vmem:[%s217 + $0x1] sm:$0xff] %v153
    %219 = vst [vmem:[%s217 + $0x9] sm:$0xff] %v154
    %220 = vst [vmem:[%s217 + $0x19] sm:$0xff] %v155
    %221 = vst [vmem:[%s217 + $0x21] sm:$0xff] %v156
    %222 = vst [vmem:[%s217 + $0x31] sm:$0xff] %v157
    %223 = vst [vmem:[%s217 + $0x39] sm:$0xff] %v158
    %224 = vst [vmem:[%s217 + $0x49] sm:$0xff] %v159
    %225 = vst [vmem:[%s217 + $0x51] sm:$0xff] %v160
    %226 = vst [vmem:[%s217 + $0x61] sm:$0xff] %v161
    %227 = vst [vmem:[%s217 + $0x69] sm:$0xff] %v162
    %228 = vst [vmem:[%s217 + $0x79] sm:$0xff] %v163
    %229 = vst [vmem:[%s217 + $0x81] sm:$0xff] %v164
    %230 = vst [vmem:[%s217 + $0x91] sm:$0xff] %v165
    %231 = vst [vmem:[%s217 + $0x99] sm:$0xff] %v166
    %232 = vst [vmem:[%s217 + $0xa9] sm:$0xff] %v167
    %233 = vst [vmem:[%s217 + $0xb1] sm:$0xff] %v168
    %234 = vst [vmem:[%s217 + $0xc1] sm:$0xff] %v169
    %235 = vst [vmem:[%s217 + $0xc9] sm:$0xff] %v170
    %236 = vst [vmem:[%s217 + $0xd9] sm:$0xff] %v171
    %237 = vst [vmem:[%s217 + $0xe1] sm:$0xff] %v172
    %238 = vst [vmem:[%s217 + $0xf1] sm:$0xff] %v173
    %239 = vst [vmem:[%s217 + $0xf9] sm:$0xff] %v174
    %240 = vst [vmem:[%s217 + $0x109] sm:$0xff] %v175
    %241 = vst [vmem:[%s217 + $0x111] sm:$0xff] %v176
    %242 = vst [vmem:[%s217 + $0x121] sm:$0xff] %v177
    %243 = vst [vmem:[%s217 + $0x129] sm:$0xff] %v178
    %244 = vst [vmem:[%s217 + $0x139] sm:$0xff] %v179
    %245 = vst [vmem:[%s217 + $0x141] sm:$0xff] %v180
    %246 = vst [vmem:[%s217 + $0x151] sm:$0xff] %v181
    %247 = vst [vmem:[%s217 + $0x159] sm:$0xff] %v182
    %248 = vst [vmem:[%s217 + $0x169] sm:$0xff] %v183
    %249 = vst [vmem:[%s217 + $0x171] sm:$0xff] %v184
    %250 = vst [vmem:[%s217 + $0x1b1] sm:$0xff] %v185
    %251 = vst [vmem:[%s217 + $0x1b9] sm:$0xff] %v186
    %252 = vst [vmem:[%s217 + $0x1c9] sm:$0xff] %v187
    %253 = vst [vmem:[%s217 + $0x1d1] sm:$0xff] %v188
    %254 = vst [vmem:[%s217 + $0x1e1] sm:$0xff] %v189
    %255 = vst [vmem:[%s217 + $0x1e9] sm:$0xff] %v190
    %256 = vst [vmem:[%s217 + $0x1f9] sm:$0xff] %v191
    %257 = vst [vmem:[%s217 + $0x201] sm:$0xff] %v192
    %258 = vst [vmem:[%s217 + $0x211] sm:$0xff] %v193
    %259 = vst [vmem:[%s217 + $0x219] sm:$0xff] %v194
    %260 = vst [vmem:[%s217 + $0x229] sm:$0xff] %v195
    %261 = vst [vmem:[%s217 + $0x231] sm:$0xff] %v196
    %262 = vst [vmem:[%s217 + $0x241] sm:$0xff] %v197
    %263 = vst [vmem:[%s217 + $0x249] sm:$0xff] %v198
    %264 = vst [vmem:[%s217 + $0x259] sm:$0xff] %v199
    %265 = vst [vmem:[%s217 + $0x261] sm:$0xff] %v200
    %266 = vst [vmem:[%s217 + $0x271] sm:$0xff] %v201
    %267 = vst [vmem:[%s217 + $0x279] sm:$0xff] %v202
    %268 = vst [vmem:[%s217 + $0x289] sm:$0xff] %v203
    %269 = vst [vmem:[%s217 + $0x291] sm:$0xff] %v204
    %270 = vst [vmem:[%s217 + $0x2a1] sm:$0xff] %v205
    %271 = vst [vmem:[%s217 + $0x2a9] sm:$0xff] %v206
    %272 = vst [vmem:[%s217 + $0x2b9] sm:$0xff] %v207
    %273 = vst [vmem:[%s217 + $0x2c1] sm:$0xff] %v208
    %274 = vst [vmem:[%s217 + $0x2d1] sm:$0xff] %v209
    %275 = vst [vmem:[%s217 + $0x2d9] sm:$0xff] %v210
    %276 = vst [vmem:[%s217 + $0x2e9] sm:$0xff] %v211
    %277 = vst [vmem:[%s217 + $0x2f1] sm:$0xff] %v212
    %278 = vst [vmem:[%s217 + $0x301] sm:$0xff] %v213
    %279 = vst [vmem:[%s217 + $0x309] sm:$0xff] %v214
    %280 = vst [vmem:[%s217 + $0x319] sm:$0xff] %v215
    %281 = vst [vmem:[%s217 + $0x321] sm:$0xff] %v216
    %v282 = vld [vmem:[#allocation2] sm:$0xff]
    %v283 = vld [vmem:[#allocation2 + $0x8] sm:$0xff]
    %v284 = vld [vmem:[#allocation2 + $0x18] sm:$0xff]
    %v285 = vld [vmem:[#allocation2 + $0x20] sm:$0xff]
    %v286 = vld [vmem:[#allocation2 + $0x30] sm:$0xff]
    %v287 = vld [vmem:[#allocation2 + $0x38] sm:$0xff]
    %v288 = vld [vmem:[#allocation2 + $0x48] sm:$0xff]
    %v289 = vld [vmem:[#allocation2 + $0x50] sm:$0xff]
    %v290 = vld [vmem:[#allocation2 + $0x60] sm:$0xff]
    %v291 = vld [vmem:[#allocation2 + $0x68] sm:$0xff]
    %v292 = vld [vmem:[#allocation2 + $0x78] sm:$0xff]
    %v293 = vld [vmem:[#allocation2 + $0x80] sm:$0xff]
    %v294 = vld [vmem:[#allocation2 + $0x90] sm:$0xff]
    %v295 = vld [vmem:[#allocation2 + $0x98] sm:$0xff]
    %v296 = vld [vmem:[#allocation2 + $0xa8] sm:$0xff]
    %v297 = vld [vmem:[#allocation2 + $0xb0] sm:$0xff]
    %v298 = vld [vmem:[#allocation2 + $0xc0] sm:$0xff]
    %v299 = vld [vmem:[#allocation2 + $0xc8] sm:$0xff]
    %v300 = vld [vmem:[#allocation2 + $0xd8] sm:$0xff]
    %v301 = vld [vmem:[#allocation2 + $0xe0] sm:$0xff]
    %v302 = vld [vmem:[#allocation2 + $0xf0] sm:$0xff]
    %v303 = vld [vmem:[#allocation2 + $0xf8] sm:$0xff]
    %v304 = vld [vmem:[#allocation2 + $0x108] sm:$0xff]
    %v305 = vld [vmem:[#allocation2 + $0x110] sm:$0xff]
    %v306 = vld [vmem:[#allocation2 + $0x120] sm:$0xff]
    %v307 = vld [vmem:[#allocation2 + $0x128] sm:$0xff]
    %v308 = vld [vmem:[#allocation2 + $0x138] sm:$0xff]
    %v309 = vld [vmem:[#allocation2 + $0x140] sm:$0xff]
    %v310 = vld [vmem:[#allocation2 + $0x150] sm:$0xff]
    %v311 = vld [vmem:[#allocation2 + $0x158] sm:$0xff]
    %v312 = vld [vmem:[#allocation2 + $0x168] sm:$0xff]
    %v313 = vld [vmem:[#allocation2 + $0x170] sm:$0xff]
    %v314 = vld [vmem:[#allocation2 + $0x1b0] sm:$0xff]
    %v315 = vld [vmem:[#allocation2 + $0x1b8] sm:$0xff]
    %v316 = vld [vmem:[#allocation2 + $0x1c8] sm:$0xff]
    %v317 = vld [vmem:[#allocation2 + $0x1d0] sm:$0xff]
    %v318 = vld [vmem:[#allocation2 + $0x1e0] sm:$0xff]
    %v319 = vld [vmem:[#allocation2 + $0x1e8] sm:$0xff]
    %v320 = vld [vmem:[#allocation2 + $0x1f8] sm:$0xff]
    %v321 = vld [vmem:[#allocation2 + $0x200] sm:$0xff]
    %v322 = vld [vmem:[#allocation2 + $0x210] sm:$0xff]
    %v323 = vld [vmem:[#allocation2 + $0x218] sm:$0xff]
    %v324 = vld [vmem:[#allocation2 + $0x228] sm:$0xff]
    %v325 = vld [vmem:[#allocation2 + $0x230] sm:$0xff]
    %v326 = vld [vmem:[#allocation2 + $0x240] sm:$0xff]
    %v327 = vld [vmem:[#allocation2 + $0x248] sm:$0xff]
    %v328 = vld [vmem:[#allocation2 + $0x258] sm:$0xff]
    %v329 = vld [vmem:[#allocation2 + $0x260] sm:$0xff]
    %v330 = vld [vmem:[#allocation2 + $0x270] sm:$0xff]
    %v331 = vld [vmem:[#allocation2 + $0x278] sm:$0xff]
    %v332 = vld [vmem:[#allocation2 + $0x288] sm:$0xff]
    %v333 = vld [vmem:[#allocation2 + $0x290] sm:$0xff]
    %v334 = vld [vmem:[#allocation2 + $0x2a0] sm:$0xff]
    %v335 = vld [vmem:[#allocation2 + $0x2a8] sm:$0xff]
    %v336 = vld [vmem:[#allocation2 + $0x2b8] sm:$0xff]
    %v337 = vld [vmem:[#allocation2 + $0x2c0] sm:$0xff]
    %v338 = vld [vmem:[#allocation2 + $0x2d0] sm:$0xff]
    %v339 = vld [vmem:[#allocation2 + $0x2d8] sm:$0xff]
    %v340 = vld [vmem:[#allocation2 + $0x2e8] sm:$0xff]
    %v341 = vld [vmem:[#allocation2 + $0x2f0] sm:$0xff]
    %v342 = vld [vmem:[#allocation2 + $0x300] sm:$0xff]
    %v343 = vld [vmem:[#allocation2 + $0x308] sm:$0xff]
    %v344 = vld [vmem:[#allocation2 + $0x318] sm:$0xff]
    %v345 = vld [vmem:[#allocation2 + $0x320] sm:$0xff]
    %v346 = vld [vmem:[#allocation6] sm:$0xff]
    %v347 = vld [vmem:[#allocation6 + $0x8] sm:$0xff]
    %v348 = vld [vmem:[#allocation6 + $0x10] sm:$0xff]
    %v349 = vld [vmem:[#allocation6 + $0x18] sm:$0xff]
    %v350 = vld [vmem:[#allocation6 + $0x20] sm:$0xff]
    %v351 = vld [vmem:[#allocation6 + $0x28] sm:$0xff]
    %v352 = vld [vmem:[#allocation6 + $0x30] sm:$0xff]
    %v353 = vld [vmem:[#allocation6 + $0x38] sm:$0xff]
    %v354 = vld [vmem:[#allocation6 + $0x40] sm:$0xff]
    %v355 = vld [vmem:[#allocation6 + $0x48] sm:$0xff]
    %v356 = vld [vmem:[#allocation6 + $0x50] sm:$0xff]
    %v357 = vld [vmem:[#allocation6 + $0x58] sm:$0xff]
    %v358 = vld [vmem:[#allocation6 + $0x60] sm:$0xff]
    %v359 = vld [vmem:[#allocation6 + $0x68] sm:$0xff]
    %v360 = vld [vmem:[#allocation6 + $0x70] sm:$0xff]
    %v361 = vld [vmem:[#allocation6 + $0x78] sm:$0xff]
    %v362 = vld [vmem:[#allocation2 + $0x1] sm:$0xff]
    %v363 = vld [vmem:[#allocation2 + $0x9] sm:$0xff]
    %v364 = vld [vmem:[#allocation2 + $0x19] sm:$0xff]
    %v365 = vld [vmem:[#allocation2 + $0x21] sm:$0xff]
    %v366 = vld [vmem:[#allocation2 + $0x31] sm:$0xff]
    %v367 = vld [vmem:[#allocation2 + $0x39] sm:$0xff]
    %v368 = vld [vmem:[#allocation2 + $0x49] sm:$0xff]
    %v369 = vld [vmem:[#allocation2 + $0x51] sm:$0xff]
    %v370 = vld [vmem:[#allocation2 + $0x61] sm:$0xff]
    %v371 = vld [vmem:[#allocation2 + $0x69] sm:$0xff]
    %v372 = vld [vmem:[#allocation2 + $0x79] sm:$0xff]
    %v373 = vld [vmem:[#allocation2 + $0x81] sm:$0xff]
    %v374 = vld [vmem:[#allocation2 + $0x91] sm:$0xff]
    %v375 = vld [vmem:[#allocation2 + $0x99] sm:$0xff]
    %v376 = vld [vmem:[#allocation2 + $0xa9] sm:$0xff]
    %v377 = vld [vmem:[#allocation2 + $0xb1] sm:$0xff]
    %v378 = vld [vmem:[#allocation2 + $0xc1] sm:$0xff]
    %v379 = vld [vmem:[#allocation2 + $0xc9] sm:$0xff]
    %v380 = vld [vmem:[#allocation2 + $0xd9] sm:$0xff]
    %v381 = vld [vmem:[#allocation2 + $0xe1] sm:$0xff]
    %v382 = vld [vmem:[#allocation2 + $0xf1] sm:$0xff]
    %v383 = vld [vmem:[#allocation2 + $0xf9] sm:$0xff]
    %v384 = vld [vmem:[#allocation2 + $0x109] sm:$0xff]
    %v385 = vld [vmem:[#allocation2 + $0x111] sm:$0xff]
    %v386 = vld [vmem:[#allocation2 + $0x121] sm:$0xff]
    %v387 = vld [vmem:[#allocation2 + $0x129] sm:$0xff]
    %v388 = vld [vmem:[#allocation2 + $0x139] sm:$0xff]
    %v389 = vld [vmem:[#allocation2 + $0x141] sm:$0xff]
    %v390 = vld [vmem:[#allocation2 + $0x151] sm:$0xff]
    %v391 = vld [vmem:[#allocation2 + $0x159] sm:$0xff]
    %v392 = vld [vmem:[#allocation2 + $0x169] sm:$0xff]
    %v393 = vld [vmem:[#allocation2 + $0x171] sm:$0xff]
    %v394 = vld [vmem:[#allocation2 + $0x1b1] sm:$0xff]
    %v395 = vld [vmem:[#allocation2 + $0x1b9] sm:$0xff]
    %v396 = vld [vmem:[#allocation2 + $0x1c9] sm:$0xff]
    %v397 = vld [vmem:[#allocation2 + $0x1d1] sm:$0xff]
    %v398 = vld [vmem:[#allocation2 + $0x1e1] sm:$0xff]
    %v399 = vld [vmem:[#allocation2 + $0x1e9] sm:$0xff]
    %v400 = vld [vmem:[#allocation2 + $0x1f9] sm:$0xff]
    %v401 = vld [vmem:[#allocation2 + $0x201] sm:$0xff]
    %v402 = vld [vmem:[#allocation2 + $0x211] sm:$0xff]
    %v403 = vld [vmem:[#allocation2 + $0x219] sm:$0xff]
    %v404 = vld [vmem:[#allocation2 + $0x229] sm:$0xff]
    %v405 = vld [vmem:[#allocation2 + $0x231] sm:$0xff]
    %v406 = vld [vmem:[#allocation2 + $0x241] sm:$0xff]
    %v407 = vld [vmem:[#allocation2 + $0x249] sm:$0xff]
    %v408 = vld [vmem:[#allocation2 + $0x259] sm:$0xff]
    %v409 = vld [vmem:[#allocation2 + $0x261] sm:$0xff]
    %v410 = vld [vmem:[#allocation2 + $0x271] sm:$0xff]
    %v411 = vld [vmem:[#allocation2 + $0x279] sm:$0xff]
    %v412 = vld [vmem:[#allocation2 + $0x289] sm:$0xff]
    %v413 = vld [vmem:[#allocation2 + $0x291] sm:$0xff]
    %v414 = vld [vmem:[#allocation2 + $0x2a1] sm:$0xff]
    %v415 = vld [vmem:[#allocation2 + $0x2a9] sm:$0xff]
    %v416 = vld [vmem:[#allocation2 + $0x2b9] sm:$0xff]
    %v417 = vld [vmem:[#allocation2 + $0x2c1] sm:$0xff]
    %v418 = vld [vmem:[#allocation2 + $0x2d1] sm:$0xff]
    %v419 = vld [vmem:[#allocation2 + $0x2d9] sm:$0xff]
    %v420 = vld [vmem:[#allocation2 + $0x2e9] sm:$0xff]
    %v421 = vld [vmem:[#allocation2 + $0x2f1] sm:$0xff]
    %v422 = vld [vmem:[#allocation2 + $0x301] sm:$0xff]
    %v423 = vld [vmem:[#allocation2 + $0x309] sm:$0xff]
    %v424 = vld [vmem:[#allocation2 + $0x319] sm:$0xff]
    %v425 = vld [vmem:[#allocation2 + $0x321] sm:$0xff]
    %s426 = scalar_lea.vmem [#allocation6], 128
    %v427 = vld [vmem:[%s426] sm:$0xff]
    %v428 = vld [vmem:[%s426 + $0x8] sm:$0xff]
    %v429 = vld [vmem:[%s426 + $0x10] sm:$0xff]
    %v430 = vld [vmem:[%s426 + $0x18] sm:$0xff]
    %v431 = vld [vmem:[%s426 + $0x20] sm:$0xff]
    %v432 = vld [vmem:[%s426 + $0x28] sm:$0xff]
    %v433 = vld [vmem:[%s426 + $0x30] sm:$0xff]
    %v434 = vld [vmem:[%s426 + $0x38] sm:$0xff]
    %v435 = vld [vmem:[%s426 + $0x40] sm:$0xff]
    %v436 = vld [vmem:[%s426 + $0x48] sm:$0xff]
    %v437 = vld [vmem:[%s426 + $0x50] sm:$0xff]
    %v438 = vld [vmem:[%s426 + $0x58] sm:$0xff]
    %v439 = vld [vmem:[%s426 + $0x60] sm:$0xff]
    %v440 = vld [vmem:[%s426 + $0x68] sm:$0xff]
    %v441 = vld [vmem:[%s426 + $0x70] sm:$0xff]
    %v442 = vld [vmem:[%s426 + $0x78] sm:$0xff]
    %443 = vrot.lane.b32.xlu0 %v362, 4
    %v444 = vpop.permute.xlu0 %443
    %445 = vrot.lane.b32.xlu0 %v363, 4
    %v446 = vpop.permute.xlu0 %445
    %447 = vrot.lane.b32.xlu0 %v364, 4
    %v448 = vpop.permute.xlu0 %447
    %449 = vrot.lane.b32.xlu0 %v365, 4
    %v450 = vpop.permute.xlu0 %449
    %451 = vrot.lane.b32.xlu0 %v366, 4
    %v452 = vpop.permute.xlu0 %451
    %453 = vrot.lane.b32.xlu0 %v367, 4
    %v454 = vpop.permute.xlu0 %453
    %455 = vrot.lane.b32.xlu0 %v368, 4
    %v456 = vpop.permute.xlu0 %455
    %457 = vrot.lane.b32.xlu0 %v369, 4
    %v458 = vpop.permute.xlu0 %457
    %459 = vrot.lane.b32.xlu0 %v370, 4
    %v460 = vpop.permute.xlu0 %459
    %461 = vrot.lane.b32.xlu0 %v371, 4
    %v462 = vpop.permute.xlu0 %461
    %463 = vrot.lane.b32.xlu0 %v372, 4
    %v464 = vpop.permute.xlu0 %463
    %465 = vrot.lane.b32.xlu0 %v373, 4
    %v466 = vpop.permute.xlu0 %465
    %467 = vrot.lane.b32.xlu0 %v374, 4
    %v468 = vpop.permute.xlu0 %467
    %469 = vrot.lane.b32.xlu0 %v375, 4
    %v470 = vpop.permute.xlu0 %469
    %471 = vrot.lane.b32.xlu0 %v376, 4
    %v472 = vpop.permute.xlu0 %471
    %473 = vrot.lane.b32.xlu0 %v377, 4
    %v474 = vpop.permute.xlu0 %473
    %475 = vrot.lane.b32.xlu0 %v378, 4
    %v476 = vpop.permute.xlu0 %475
    %477 = vrot.lane.b32.xlu0 %v379, 4
    %v478 = vpop.permute.xlu0 %477
    %479 = vrot.lane.b32.xlu0 %v380, 4
    %v480 = vpop.permute.xlu0 %479
    %481 = vrot.lane.b32.xlu0 %v381, 4
    %v482 = vpop.permute.xlu0 %481
    %483 = vrot.lane.b32.xlu0 %v382, 4
    %v484 = vpop.permute.xlu0 %483
    %485 = vrot.lane.b32.xlu0 %v383, 4
    %v486 = vpop.permute.xlu0 %485
    %487 = vrot.lane.b32.xlu0 %v384, 4
    %v488 = vpop.permute.xlu0 %487
    %489 = vrot.lane.b32.xlu0 %v385, 4
    %v490 = vpop.permute.xlu0 %489
    %491 = vrot.lane.b32.xlu0 %v386, 4
    %v492 = vpop.permute.xlu0 %491
    %493 = vrot.lane.b32.xlu0 %v387, 4
    %v494 = vpop.permute.xlu0 %493
    %495 = vrot.lane.b32.xlu0 %v388, 4
    %v496 = vpop.permute.xlu0 %495
    %497 = vrot.lane.b32.xlu0 %v389, 4
    %v498 = vpop.permute.xlu0 %497
    %499 = vrot.lane.b32.xlu0 %v390, 4
    %v500 = vpop.permute.xlu0 %499
    %501 = vrot.lane.b32.xlu0 %v391, 4
    %v502 = vpop.permute.xlu0 %501
    %503 = vrot.lane.b32.xlu0 %v392, 4
    %v504 = vpop.permute.xlu0 %503
    %505 = vrot.lane.b32.xlu0 %v393, 4
    %v506 = vpop.permute.xlu0 %505
    %507 = vrot.lane.b32.xlu0 %v394, 4
    %v508 = vpop.permute.xlu0 %507
    %509 = vrot.lane.b32.xlu0 %v395, 4
    %v510 = vpop.permute.xlu0 %509
    %511 = vrot.lane.b32.xlu0 %v396, 4
    %v512 = vpop.permute.xlu0 %511
    %513 = vrot.lane.b32.xlu0 %v397, 4
    %v514 = vpop.permute.xlu0 %513
    %515 = vrot.lane.b32.xlu0 %v398, 4
    %v516 = vpop.permute.xlu0 %515
    %517 = vrot.lane.b32.xlu0 %v399, 4
    %v518 = vpop.permute.xlu0 %517
    %519 = vrot.lane.b32.xlu0 %v400, 4
    %v520 = vpop.permute.xlu0 %519
    %521 = vrot.lane.b32.xlu0 %v401, 4
    %v522 = vpop.permute.xlu0 %521
    %523 = vrot.lane.b32.xlu0 %v402, 4
    %v524 = vpop.permute.xlu0 %523
    %525 = vrot.lane.b32.xlu0 %v403, 4
    %v526 = vpop.permute.xlu0 %525
    %527 = vrot.lane.b32.xlu0 %v404, 4
    %v528 = vpop.permute.xlu0 %527
    %529 = vrot.lane.b32.xlu0 %v405, 4
    %v530 = vpop.permute.xlu0 %529
    %531 = vrot.lane.b32.xlu0 %v406, 4
    %v532 = vpop.permute.xlu0 %531
    %533 = vrot.lane.b32.xlu0 %v407, 4
    %v534 = vpop.permute.xlu0 %533
    %535 = vrot.lane.b32.xlu0 %v408, 4
    %v536 = vpop.permute.xlu0 %535
    %537 = vrot.lane.b32.xlu0 %v409, 4
    %v538 = vpop.permute.xlu0 %537
    %539 = vrot.lane.b32.xlu0 %v410, 4
    %v540 = vpop.permute.xlu0 %539
    %541 = vrot.lane.b32.xlu0 %v411, 4
    %v542 = vpop.permute.xlu0 %541
    %543 = vrot.lane.b32.xlu0 %v412, 4
    %v544 = vpop.permute.xlu0 %543
    %545 = vrot.lane.b32.xlu0 %v413, 4
    %v546 = vpop.permute.xlu0 %545
    %547 = vrot.lane.b32.xlu0 %v414, 4
    %v548 = vpop.permute.xlu0 %547
    %549 = vrot.lane.b32.xlu0 %v415, 4
    %v550 = vpop.permute.xlu0 %549
    %551 = vrot.lane.b32.xlu0 %v416, 4
    %v552 = vpop.permute.xlu0 %551
    %553 = vrot.lane.b32.xlu0 %v417, 4
    %v554 = vpop.permute.xlu0 %553
    %555 = vrot.lane.b32.xlu0 %v418, 4
    %v556 = vpop.permute.xlu0 %555
    %557 = vrot.lane.b32.xlu0 %v419, 4
    %v558 = vpop.permute.xlu0 %557
    %559 = vrot.lane.b32.xlu0 %v420, 4
    %v560 = vpop.permute.xlu0 %559
    %561 = vrot.lane.b32.xlu0 %v421, 4
    %v562 = vpop.permute.xlu0 %561
    %563 = vrot.lane.b32.xlu0 %v422, 4
    %v564 = vpop.permute.xlu0 %563
    %565 = vrot.lane.b32.xlu0 %v423, 4
    %v566 = vpop.permute.xlu0 %565
    %567 = vrot.lane.b32.xlu0 %v424, 4
    %v568 = vpop.permute.xlu0 %567
    %569 = vrot.lane.b32.xlu0 %v425, 4
    %v570 = vpop.permute.xlu0 %569
    %571 = vrot.lane.b32.xlu0 %v427, 4
    %v572 = vpop.permute.xlu0 %571
    %573 = vrot.lane.b32.xlu0 %v428, 4
    %v574 = vpop.permute.xlu0 %573
    %575 = vrot.lane.b32.xlu0 %v429, 4
    %v576 = vpop.permute.xlu0 %575
    %577 = vrot.lane.b32.xlu0 %v430, 4
    %v578 = vpop.permute.xlu0 %577
    %579 = vrot.lane.b32.xlu0 %v431, 4
    %v580 = vpop.permute.xlu0 %579
    %581 = vrot.lane.b32.xlu0 %v432, 4
    %v582 = vpop.permute.xlu0 %581
    %583 = vrot.lane.b32.xlu0 %v433, 4
    %v584 = vpop.permute.xlu0 %583
    %585 = vrot.lane.b32.xlu0 %v434, 4
    %v586 = vpop.permute.xlu0 %585
    %587 = vrot.lane.b32.xlu0 %v435, 4
    %v588 = vpop.permute.xlu0 %587
    %589 = vrot.lane.b32.xlu0 %v436, 4
    %v590 = vpop.permute.xlu0 %589
    %591 = vrot.lane.b32.xlu0 %v437, 4
    %v592 = vpop.permute.xlu0 %591
    %593 = vrot.lane.b32.xlu0 %v438, 4
    %v594 = vpop.permute.xlu0 %593
    %595 = vrot.lane.b32.xlu0 %v439, 4
    %v596 = vpop.permute.xlu0 %595
    %597 = vrot.lane.b32.xlu0 %v440, 4
    %v598 = vpop.permute.xlu0 %597
    %599 = vrot.lane.b32.xlu0 %v441, 4
    %v600 = vpop.permute.xlu0 %599
    %601 = vrot.lane.b32.xlu0 %v442, 4
    %v602 = vpop.permute.xlu0 %601
    %v603 = vadd.f32 %v282, %v444
    %v604 = vadd.f32 %v283, %v446
    %v605 = vadd.f32 %v284, %v448
    %v606 = vadd.f32 %v285, %v450
    %v607 = vadd.f32 %v286, %v452
    %v608 = vadd.f32 %v287, %v454
    %v609 = vadd.f32 %v288, %v456
    %v610 = vadd.f32 %v289, %v458
    %v611 = vadd.f32 %v290, %v460
    %v612 = vadd.f32 %v291, %v462
    %v613 = vadd.f32 %v292, %v464
    %v614 = vadd.f32 %v293, %v466
    %v615 = vadd.f32 %v294, %v468
    %v616 = vadd.f32 %v295, %v470
    %v617 = vadd.f32 %v296, %v472
    %v618 = vadd.f32 %v297, %v474
    %v619 = vadd.f32 %v298, %v476
    %v620 = vadd.f32 %v299, %v478
    %v621 = vadd.f32 %v300, %v480
    %v622 = vadd.f32 %v301, %v482
    %v623 = vadd.f32 %v302, %v484
    %v624 = vadd.f32 %v303, %v486
    %v625 = vadd.f32 %v304, %v488
    %v626 = vadd.f32 %v305, %v490
    %v627 = vadd.f32 %v306, %v492
    %v628 = vadd.f32 %v307, %v494
    %v629 = vadd.f32 %v308, %v496
    %v630 = vadd.f32 %v309, %v498
    %v631 = vadd.f32 %v310, %v500
    %v632 = vadd.f32 %v311, %v502
    %v633 = vadd.f32 %v312, %v504
    %v634 = vadd.f32 %v313, %v506
    %v635 = vadd.f32 %v314, %v508
    %v636 = vadd.f32 %v315, %v510
    %v637 = vadd.f32 %v316, %v512
    %v638 = vadd.f32 %v317, %v514
    %v639 = vadd.f32 %v318, %v516
    %v640 = vadd.f32 %v319, %v518
    %v641 = vadd.f32 %v320, %v520
    %v642 = vadd.f32 %v321, %v522
    %v643 = vadd.f32 %v322, %v524
    %v644 = vadd.f32 %v323, %v526
    %v645 = vadd.f32 %v324, %v528
    %v646 = vadd.f32 %v325, %v530
    %v647 = vadd.f32 %v326, %v532
    %v648 = vadd.f32 %v327, %v534
    %v649 = vadd.f32 %v328, %v536
    %v650 = vadd.f32 %v329, %v538
    %v651 = vadd.f32 %v330, %v540
    %v652 = vadd.f32 %v331, %v542
    %v653 = vadd.f32 %v332, %v544
    %v654 = vadd.f32 %v333, %v546
    %v655 = vadd.f32 %v334, %v548
    %v656 = vadd.f32 %v335, %v550
    %v657 = vadd.f32 %v336, %v552
    %v658 = vadd.f32 %v337, %v554
    %v659 = vadd.f32 %v338, %v556
    %v660 = vadd.f32 %v339, %v558
    %v661 = vadd.f32 %v340, %v560
    %v662 = vadd.f32 %v341, %v562
    %v663 = vadd.f32 %v342, %v564
    %v664 = vadd.f32 %v343, %v566
    %v665 = vadd.f32 %v344, %v568
    %v666 = vadd.f32 %v345, %v570
    %v667 = vadd.f32 %v346, %v572
    %v668 = vadd.f32 %v347, %v574
    %v669 = vadd.f32 %v348, %v576
    %v670 = vadd.f32 %v349, %v578
    %v671 = vadd.f32 %v350, %v580
    %v672 = vadd.f32 %v351, %v582
    %v673 = vadd.f32 %v352, %v584
    %v674 = vadd.f32 %v353, %v586
    %v675 = vadd.f32 %v354, %v588
    %v676 = vadd.f32 %v355, %v590
    %v677 = vadd.f32 %v356, %v592
    %v678 = vadd.f32 %v357, %v594
    %v679 = vadd.f32 %v358, %v596
    %v680 = vadd.f32 %v359, %v598
    %v681 = vadd.f32 %v360, %v600
    %v682 = vadd.f32 %v361, %v602
    %v683 = vld [vmem:[#allocation2 + $0x2] sm:$0xff]
    %v684 = vld [vmem:[#allocation2 + $0xa] sm:$0xff]
    %v685 = vld [vmem:[#allocation2 + $0x1a] sm:$0xff]
    %v686 = vld [vmem:[#allocation2 + $0x22] sm:$0xff]
    %v687 = vld [vmem:[#allocation2 + $0x32] sm:$0xff]
    %v688 = vld [vmem:[#allocation2 + $0x3a] sm:$0xff]
    %v689 = vld [vmem:[#allocation2 + $0x4a] sm:$0xff]
    %v690 = vld [vmem:[#allocation2 + $0x52] sm:$0xff]
    %v691 = vld [vmem:[#allocation2 + $0x62] sm:$0xff]
    %v692 = vld [vmem:[#allocation2 + $0x6a] sm:$0xff]
    %v693 = vld [vmem:[#allocation2 + $0x7a] sm:$0xff]
    %v694 = vld [vmem:[#allocation2 + $0x82] sm:$0xff]
    %v695 = vld [vmem:[#allocation2 + $0x92] sm:$0xff]
    %v696 = vld [vmem:[#allocation2 + $0x9a] sm:$0xff]
    %v697 = vld [vmem:[#allocation2 + $0xaa] sm:$0xff]
    %v698 = vld [vmem:[#allocation2 + $0xb2] sm:$0xff]
    %v699 = vld [vmem:[#allocation2 + $0xc2] sm:$0xff]
    %v700 = vld [vmem:[#allocation2 + $0xca] sm:$0xff]
    %v701 = vld [vmem:[#allocation2 + $0xda] sm:$0xff]
    %v702 = vld [vmem:[#allocation2 + $0xe2] sm:$0xff]
    %v703 = vld [vmem:[#allocation2 + $0xf2] sm:$0xff]
    %v704 = vld [vmem:[#allocation2 + $0xfa] sm:$0xff]
    %v705 = vld [vmem:[#allocation2 + $0x10a] sm:$0xff]
    %v706 = vld [vmem:[#allocation2 + $0x112] sm:$0xff]
    %v707 = vld [vmem:[#allocation2 + $0x122] sm:$0xff]
    %v708 = vld [vmem:[#allocation2 + $0x12a] sm:$0xff]
    %v709 = vld [vmem:[#allocation2 + $0x13a] sm:$0xff]
    %v710 = vld [vmem:[#allocation2 + $0x142] sm:$0xff]
    %v711 = vld [vmem:[#allocation2 + $0x152] sm:$0xff]
    %v712 = vld [vmem:[#allocation2 + $0x15a] sm:$0xff]
    %v713 = vld [vmem:[#allocation2 + $0x16a] sm:$0xff]
    %v714 = vld [vmem:[#allocation2 + $0x172] sm:$0xff]
    %v715 = vld [vmem:[#allocation2 + $0x1b2] sm:$0xff]
    %v716 = vld [vmem:[#allocation2 + $0x1ba] sm:$0xff]
    %v717 = vld [vmem:[#allocation2 + $0x1ca] sm:$0xff]
    %v718 = vld [vmem:[#allocation2 + $0x1d2] sm:$0xff]
    %v719 = vld [vmem:[#allocation2 + $0x1e2] sm:$0xff]
    %v720 = vld [vmem:[#allocation2 + $0x1ea] sm:$0xff]
    %v721 = vld [vmem:[#allocation2 + $0x1fa] sm:$0xff]
    %v722 = vld [vmem:[#allocation2 + $0x202] sm:$0xff]
    %v723 = vld [vmem:[#allocation2 + $0x212] sm:$0xff]
    %v724 = vld [vmem:[#allocation2 + $0x21a] sm:$0xff]
    %v725 = vld [vmem:[#allocation2 + $0x22a] sm:$0xff]
    %v726 = vld [vmem:[#allocation2 + $0x232] sm:$0xff]
    %v727 = vld [vmem:[#allocation2 + $0x242] sm:$0xff]
    %v728 = vld [vmem:[#allocation2 + $0x24a] sm:$0xff]
    %v729 = vld [vmem:[#allocation2 + $0x25a] sm:$0xff]
    %v730 = vld [vmem:[#allocation2 + $0x262] sm:$0xff]
    %v731 = vld [vmem:[#allocation2 + $0x272] sm:$0xff]
    %v732 = vld [vmem:[#allocation2 + $0x27a] sm:$0xff]
    %v733 = vld [vmem:[#allocation2 + $0x28a] sm:$0xff]
    %v734 = vld [vmem:[#allocation2 + $0x292] sm:$0xff]
    %v735 = vld [vmem:[#allocation2 + $0x2a2] sm:$0xff]
    %v736 = vld [vmem:[#allocation2 + $0x2aa] sm:$0xff]
    %v737 = vld [vmem:[#allocation2 + $0x2ba] sm:$0xff]
    %v738 = vld [vmem:[#allocation2 + $0x2c2] sm:$0xff]
    %v739 = vld [vmem:[#allocation2 + $0x2d2] sm:$0xff]
    %v740 = vld [vmem:[#allocation2 + $0x2da] sm:$0xff]
    %v741 = vld [vmem:[#allocation2 + $0x2ea] sm:$0xff]
    %v742 = vld [vmem:[#allocation2 + $0x2f2] sm:$0xff]
    %v743 = vld [vmem:[#allocation2 + $0x302] sm:$0xff]
    %v744 = vld [vmem:[#allocation2 + $0x30a] sm:$0xff]
    %v745 = vld [vmem:[#allocation2 + $0x31a] sm:$0xff]
    %v746 = vld [vmem:[#allocation2 + $0x322] sm:$0xff]
    %s747 = scalar_lea.vmem [#allocation6], 256
    %v748 = vld [vmem:[%s747] sm:$0xff]
    %v749 = vld [vmem:[%s747 + $0x8] sm:$0xff]
    %v750 = vld [vmem:[%s747 + $0x10] sm:$0xff]
    %v751 = vld [vmem:[%s747 + $0x18] sm:$0xff]
    %v752 = vld [vmem:[%s747 + $0x20] sm:$0xff]
    %v753 = vld [vmem:[%s747 + $0x28] sm:$0xff]
    %v754 = vld [vmem:[%s747 + $0x30] sm:$0xff]
    %v755 = vld [vmem:[%s747 + $0x38] sm:$0xff]
    %v756 = vld [vmem:[%s747 + $0x40] sm:$0xff]
    %v757 = vld [vmem:[%s747 + $0x48] sm:$0xff]
    %v758 = vld [vmem:[%s747 + $0x50] sm:$0xff]
    %v759 = vld [vmem:[%s747 + $0x58] sm:$0xff]
    %v760 = vld [vmem:[%s747 + $0x60] sm:$0xff]
    %v761 = vld [vmem:[%s747 + $0x68] sm:$0xff]
    %v762 = vld [vmem:[%s747 + $0x70] sm:$0xff]
    %v763 = vld [vmem:[%s747 + $0x78] sm:$0xff]
    %764 = vrot.lane.b32.xlu0 %v683, 8
    %v765 = vpop.permute.xlu0 %764
    %766 = vrot.lane.b32.xlu0 %v684, 8
    %v767 = vpop.permute.xlu0 %766
    %768 = vrot.lane.b32.xlu0 %v685, 8
    %v769 = vpop.permute.xlu0 %768
    %770 = vrot.lane.b32.xlu0 %v686, 8
    %v771 = vpop.permute.xlu0 %770
    %772 = vrot.lane.b32.xlu0 %v687, 8
    %v773 = vpop.permute.xlu0 %772
    %774 = vrot.lane.b32.xlu0 %v688, 8
    %v775 = vpop.permute.xlu0 %774
    %776 = vrot.lane.b32.xlu0 %v689, 8
    %v777 = vpop.permute.xlu0 %776
    %778 = vrot.lane.b32.xlu0 %v690, 8
    %v779 = vpop.permute.xlu0 %778
    %780 = vrot.lane.b32.xlu0 %v691, 8
    %v781 = vpop.permute.xlu0 %780
    %782 = vrot.lane.b32.xlu0 %v692, 8
    %v783 = vpop.permute.xlu0 %782
    %784 = vrot.lane.b32.xlu0 %v693, 8
    %v785 = vpop.permute.xlu0 %784
    %786 = vrot.lane.b32.xlu0 %v694, 8
    %v787 = vpop.permute.xlu0 %786
    %788 = vrot.lane.b32.xlu0 %v695, 8
    %v789 = vpop.permute.xlu0 %788
    %790 = vrot.lane.b32.xlu0 %v696, 8
    %v791 = vpop.permute.xlu0 %790
    %792 = vrot.lane.b32.xlu0 %v697, 8
    %v793 = vpop.permute.xlu0 %792
    %794 = vrot.lane.b32.xlu0 %v698, 8
    %v795 = vpop.permute.xlu0 %794
    %796 = vrot.lane.b32.xlu0 %v699, 8
    %v797 = vpop.permute.xlu0 %796
    %798 = vrot.lane.b32.xlu0 %v700, 8
    %v799 = vpop.permute.xlu0 %798
    %800 = vrot.lane.b32.xlu0 %v701, 8
    %v801 = vpop.permute.xlu0 %800
    %802 = vrot.lane.b32.xlu0 %v702, 8
    %v803 = vpop.permute.xlu0 %802
    %804 = vrot.lane.b32.xlu0 %v703, 8
    %v805 = vpop.permute.xlu0 %804
    %806 = vrot.lane.b32.xlu0 %v704, 8
    %v807 = vpop.permute.xlu0 %806
    %808 = vrot.lane.b32.xlu0 %v705, 8
    %v809 = vpop.permute.xlu0 %808
    %810 = vrot.lane.b32.xlu0 %v706, 8
    %v811 = vpop.permute.xlu0 %810
    %812 = vrot.lane.b32.xlu0 %v707, 8
    %v813 = vpop.permute.xlu0 %812
    %814 = vrot.lane.b32.xlu0 %v708, 8
    %v815 = vpop.permute.xlu0 %814
    %816 = vrot.lane.b32.xlu0 %v709, 8
    %v817 = vpop.permute.xlu0 %816
    %818 = vrot.lane.b32.xlu0 %v710, 8
    %v819 = vpop.permute.xlu0 %818
    %820 = vrot.lane.b32.xlu0 %v711, 8
    %v821 = vpop.permute.xlu0 %820
    %822 = vrot.lane.b32.xlu0 %v712, 8
    %v823 = vpop.permute.xlu0 %822
    %824 = vrot.lane.b32.xlu0 %v713, 8
    %v825 = vpop.permute.xlu0 %824
    %826 = vrot.lane.b32.xlu0 %v714, 8
    %v827 = vpop.permute.xlu0 %826
    %828 = vrot.lane.b32.xlu0 %v715, 8
    %v829 = vpop.permute.xlu0 %828
    %830 = vrot.lane.b32.xlu0 %v716, 8
    %v831 = vpop.permute.xlu0 %830
    %832 = vrot.lane.b32.xlu0 %v717, 8
    %v833 = vpop.permute.xlu0 %832
    %834 = vrot.lane.b32.xlu0 %v718, 8
    %v835 = vpop.permute.xlu0 %834
    %836 = vrot.lane.b32.xlu0 %v719, 8
    %v837 = vpop.permute.xlu0 %836
    %838 = vrot.lane.b32.xlu0 %v720, 8
    %v839 = vpop.permute.xlu0 %838
    %840 = vrot.lane.b32.xlu0 %v721, 8
    %v841 = vpop.permute.xlu0 %840
    %842 = vrot.lane.b32.xlu0 %v722, 8
    %v843 = vpop.permute.xlu0 %842
    %844 = vrot.lane.b32.xlu0 %v723, 8
    %v845 = vpop.permute.xlu0 %844
    %846 = vrot.lane.b32.xlu0 %v724, 8
    %v847 = vpop.permute.xlu0 %846
    %848 = vrot.lane.b32.xlu0 %v725, 8
    %v849 = vpop.permute.xlu0 %848
    %850 = vrot.lane.b32.xlu0 %v726, 8
    %v851 = vpop.permute.xlu0 %850
    %852 = vrot.lane.b32.xlu0 %v727, 8
    %v853 = vpop.permute.xlu0 %852
    %854 = vrot.lane.b32.xlu0 %v728, 8
    %v855 = vpop.permute.xlu0 %854
    %856 = vrot.lane.b32.xlu0 %v729, 8
    %v857 = vpop.permute.xlu0 %856
    %858 = vrot.lane.b32.xlu0 %v730, 8
    %v859 = vpop.permute.xlu0 %858
    %860 = vrot.lane.b32.xlu0 %v731, 8
    %v861 = vpop.permute.xlu0 %860
    %862 = vrot.lane.b32.xlu0 %v732, 8
    %v863 = vpop.permute.xlu0 %862
    %864 = vrot.lane.b32.xlu0 %v733, 8
    %v865 = vpop.permute.xlu0 %864
    %866 = vrot.lane.b32.xlu0 %v734, 8
    %v867 = vpop.permute.xlu0 %866
    %868 = vrot.lane.b32.xlu0 %v735, 8
    %v869 = vpop.permute.xlu0 %868
    %870 = vrot.lane.b32.xlu0 %v736, 8
    %v871 = vpop.permute.xlu0 %870
    %872 = vrot.lane.b32.xlu0 %v737, 8
    %v873 = vpop.permute.xlu0 %872
    %874 = vrot.lane.b32.xlu0 %v738, 8
    %v875 = vpop.permute.xlu0 %874
    %876 = vrot.lane.b32.xlu0 %v739, 8
    %v877 = vpop.permute.xlu0 %876
    %878 = vrot.lane.b32.xlu0 %v740, 8
    %v879 = vpop.permute.xlu0 %878
    %880 = vrot.lane.b32.xlu0 %v741, 8
    %v881 = vpop.permute.xlu0 %880
    %882 = vrot.lane.b32.xlu0 %v742, 8
    %v883 = vpop.permute.xlu0 %882
    %884 = vrot.lane.b32.xlu0 %v743, 8
    %v885 = vpop.permute.xlu0 %884
    %886 = vrot.lane.b32.xlu0 %v744, 8
    %v887 = vpop.permute.xlu0 %886
    %888 = vrot.lane.b32.xlu0 %v745, 8
    %v889 = vpop.permute.xlu0 %888
    %890 = vrot.lane.b32.xlu0 %v746, 8
    %v891 = vpop.permute.xlu0 %890
    %892 = vrot.lane.b32.xlu0 %v748, 8
    %v893 = vpop.permute.xlu0 %892
    %894 = vrot.lane.b32.xlu0 %v749, 8
    %v895 = vpop.permute.xlu0 %894
    %896 = vrot.lane.b32.xlu0 %v750, 8
    %v897 = vpop.permute.xlu0 %896
    %898 = vrot.lane.b32.xlu0 %v751, 8
    %v899 = vpop.permute.xlu0 %898
    %900 = vrot.lane.b32.xlu0 %v752, 8
    %v901 = vpop.permute.xlu0 %900
    %902 = vrot.lane.b32.xlu0 %v753, 8
    %v903 = vpop.permute.xlu0 %902
    %904 = vrot.lane.b32.xlu0 %v754, 8
    %v905 = vpop.permute.xlu0 %904
    %906 = vrot.lane.b32.xlu0 %v755, 8
    %v907 = vpop.permute.xlu0 %906
    %908 = vrot.lane.b32.xlu0 %v756, 8
    %v909 = vpop.permute.xlu0 %908
    %910 = vrot.lane.b32.xlu0 %v757, 8
    %v911 = vpop.permute.xlu0 %910
    %912 = vrot.lane.b32.xlu0 %v758, 8
    %v913 = vpop.permute.xlu0 %912
    %914 = vrot.lane.b32.xlu0 %v759, 8
    %v915 = vpop.permute.xlu0 %914
    %916 = vrot.lane.b32.xlu0 %v760, 8
    %v917 = vpop.permute.xlu0 %916
    %918 = vrot.lane.b32.xlu0 %v761, 8
    %v919 = vpop.permute.xlu0 %918
    %920 = vrot.lane.b32.xlu0 %v762, 8
    %v921 = vpop.permute.xlu0 %920
    %922 = vrot.lane.b32.xlu0 %v763, 8
    %v923 = vpop.permute.xlu0 %922
    %v924 = vadd.f32 %v603, %v765
    %v925 = vadd.f32 %v604, %v767
    %v926 = vadd.f32 %v605, %v769
    %v927 = vadd.f32 %v606, %v771
    %v928 = vadd.f32 %v607, %v773
    %v929 = vadd.f32 %v608, %v775
    %v930 = vadd.f32 %v609, %v777
    %v931 = vadd.f32 %v610, %v779
    %v932 = vadd.f32 %v611, %v781
    %v933 = vadd.f32 %v612, %v783
    %v934 = vadd.f32 %v613, %v785
    %v935 = vadd.f32 %v614, %v787
    %v936 = vadd.f32 %v615, %v789
    %v937 = vadd.f32 %v616, %v791
    %v938 = vadd.f32 %v617, %v793
    %v939 = vadd.f32 %v618, %v795
    %v940 = vadd.f32 %v619, %v797
    %v941 = vadd.f32 %v620, %v799
    %v942 = vadd.f32 %v621, %v801
    %v943 = vadd.f32 %v622, %v803
    %v944 = vadd.f32 %v623, %v805
    %v945 = vadd.f32 %v624, %v807
    %v946 = vadd.f32 %v625, %v809
    %v947 = vadd.f32 %v626, %v811
    %v948 = vadd.f32 %v627, %v813
    %v949 = vadd.f32 %v628, %v815
    %v950 = vadd.f32 %v629, %v817
    %v951 = vadd.f32 %v630, %v819
    %v952 = vadd.f32 %v631, %v821
    %v953 = vadd.f32 %v632, %v823
    %v954 = vadd.f32 %v633, %v825
    %v955 = vadd.f32 %v634, %v827
    %v956 = vadd.f32 %v635, %v829
    %v957 = vadd.f32 %v636, %v831
    %v958 = vadd.f32 %v637, %v833
    %v959 = vadd.f32 %v638, %v835
    %v960 = vadd.f32 %v639, %v837
    %v961 = vadd.f32 %v640, %v839
    %v962 = vadd.f32 %v641, %v841
    %v963 = vadd.f32 %v642, %v843
    %v964 = vadd.f32 %v643, %v845
    %v965 = vadd.f32 %v644, %v847
    %v966 = vadd.f32 %v645, %v849
    %v967 = vadd.f32 %v646, %v851
    %v968 = vadd.f32 %v647, %v853
    %v969 = vadd.f32 %v648, %v855
    %v970 = vadd.f32 %v649, %v857
    %v971 = vadd.f32 %v650, %v859
    %v972 = vadd.f32 %v651, %v861
    %v973 = vadd.f32 %v652, %v863
    %v974 = vadd.f32 %v653, %v865
    %v975 = vadd.f32 %v654, %v867
    %v976 = vadd.f32 %v655, %v869
    %v977 = vadd.f32 %v656, %v871
    %v978 = vadd.f32 %v657, %v873
    %v979 = vadd.f32 %v658, %v875
    %v980 = vadd.f32 %v659, %v877
    %v981 = vadd.f32 %v660, %v879
    %v982 = vadd.f32 %v661, %v881
    %v983 = vadd.f32 %v662, %v883
    %v984 = vadd.f32 %v663, %v885
    %v985 = vadd.f32 %v664, %v887
    %v986 = vadd.f32 %v665, %v889
    %v987 = vadd.f32 %v666, %v891
    %v988 = vadd.f32 %v667, %v893
    %v989 = vadd.f32 %v668, %v895
    %v990 = vadd.f32 %v669, %v897
    %v991 = vadd.f32 %v670, %v899
    %v992 = vadd.f32 %v671, %v901
    %v993 = vadd.f32 %v672, %v903
    %v994 = vadd.f32 %v673, %v905
    %v995 = vadd.f32 %v674, %v907
    %v996 = vadd.f32 %v675, %v909
    %v997 = vadd.f32 %v676, %v911
    %v998 = vadd.f32 %v677, %v913
    %v999 = vadd.f32 %v678, %v915
    %v1000 = vadd.f32 %v679, %v917
    %v1001 = vadd.f32 %v680, %v919
    %v1002 = vadd.f32 %v681, %v921
    %v1003 = vadd.f32 %v682, %v923
    %v1004 = vld [vmem:[%s217] sm:$0xff]
    %v1005 = vld [vmem:[%s217 + $0x8] sm:$0xff]
    %v1006 = vld [vmem:[%s217 + $0x18] sm:$0xff]
    %v1007 = vld [vmem:[%s217 + $0x20] sm:$0xff]
    %v1008 = vld [vmem:[%s217 + $0x30] sm:$0xff]
    %v1009 = vld [vmem:[%s217 + $0x38] sm:$0xff]
    %v1010 = vld [vmem:[%s217 + $0x48] sm:$0xff]
    %v1011 = vld [vmem:[%s217 + $0x50] sm:$0xff]
    %v1012 = vld [vmem:[%s217 + $0x60] sm:$0xff]
    %v1013 = vld [vmem:[%s217 + $0x68] sm:$0xff]
    %v1014 = vld [vmem:[%s217 + $0x78] sm:$0xff]
    %v1015 = vld [vmem:[%s217 + $0x80] sm:$0xff]
    %v1016 = vld [vmem:[%s217 + $0x90] sm:$0xff]
    %v1017 = vld [vmem:[%s217 + $0x98] sm:$0xff]
    %v1018 = vld [vmem:[%s217 + $0xa8] sm:$0xff]
    %v1019 = vld [vmem:[%s217 + $0xb0] sm:$0xff]
    %v1020 = vld [vmem:[%s217 + $0xc0] sm:$0xff]
    %v1021 = vld [vmem:[%s217 + $0xc8] sm:$0xff]
    %v1022 = vld [vmem:[%s217 + $0xd8] sm:$0xff]
    %v1023 = vld [vmem:[%s217 + $0xe0] sm:$0xff]
    %v1024 = vld [vmem:[%s217 + $0xf0] sm:$0xff]
    %v1025 = vld [vmem:[%s217 + $0xf8] sm:$0xff]
    %v1026 = vld [vmem:[%s217 + $0x108] sm:$0xff]
    %v1027 = vld [vmem:[%s217 + $0x110] sm:$0xff]
    %v1028 = vld [vmem:[%s217 + $0x120] sm:$0xff]
    %v1029 = vld [vmem:[%s217 + $0x128] sm:$0xff]
    %v1030 = vld [vmem:[%s217 + $0x138] sm:$0xff]
    %v1031 = vld [vmem:[%s217 + $0x140] sm:$0xff]
    %v1032 = vld [vmem:[%s217 + $0x150] sm:$0xff]
    %v1033 = vld [vmem:[%s217 + $0x158] sm:$0xff]
    %v1034 = vld [vmem:[%s217 + $0x168] sm:$0xff]
    %v1035 = vld [vmem:[%s217 + $0x170] sm:$0xff]
    %v1036 = vld [vmem:[%s217 + $0x1b0] sm:$0xff]
    %v1037 = vld [vmem:[%s217 + $0x1b8] sm:$0xff]
    %v1038 = vld [vmem:[%s217 + $0x1c8] sm:$0xff]
    %v1039 = vld [vmem:[%s217 + $0x1d0] sm:$0xff]
    %v1040 = vld [vmem:[%s217 + $0x1e0] sm:$0xff]
    %v1041 = vld [vmem:[%s217 + $0x1e8] sm:$0xff]
    %v1042 = vld [vmem:[%s217 + $0x1f8] sm:$0xff]
    %v1043 = vld [vmem:[%s217 + $0x200] sm:$0xff]
    %v1044 = vld [vmem:[%s217 + $0x210] sm:$0xff]
    %v1045 = vld [vmem:[%s217 + $0x218] sm:$0xff]
    %v1046 = vld [vmem:[%s217 + $0x228] sm:$0xff]
    %v1047 = vld [vmem:[%s217 + $0x230] sm:$0xff]
    %v1048 = vld [vmem:[%s217 + $0x240] sm:$0xff]
    %v1049 = vld [vmem:[%s217 + $0x248] sm:$0xff]
    %v1050 = vld [vmem:[%s217 + $0x258] sm:$0xff]
    %v1051 = vld [vmem:[%s217 + $0x260] sm:$0xff]
    %v1052 = vld [vmem:[%s217 + $0x270] sm:$0xff]
    %v1053 = vld [vmem:[%s217 + $0x278] sm:$0xff]
    %v1054 = vld [vmem:[%s217 + $0x288] sm:$0xff]
    %v1055 = vld [vmem:[%s217 + $0x290] sm:$0xff]
    %v1056 = vld [vmem:[%s217 + $0x2a0] sm:$0xff]
    %v1057 = vld [vmem:[%s217 + $0x2a8] sm:$0xff]
    %v1058 = vld [vmem:[%s217 + $0x2b8] sm:$0xff]
    %v1059 = vld [vmem:[%s217 + $0x2c0] sm:$0xff]
    %v1060 = vld [vmem:[%s217 + $0x2d0] sm:$0xff]
    %v1061 = vld [vmem:[%s217 + $0x2d8] sm:$0xff]
    %v1062 = vld [vmem:[%s217 + $0x2e8] sm:$0xff]
    %v1063 = vld [vmem:[%s217 + $0x2f0] sm:$0xff]
    %v1064 = vld [vmem:[%s217 + $0x300] sm:$0xff]
    %v1065 = vld [vmem:[%s217 + $0x308] sm:$0xff]
    %v1066 = vld [vmem:[%s217 + $0x318] sm:$0xff]
    %v1067 = vld [vmem:[%s217 + $0x320] sm:$0xff]
    %s1068 = scalar_lea.vmem [#allocation6], 384
    %v1069 = vld [vmem:[%s1068] sm:$0xff]
    %v1070 = vld [vmem:[%s1068 + $0x8] sm:$0xff]
    %v1071 = vld [vmem:[%s1068 + $0x10] sm:$0xff]
    %v1072 = vld [vmem:[%s1068 + $0x18] sm:$0xff]
    %v1073 = vld [vmem:[%s1068 + $0x20] sm:$0xff]
    %v1074 = vld [vmem:[%s1068 + $0x28] sm:$0xff]
    %v1075 = vld [vmem:[%s1068 + $0x30] sm:$0xff]
    %v1076 = vld [vmem:[%s1068 + $0x38] sm:$0xff]
    %v1077 = vld [vmem:[%s1068 + $0x40] sm:$0xff]
    %v1078 = vld [vmem:[%s1068 + $0x48] sm:$0xff]
    %v1079 = vld [vmem:[%s1068 + $0x50] sm:$0xff]
    %v1080 = vld [vmem:[%s1068 + $0x58] sm:$0xff]
    %v1081 = vld [vmem:[%s1068 + $0x60] sm:$0xff]
    %v1082 = vld [vmem:[%s1068 + $0x68] sm:$0xff]
    %v1083 = vld [vmem:[%s1068 + $0x70] sm:$0xff]
    %v1084 = vld [vmem:[%s1068 + $0x78] sm:$0xff]
    %1085 = vrot.lane.b32.xlu0 %v1004, 12
    %v1086 = vpop.permute.xlu0 %1085
    %1087 = vrot.lane.b32.xlu0 %v1005, 12
    %v1088 = vpop.permute.xlu0 %1087
    %1089 = vrot.lane.b32.xlu0 %v1006, 12
    %v1090 = vpop.permute.xlu0 %1089
    %1091 = vrot.lane.b32.xlu0 %v1007, 12
    %v1092 = vpop.permute.xlu0 %1091
    %1093 = vrot.lane.b32.xlu0 %v1008, 12
    %v1094 = vpop.permute.xlu0 %1093
    %1095 = vrot.lane.b32.xlu0 %v1009, 12
    %v1096 = vpop.permute.xlu0 %1095
    %1097 = vrot.lane.b32.xlu0 %v1010, 12
    %v1098 = vpop.permute.xlu0 %1097
    %1099 = vrot.lane.b32.xlu0 %v1011, 12
    %v1100 = vpop.permute.xlu0 %1099
    %1101 = vrot.lane.b32.xlu0 %v1012, 12
    %v1102 = vpop.permute.xlu0 %1101
    %1103 = vrot.lane.b32.xlu0 %v1013, 12
    %v1104 = vpop.permute.xlu0 %1103
    %1105 = vrot.lane.b32.xlu0 %v1014, 12
    %v1106 = vpop.permute.xlu0 %1105
    %1107 = vrot.lane.b32.xlu0 %v1015, 12
    %v1108 = vpop.permute.xlu0 %1107
    %1109 = vrot.lane.b32.xlu0 %v1016, 12
    %v1110 = vpop.permute.xlu0 %1109
    %1111 = vrot.lane.b32.xlu0 %v1017, 12
    %v1112 = vpop.permute.xlu0 %1111
    %1113 = vrot.lane.b32.xlu0 %v1018, 12
    %v1114 = vpop.permute.xlu0 %1113
    %1115 = vrot.lane.b32.xlu0 %v1019, 12
    %v1116 = vpop.permute.xlu0 %1115
    %1117 = vrot.lane.b32.xlu0 %v1020, 12
    %v1118 = vpop.permute.xlu0 %1117
    %1119 = vrot.lane.b32.xlu0 %v1021, 12
    %v1120 = vpop.permute.xlu0 %1119
    %1121 = vrot.lane.b32.xlu0 %v1022, 12
    %v1122 = vpop.permute.xlu0 %1121
    %1123 = vrot.lane.b32.xlu0 %v1023, 12
    %v1124 = vpop.permute.xlu0 %1123
    %1125 = vrot.lane.b32.xlu0 %v1024, 12
    %v1126 = vpop.permute.xlu0 %1125
    %1127 = vrot.lane.b32.xlu0 %v1025, 12
    %v1128 = vpop.permute.xlu0 %1127
    %1129 = vrot.lane.b32.xlu0 %v1026, 12
    %v1130 = vpop.permute.xlu0 %1129
    %1131 = vrot.lane.b32.xlu0 %v1027, 12
    %v1132 = vpop.permute.xlu0 %1131
    %1133 = vrot.lane.b32.xlu0 %v1028, 12
    %v1134 = vpop.permute.xlu0 %1133
    %1135 = vrot.lane.b32.xlu0 %v1029, 12
    %v1136 = vpop.permute.xlu0 %1135
    %1137 = vrot.lane.b32.xlu0 %v1030, 12
    %v1138 = vpop.permute.xlu0 %1137
    %1139 = vrot.lane.b32.xlu0 %v1031, 12
    %v1140 = vpop.permute.xlu0 %1139
    %1141 = vrot.lane.b32.xlu0 %v1032, 12
    %v1142 = vpop.permute.xlu0 %1141
    %1143 = vrot.lane.b32.xlu0 %v1033, 12
    %v1144 = vpop.permute.xlu0 %1143
    %1145 = vrot.lane.b32.xlu0 %v1034, 12
    %v1146 = vpop.permute.xlu0 %1145
    %1147 = vrot.lane.b32.xlu0 %v1035, 12
    %v1148 = vpop.permute.xlu0 %1147
    %1149 = vrot.lane.b32.xlu0 %v1036, 12
    %v1150 = vpop.permute.xlu0 %1149
    %1151 = vrot.lane.b32.xlu0 %v1037, 12
    %v1152 = vpop.permute.xlu0 %1151
    %1153 = vrot.lane.b32.xlu0 %v1038, 12
    %v1154 = vpop.permute.xlu0 %1153
    %1155 = vrot.lane.b32.xlu0 %v1039, 12
    %v1156 = vpop.permute.xlu0 %1155
    %1157 = vrot.lane.b32.xlu0 %v1040, 12
    %v1158 = vpop.permute.xlu0 %1157
    %1159 = vrot.lane.b32.xlu0 %v1041, 12
    %v1160 = vpop.permute.xlu0 %1159
    %1161 = vrot.lane.b32.xlu0 %v1042, 12
    %v1162 = vpop.permute.xlu0 %1161
    %1163 = vrot.lane.b32.xlu0 %v1043, 12
    %v1164 = vpop.permute.xlu0 %1163
    %1165 = vrot.lane.b32.xlu0 %v1044, 12
    %v1166 = vpop.permute.xlu0 %1165
    %1167 = vrot.lane.b32.xlu0 %v1045, 12
    %v1168 = vpop.permute.xlu0 %1167
    %1169 = vrot.lane.b32.xlu0 %v1046, 12
    %v1170 = vpop.permute.xlu0 %1169
    %1171 = vrot.lane.b32.xlu0 %v1047, 12
    %v1172 = vpop.permute.xlu0 %1171
    %1173 = vrot.lane.b32.xlu0 %v1048, 12
    %v1174 = vpop.permute.xlu0 %1173
    %1175 = vrot.lane.b32.xlu0 %v1049, 12
    %v1176 = vpop.permute.xlu0 %1175
    %1177 = vrot.lane.b32.xlu0 %v1050, 12
    %v1178 = vpop.permute.xlu0 %1177
    %1179 = vrot.lane.b32.xlu0 %v1051, 12
    %v1180 = vpop.permute.xlu0 %1179
    %1181 = vrot.lane.b32.xlu0 %v1052, 12
    %v1182 = vpop.permute.xlu0 %1181
    %1183 = vrot.lane.b32.xlu0 %v1053, 12
    %v1184 = vpop.permute.xlu0 %1183
    %1185 = vrot.lane.b32.xlu0 %v1054, 12
    %v1186 = vpop.permute.xlu0 %1185
    %1187 = vrot.lane.b32.xlu0 %v1055, 12
    %v1188 = vpop.permute.xlu0 %1187
    %1189 = vrot.lane.b32.xlu0 %v1056, 12
    %v1190 = vpop.permute.xlu0 %1189
    %1191 = vrot.lane.b32.xlu0 %v1057, 12
    %v1192 = vpop.permute.xlu0 %1191
    %1193 = vrot.lane.b32.xlu0 %v1058, 12
    %v1194 = vpop.permute.xlu0 %1193
    %1195 = vrot.lane.b32.xlu0 %v1059, 12
    %v1196 = vpop.permute.xlu0 %1195
    %1197 = vrot.lane.b32.xlu0 %v1060, 12
    %v1198 = vpop.permute.xlu0 %1197
    %1199 = vrot.lane.b32.xlu0 %v1061, 12
    %v1200 = vpop.permute.xlu0 %1199
    %1201 = vrot.lane.b32.xlu0 %v1062, 12
    %v1202 = vpop.permute.xlu0 %1201
    %1203 = vrot.lane.b32.xlu0 %v1063, 12
    %v1204 = vpop.permute.xlu0 %1203
    %1205 = vrot.lane.b32.xlu0 %v1064, 12
    %v1206 = vpop.permute.xlu0 %1205
    %1207 = vrot.lane.b32.xlu0 %v1065, 12
    %v1208 = vpop.permute.xlu0 %1207
    %1209 = vrot.lane.b32.xlu0 %v1066, 12
    %v1210 = vpop.permute.xlu0 %1209
    %1211 = vrot.lane.b32.xlu0 %v1067, 12
    %v1212 = vpop.permute.xlu0 %1211
    %1213 = vrot.lane.b32.xlu0 %v1069, 12
    %v1214 = vpop.permute.xlu0 %1213
    %1215 = vrot.lane.b32.xlu0 %v1070, 12
    %v1216 = vpop.permute.xlu0 %1215
    %1217 = vrot.lane.b32.xlu0 %v1071, 12
    %v1218 = vpop.permute.xlu0 %1217
    %1219 = vrot.lane.b32.xlu0 %v1072, 12
    %v1220 = vpop.permute.xlu0 %1219
    %1221 = vrot.lane.b32.xlu0 %v1073, 12
    %v1222 = vpop.permute.xlu0 %1221
    %1223 = vrot.lane.b32.xlu0 %v1074, 12
    %v1224 = vpop.permute.xlu0 %1223
    %1225 = vrot.lane.b32.xlu0 %v1075, 12
    %v1226 = vpop.permute.xlu0 %1225
    %1227 = vrot.lane.b32.xlu0 %v1076, 12
    %v1228 = vpop.permute.xlu0 %1227
    %1229 = vrot.lane.b32.xlu0 %v1077, 12
    %v1230 = vpop.permute.xlu0 %1229
    %1231 = vrot.lane.b32.xlu0 %v1078, 12
    %v1232 = vpop.permute.xlu0 %1231
    %1233 = vrot.lane.b32.xlu0 %v1079, 12
    %v1234 = vpop.permute.xlu0 %1233
    %1235 = vrot.lane.b32.xlu0 %v1080, 12
    %v1236 = vpop.permute.xlu0 %1235
    %1237 = vrot.lane.b32.xlu0 %v1081, 12
    %v1238 = vpop.permute.xlu0 %1237
    %1239 = vrot.lane.b32.xlu0 %v1082, 12
    %v1240 = vpop.permute.xlu0 %1239
    %1241 = vrot.lane.b32.xlu0 %v1083, 12
    %v1242 = vpop.permute.xlu0 %1241
    %1243 = vrot.lane.b32.xlu0 %v1084, 12
    %v1244 = vpop.permute.xlu0 %1243
    %v1245 = vadd.f32 %v924, %v1086
    %v1246 = vadd.f32 %v925, %v1088
    %v1247 = vadd.f32 %v926, %v1090
    %v1248 = vadd.f32 %v927, %v1092
    %v1249 = vadd.f32 %v928, %v1094
    %v1250 = vadd.f32 %v929, %v1096
    %v1251 = vadd.f32 %v930, %v1098
    %v1252 = vadd.f32 %v931, %v1100
    %v1253 = vadd.f32 %v932, %v1102
    %v1254 = vadd.f32 %v933, %v1104
    %v1255 = vadd.f32 %v934, %v1106
    %v1256 = vadd.f32 %v935, %v1108
    %v1257 = vadd.f32 %v936, %v1110
    %v1258 = vadd.f32 %v937, %v1112
    %v1259 = vadd.f32 %v938, %v1114
    %v1260 = vadd.f32 %v939, %v1116
    %v1261 = vadd.f32 %v940, %v1118
    %v1262 = vadd.f32 %v941, %v1120
    %v1263 = vadd.f32 %v942, %v1122
    %v1264 = vadd.f32 %v943, %v1124
    %v1265 = vadd.f32 %v944, %v1126
    %v1266 = vadd.f32 %v945, %v1128
    %v1267 = vadd.f32 %v946, %v1130
    %v1268 = vadd.f32 %v947, %v1132
    %v1269 = vadd.f32 %v948, %v1134
    %v1270 = vadd.f32 %v949, %v1136
    %v1271 = vadd.f32 %v950, %v1138
    %v1272 = vadd.f32 %v951, %v1140
    %v1273 = vadd.f32 %v952, %v1142
    %v1274 = vadd.f32 %v953, %v1144
    %v1275 = vadd.f32 %v954, %v1146
    %v1276 = vadd.f32 %v955, %v1148
    %v1277 = vadd.f32 %v956, %v1150
    %v1278 = vadd.f32 %v957, %v1152
    %v1279 = vadd.f32 %v958, %v1154
    %v1280 = vadd.f32 %v959, %v1156
    %v1281 = vadd.f32 %v960, %v1158
    %v1282 = vadd.f32 %v961, %v1160
    %v1283 = vadd.f32 %v962, %v1162
    %v1284 = vadd.f32 %v963, %v1164
    %v1285 = vadd.f32 %v964, %v1166
    %v1286 = vadd.f32 %v965, %v1168
    %v1287 = vadd.f32 %v966, %v1170
    %v1288 = vadd.f32 %v967, %v1172
    %v1289 = vadd.f32 %v968, %v1174
    %v1290 = vadd.f32 %v969, %v1176
    %v1291 = vadd.f32 %v970, %v1178
    %v1292 = vadd.f32 %v971, %v1180
    %v1293 = vadd.f32 %v972, %v1182
    %v1294 = vadd.f32 %v973, %v1184
    %v1295 = vadd.f32 %v974, %v1186
    %v1296 = vadd.f32 %v975, %v1188
    %v1297 = vadd.f32 %v976, %v1190
    %v1298 = vadd.f32 %v977, %v1192
    %v1299 = vadd.f32 %v978, %v1194
    %v1300 = vadd.f32 %v979, %v1196
    %v1301 = vadd.f32 %v980, %v1198
    %v1302 = vadd.f32 %v981, %v1200
    %v1303 = vadd.f32 %v982, %v1202
    %v1304 = vadd.f32 %v983, %v1204
    %v1305 = vadd.f32 %v984, %v1206
    %v1306 = vadd.f32 %v985, %v1208
    %v1307 = vadd.f32 %v986, %v1210
    %v1308 = vadd.f32 %v987, %v1212
    %v1309 = vadd.f32 %v988, %v1214
    %v1310 = vadd.f32 %v989, %v1216
    %v1311 = vadd.f32 %v990, %v1218
    %v1312 = vadd.f32 %v991, %v1220
    %v1313 = vadd.f32 %v992, %v1222
    %v1314 = vadd.f32 %v993, %v1224
    %v1315 = vadd.f32 %v994, %v1226
    %v1316 = vadd.f32 %v995, %v1228
    %v1317 = vadd.f32 %v996, %v1230
    %v1318 = vadd.f32 %v997, %v1232
    %v1319 = vadd.f32 %v998, %v1234
    %v1320 = vadd.f32 %v999, %v1236
    %v1321 = vadd.f32 %v1000, %v1238
    %v1322 = vadd.f32 %v1001, %v1240
    %v1323 = vadd.f32 %v1002, %v1242
    %v1324 = vadd.f32 %v1003, %v1244
    %v1325 = vld [vmem:[%s217 + $0x1] sm:$0xff]
    %v1326 = vld [vmem:[%s217 + $0x9] sm:$0xff]
    %v1327 = vld [vmem:[%s217 + $0x19] sm:$0xff]
    %v1328 = vld [vmem:[%s217 + $0x21] sm:$0xff]
    %v1329 = vld [vmem:[%s217 + $0x31] sm:$0xff]
    %v1330 = vld [vmem:[%s217 + $0x39] sm:$0xff]
    %v1331 = vld [vmem:[%s217 + $0x49] sm:$0xff]
    %v1332 = vld [vmem:[%s217 + $0x51] sm:$0xff]
    %v1333 = vld [vmem:[%s217 + $0x61] sm:$0xff]
    %v1334 = vld [vmem:[%s217 + $0x69] sm:$0xff]
    %v1335 = vld [vmem:[%s217 + $0x79] sm:$0xff]
    %v1336 = vld [vmem:[%s217 + $0x81] sm:$0xff]
    %v1337 = vld [vmem:[%s217 + $0x91] sm:$0xff]
    %v1338 = vld [vmem:[%s217 + $0x99] sm:$0xff]
    %v1339 = vld [vmem:[%s217 + $0xa9] sm:$0xff]
    %v1340 = vld [vmem:[%s217 + $0xb1] sm:$0xff]
    %v1341 = vld [vmem:[%s217 + $0xc1] sm:$0xff]
    %v1342 = vld [vmem:[%s217 + $0xc9] sm:$0xff]
    %v1343 = vld [vmem:[%s217 + $0xd9] sm:$0xff]
    %v1344 = vld [vmem:[%s217 + $0xe1] sm:$0xff]
    %v1345 = vld [vmem:[%s217 + $0xf1] sm:$0xff]
    %v1346 = vld [vmem:[%s217 + $0xf9] sm:$0xff]
    %v1347 = vld [vmem:[%s217 + $0x109] sm:$0xff]
    %v1348 = vld [vmem:[%s217 + $0x111] sm:$0xff]
    %v1349 = vld [vmem:[%s217 + $0x121] sm:$0xff]
    %v1350 = vld [vmem:[%s217 + $0x129] sm:$0xff]
    %v1351 = vld [vmem:[%s217 + $0x139] sm:$0xff]
    %v1352 = vld [vmem:[%s217 + $0x141] sm:$0xff]
    %v1353 = vld [vmem:[%s217 + $0x151] sm:$0xff]
    %v1354 = vld [vmem:[%s217 + $0x159] sm:$0xff]
    %v1355 = vld [vmem:[%s217 + $0x169] sm:$0xff]
    %v1356 = vld [vmem:[%s217 + $0x171] sm:$0xff]
    %v1357 = vld [vmem:[%s217 + $0x1b1] sm:$0xff]
    %v1358 = vld [vmem:[%s217 + $0x1b9] sm:$0xff]
    %v1359 = vld [vmem:[%s217 + $0x1c9] sm:$0xff]
    %v1360 = vld [vmem:[%s217 + $0x1d1] sm:$0xff]
    %v1361 = vld [vmem:[%s217 + $0x1e1] sm:$0xff]
    %v1362 = vld [vmem:[%s217 + $0x1e9] sm:$0xff]
    %v1363 = vld [vmem:[%s217 + $0x1f9] sm:$0xff]
    %v1364 = vld [vmem:[%s217 + $0x201] sm:$0xff]
    %v1365 = vld [vmem:[%s217 + $0x211] sm:$0xff]
    %v1366 = vld [vmem:[%s217 + $0x219] sm:$0xff]
    %v1367 = vld [vmem:[%s217 + $0x229] sm:$0xff]
    %v1368 = vld [vmem:[%s217 + $0x231] sm:$0xff]
    %v1369 = vld [vmem:[%s217 + $0x241] sm:$0xff]
    %v1370 = vld [vmem:[%s217 + $0x249] sm:$0xff]
    %v1371 = vld [vmem:[%s217 + $0x259] sm:$0xff]
    %v1372 = vld [vmem:[%s217 + $0x261] sm:$0xff]
    %v1373 = vld [vmem:[%s217 + $0x271] sm:$0xff]
    %v1374 = vld [vmem:[%s217 + $0x279] sm:$0xff]
    %v1375 = vld [vmem:[%s217 + $0x289] sm:$0xff]
    %v1376 = vld [vmem:[%s217 + $0x291] sm:$0xff]
    %v1377 = vld [vmem:[%s217 + $0x2a1] sm:$0xff]
    %v1378 = vld [vmem:[%s217 + $0x2a9] sm:$0xff]
    %v1379 = vld [vmem:[%s217 + $0x2b9] sm:$0xff]
    %v1380 = vld [vmem:[%s217 + $0x2c1] sm:$0xff]
    %v1381 = vld [vmem:[%s217 + $0x2d1] sm:$0xff]
    %v1382 = vld [vmem:[%s217 + $0x2d9] sm:$0xff]
    %v1383 = vld [vmem:[%s217 + $0x2e9] sm:$0xff]
    %v1384 = vld [vmem:[%s217 + $0x2f1] sm:$0xff]
    %v1385 = vld [vmem:[%s217 + $0x301] sm:$0xff]
    %v1386 = vld [vmem:[%s217 + $0x309] sm:$0xff]
    %v1387 = vld [vmem:[%s217 + $0x319] sm:$0xff]
    %v1388 = vld [vmem:[%s217 + $0x321] sm:$0xff]
    %s1389 = scalar_lea.vmem [#allocation6], 512
    %v1390 = vld [vmem:[%s1389] sm:$0xff]
    %v1391 = vld [vmem:[%s1389 + $0x8] sm:$0xff]
    %v1392 = vld [vmem:[%s1389 + $0x10] sm:$0xff]
    %v1393 = vld [vmem:[%s1389 + $0x18] sm:$0xff]
    %v1394 = vld [vmem:[%s1389 + $0x20] sm:$0xff]
    %v1395 = vld [vmem:[%s1389 + $0x28] sm:$0xff]
    %v1396 = vld [vmem:[%s1389 + $0x30] sm:$0xff]
    %v1397 = vld [vmem:[%s1389 + $0x38] sm:$0xff]
    %v1398 = vld [vmem:[%s1389 + $0x40] sm:$0xff]
    %v1399 = vld [vmem:[%s1389 + $0x48] sm:$0xff]
    %v1400 = vld [vmem:[%s1389 + $0x50] sm:$0xff]
    %v1401 = vld [vmem:[%s1389 + $0x58] sm:$0xff]
    %v1402 = vld [vmem:[%s1389 + $0x60] sm:$0xff]
    %v1403 = vld [vmem:[%s1389 + $0x68] sm:$0xff]
    %v1404 = vld [vmem:[%s1389 + $0x70] sm:$0xff]
    %v1405 = vld [vmem:[%s1389 + $0x78] sm:$0xff]
    %1406 = vrot.lane.b32.xlu0 %v1325, 16
    %v1407 = vpop.permute.xlu0 %1406
    %1408 = vrot.lane.b32.xlu0 %v1326, 16
    %v1409 = vpop.permute.xlu0 %1408
    %1410 = vrot.lane.b32.xlu0 %v1327, 16
    %v1411 = vpop.permute.xlu0 %1410
    %1412 = vrot.lane.b32.xlu0 %v1328, 16
    %v1413 = vpop.permute.xlu0 %1412
    %1414 = vrot.lane.b32.xlu0 %v1329, 16
    %v1415 = vpop.permute.xlu0 %1414
    %1416 = vrot.lane.b32.xlu0 %v1330, 16
    %v1417 = vpop.permute.xlu0 %1416
    %1418 = vrot.lane.b32.xlu0 %v1331, 16
    %v1419 = vpop.permute.xlu0 %1418
    %1420 = vrot.lane.b32.xlu0 %v1332, 16
    %v1421 = vpop.permute.xlu0 %1420
    %1422 = vrot.lane.b32.xlu0 %v1333, 16
    %v1423 = vpop.permute.xlu0 %1422
    %1424 = vrot.lane.b32.xlu0 %v1334, 16
    %v1425 = vpop.permute.xlu0 %1424
    %1426 = vrot.lane.b32.xlu0 %v1335, 16
    %v1427 = vpop.permute.xlu0 %1426
    %1428 = vrot.lane.b32.xlu0 %v1336, 16
    %v1429 = vpop.permute.xlu0 %1428
    %1430 = vrot.lane.b32.xlu0 %v1337, 16
    %v1431 = vpop.permute.xlu0 %1430
    %1432 = vrot.lane.b32.xlu0 %v1338, 16
    %v1433 = vpop.permute.xlu0 %1432
    %1434 = vrot.lane.b32.xlu0 %v1339, 16
    %v1435 = vpop.permute.xlu0 %1434
    %1436 = vrot.lane.b32.xlu0 %v1340, 16
    %v1437 = vpop.permute.xlu0 %1436
    %1438 = vrot.lane.b32.xlu0 %v1341, 16
    %v1439 = vpop.permute.xlu0 %1438
    %1440 = vrot.lane.b32.xlu0 %v1342, 16
    %v1441 = vpop.permute.xlu0 %1440
    %1442 = vrot.lane.b32.xlu0 %v1343, 16
    %v1443 = vpop.permute.xlu0 %1442
    %1444 = vrot.lane.b32.xlu0 %v1344, 16
    %v1445 = vpop.permute.xlu0 %1444
    %1446 = vrot.lane.b32.xlu0 %v1345, 16
    %v1447 = vpop.permute.xlu0 %1446
    %1448 = vrot.lane.b32.xlu0 %v1346, 16
    %v1449 = vpop.permute.xlu0 %1448
    %1450 = vrot.lane.b32.xlu0 %v1347, 16
    %v1451 = vpop.permute.xlu0 %1450
    %1452 = vrot.lane.b32.xlu0 %v1348, 16
    %v1453 = vpop.permute.xlu0 %1452
    %1454 = vrot.lane.b32.xlu0 %v1349, 16
    %v1455 = vpop.permute.xlu0 %1454
    %1456 = vrot.lane.b32.xlu0 %v1350, 16
    %v1457 = vpop.permute.xlu0 %1456
    %1458 = vrot.lane.b32.xlu0 %v1351, 16
    %v1459 = vpop.permute.xlu0 %1458
    %1460 = vrot.lane.b32.xlu0 %v1352, 16
    %v1461 = vpop.permute.xlu0 %1460
    %1462 = vrot.lane.b32.xlu0 %v1353, 16
    %v1463 = vpop.permute.xlu0 %1462
    %1464 = vrot.lane.b32.xlu0 %v1354, 16
    %v1465 = vpop.permute.xlu0 %1464
    %1466 = vrot.lane.b32.xlu0 %v1355, 16
    %v1467 = vpop.permute.xlu0 %1466
    %1468 = vrot.lane.b32.xlu0 %v1356, 16
    %v1469 = vpop.permute.xlu0 %1468
    %1470 = vrot.lane.b32.xlu0 %v1357, 16
    %v1471 = vpop.permute.xlu0 %1470
    %1472 = vrot.lane.b32.xlu0 %v1358, 16
    %v1473 = vpop.permute.xlu0 %1472
    %1474 = vrot.lane.b32.xlu0 %v1359, 16
    %v1475 = vpop.permute.xlu0 %1474
    %1476 = vrot.lane.b32.xlu0 %v1360, 16
    %v1477 = vpop.permute.xlu0 %1476
    %1478 = vrot.lane.b32.xlu0 %v1361, 16
    %v1479 = vpop.permute.xlu0 %1478
    %1480 = vrot.lane.b32.xlu0 %v1362, 16
    %v1481 = vpop.permute.xlu0 %1480
    %1482 = vrot.lane.b32.xlu0 %v1363, 16
    %v1483 = vpop.permute.xlu0 %1482
    %1484 = vrot.lane.b32.xlu0 %v1364, 16
    %v1485 = vpop.permute.xlu0 %1484
    %1486 = vrot.lane.b32.xlu0 %v1365, 16
    %v1487 = vpop.permute.xlu0 %1486
    %1488 = vrot.lane.b32.xlu0 %v1366, 16
    %v1489 = vpop.permute.xlu0 %1488
    %1490 = vrot.lane.b32.xlu0 %v1367, 16
    %v1491 = vpop.permute.xlu0 %1490
    %1492 = vrot.lane.b32.xlu0 %v1368, 16
    %v1493 = vpop.permute.xlu0 %1492
    %1494 = vrot.lane.b32.xlu0 %v1369, 16
    %v1495 = vpop.permute.xlu0 %1494
    %1496 = vrot.lane.b32.xlu0 %v1370, 16
    %v1497 = vpop.permute.xlu0 %1496
    %1498 = vrot.lane.b32.xlu0 %v1371, 16
    %v1499 = vpop.permute.xlu0 %1498
    %1500 = vrot.lane.b32.xlu0 %v1372, 16
    %v1501 = vpop.permute.xlu0 %1500
    %1502 = vrot.lane.b32.xlu0 %v1373, 16
    %v1503 = vpop.permute.xlu0 %1502
    %1504 = vrot.lane.b32.xlu0 %v1374, 16
    %v1505 = vpop.permute.xlu0 %1504
    %1506 = vrot.lane.b32.xlu0 %v1375, 16
    %v1507 = vpop.permute.xlu0 %1506
    %1508 = vrot.lane.b32.xlu0 %v1376, 16
    %v1509 = vpop.permute.xlu0 %1508
    %1510 = vrot.lane.b32.xlu0 %v1377, 16
    %v1511 = vpop.permute.xlu0 %1510
    %1512 = vrot.lane.b32.xlu0 %v1378, 16
    %v1513 = vpop.permute.xlu0 %1512
    %1514 = vrot.lane.b32.xlu0 %v1379, 16
    %v1515 = vpop.permute.xlu0 %1514
    %1516 = vrot.lane.b32.xlu0 %v1380, 16
    %v1517 = vpop.permute.xlu0 %1516
    %1518 = vrot.lane.b32.xlu0 %v1381, 16
    %v1519 = vpop.permute.xlu0 %1518
    %1520 = vrot.lane.b32.xlu0 %v1382, 16
    %v1521 = vpop.permute.xlu0 %1520
    %1522 = vrot.lane.b32.xlu0 %v1383, 16
    %v1523 = vpop.permute.xlu0 %1522
    %1524 = vrot.lane.b32.xlu0 %v1384, 16
    %v1525 = vpop.permute.xlu0 %1524
    %1526 = vrot.lane.b32.xlu0 %v1385, 16
    %v1527 = vpop.permute.xlu0 %1526
    %1528 = vrot.lane.b32.xlu0 %v1386, 16
    %v1529 = vpop.permute.xlu0 %1528
    %1530 = vrot.lane.b32.xlu0 %v1387, 16
    %v1531 = vpop.permute.xlu0 %1530
    %1532 = vrot.lane.b32.xlu0 %v1388, 16
    %v1533 = vpop.permute.xlu0 %1532
    %1534 = vrot.lane.b32.xlu0 %v1390, 16
    %v1535 = vpop.permute.xlu0 %1534
    %1536 = vrot.lane.b32.xlu0 %v1391, 16
    %v1537 = vpop.permute.xlu0 %1536
    %1538 = vrot.lane.b32.xlu0 %v1392, 16
    %v1539 = vpop.permute.xlu0 %1538
    %1540 = vrot.lane.b32.xlu0 %v1393, 16
    %v1541 = vpop.permute.xlu0 %1540
    %1542 = vrot.lane.b32.xlu0 %v1394, 16
    %v1543 = vpop.permute.xlu0 %1542
    %1544 = vrot.lane.b32.xlu0 %v1395, 16
    %v1545 = vpop.permute.xlu0 %1544
    %1546 = vrot.lane.b32.xlu0 %v1396, 16
    %v1547 = vpop.permute.xlu0 %1546
    %1548 = vrot.lane.b32.xlu0 %v1397, 16
    %v1549 = vpop.permute.xlu0 %1548
    %1550 = vrot.lane.b32.xlu0 %v1398, 16
    %v1551 = vpop.permute.xlu0 %1550
    %1552 = vrot.lane.b32.xlu0 %v1399, 16
    %v1553 = vpop.permute.xlu0 %1552
    %1554 = vrot.lane.b32.xlu0 %v1400, 16
    %v1555 = vpop.permute.xlu0 %1554
    %1556 = vrot.lane.b32.xlu0 %v1401, 16
    %v1557 = vpop.permute.xlu0 %1556
    %1558 = vrot.lane.b32.xlu0 %v1402, 16
    %v1559 = vpop.permute.xlu0 %1558
    %1560 = vrot.lane.b32.xlu0 %v1403, 16
    %v1561 = vpop.permute.xlu0 %1560
    %1562 = vrot.lane.b32.xlu0 %v1404, 16
    %v1563 = vpop.permute.xlu0 %1562
    %1564 = vrot.lane.b32.xlu0 %v1405, 16
    %v1565 = vpop.permute.xlu0 %1564
    %v1566 = vadd.f32 %v1245, %v1407
    %v1567 = vadd.f32 %v1246, %v1409
    %v1568 = vadd.f32 %v1247, %v1411
    %v1569 = vadd.f32 %v1248, %v1413
    %v1570 = vadd.f32 %v1249, %v1415
    %v1571 = vadd.f32 %v1250, %v1417
    %v1572 = vadd.f32 %v1251, %v1419
    %v1573 = vadd.f32 %v1252, %v1421
    %v1574 = vadd.f32 %v1253, %v1423
    %v1575 = vadd.f32 %v1254, %v1425
    %v1576 = vadd.f32 %v1255, %v1427
    %v1577 = vadd.f32 %v1256, %v1429
    %v1578 = vadd.f32 %v1257, %v1431
    %v1579 = vadd.f32 %v1258, %v1433
    %v1580 = vadd.f32 %v1259, %v1435
    %v1581 = vadd.f32 %v1260, %v1437
    %v1582 = vadd.f32 %v1261, %v1439
    %v1583 = vadd.f32 %v1262, %v1441
    %v1584 = vadd.f32 %v1263, %v1443
    %v1585 = vadd.f32 %v1264, %v1445
    %v1586 = vadd.f32 %v1265, %v1447
    %v1587 = vadd.f32 %v1266, %v1449
    %v1588 = vadd.f32 %v1267, %v1451
    %v1589 = vadd.f32 %v1268, %v1453
    %v1590 = vadd.f32 %v1269, %v1455
    %v1591 = vadd.f32 %v1270, %v1457
    %v1592 = vadd.f32 %v1271, %v1459
    %v1593 = vadd.f32 %v1272, %v1461
    %v1594 = vadd.f32 %v1273, %v1463
    %v1595 = vadd.f32 %v1274, %v1465
    %v1596 = vadd.f32 %v1275, %v1467
    %v1597 = vadd.f32 %v1276, %v1469
    %v1598 = vadd.f32 %v1277, %v1471
    %v1599 = vadd.f32 %v1278, %v1473
    %v1600 = vadd.f32 %v1279, %v1475
    %v1601 = vadd.f32 %v1280, %v1477
    %v1602 = vadd.f32 %v1281, %v1479
    %v1603 = vadd.f32 %v1282, %v1481
    %v1604 = vadd.f32 %v1283, %v1483
    %v1605 = vadd.f32 %v1284, %v1485
    %v1606 = vadd.f32 %v1285, %v1487
    %v1607 = vadd.f32 %v1286, %v1489
    %v1608 = vadd.f32 %v1287, %v1491
    %v1609 = vadd.f32 %v1288, %v1493
    %v1610 = vadd.f32 %v1289, %v1495
    %v1611 = vadd.f32 %v1290, %v1497
    %v1612 = vadd.f32 %v1291, %v1499
    %v1613 = vadd.f32 %v1292, %v1501
    %v1614 = vadd.f32 %v1293, %v1503
    %v1615 = vadd.f32 %v1294, %v1505
    %v1616 = vadd.f32 %v1295, %v1507
    %v1617 = vadd.f32 %v1296, %v1509
    %v1618 = vadd.f32 %v1297, %v1511
    %v1619 = vadd.f32 %v1298, %v1513
    %v1620 = vadd.f32 %v1299, %v1515
    %v1621 = vadd.f32 %v1300, %v1517
    %v1622 = vadd.f32 %v1301, %v1519
    %v1623 = vadd.f32 %v1302, %v1521
    %v1624 = vadd.f32 %v1303, %v1523
    %v1625 = vadd.f32 %v1304, %v1525
    %v1626 = vadd.f32 %v1305, %v1527
    %v1627 = vadd.f32 %v1306, %v1529
    %v1628 = vadd.f32 %v1307, %v1531
    %v1629 = vadd.f32 %v1308, %v1533
    %v1630 = vadd.f32 %v1309, %v1535
    %v1631 = vadd.f32 %v1310, %v1537
    %v1632 = vadd.f32 %v1311, %v1539
    %v1633 = vadd.f32 %v1312, %v1541
    %v1634 = vadd.f32 %v1313, %v1543
    %v1635 = vadd.f32 %v1314, %v1545
    %v1636 = vadd.f32 %v1315, %v1547
    %v1637 = vadd.f32 %v1316, %v1549
    %v1638 = vadd.f32 %v1317, %v1551
    %v1639 = vadd.f32 %v1318, %v1553
    %v1640 = vadd.f32 %v1319, %v1555
    %v1641 = vadd.f32 %v1320, %v1557
    %v1642 = vadd.f32 %v1321, %v1559
    %v1643 = vadd.f32 %v1322, %v1561
    %v1644 = vadd.f32 %v1323, %v1563
    %v1645 = vadd.f32 %v1324, %v1565
    %v1646 = vld [vmem:[%s217 + $0x2] sm:$0xff]
    %v1647 = vld [vmem:[%s217 + $0xa] sm:$0xff]
    %v1648 = vld [vmem:[%s217 + $0x1a] sm:$0xff]
    %v1649 = vld [vmem:[%s217 + $0x22] sm:$0xff]
    %v1650 = vld [vmem:[%s217 + $0x32] sm:$0xff]
    %v1651 = vld [vmem:[%s217 + $0x3a] sm:$0xff]
    %v1652 = vld [vmem:[%s217 + $0x4a] sm:$0xff]
    %v1653 = vld [vmem:[%s217 + $0x52] sm:$0xff]
    %v1654 = vld [vmem:[%s217 + $0x62] sm:$0xff]
    %v1655 = vld [vmem:[%s217 + $0x6a] sm:$0xff]
    %v1656 = vld [vmem:[%s217 + $0x7a] sm:$0xff]
    %v1657 = vld [vmem:[%s217 + $0x82] sm:$0xff]
    %v1658 = vld [vmem:[%s217 + $0x92] sm:$0xff]
    %v1659 = vld [vmem:[%s217 + $0x9a] sm:$0xff]
    %v1660 = vld [vmem:[%s217 + $0xaa] sm:$0xff]
    %v1661 = vld [vmem:[%s217 + $0xb2] sm:$0xff]
    %v1662 = vld [vmem:[%s217 + $0xc2] sm:$0xff]
    %v1663 = vld [vmem:[%s217 + $0xca] sm:$0xff]
    %v1664 = vld [vmem:[%s217 + $0xda] sm:$0xff]
    %v1665 = vld [vmem:[%s217 + $0xe2] sm:$0xff]
    %v1666 = vld [vmem:[%s217 + $0xf2] sm:$0xff]
    %v1667 = vld [vmem:[%s217 + $0xfa] sm:$0xff]
    %v1668 = vld [vmem:[%s217 + $0x10a] sm:$0xff]
    %v1669 = vld [vmem:[%s217 + $0x112] sm:$0xff]
    %v1670 = vld [vmem:[%s217 + $0x122] sm:$0xff]
    %v1671 = vld [vmem:[%s217 + $0x12a] sm:$0xff]
    %v1672 = vld [vmem:[%s217 + $0x13a] sm:$0xff]
    %v1673 = vld [vmem:[%s217 + $0x142] sm:$0xff]
    %v1674 = vld [vmem:[%s217 + $0x152] sm:$0xff]
    %v1675 = vld [vmem:[%s217 + $0x15a] sm:$0xff]
    %v1676 = vld [vmem:[%s217 + $0x16a] sm:$0xff]
    %v1677 = vld [vmem:[%s217 + $0x172] sm:$0xff]
    %v1678 = vld [vmem:[%s217 + $0x1b2] sm:$0xff]
    %v1679 = vld [vmem:[%s217 + $0x1ba] sm:$0xff]
    %v1680 = vld [vmem:[%s217 + $0x1ca] sm:$0xff]
    %v1681 = vld [vmem:[%s217 + $0x1d2] sm:$0xff]
    %v1682 = vld [vmem:[%s217 + $0x1e2] sm:$0xff]
    %v1683 = vld [vmem:[%s217 + $0x1ea] sm:$0xff]
    %v1684 = vld [vmem:[%s217 + $0x1fa] sm:$0xff]
    %v1685 = vld [vmem:[%s217 + $0x202] sm:$0xff]
    %v1686 = vld [vmem:[%s217 + $0x212] sm:$0xff]
    %v1687 = vld [vmem:[%s217 + $0x21a] sm:$0xff]
    %v1688 = vld [vmem:[%s217 + $0x22a] sm:$0xff]
    %v1689 = vld [vmem:[%s217 + $0x232] sm:$0xff]
    %v1690 = vld [vmem:[%s217 + $0x242] sm:$0xff]
    %v1691 = vld [vmem:[%s217 + $0x24a] sm:$0xff]
    %v1692 = vld [vmem:[%s217 + $0x25a] sm:$0xff]
    %v1693 = vld [vmem:[%s217 + $0x262] sm:$0xff]
    %v1694 = vld [vmem:[%s217 + $0x272] sm:$0xff]
    %v1695 = vld [vmem:[%s217 + $0x27a] sm:$0xff]
    %v1696 = vld [vmem:[%s217 + $0x28a] sm:$0xff]
    %v1697 = vld [vmem:[%s217 + $0x292] sm:$0xff]
    %v1698 = vld [vmem:[%s217 + $0x2a2] sm:$0xff]
    %v1699 = vld [vmem:[%s217 + $0x2aa] sm:$0xff]
    %v1700 = vld [vmem:[%s217 + $0x2ba] sm:$0xff]
    %v1701 = vld [vmem:[%s217 + $0x2c2] sm:$0xff]
    %v1702 = vld [vmem:[%s217 + $0x2d2] sm:$0xff]
    %v1703 = vld [vmem:[%s217 + $0x2da] sm:$0xff]
    %v1704 = vld [vmem:[%s217 + $0x2ea] sm:$0xff]
    %v1705 = vld [vmem:[%s217 + $0x2f2] sm:$0xff]
    %v1706 = vld [vmem:[%s217 + $0x302] sm:$0xff]
    %v1707 = vld [vmem:[%s217 + $0x30a] sm:$0xff]
    %v1708 = vld [vmem:[%s217 + $0x31a] sm:$0xff]
    %v1709 = vld [vmem:[%s217 + $0x322] sm:$0xff]
    %s1710 = scalar_lea.vmem [#allocation6], 640
    %v1711 = vld [vmem:[%s1710] sm:$0xff]
    %v1712 = vld [vmem:[%s1710 + $0x8] sm:$0xff]
    %v1713 = vld [vmem:[%s1710 + $0x10] sm:$0xff]
    %v1714 = vld [vmem:[%s1710 + $0x18] sm:$0xff]
    %v1715 = vld [vmem:[%s1710 + $0x20] sm:$0xff]
    %v1716 = vld [vmem:[%s1710 + $0x28] sm:$0xff]
    %v1717 = vld [vmem:[%s1710 + $0x30] sm:$0xff]
    %v1718 = vld [vmem:[%s1710 + $0x38] sm:$0xff]
    %v1719 = vld [vmem:[%s1710 + $0x40] sm:$0xff]
    %v1720 = vld [vmem:[%s1710 + $0x48] sm:$0xff]
    %v1721 = vld [vmem:[%s1710 + $0x50] sm:$0xff]
    %v1722 = vld [vmem:[%s1710 + $0x58] sm:$0xff]
    %v1723 = vld [vmem:[%s1710 + $0x60] sm:$0xff]
    %v1724 = vld [vmem:[%s1710 + $0x68] sm:$0xff]
    %v1725 = vld [vmem:[%s1710 + $0x70] sm:$0xff]
    %v1726 = vld [vmem:[%s1710 + $0x78] sm:$0xff]
    %1727 = vrot.lane.b32.xlu0 %v1646, 20
    %v1728 = vpop.permute.xlu0 %1727
    %1729 = vrot.lane.b32.xlu0 %v1647, 20
    %v1730 = vpop.permute.xlu0 %1729
    %1731 = vrot.lane.b32.xlu0 %v1648, 20
    %v1732 = vpop.permute.xlu0 %1731
    %1733 = vrot.lane.b32.xlu0 %v1649, 20
    %v1734 = vpop.permute.xlu0 %1733
    %1735 = vrot.lane.b32.xlu0 %v1650, 20
    %v1736 = vpop.permute.xlu0 %1735
    %1737 = vrot.lane.b32.xlu0 %v1651, 20
    %v1738 = vpop.permute.xlu0 %1737
    %1739 = vrot.lane.b32.xlu0 %v1652, 20
    %v1740 = vpop.permute.xlu0 %1739
    %1741 = vrot.lane.b32.xlu0 %v1653, 20
    %v1742 = vpop.permute.xlu0 %1741
    %1743 = vrot.lane.b32.xlu0 %v1654, 20
    %v1744 = vpop.permute.xlu0 %1743
    %1745 = vrot.lane.b32.xlu0 %v1655, 20
    %v1746 = vpop.permute.xlu0 %1745
    %1747 = vrot.lane.b32.xlu0 %v1656, 20
    %v1748 = vpop.permute.xlu0 %1747
    %1749 = vrot.lane.b32.xlu0 %v1657, 20
    %v1750 = vpop.permute.xlu0 %1749
    %1751 = vrot.lane.b32.xlu0 %v1658, 20
    %v1752 = vpop.permute.xlu0 %1751
    %1753 = vrot.lane.b32.xlu0 %v1659, 20
    %v1754 = vpop.permute.xlu0 %1753
    %1755 = vrot.lane.b32.xlu0 %v1660, 20
    %v1756 = vpop.permute.xlu0 %1755
    %1757 = vrot.lane.b32.xlu0 %v1661, 20
    %v1758 = vpop.permute.xlu0 %1757
    %1759 = vrot.lane.b32.xlu0 %v1662, 20
    %v1760 = vpop.permute.xlu0 %1759
    %1761 = vrot.lane.b32.xlu0 %v1663, 20
    %v1762 = vpop.permute.xlu0 %1761
    %1763 = vrot.lane.b32.xlu0 %v1664, 20
    %v1764 = vpop.permute.xlu0 %1763
    %1765 = vrot.lane.b32.xlu0 %v1665, 20
    %v1766 = vpop.permute.xlu0 %1765
    %1767 = vrot.lane.b32.xlu0 %v1666, 20
    %v1768 = vpop.permute.xlu0 %1767
    %1769 = vrot.lane.b32.xlu0 %v1667, 20
    %v1770 = vpop.permute.xlu0 %1769
    %1771 = vrot.lane.b32.xlu0 %v1668, 20
    %v1772 = vpop.permute.xlu0 %1771
    %1773 = vrot.lane.b32.xlu0 %v1669, 20
    %v1774 = vpop.permute.xlu0 %1773
    %1775 = vrot.lane.b32.xlu0 %v1670, 20
    %v1776 = vpop.permute.xlu0 %1775
    %1777 = vrot.lane.b32.xlu0 %v1671, 20
    %v1778 = vpop.permute.xlu0 %1777
    %1779 = vrot.lane.b32.xlu0 %v1672, 20
    %v1780 = vpop.permute.xlu0 %1779
    %1781 = vrot.lane.b32.xlu0 %v1673, 20
    %v1782 = vpop.permute.xlu0 %1781
    %1783 = vrot.lane.b32.xlu0 %v1674, 20
    %v1784 = vpop.permute.xlu0 %1783
    %1785 = vrot.lane.b32.xlu0 %v1675, 20
    %v1786 = vpop.permute.xlu0 %1785
    %1787 = vrot.lane.b32.xlu0 %v1676, 20
    %v1788 = vpop.permute.xlu0 %1787
    %1789 = vrot.lane.b32.xlu0 %v1677, 20
    %v1790 = vpop.permute.xlu0 %1789
    %1791 = vrot.lane.b32.xlu0 %v1678, 20
    %v1792 = vpop.permute.xlu0 %1791
    %1793 = vrot.lane.b32.xlu0 %v1679, 20
    %v1794 = vpop.permute.xlu0 %1793
    %1795 = vrot.lane.b32.xlu0 %v1680, 20
    %v1796 = vpop.permute.xlu0 %1795
    %1797 = vrot.lane.b32.xlu0 %v1681, 20
    %v1798 = vpop.permute.xlu0 %1797
    %1799 = vrot.lane.b32.xlu0 %v1682, 20
    %v1800 = vpop.permute.xlu0 %1799
    %1801 = vrot.lane.b32.xlu0 %v1683, 20
    %v1802 = vpop.permute.xlu0 %1801
    %1803 = vrot.lane.b32.xlu0 %v1684, 20
    %v1804 = vpop.permute.xlu0 %1803
    %1805 = vrot.lane.b32.xlu0 %v1685, 20
    %v1806 = vpop.permute.xlu0 %1805
    %1807 = vrot.lane.b32.xlu0 %v1686, 20
    %v1808 = vpop.permute.xlu0 %1807
    %1809 = vrot.lane.b32.xlu0 %v1687, 20
    %v1810 = vpop.permute.xlu0 %1809
    %1811 = vrot.lane.b32.xlu0 %v1688, 20
    %v1812 = vpop.permute.xlu0 %1811
    %1813 = vrot.lane.b32.xlu0 %v1689, 20
    %v1814 = vpop.permute.xlu0 %1813
    %1815 = vrot.lane.b32.xlu0 %v1690, 20
    %v1816 = vpop.permute.xlu0 %1815
    %1817 = vrot.lane.b32.xlu0 %v1691, 20
    %v1818 = vpop.permute.xlu0 %1817
    %1819 = vrot.lane.b32.xlu0 %v1692, 20
    %v1820 = vpop.permute.xlu0 %1819
    %1821 = vrot.lane.b32.xlu0 %v1693, 20
    %v1822 = vpop.permute.xlu0 %1821
    %1823 = vrot.lane.b32.xlu0 %v1694, 20
    %v1824 = vpop.permute.xlu0 %1823
    %1825 = vrot.lane.b32.xlu0 %v1695, 20
    %v1826 = vpop.permute.xlu0 %1825
    %1827 = vrot.lane.b32.xlu0 %v1696, 20
    %v1828 = vpop.permute.xlu0 %1827
    %1829 = vrot.lane.b32.xlu0 %v1697, 20
    %v1830 = vpop.permute.xlu0 %1829
    %1831 = vrot.lane.b32.xlu0 %v1698, 20
    %v1832 = vpop.permute.xlu0 %1831
    %1833 = vrot.lane.b32.xlu0 %v1699, 20
    %v1834 = vpop.permute.xlu0 %1833
    %1835 = vrot.lane.b32.xlu0 %v1700, 20
    %v1836 = vpop.permute.xlu0 %1835
    %1837 = vrot.lane.b32.xlu0 %v1701, 20
    %v1838 = vpop.permute.xlu0 %1837
    %1839 = vrot.lane.b32.xlu0 %v1702, 20
    %v1840 = vpop.permute.xlu0 %1839
    %1841 = vrot.lane.b32.xlu0 %v1703, 20
    %v1842 = vpop.permute.xlu0 %1841
    %1843 = vrot.lane.b32.xlu0 %v1704, 20
    %v1844 = vpop.permute.xlu0 %1843
    %1845 = vrot.lane.b32.xlu0 %v1705, 20
    %v1846 = vpop.permute.xlu0 %1845
    %1847 = vrot.lane.b32.xlu0 %v1706, 20
    %v1848 = vpop.permute.xlu0 %1847
    %1849 = vrot.lane.b32.xlu0 %v1707, 20
    %v1850 = vpop.permute.xlu0 %1849
    %1851 = vrot.lane.b32.xlu0 %v1708, 20
    %v1852 = vpop.permute.xlu0 %1851
    %1853 = vrot.lane.b32.xlu0 %v1709, 20
    %v1854 = vpop.permute.xlu0 %1853
    %1855 = vrot.lane.b32.xlu0 %v1711, 20
    %v1856 = vpop.permute.xlu0 %1855
    %1857 = vrot.lane.b32.xlu0 %v1712, 20
    %v1858 = vpop.permute.xlu0 %1857
    %1859 = vrot.lane.b32.xlu0 %v1713, 20
    %v1860 = vpop.permute.xlu0 %1859
    %1861 = vrot.lane.b32.xlu0 %v1714, 20
    %v1862 = vpop.permute.xlu0 %1861
    %1863 = vrot.lane.b32.xlu0 %v1715, 20
    %v1864 = vpop.permute.xlu0 %1863
    %1865 = vrot.lane.b32.xlu0 %v1716, 20
    %v1866 = vpop.permute.xlu0 %1865
    %1867 = vrot.lane.b32.xlu0 %v1717, 20
    %v1868 = vpop.permute.xlu0 %1867
    %1869 = vrot.lane.b32.xlu0 %v1718, 20
    %v1870 = vpop.permute.xlu0 %1869
    %1871 = vrot.lane.b32.xlu0 %v1719, 20
    %v1872 = vpop.permute.xlu0 %1871
    %1873 = vrot.lane.b32.xlu0 %v1720, 20
    %v1874 = vpop.permute.xlu0 %1873
    %1875 = vrot.lane.b32.xlu0 %v1721, 20
    %v1876 = vpop.permute.xlu0 %1875
    %1877 = vrot.lane.b32.xlu0 %v1722, 20
    %v1878 = vpop.permute.xlu0 %1877
    %1879 = vrot.lane.b32.xlu0 %v1723, 20
    %v1880 = vpop.permute.xlu0 %1879
    %1881 = vrot.lane.b32.xlu0 %v1724, 20
    %v1882 = vpop.permute.xlu0 %1881
    %1883 = vrot.lane.b32.xlu0 %v1725, 20
    %v1884 = vpop.permute.xlu0 %1883
    %1885 = vrot.lane.b32.xlu0 %v1726, 20
    %v1886 = vpop.permute.xlu0 %1885
    %v1887 = vadd.f32 %v1566, %v1728
    %v1888 = vadd.f32 %v1567, %v1730
    %v1889 = vadd.f32 %v1568, %v1732
    %v1890 = vadd.f32 %v1569, %v1734
    %v1891 = vadd.f32 %v1570, %v1736
    %v1892 = vadd.f32 %v1571, %v1738
    %v1893 = vadd.f32 %v1572, %v1740
    %v1894 = vadd.f32 %v1573, %v1742
    %v1895 = vadd.f32 %v1574, %v1744
    %v1896 = vadd.f32 %v1575, %v1746
    %v1897 = vadd.f32 %v1576, %v1748
    %v1898 = vadd.f32 %v1577, %v1750
    %v1899 = vadd.f32 %v1578, %v1752
    %v1900 = vadd.f32 %v1579, %v1754
    %v1901 = vadd.f32 %v1580, %v1756
    %v1902 = vadd.f32 %v1581, %v1758
    %v1903 = vadd.f32 %v1582, %v1760
    %v1904 = vadd.f32 %v1583, %v1762
    %v1905 = vadd.f32 %v1584, %v1764
    %v1906 = vadd.f32 %v1585, %v1766
    %v1907 = vadd.f32 %v1586, %v1768
    %v1908 = vadd.f32 %v1587, %v1770
    %v1909 = vadd.f32 %v1588, %v1772
    %v1910 = vadd.f32 %v1589, %v1774
    %v1911 = vadd.f32 %v1590, %v1776
    %v1912 = vadd.f32 %v1591, %v1778
    %v1913 = vadd.f32 %v1592, %v1780
    %v1914 = vadd.f32 %v1593, %v1782
    %v1915 = vadd.f32 %v1594, %v1784
    %v1916 = vadd.f32 %v1595, %v1786
    %v1917 = vadd.f32 %v1596, %v1788
    %v1918 = vadd.f32 %v1597, %v1790
    %v1919 = vadd.f32 %v1598, %v1792
    %v1920 = vadd.f32 %v1599, %v1794
    %v1921 = vadd.f32 %v1600, %v1796
    %v1922 = vadd.f32 %v1601, %v1798
    %v1923 = vadd.f32 %v1602, %v1800
    %v1924 = vadd.f32 %v1603, %v1802
    %v1925 = vadd.f32 %v1604, %v1804
    %v1926 = vadd.f32 %v1605, %v1806
    %v1927 = vadd.f32 %v1606, %v1808
    %v1928 = vadd.f32 %v1607, %v1810
    %v1929 = vadd.f32 %v1608, %v1812
    %v1930 = vadd.f32 %v1609, %v1814
    %v1931 = vadd.f32 %v1610, %v1816
    %v1932 = vadd.f32 %v1611, %v1818
    %v1933 = vadd.f32 %v1612, %v1820
    %v1934 = vadd.f32 %v1613, %v1822
    %v1935 = vadd.f32 %v1614, %v1824
    %v1936 = vadd.f32 %v1615, %v1826
    %v1937 = vadd.f32 %v1616, %v1828
    %v1938 = vadd.f32 %v1617, %v1830
    %v1939 = vadd.f32 %v1618, %v1832
    %v1940 = vadd.f32 %v1619, %v1834
    %v1941 = vadd.f32 %v1620, %v1836
    %v1942 = vadd.f32 %v1621, %v1838
    %v1943 = vadd.f32 %v1622, %v1840
    %v1944 = vadd.f32 %v1623, %v1842
    %v1945 = vadd.f32 %v1624, %v1844
    %v1946 = vadd.f32 %v1625, %v1846
    %v1947 = vadd.f32 %v1626, %v1848
    %v1948 = vadd.f32 %v1627, %v1850
    %v1949 = vadd.f32 %v1628, %v1852
    %v1950 = vadd.f32 %v1629, %v1854
    %v1951 = vadd.f32 %v1630, %v1856
    %v1952 = vadd.f32 %v1631, %v1858
    %v1953 = vadd.f32 %v1632, %v1860
    %v1954 = vadd.f32 %v1633, %v1862
    %v1955 = vadd.f32 %v1634, %v1864
    %v1956 = vadd.f32 %v1635, %v1866
    %v1957 = vadd.f32 %v1636, %v1868
    %v1958 = vadd.f32 %v1637, %v1870
    %v1959 = vadd.f32 %v1638, %v1872
    %v1960 = vadd.f32 %v1639, %v1874
    %v1961 = vadd.f32 %v1640, %v1876
    %v1962 = vadd.f32 %v1641, %v1878
    %v1963 = vadd.f32 %v1642, %v1880
    %v1964 = vadd.f32 %v1643, %v1882
    %v1965 = vadd.f32 %v1644, %v1884
    %v1966 = vadd.f32 %v1645, %v1886
    %s1967 = scalar_lea.vmem [#allocation2], 48
    %v1968 = vld [vmem:[%s1967] sm:$0xff]
    %v1969 = vld [vmem:[%s1967 + $0x8] sm:$0xff]
    %v1970 = vld [vmem:[%s1967 + $0x18] sm:$0xff]
    %v1971 = vld [vmem:[%s1967 + $0x20] sm:$0xff]
    %v1972 = vld [vmem:[%s1967 + $0x30] sm:$0xff]
    %v1973 = vld [vmem:[%s1967 + $0x38] sm:$0xff]
    %v1974 = vld [vmem:[%s1967 + $0x48] sm:$0xff]
    %v1975 = vld [vmem:[%s1967 + $0x50] sm:$0xff]
    %v1976 = vld [vmem:[%s1967 + $0x60] sm:$0xff]
    %v1977 = vld [vmem:[%s1967 + $0x68] sm:$0xff]
    %v1978 = vld [vmem:[%s1967 + $0x78] sm:$0xff]
    %v1979 = vld [vmem:[%s1967 + $0x80] sm:$0xff]
    %v1980 = vld [vmem:[%s1967 + $0x90] sm:$0xff]
    %v1981 = vld [vmem:[%s1967 + $0x98] sm:$0xff]
    %v1982 = vld [vmem:[%s1967 + $0xa8] sm:$0xff]
    %v1983 = vld [vmem:[%s1967 + $0xb0] sm:$0xff]
    %v1984 = vld [vmem:[%s1967 + $0xc0] sm:$0xff]
    %v1985 = vld [vmem:[%s1967 + $0xc8] sm:$0xff]
    %v1986 = vld [vmem:[%s1967 + $0xd8] sm:$0xff]
    %v1987 = vld [vmem:[%s1967 + $0xe0] sm:$0xff]
    %v1988 = vld [vmem:[%s1967 + $0xf0] sm:$0xff]
    %v1989 = vld [vmem:[%s1967 + $0xf8] sm:$0xff]
    %v1990 = vld [vmem:[%s1967 + $0x108] sm:$0xff]
    %v1991 = vld [vmem:[%s1967 + $0x110] sm:$0xff]
    %v1992 = vld [vmem:[%s1967 + $0x120] sm:$0xff]
    %v1993 = vld [vmem:[%s1967 + $0x128] sm:$0xff]
    %v1994 = vld [vmem:[%s1967 + $0x138] sm:$0xff]
    %v1995 = vld [vmem:[%s1967 + $0x140] sm:$0xff]
    %v1996 = vld [vmem:[%s1967 + $0x150] sm:$0xff]
    %v1997 = vld [vmem:[%s1967 + $0x158] sm:$0xff]
    %v1998 = vld [vmem:[%s1967 + $0x168] sm:$0xff]
    %v1999 = vld [vmem:[%s1967 + $0x170] sm:$0xff]
    %v2000 = vld [vmem:[%s1967 + $0x1b0] sm:$0xff]
    %v2001 = vld [vmem:[%s1967 + $0x1b8] sm:$0xff]
    %v2002 = vld [vmem:[%s1967 + $0x1c8] sm:$0xff]
    %v2003 = vld [vmem:[%s1967 + $0x1d0] sm:$0xff]
    %v2004 = vld [vmem:[%s1967 + $0x1e0] sm:$0xff]
    %v2005 = vld [vmem:[%s1967 + $0x1e8] sm:$0xff]
    %v2006 = vld [vmem:[%s1967 + $0x1f8] sm:$0xff]
    %v2007 = vld [vmem:[%s1967 + $0x200] sm:$0xff]
    %v2008 = vld [vmem:[%s1967 + $0x210] sm:$0xff]
    %v2009 = vld [vmem:[%s1967 + $0x218] sm:$0xff]
    %v2010 = vld [vmem:[%s1967 + $0x228] sm:$0xff]
    %v2011 = vld [vmem:[%s1967 + $0x230] sm:$0xff]
    %v2012 = vld [vmem:[%s1967 + $0x240] sm:$0xff]
    %v2013 = vld [vmem:[%s1967 + $0x248] sm:$0xff]
    %v2014 = vld [vmem:[%s1967 + $0x258] sm:$0xff]
    %v2015 = vld [vmem:[%s1967 + $0x260] sm:$0xff]
    %v2016 = vld [vmem:[%s1967 + $0x270] sm:$0xff]
    %v2017 = vld [vmem:[%s1967 + $0x278] sm:$0xff]
    %v2018 = vld [vmem:[%s1967 + $0x288] sm:$0xff]
    %v2019 = vld [vmem:[%s1967 + $0x290] sm:$0xff]
    %v2020 = vld [vmem:[%s1967 + $0x2a0] sm:$0xff]
    %v2021 = vld [vmem:[%s1967 + $0x2a8] sm:$0xff]
    %v2022 = vld [vmem:[%s1967 + $0x2b8] sm:$0xff]
    %v2023 = vld [vmem:[%s1967 + $0x2c0] sm:$0xff]
    %v2024 = vld [vmem:[%s1967 + $0x2d0] sm:$0xff]
    %v2025 = vld [vmem:[%s1967 + $0x2d8] sm:$0xff]
    %v2026 = vld [vmem:[%s1967 + $0x2e8] sm:$0xff]
    %v2027 = vld [vmem:[%s1967 + $0x2f0] sm:$0xff]
    %v2028 = vld [vmem:[%s1967 + $0x300] sm:$0xff]
    %v2029 = vld [vmem:[%s1967 + $0x308] sm:$0xff]
    %v2030 = vld [vmem:[%s1967 + $0x318] sm:$0xff]
    %v2031 = vld [vmem:[%s1967 + $0x320] sm:$0xff]
    %s2032 = scalar_lea.vmem [#allocation6], 768
    %v2033 = vld [vmem:[%s2032] sm:$0xff]
    %v2034 = vld [vmem:[%s2032 + $0x8] sm:$0xff]
    %v2035 = vld [vmem:[%s2032 + $0x10] sm:$0xff]
    %v2036 = vld [vmem:[%s2032 + $0x18] sm:$0xff]
    %v2037 = vld [vmem:[%s2032 + $0x20] sm:$0xff]
    %v2038 = vld [vmem:[%s2032 + $0x28] sm:$0xff]
    %v2039 = vld [vmem:[%s2032 + $0x30] sm:$0xff]
    %v2040 = vld [vmem:[%s2032 + $0x38] sm:$0xff]
    %v2041 = vld [vmem:[%s2032 + $0x40] sm:$0xff]
    %v2042 = vld [vmem:[%s2032 + $0x48] sm:$0xff]
    %v2043 = vld [vmem:[%s2032 + $0x50] sm:$0xff]
    %v2044 = vld [vmem:[%s2032 + $0x58] sm:$0xff]
    %v2045 = vld [vmem:[%s2032 + $0x60] sm:$0xff]
    %v2046 = vld [vmem:[%s2032 + $0x68] sm:$0xff]
    %v2047 = vld [vmem:[%s2032 + $0x70] sm:$0xff]
    %v2048 = vld [vmem:[%s2032 + $0x78] sm:$0xff]
    %2049 = vrot.lane.b32.xlu0 %v1968, 24
    %v2050 = vpop.permute.xlu0 %2049
    %2051 = vrot.lane.b32.xlu0 %v1969, 24
    %v2052 = vpop.permute.xlu0 %2051
    %2053 = vrot.lane.b32.xlu0 %v1970, 24
    %v2054 = vpop.permute.xlu0 %2053
    %2055 = vrot.lane.b32.xlu0 %v1971, 24
    %v2056 = vpop.permute.xlu0 %2055
    %2057 = vrot.lane.b32.xlu0 %v1972, 24
    %v2058 = vpop.permute.xlu0 %2057
    %2059 = vrot.lane.b32.xlu0 %v1973, 24
    %v2060 = vpop.permute.xlu0 %2059
    %2061 = vrot.lane.b32.xlu0 %v1974, 24
    %v2062 = vpop.permute.xlu0 %2061
    %2063 = vrot.lane.b32.xlu0 %v1975, 24
    %v2064 = vpop.permute.xlu0 %2063
    %2065 = vrot.lane.b32.xlu0 %v1976, 24
    %v2066 = vpop.permute.xlu0 %2065
    %2067 = vrot.lane.b32.xlu0 %v1977, 24
    %v2068 = vpop.permute.xlu0 %2067
    %2069 = vrot.lane.b32.xlu0 %v1978, 24
    %v2070 = vpop.permute.xlu0 %2069
    %2071 = vrot.lane.b32.xlu0 %v1979, 24
    %v2072 = vpop.permute.xlu0 %2071
    %2073 = vrot.lane.b32.xlu0 %v1980, 24
    %v2074 = vpop.permute.xlu0 %2073
    %2075 = vrot.lane.b32.xlu0 %v1981, 24
    %v2076 = vpop.permute.xlu0 %2075
    %2077 = vrot.lane.b32.xlu0 %v1982, 24
    %v2078 = vpop.permute.xlu0 %2077
    %2079 = vrot.lane.b32.xlu0 %v1983, 24
    %v2080 = vpop.permute.xlu0 %2079
    %2081 = vrot.lane.b32.xlu0 %v1984, 24
    %v2082 = vpop.permute.xlu0 %2081
    %2083 = vrot.lane.b32.xlu0 %v1985, 24
    %v2084 = vpop.permute.xlu0 %2083
    %2085 = vrot.lane.b32.xlu0 %v1986, 24
    %v2086 = vpop.permute.xlu0 %2085
    %2087 = vrot.lane.b32.xlu0 %v1987, 24
    %v2088 = vpop.permute.xlu0 %2087
    %2089 = vrot.lane.b32.xlu0 %v1988, 24
    %v2090 = vpop.permute.xlu0 %2089
    %2091 = vrot.lane.b32.xlu0 %v1989, 24
    %v2092 = vpop.permute.xlu0 %2091
    %2093 = vrot.lane.b32.xlu0 %v1990, 24
    %v2094 = vpop.permute.xlu0 %2093
    %2095 = vrot.lane.b32.xlu0 %v1991, 24
    %v2096 = vpop.permute.xlu0 %2095
    %2097 = vrot.lane.b32.xlu0 %v1992, 24
    %v2098 = vpop.permute.xlu0 %2097
    %2099 = vrot.lane.b32.xlu0 %v1993, 24
    %v2100 = vpop.permute.xlu0 %2099
    %2101 = vrot.lane.b32.xlu0 %v1994, 24
    %v2102 = vpop.permute.xlu0 %2101
    %2103 = vrot.lane.b32.xlu0 %v1995, 24
    %v2104 = vpop.permute.xlu0 %2103
    %2105 = vrot.lane.b32.xlu0 %v1996, 24
    %v2106 = vpop.permute.xlu0 %2105
    %2107 = vrot.lane.b32.xlu0 %v1997, 24
    %v2108 = vpop.permute.xlu0 %2107
    %2109 = vrot.lane.b32.xlu0 %v1998, 24
    %v2110 = vpop.permute.xlu0 %2109
    %2111 = vrot.lane.b32.xlu0 %v1999, 24
    %v2112 = vpop.permute.xlu0 %2111
    %2113 = vrot.lane.b32.xlu0 %v2000, 24
    %v2114 = vpop.permute.xlu0 %2113
    %2115 = vrot.lane.b32.xlu0 %v2001, 24
    %v2116 = vpop.permute.xlu0 %2115
    %2117 = vrot.lane.b32.xlu0 %v2002, 24
    %v2118 = vpop.permute.xlu0 %2117
    %2119 = vrot.lane.b32.xlu0 %v2003, 24
    %v2120 = vpop.permute.xlu0 %2119
    %2121 = vrot.lane.b32.xlu0 %v2004, 24
    %v2122 = vpop.permute.xlu0 %2121
    %2123 = vrot.lane.b32.xlu0 %v2005, 24
    %v2124 = vpop.permute.xlu0 %2123
    %2125 = vrot.lane.b32.xlu0 %v2006, 24
    %v2126 = vpop.permute.xlu0 %2125
    %2127 = vrot.lane.b32.xlu0 %v2007, 24
    %v2128 = vpop.permute.xlu0 %2127
    %2129 = vrot.lane.b32.xlu0 %v2008, 24
    %v2130 = vpop.permute.xlu0 %2129
    %2131 = vrot.lane.b32.xlu0 %v2009, 24
    %v2132 = vpop.permute.xlu0 %2131
    %2133 = vrot.lane.b32.xlu0 %v2010, 24
    %v2134 = vpop.permute.xlu0 %2133
    %2135 = vrot.lane.b32.xlu0 %v2011, 24
    %v2136 = vpop.permute.xlu0 %2135
    %2137 = vrot.lane.b32.xlu0 %v2012, 24
    %v2138 = vpop.permute.xlu0 %2137
    %2139 = vrot.lane.b32.xlu0 %v2013, 24
    %v2140 = vpop.permute.xlu0 %2139
    %2141 = vrot.lane.b32.xlu0 %v2014, 24
    %v2142 = vpop.permute.xlu0 %2141
    %2143 = vrot.lane.b32.xlu0 %v2015, 24
    %v2144 = vpop.permute.xlu0 %2143
    %2145 = vrot.lane.b32.xlu0 %v2016, 24
    %v2146 = vpop.permute.xlu0 %2145
    %2147 = vrot.lane.b32.xlu0 %v2017, 24
    %v2148 = vpop.permute.xlu0 %2147
    %2149 = vrot.lane.b32.xlu0 %v2018, 24
    %v2150 = vpop.permute.xlu0 %2149
    %2151 = vrot.lane.b32.xlu0 %v2019, 24
    %v2152 = vpop.permute.xlu0 %2151
    %2153 = vrot.lane.b32.xlu0 %v2020, 24
    %v2154 = vpop.permute.xlu0 %2153
    %2155 = vrot.lane.b32.xlu0 %v2021, 24
    %v2156 = vpop.permute.xlu0 %2155
    %2157 = vrot.lane.b32.xlu0 %v2022, 24
    %v2158 = vpop.permute.xlu0 %2157
    %2159 = vrot.lane.b32.xlu0 %v2023, 24
    %v2160 = vpop.permute.xlu0 %2159
    %2161 = vrot.lane.b32.xlu0 %v2024, 24
    %v2162 = vpop.permute.xlu0 %2161
    %2163 = vrot.lane.b32.xlu0 %v2025, 24
    %v2164 = vpop.permute.xlu0 %2163
    %2165 = vrot.lane.b32.xlu0 %v2026, 24
    %v2166 = vpop.permute.xlu0 %2165
    %2167 = vrot.lane.b32.xlu0 %v2027, 24
    %v2168 = vpop.permute.xlu0 %2167
    %2169 = vrot.lane.b32.xlu0 %v2028, 24
    %v2170 = vpop.permute.xlu0 %2169
    %2171 = vrot.lane.b32.xlu0 %v2029, 24
    %v2172 = vpop.permute.xlu0 %2171
    %2173 = vrot.lane.b32.xlu0 %v2030, 24
    %v2174 = vpop.permute.xlu0 %2173
    %2175 = vrot.lane.b32.xlu0 %v2031, 24
    %v2176 = vpop.permute.xlu0 %2175
    %2177 = vrot.lane.b32.xlu0 %v2033, 24
    %v2178 = vpop.permute.xlu0 %2177
    %2179 = vrot.lane.b32.xlu0 %v2034, 24
    %v2180 = vpop.permute.xlu0 %2179
    %2181 = vrot.lane.b32.xlu0 %v2035, 24
    %v2182 = vpop.permute.xlu0 %2181
    %2183 = vrot.lane.b32.xlu0 %v2036, 24
    %v2184 = vpop.permute.xlu0 %2183
    %2185 = vrot.lane.b32.xlu0 %v2037, 24
    %v2186 = vpop.permute.xlu0 %2185
    %2187 = vrot.lane.b32.xlu0 %v2038, 24
    %v2188 = vpop.permute.xlu0 %2187
    %2189 = vrot.lane.b32.xlu0 %v2039, 24
    %v2190 = vpop.permute.xlu0 %2189
    %2191 = vrot.lane.b32.xlu0 %v2040, 24
    %v2192 = vpop.permute.xlu0 %2191
    %2193 = vrot.lane.b32.xlu0 %v2041, 24
    %v2194 = vpop.permute.xlu0 %2193
    %2195 = vrot.lane.b32.xlu0 %v2042, 24
    %v2196 = vpop.permute.xlu0 %2195
    %2197 = vrot.lane.b32.xlu0 %v2043, 24
    %v2198 = vpop.permute.xlu0 %2197
    %2199 = vrot.lane.b32.xlu0 %v2044, 24
    %v2200 = vpop.permute.xlu0 %2199
    %2201 = vrot.lane.b32.xlu0 %v2045, 24
    %v2202 = vpop.permute.xlu0 %2201
    %2203 = vrot.lane.b32.xlu0 %v2046, 24
    %v2204 = vpop.permute.xlu0 %2203
    %2205 = vrot.lane.b32.xlu0 %v2047, 24
    %v2206 = vpop.permute.xlu0 %2205
    %2207 = vrot.lane.b32.xlu0 %v2048, 24
    %v2208 = vpop.permute.xlu0 %2207
    %v2209 = vadd.f32 %v1887, %v2050
    %v2210 = vadd.f32 %v1888, %v2052
    %v2211 = vadd.f32 %v1889, %v2054
    %v2212 = vadd.f32 %v1890, %v2056
    %v2213 = vadd.f32 %v1891, %v2058
    %v2214 = vadd.f32 %v1892, %v2060
    %v2215 = vadd.f32 %v1893, %v2062
    %v2216 = vadd.f32 %v1894, %v2064
    %v2217 = vadd.f32 %v1895, %v2066
    %v2218 = vadd.f32 %v1896, %v2068
    %v2219 = vadd.f32 %v1897, %v2070
    %v2220 = vadd.f32 %v1898, %v2072
    %v2221 = vadd.f32 %v1899, %v2074
    %v2222 = vadd.f32 %v1900, %v2076
    %v2223 = vadd.f32 %v1901, %v2078
    %v2224 = vadd.f32 %v1902, %v2080
    %v2225 = vadd.f32 %v1903, %v2082
    %v2226 = vadd.f32 %v1904, %v2084
    %v2227 = vadd.f32 %v1905, %v2086
    %v2228 = vadd.f32 %v1906, %v2088
    %v2229 = vadd.f32 %v1907, %v2090
    %v2230 = vadd.f32 %v1908, %v2092
    %v2231 = vadd.f32 %v1909, %v2094
    %v2232 = vadd.f32 %v1910, %v2096
    %v2233 = vadd.f32 %v1911, %v2098
    %v2234 = vadd.f32 %v1912, %v2100
    %v2235 = vadd.f32 %v1913, %v2102
    %v2236 = vadd.f32 %v1914, %v2104
    %v2237 = vadd.f32 %v1915, %v2106
    %v2238 = vadd.f32 %v1916, %v2108
    %v2239 = vadd.f32 %v1917, %v2110
    %v2240 = vadd.f32 %v1918, %v2112
    %v2241 = vadd.f32 %v1919, %v2114
    %v2242 = vadd.f32 %v1920, %v2116
    %v2243 = vadd.f32 %v1921, %v2118
    %v2244 = vadd.f32 %v1922, %v2120
    %v2245 = vadd.f32 %v1923, %v2122
    %v2246 = vadd.f32 %v1924, %v2124
    %v2247 = vadd.f32 %v1925, %v2126
    %v2248 = vadd.f32 %v1926, %v2128
    %v2249 = vadd.f32 %v1927, %v2130
    %v2250 = vadd.f32 %v1928, %v2132
    %v2251 = vadd.f32 %v1929, %v2134
    %v2252 = vadd.f32 %v1930, %v2136
    %v2253 = vadd.f32 %v1931, %v2138
    %v2254 = vadd.f32 %v1932, %v2140
    %v2255 = vadd.f32 %v1933, %v2142
    %v2256 = vadd.f32 %v1934, %v2144
    %v2257 = vadd.f32 %v1935, %v2146
    %v2258 = vadd.f32 %v1936, %v2148
    %v2259 = vadd.f32 %v1937, %v2150
    %v2260 = vadd.f32 %v1938, %v2152
    %v2261 = vadd.f32 %v1939, %v2154
    %v2262 = vadd.f32 %v1940, %v2156
    %v2263 = vadd.f32 %v1941, %v2158
    %v2264 = vadd.f32 %v1942, %v2160
    %v2265 = vadd.f32 %v1943, %v2162
    %v2266 = vadd.f32 %v1944, %v2164
    %v2267 = vadd.f32 %v1945, %v2166
    %v2268 = vadd.f32 %v1946, %v2168
    %v2269 = vadd.f32 %v1947, %v2170
    %v2270 = vadd.f32 %v1948, %v2172
    %v2271 = vadd.f32 %v1949, %v2174
    %v2272 = vadd.f32 %v1950, %v2176
    %v2273 = vadd.f32 %v1951, %v2178
    %v2274 = vadd.f32 %v1952, %v2180
    %v2275 = vadd.f32 %v1953, %v2182
    %v2276 = vadd.f32 %v1954, %v2184
    %v2277 = vadd.f32 %v1955, %v2186
    %v2278 = vadd.f32 %v1956, %v2188
    %v2279 = vadd.f32 %v1957, %v2190
    %v2280 = vadd.f32 %v1958, %v2192
    %v2281 = vadd.f32 %v1959, %v2194
    %v2282 = vadd.f32 %v1960, %v2196
    %v2283 = vadd.f32 %v1961, %v2198
    %v2284 = vadd.f32 %v1962, %v2200
    %v2285 = vadd.f32 %v1963, %v2202
    %v2286 = vadd.f32 %v1964, %v2204
    %v2287 = vadd.f32 %v1965, %v2206
    %v2288 = vadd.f32 %v1966, %v2208
    %v2289 = vld [vmem:[%s1967 + $0x1] sm:$0xff]
    %v2290 = vld [vmem:[%s1967 + $0x9] sm:$0xff]
    %v2291 = vld [vmem:[%s1967 + $0x19] sm:$0xff]
    %v2292 = vld [vmem:[%s1967 + $0x21] sm:$0xff]
    %v2293 = vld [vmem:[%s1967 + $0x31] sm:$0xff]
    %v2294 = vld [vmem:[%s1967 + $0x39] sm:$0xff]
    %v2295 = vld [vmem:[%s1967 + $0x49] sm:$0xff]
    %v2296 = vld [vmem:[%s1967 + $0x51] sm:$0xff]
    %v2297 = vld [vmem:[%s1967 + $0x61] sm:$0xff]
    %v2298 = vld [vmem:[%s1967 + $0x69] sm:$0xff]
    %v2299 = vld [vmem:[%s1967 + $0x79] sm:$0xff]
    %v2300 = vld [vmem:[%s1967 + $0x81] sm:$0xff]
    %v2301 = vld [vmem:[%s1967 + $0x91] sm:$0xff]
    %v2302 = vld [vmem:[%s1967 + $0x99] sm:$0xff]
    %v2303 = vld [vmem:[%s1967 + $0xa9] sm:$0xff]
    %v2304 = vld [vmem:[%s1967 + $0xb1] sm:$0xff]
    %v2305 = vld [vmem:[%s1967 + $0xc1] sm:$0xff]
    %v2306 = vld [vmem:[%s1967 + $0xc9] sm:$0xff]
    %v2307 = vld [vmem:[%s1967 + $0xd9] sm:$0xff]
    %v2308 = vld [vmem:[%s1967 + $0xe1] sm:$0xff]
    %v2309 = vld [vmem:[%s1967 + $0xf1] sm:$0xff]
    %v2310 = vld [vmem:[%s1967 + $0xf9] sm:$0xff]
    %v2311 = vld [vmem:[%s1967 + $0x109] sm:$0xff]
    %v2312 = vld [vmem:[%s1967 + $0x111] sm:$0xff]
    %v2313 = vld [vmem:[%s1967 + $0x121] sm:$0xff]
    %v2314 = vld [vmem:[%s1967 + $0x129] sm:$0xff]
    %v2315 = vld [vmem:[%s1967 + $0x139] sm:$0xff]
    %v2316 = vld [vmem:[%s1967 + $0x141] sm:$0xff]
    %v2317 = vld [vmem:[%s1967 + $0x151] sm:$0xff]
    %v2318 = vld [vmem:[%s1967 + $0x159] sm:$0xff]
    %v2319 = vld [vmem:[%s1967 + $0x169] sm:$0xff]
    %v2320 = vld [vmem:[%s1967 + $0x171] sm:$0xff]
    %v2321 = vld [vmem:[%s1967 + $0x1b1] sm:$0xff]
    %v2322 = vld [vmem:[%s1967 + $0x1b9] sm:$0xff]
    %v2323 = vld [vmem:[%s1967 + $0x1c9] sm:$0xff]
    %v2324 = vld [vmem:[%s1967 + $0x1d1] sm:$0xff]
    %v2325 = vld [vmem:[%s1967 + $0x1e1] sm:$0xff]
    %v2326 = vld [vmem:[%s1967 + $0x1e9] sm:$0xff]
    %v2327 = vld [vmem:[%s1967 + $0x1f9] sm:$0xff]
    %v2328 = vld [vmem:[%s1967 + $0x201] sm:$0xff]
    %v2329 = vld [vmem:[%s1967 + $0x211] sm:$0xff]
    %v2330 = vld [vmem:[%s1967 + $0x219] sm:$0xff]
    %v2331 = vld [vmem:[%s1967 + $0x229] sm:$0xff]
    %v2332 = vld [vmem:[%s1967 + $0x231] sm:$0xff]
    %v2333 = vld [vmem:[%s1967 + $0x241] sm:$0xff]
    %v2334 = vld [vmem:[%s1967 + $0x249] sm:$0xff]
    %v2335 = vld [vmem:[%s1967 + $0x259] sm:$0xff]
    %v2336 = vld [vmem:[%s1967 + $0x261] sm:$0xff]
    %v2337 = vld [vmem:[%s1967 + $0x271] sm:$0xff]
    %v2338 = vld [vmem:[%s1967 + $0x279] sm:$0xff]
    %v2339 = vld [vmem:[%s1967 + $0x289] sm:$0xff]
    %v2340 = vld [vmem:[%s1967 + $0x291] sm:$0xff]
    %v2341 = vld [vmem:[%s1967 + $0x2a1] sm:$0xff]
    %v2342 = vld [vmem:[%s1967 + $0x2a9] sm:$0xff]
    %v2343 = vld [vmem:[%s1967 + $0x2b9] sm:$0xff]
    %v2344 = vld [vmem:[%s1967 + $0x2c1] sm:$0xff]
    %v2345 = vld [vmem:[%s1967 + $0x2d1] sm:$0xff]
    %v2346 = vld [vmem:[%s1967 + $0x2d9] sm:$0xff]
    %v2347 = vld [vmem:[%s1967 + $0x2e9] sm:$0xff]
    %v2348 = vld [vmem:[%s1967 + $0x2f1] sm:$0xff]
    %v2349 = vld [vmem:[%s1967 + $0x301] sm:$0xff]
    %v2350 = vld [vmem:[%s1967 + $0x309] sm:$0xff]
    %v2351 = vld [vmem:[%s1967 + $0x319] sm:$0xff]
    %v2352 = vld [vmem:[%s1967 + $0x321] sm:$0xff]
    %s2353 = scalar_lea.vmem [#allocation6], 896
    %v2354 = vld [vmem:[%s2353] sm:$0xff]
    %v2355 = vld [vmem:[%s2353 + $0x8] sm:$0xff]
    %v2356 = vld [vmem:[%s2353 + $0x10] sm:$0xff]
    %v2357 = vld [vmem:[%s2353 + $0x18] sm:$0xff]
    %v2358 = vld [vmem:[%s2353 + $0x20] sm:$0xff]
    %v2359 = vld [vmem:[%s2353 + $0x28] sm:$0xff]
    %v2360 = vld [vmem:[%s2353 + $0x30] sm:$0xff]
    %v2361 = vld [vmem:[%s2353 + $0x38] sm:$0xff]
    %v2362 = vld [vmem:[%s2353 + $0x40] sm:$0xff]
    %v2363 = vld [vmem:[%s2353 + $0x48] sm:$0xff]
    %v2364 = vld [vmem:[%s2353 + $0x50] sm:$0xff]
    %v2365 = vld [vmem:[%s2353 + $0x58] sm:$0xff]
    %v2366 = vld [vmem:[%s2353 + $0x60] sm:$0xff]
    %v2367 = vld [vmem:[%s2353 + $0x68] sm:$0xff]
    %v2368 = vld [vmem:[%s2353 + $0x70] sm:$0xff]
    %v2369 = vld [vmem:[%s2353 + $0x78] sm:$0xff]
    %2370 = vrot.lane.b32.xlu0 %v2289, 28
    %v2371 = vpop.permute.xlu0 %2370
    %2372 = vrot.lane.b32.xlu0 %v2290, 28
    %v2373 = vpop.permute.xlu0 %2372
    %2374 = vrot.lane.b32.xlu0 %v2291, 28
    %v2375 = vpop.permute.xlu0 %2374
    %2376 = vrot.lane.b32.xlu0 %v2292, 28
    %v2377 = vpop.permute.xlu0 %2376
    %2378 = vrot.lane.b32.xlu0 %v2293, 28
    %v2379 = vpop.permute.xlu0 %2378
    %2380 = vrot.lane.b32.xlu0 %v2294, 28
    %v2381 = vpop.permute.xlu0 %2380
    %2382 = vrot.lane.b32.xlu0 %v2295, 28
    %v2383 = vpop.permute.xlu0 %2382
    %2384 = vrot.lane.b32.xlu0 %v2296, 28
    %v2385 = vpop.permute.xlu0 %2384
    %2386 = vrot.lane.b32.xlu0 %v2297, 28
    %v2387 = vpop.permute.xlu0 %2386
    %2388 = vrot.lane.b32.xlu0 %v2298, 28
    %v2389 = vpop.permute.xlu0 %2388
    %2390 = vrot.lane.b32.xlu0 %v2299, 28
    %v2391 = vpop.permute.xlu0 %2390
    %2392 = vrot.lane.b32.xlu0 %v2300, 28
    %v2393 = vpop.permute.xlu0 %2392
    %2394 = vrot.lane.b32.xlu0 %v2301, 28
    %v2395 = vpop.permute.xlu0 %2394
    %2396 = vrot.lane.b32.xlu0 %v2302, 28
    %v2397 = vpop.permute.xlu0 %2396
    %2398 = vrot.lane.b32.xlu0 %v2303, 28
    %v2399 = vpop.permute.xlu0 %2398
    %2400 = vrot.lane.b32.xlu0 %v2304, 28
    %v2401 = vpop.permute.xlu0 %2400
    %2402 = vrot.lane.b32.xlu0 %v2305, 28
    %v2403 = vpop.permute.xlu0 %2402
    %2404 = vrot.lane.b32.xlu0 %v2306, 28
    %v2405 = vpop.permute.xlu0 %2404
    %2406 = vrot.lane.b32.xlu0 %v2307, 28
    %v2407 = vpop.permute.xlu0 %2406
    %2408 = vrot.lane.b32.xlu0 %v2308, 28
    %v2409 = vpop.permute.xlu0 %2408
    %2410 = vrot.lane.b32.xlu0 %v2309, 28
    %v2411 = vpop.permute.xlu0 %2410
    %2412 = vrot.lane.b32.xlu0 %v2310, 28
    %v2413 = vpop.permute.xlu0 %2412
    %2414 = vrot.lane.b32.xlu0 %v2311, 28
    %v2415 = vpop.permute.xlu0 %2414
    %2416 = vrot.lane.b32.xlu0 %v2312, 28
    %v2417 = vpop.permute.xlu0 %2416
    %2418 = vrot.lane.b32.xlu0 %v2313, 28
    %v2419 = vpop.permute.xlu0 %2418
    %2420 = vrot.lane.b32.xlu0 %v2314, 28
    %v2421 = vpop.permute.xlu0 %2420
    %2422 = vrot.lane.b32.xlu0 %v2315, 28
    %v2423 = vpop.permute.xlu0 %2422
    %2424 = vrot.lane.b32.xlu0 %v2316, 28
    %v2425 = vpop.permute.xlu0 %2424
    %2426 = vrot.lane.b32.xlu0 %v2317, 28
    %v2427 = vpop.permute.xlu0 %2426
    %2428 = vrot.lane.b32.xlu0 %v2318, 28
    %v2429 = vpop.permute.xlu0 %2428
    %2430 = vrot.lane.b32.xlu0 %v2319, 28
    %v2431 = vpop.permute.xlu0 %2430
    %2432 = vrot.lane.b32.xlu0 %v2320, 28
    %v2433 = vpop.permute.xlu0 %2432
    %2434 = vrot.lane.b32.xlu0 %v2321, 28
    %v2435 = vpop.permute.xlu0 %2434
    %2436 = vrot.lane.b32.xlu0 %v2322, 28
    %v2437 = vpop.permute.xlu0 %2436
    %2438 = vrot.lane.b32.xlu0 %v2323, 28
    %v2439 = vpop.permute.xlu0 %2438
    %2440 = vrot.lane.b32.xlu0 %v2324, 28
    %v2441 = vpop.permute.xlu0 %2440
    %2442 = vrot.lane.b32.xlu0 %v2325, 28
    %v2443 = vpop.permute.xlu0 %2442
    %2444 = vrot.lane.b32.xlu0 %v2326, 28
    %v2445 = vpop.permute.xlu0 %2444
    %2446 = vrot.lane.b32.xlu0 %v2327, 28
    %v2447 = vpop.permute.xlu0 %2446
    %2448 = vrot.lane.b32.xlu0 %v2328, 28
    %v2449 = vpop.permute.xlu0 %2448
    %2450 = vrot.lane.b32.xlu0 %v2329, 28
    %v2451 = vpop.permute.xlu0 %2450
    %2452 = vrot.lane.b32.xlu0 %v2330, 28
    %v2453 = vpop.permute.xlu0 %2452
    %2454 = vrot.lane.b32.xlu0 %v2331, 28
    %v2455 = vpop.permute.xlu0 %2454
    %2456 = vrot.lane.b32.xlu0 %v2332, 28
    %v2457 = vpop.permute.xlu0 %2456
    %2458 = vrot.lane.b32.xlu0 %v2333, 28
    %v2459 = vpop.permute.xlu0 %2458
    %2460 = vrot.lane.b32.xlu0 %v2334, 28
    %v2461 = vpop.permute.xlu0 %2460
    %2462 = vrot.lane.b32.xlu0 %v2335, 28
    %v2463 = vpop.permute.xlu0 %2462
    %2464 = vrot.lane.b32.xlu0 %v2336, 28
    %v2465 = vpop.permute.xlu0 %2464
    %2466 = vrot.lane.b32.xlu0 %v2337, 28
    %v2467 = vpop.permute.xlu0 %2466
    %2468 = vrot.lane.b32.xlu0 %v2338, 28
    %v2469 = vpop.permute.xlu0 %2468
    %2470 = vrot.lane.b32.xlu0 %v2339, 28
    %v2471 = vpop.permute.xlu0 %2470
    %2472 = vrot.lane.b32.xlu0 %v2340, 28
    %v2473 = vpop.permute.xlu0 %2472
    %2474 = vrot.lane.b32.xlu0 %v2341, 28
    %v2475 = vpop.permute.xlu0 %2474
    %2476 = vrot.lane.b32.xlu0 %v2342, 28
    %v2477 = vpop.permute.xlu0 %2476
    %2478 = vrot.lane.b32.xlu0 %v2343, 28
    %v2479 = vpop.permute.xlu0 %2478
    %2480 = vrot.lane.b32.xlu0 %v2344, 28
    %v2481 = vpop.permute.xlu0 %2480
    %2482 = vrot.lane.b32.xlu0 %v2345, 28
    %v2483 = vpop.permute.xlu0 %2482
    %2484 = vrot.lane.b32.xlu0 %v2346, 28
    %v2485 = vpop.permute.xlu0 %2484
    %2486 = vrot.lane.b32.xlu0 %v2347, 28
    %v2487 = vpop.permute.xlu0 %2486
    %2488 = vrot.lane.b32.xlu0 %v2348, 28
    %v2489 = vpop.permute.xlu0 %2488
    %2490 = vrot.lane.b32.xlu0 %v2349, 28
    %v2491 = vpop.permute.xlu0 %2490
    %2492 = vrot.lane.b32.xlu0 %v2350, 28
    %v2493 = vpop.permute.xlu0 %2492
    %2494 = vrot.lane.b32.xlu0 %v2351, 28
    %v2495 = vpop.permute.xlu0 %2494
    %2496 = vrot.lane.b32.xlu0 %v2352, 28
    %v2497 = vpop.permute.xlu0 %2496
    %2498 = vrot.lane.b32.xlu0 %v2354, 28
    %v2499 = vpop.permute.xlu0 %2498
    %2500 = vrot.lane.b32.xlu0 %v2355, 28
    %v2501 = vpop.permute.xlu0 %2500
    %2502 = vrot.lane.b32.xlu0 %v2356, 28
    %v2503 = vpop.permute.xlu0 %2502
    %2504 = vrot.lane.b32.xlu0 %v2357, 28
    %v2505 = vpop.permute.xlu0 %2504
    %2506 = vrot.lane.b32.xlu0 %v2358, 28
    %v2507 = vpop.permute.xlu0 %2506
    %2508 = vrot.lane.b32.xlu0 %v2359, 28
    %v2509 = vpop.permute.xlu0 %2508
    %2510 = vrot.lane.b32.xlu0 %v2360, 28
    %v2511 = vpop.permute.xlu0 %2510
    %2512 = vrot.lane.b32.xlu0 %v2361, 28
    %v2513 = vpop.permute.xlu0 %2512
    %2514 = vrot.lane.b32.xlu0 %v2362, 28
    %v2515 = vpop.permute.xlu0 %2514
    %2516 = vrot.lane.b32.xlu0 %v2363, 28
    %v2517 = vpop.permute.xlu0 %2516
    %2518 = vrot.lane.b32.xlu0 %v2364, 28
    %v2519 = vpop.permute.xlu0 %2518
    %2520 = vrot.lane.b32.xlu0 %v2365, 28
    %v2521 = vpop.permute.xlu0 %2520
    %2522 = vrot.lane.b32.xlu0 %v2366, 28
    %v2523 = vpop.permute.xlu0 %2522
    %2524 = vrot.lane.b32.xlu0 %v2367, 28
    %v2525 = vpop.permute.xlu0 %2524
    %2526 = vrot.lane.b32.xlu0 %v2368, 28
    %v2527 = vpop.permute.xlu0 %2526
    %2528 = vrot.lane.b32.xlu0 %v2369, 28
    %v2529 = vpop.permute.xlu0 %2528
    %v2530 = vadd.f32 %v2209, %v2371
    %v2531 = vadd.f32 %v2210, %v2373
    %v2532 = vadd.f32 %v2211, %v2375
    %v2533 = vadd.f32 %v2212, %v2377
    %v2534 = vadd.f32 %v2213, %v2379
    %v2535 = vadd.f32 %v2214, %v2381
    %v2536 = vadd.f32 %v2215, %v2383
    %v2537 = vadd.f32 %v2216, %v2385
    %v2538 = vadd.f32 %v2217, %v2387
    %v2539 = vadd.f32 %v2218, %v2389
    %v2540 = vadd.f32 %v2219, %v2391
    %v2541 = vadd.f32 %v2220, %v2393
    %v2542 = vadd.f32 %v2221, %v2395
    %v2543 = vadd.f32 %v2222, %v2397
    %v2544 = vadd.f32 %v2223, %v2399
    %v2545 = vadd.f32 %v2224, %v2401
    %v2546 = vadd.f32 %v2225, %v2403
    %v2547 = vadd.f32 %v2226, %v2405
    %v2548 = vadd.f32 %v2227, %v2407
    %v2549 = vadd.f32 %v2228, %v2409
    %v2550 = vadd.f32 %v2229, %v2411
    %v2551 = vadd.f32 %v2230, %v2413
    %v2552 = vadd.f32 %v2231, %v2415
    %v2553 = vadd.f32 %v2232, %v2417
    %v2554 = vadd.f32 %v2233, %v2419
    %v2555 = vadd.f32 %v2234, %v2421
    %v2556 = vadd.f32 %v2235, %v2423
    %v2557 = vadd.f32 %v2236, %v2425
    %v2558 = vadd.f32 %v2237, %v2427
    %v2559 = vadd.f32 %v2238, %v2429
    %v2560 = vadd.f32 %v2239, %v2431
    %v2561 = vadd.f32 %v2240, %v2433
    %v2562 = vadd.f32 %v2241, %v2435
    %v2563 = vadd.f32 %v2242, %v2437
    %v2564 = vadd.f32 %v2243, %v2439
    %v2565 = vadd.f32 %v2244, %v2441
    %v2566 = vadd.f32 %v2245, %v2443
    %v2567 = vadd.f32 %v2246, %v2445
    %v2568 = vadd.f32 %v2247, %v2447
    %v2569 = vadd.f32 %v2248, %v2449
    %v2570 = vadd.f32 %v2249, %v2451
    %v2571 = vadd.f32 %v2250, %v2453
    %v2572 = vadd.f32 %v2251, %v2455
    %v2573 = vadd.f32 %v2252, %v2457
    %v2574 = vadd.f32 %v2253, %v2459
    %v2575 = vadd.f32 %v2254, %v2461
    %v2576 = vadd.f32 %v2255, %v2463
    %v2577 = vadd.f32 %v2256, %v2465
    %v2578 = vadd.f32 %v2257, %v2467
    %v2579 = vadd.f32 %v2258, %v2469
    %v2580 = vadd.f32 %v2259, %v2471
    %v2581 = vadd.f32 %v2260, %v2473
    %v2582 = vadd.f32 %v2261, %v2475
    %v2583 = vadd.f32 %v2262, %v2477
    %v2584 = vadd.f32 %v2263, %v2479
    %v2585 = vadd.f32 %v2264, %v2481
    %v2586 = vadd.f32 %v2265, %v2483
    %v2587 = vadd.f32 %v2266, %v2485
    %v2588 = vadd.f32 %v2267, %v2487
    %v2589 = vadd.f32 %v2268, %v2489
    %v2590 = vadd.f32 %v2269, %v2491
    %v2591 = vadd.f32 %v2270, %v2493
    %v2592 = vadd.f32 %v2271, %v2495
    %v2593 = vadd.f32 %v2272, %v2497
    %v2594 = vadd.f32 %v2273, %v2499
    %v2595 = vadd.f32 %v2274, %v2501
    %v2596 = vadd.f32 %v2275, %v2503
    %v2597 = vadd.f32 %v2276, %v2505
    %v2598 = vadd.f32 %v2277, %v2507
    %v2599 = vadd.f32 %v2278, %v2509
    %v2600 = vadd.f32 %v2279, %v2511
    %v2601 = vadd.f32 %v2280, %v2513
    %v2602 = vadd.f32 %v2281, %v2515
    %v2603 = vadd.f32 %v2282, %v2517
    %v2604 = vadd.f32 %v2283, %v2519
    %v2605 = vadd.f32 %v2284, %v2521
    %v2606 = vadd.f32 %v2285, %v2523
    %v2607 = vadd.f32 %v2286, %v2525
    %v2608 = vadd.f32 %v2287, %v2527
    %v2609 = vadd.f32 %v2288, %v2529
    %v2610 = vld [vmem:[%s1967 + $0x2] sm:$0xff]
    %v2611 = vld [vmem:[%s1967 + $0xa] sm:$0xff]
    %v2612 = vld [vmem:[%s1967 + $0x1a] sm:$0xff]
    %v2613 = vld [vmem:[%s1967 + $0x22] sm:$0xff]
    %v2614 = vld [vmem:[%s1967 + $0x32] sm:$0xff]
    %v2615 = vld [vmem:[%s1967 + $0x3a] sm:$0xff]
    %v2616 = vld [vmem:[%s1967 + $0x4a] sm:$0xff]
    %v2617 = vld [vmem:[%s1967 + $0x52] sm:$0xff]
    %v2618 = vld [vmem:[%s1967 + $0x62] sm:$0xff]
    %v2619 = vld [vmem:[%s1967 + $0x6a] sm:$0xff]
    %v2620 = vld [vmem:[%s1967 + $0x7a] sm:$0xff]
    %v2621 = vld [vmem:[%s1967 + $0x82] sm:$0xff]
    %v2622 = vld [vmem:[%s1967 + $0x92] sm:$0xff]
    %v2623 = vld [vmem:[%s1967 + $0x9a] sm:$0xff]
    %v2624 = vld [vmem:[%s1967 + $0xaa] sm:$0xff]
    %v2625 = vld [vmem:[%s1967 + $0xb2] sm:$0xff]
    %v2626 = vld [vmem:[%s1967 + $0xc2] sm:$0xff]
    %v2627 = vld [vmem:[%s1967 + $0xca] sm:$0xff]
    %v2628 = vld [vmem:[%s1967 + $0xda] sm:$0xff]
    %v2629 = vld [vmem:[%s1967 + $0xe2] sm:$0xff]
    %v2630 = vld [vmem:[%s1967 + $0xf2] sm:$0xff]
    %v2631 = vld [vmem:[%s1967 + $0xfa] sm:$0xff]
    %v2632 = vld [vmem:[%s1967 + $0x10a] sm:$0xff]
    %v2633 = vld [vmem:[%s1967 + $0x112] sm:$0xff]
    %v2634 = vld [vmem:[%s1967 + $0x122] sm:$0xff]
    %v2635 = vld [vmem:[%s1967 + $0x12a] sm:$0xff]
    %v2636 = vld [vmem:[%s1967 + $0x13a] sm:$0xff]
    %v2637 = vld [vmem:[%s1967 + $0x142] sm:$0xff]
    %v2638 = vld [vmem:[%s1967 + $0x152] sm:$0xff]
    %v2639 = vld [vmem:[%s1967 + $0x15a] sm:$0xff]
    %v2640 = vld [vmem:[%s1967 + $0x16a] sm:$0xff]
    %v2641 = vld [vmem:[%s1967 + $0x172] sm:$0xff]
    %v2642 = vld [vmem:[%s1967 + $0x1b2] sm:$0xff]
    %v2643 = vld [vmem:[%s1967 + $0x1ba] sm:$0xff]
    %v2644 = vld [vmem:[%s1967 + $0x1ca] sm:$0xff]
    %v2645 = vld [vmem:[%s1967 + $0x1d2] sm:$0xff]
    %v2646 = vld [vmem:[%s1967 + $0x1e2] sm:$0xff]
    %v2647 = vld [vmem:[%s1967 + $0x1ea] sm:$0xff]
    %v2648 = vld [vmem:[%s1967 + $0x1fa] sm:$0xff]
    %v2649 = vld [vmem:[%s1967 + $0x202] sm:$0xff]
    %v2650 = vld [vmem:[%s1967 + $0x212] sm:$0xff]
    %v2651 = vld [vmem:[%s1967 + $0x21a] sm:$0xff]
    %v2652 = vld [vmem:[%s1967 + $0x22a] sm:$0xff]
    %v2653 = vld [vmem:[%s1967 + $0x232] sm:$0xff]
    %v2654 = vld [vmem:[%s1967 + $0x242] sm:$0xff]
    %v2655 = vld [vmem:[%s1967 + $0x24a] sm:$0xff]
    %v2656 = vld [vmem:[%s1967 + $0x25a] sm:$0xff]
    %v2657 = vld [vmem:[%s1967 + $0x262] sm:$0xff]
    %v2658 = vld [vmem:[%s1967 + $0x272] sm:$0xff]
    %v2659 = vld [vmem:[%s1967 + $0x27a] sm:$0xff]
    %v2660 = vld [vmem:[%s1967 + $0x28a] sm:$0xff]
    %v2661 = vld [vmem:[%s1967 + $0x292] sm:$0xff]
    %v2662 = vld [vmem:[%s1967 + $0x2a2] sm:$0xff]
    %v2663 = vld [vmem:[%s1967 + $0x2aa] sm:$0xff]
    %v2664 = vld [vmem:[%s1967 + $0x2ba] sm:$0xff]
    %v2665 = vld [vmem:[%s1967 + $0x2c2] sm:$0xff]
    %v2666 = vld [vmem:[%s1967 + $0x2d2] sm:$0xff]
    %v2667 = vld [vmem:[%s1967 + $0x2da] sm:$0xff]
    %v2668 = vld [vmem:[%s1967 + $0x2ea] sm:$0xff]
    %v2669 = vld [vmem:[%s1967 + $0x2f2] sm:$0xff]
    %v2670 = vld [vmem:[%s1967 + $0x302] sm:$0xff]
    %v2671 = vld [vmem:[%s1967 + $0x30a] sm:$0xff]
    %v2672 = vld [vmem:[%s1967 + $0x31a] sm:$0xff]
    %v2673 = vld [vmem:[%s1967 + $0x322] sm:$0xff]
    %s2674 = scalar_lea.vmem [#allocation6], 1024
    %v2675 = vld [vmem:[%s2674] sm:$0xff]
    %v2676 = vld [vmem:[%s2674 + $0x8] sm:$0xff]
    %v2677 = vld [vmem:[%s2674 + $0x10] sm:$0xff]
    %v2678 = vld [vmem:[%s2674 + $0x18] sm:$0xff]
    %v2679 = vld [vmem:[%s2674 + $0x20] sm:$0xff]
    %v2680 = vld [vmem:[%s2674 + $0x28] sm:$0xff]
    %v2681 = vld [vmem:[%s2674 + $0x30] sm:$0xff]
    %v2682 = vld [vmem:[%s2674 + $0x38] sm:$0xff]
    %v2683 = vld [vmem:[%s2674 + $0x40] sm:$0xff]
    %v2684 = vld [vmem:[%s2674 + $0x48] sm:$0xff]
    %v2685 = vld [vmem:[%s2674 + $0x50] sm:$0xff]
    %v2686 = vld [vmem:[%s2674 + $0x58] sm:$0xff]
    %v2687 = vld [vmem:[%s2674 + $0x60] sm:$0xff]
    %v2688 = vld [vmem:[%s2674 + $0x68] sm:$0xff]
    %v2689 = vld [vmem:[%s2674 + $0x70] sm:$0xff]
    %v2690 = vld [vmem:[%s2674 + $0x78] sm:$0xff]
    %2691 = vrot.lane.b32.xlu0 %v2610, 32
    %v2692 = vpop.permute.xlu0 %2691
    %2693 = vrot.lane.b32.xlu0 %v2611, 32
    %v2694 = vpop.permute.xlu0 %2693
    %2695 = vrot.lane.b32.xlu0 %v2612, 32
    %v2696 = vpop.permute.xlu0 %2695
    %2697 = vrot.lane.b32.xlu0 %v2613, 32
    %v2698 = vpop.permute.xlu0 %2697
    %2699 = vrot.lane.b32.xlu0 %v2614, 32
    %v2700 = vpop.permute.xlu0 %2699
    %2701 = vrot.lane.b32.xlu0 %v2615, 32
    %v2702 = vpop.permute.xlu0 %2701
    %2703 = vrot.lane.b32.xlu0 %v2616, 32
    %v2704 = vpop.permute.xlu0 %2703
    %2705 = vrot.lane.b32.xlu0 %v2617, 32
    %v2706 = vpop.permute.xlu0 %2705
    %2707 = vrot.lane.b32.xlu0 %v2618, 32
    %v2708 = vpop.permute.xlu0 %2707
    %2709 = vrot.lane.b32.xlu0 %v2619, 32
    %v2710 = vpop.permute.xlu0 %2709
    %2711 = vrot.lane.b32.xlu0 %v2620, 32
    %v2712 = vpop.permute.xlu0 %2711
    %2713 = vrot.lane.b32.xlu0 %v2621, 32
    %v2714 = vpop.permute.xlu0 %2713
    %2715 = vrot.lane.b32.xlu0 %v2622, 32
    %v2716 = vpop.permute.xlu0 %2715
    %2717 = vrot.lane.b32.xlu0 %v2623, 32
    %v2718 = vpop.permute.xlu0 %2717
    %2719 = vrot.lane.b32.xlu0 %v2624, 32
    %v2720 = vpop.permute.xlu0 %2719
    %2721 = vrot.lane.b32.xlu0 %v2625, 32
    %v2722 = vpop.permute.xlu0 %2721
    %2723 = vrot.lane.b32.xlu0 %v2626, 32
    %v2724 = vpop.permute.xlu0 %2723
    %2725 = vrot.lane.b32.xlu0 %v2627, 32
    %v2726 = vpop.permute.xlu0 %2725
    %2727 = vrot.lane.b32.xlu0 %v2628, 32
    %v2728 = vpop.permute.xlu0 %2727
    %2729 = vrot.lane.b32.xlu0 %v2629, 32
    %v2730 = vpop.permute.xlu0 %2729
    %2731 = vrot.lane.b32.xlu0 %v2630, 32
    %v2732 = vpop.permute.xlu0 %2731
    %2733 = vrot.lane.b32.xlu0 %v2631, 32
    %v2734 = vpop.permute.xlu0 %2733
    %2735 = vrot.lane.b32.xlu0 %v2632, 32
    %v2736 = vpop.permute.xlu0 %2735
    %2737 = vrot.lane.b32.xlu0 %v2633, 32
    %v2738 = vpop.permute.xlu0 %2737
    %2739 = vrot.lane.b32.xlu0 %v2634, 32
    %v2740 = vpop.permute.xlu0 %2739
    %2741 = vrot.lane.b32.xlu0 %v2635, 32
    %v2742 = vpop.permute.xlu0 %2741
    %2743 = vrot.lane.b32.xlu0 %v2636, 32
    %v2744 = vpop.permute.xlu0 %2743
    %2745 = vrot.lane.b32.xlu0 %v2637, 32
    %v2746 = vpop.permute.xlu0 %2745
    %2747 = vrot.lane.b32.xlu0 %v2638, 32
    %v2748 = vpop.permute.xlu0 %2747
    %2749 = vrot.lane.b32.xlu0 %v2639, 32
    %v2750 = vpop.permute.xlu0 %2749
    %2751 = vrot.lane.b32.xlu0 %v2640, 32
    %v2752 = vpop.permute.xlu0 %2751
    %2753 = vrot.lane.b32.xlu0 %v2641, 32
    %v2754 = vpop.permute.xlu0 %2753
    %2755 = vrot.lane.b32.xlu0 %v2642, 32
    %v2756 = vpop.permute.xlu0 %2755
    %2757 = vrot.lane.b32.xlu0 %v2643, 32
    %v2758 = vpop.permute.xlu0 %2757
    %2759 = vrot.lane.b32.xlu0 %v2644, 32
    %v2760 = vpop.permute.xlu0 %2759
    %2761 = vrot.lane.b32.xlu0 %v2645, 32
    %v2762 = vpop.permute.xlu0 %2761
    %2763 = vrot.lane.b32.xlu0 %v2646, 32
    %v2764 = vpop.permute.xlu0 %2763
    %2765 = vrot.lane.b32.xlu0 %v2647, 32
    %v2766 = vpop.permute.xlu0 %2765
    %2767 = vrot.lane.b32.xlu0 %v2648, 32
    %v2768 = vpop.permute.xlu0 %2767
    %2769 = vrot.lane.b32.xlu0 %v2649, 32
    %v2770 = vpop.permute.xlu0 %2769
    %2771 = vrot.lane.b32.xlu0 %v2650, 32
    %v2772 = vpop.permute.xlu0 %2771
    %2773 = vrot.lane.b32.xlu0 %v2651, 32
    %v2774 = vpop.permute.xlu0 %2773
    %2775 = vrot.lane.b32.xlu0 %v2652, 32
    %v2776 = vpop.permute.xlu0 %2775
    %2777 = vrot.lane.b32.xlu0 %v2653, 32
    %v2778 = vpop.permute.xlu0 %2777
    %2779 = vrot.lane.b32.xlu0 %v2654, 32
    %v2780 = vpop.permute.xlu0 %2779
    %2781 = vrot.lane.b32.xlu0 %v2655, 32
    %v2782 = vpop.permute.xlu0 %2781
    %2783 = vrot.lane.b32.xlu0 %v2656, 32
    %v2784 = vpop.permute.xlu0 %2783
    %2785 = vrot.lane.b32.xlu0 %v2657, 32
    %v2786 = vpop.permute.xlu0 %2785
    %2787 = vrot.lane.b32.xlu0 %v2658, 32
    %v2788 = vpop.permute.xlu0 %2787
    %2789 = vrot.lane.b32.xlu0 %v2659, 32
    %v2790 = vpop.permute.xlu0 %2789
    %2791 = vrot.lane.b32.xlu0 %v2660, 32
    %v2792 = vpop.permute.xlu0 %2791
    %2793 = vrot.lane.b32.xlu0 %v2661, 32
    %v2794 = vpop.permute.xlu0 %2793
    %2795 = vrot.lane.b32.xlu0 %v2662, 32
    %v2796 = vpop.permute.xlu0 %2795
    %2797 = vrot.lane.b32.xlu0 %v2663, 32
    %v2798 = vpop.permute.xlu0 %2797
    %2799 = vrot.lane.b32.xlu0 %v2664, 32
    %v2800 = vpop.permute.xlu0 %2799
    %2801 = vrot.lane.b32.xlu0 %v2665, 32
    %v2802 = vpop.permute.xlu0 %2801
    %2803 = vrot.lane.b32.xlu0 %v2666, 32
    %v2804 = vpop.permute.xlu0 %2803
    %2805 = vrot.lane.b32.xlu0 %v2667, 32
    %v2806 = vpop.permute.xlu0 %2805
    %2807 = vrot.lane.b32.xlu0 %v2668, 32
    %v2808 = vpop.permute.xlu0 %2807
    %2809 = vrot.lane.b32.xlu0 %v2669, 32
    %v2810 = vpop.permute.xlu0 %2809
    %2811 = vrot.lane.b32.xlu0 %v2670, 32
    %v2812 = vpop.permute.xlu0 %2811
    %2813 = vrot.lane.b32.xlu0 %v2671, 32
    %v2814 = vpop.permute.xlu0 %2813
    %2815 = vrot.lane.b32.xlu0 %v2672, 32
    %v2816 = vpop.permute.xlu0 %2815
    %2817 = vrot.lane.b32.xlu0 %v2673, 32
    %v2818 = vpop.permute.xlu0 %2817
    %2819 = vrot.lane.b32.xlu0 %v2675, 32
    %v2820 = vpop.permute.xlu0 %2819
    %2821 = vrot.lane.b32.xlu0 %v2676, 32
    %v2822 = vpop.permute.xlu0 %2821
    %2823 = vrot.lane.b32.xlu0 %v2677, 32
    %v2824 = vpop.permute.xlu0 %2823
    %2825 = vrot.lane.b32.xlu0 %v2678, 32
    %v2826 = vpop.permute.xlu0 %2825
    %2827 = vrot.lane.b32.xlu0 %v2679, 32
    %v2828 = vpop.permute.xlu0 %2827
    %2829 = vrot.lane.b32.xlu0 %v2680, 32
    %v2830 = vpop.permute.xlu0 %2829
    %2831 = vrot.lane.b32.xlu0 %v2681, 32
    %v2832 = vpop.permute.xlu0 %2831
    %2833 = vrot.lane.b32.xlu0 %v2682, 32
    %v2834 = vpop.permute.xlu0 %2833
    %2835 = vrot.lane.b32.xlu0 %v2683, 32
    %v2836 = vpop.permute.xlu0 %2835
    %2837 = vrot.lane.b32.xlu0 %v2684, 32
    %v2838 = vpop.permute.xlu0 %2837
    %2839 = vrot.lane.b32.xlu0 %v2685, 32
    %v2840 = vpop.permute.xlu0 %2839
    %2841 = vrot.lane.b32.xlu0 %v2686, 32
    %v2842 = vpop.permute.xlu0 %2841
    %2843 = vrot.lane.b32.xlu0 %v2687, 32
    %v2844 = vpop.permute.xlu0 %2843
    %2845 = vrot.lane.b32.xlu0 %v2688, 32
    %v2846 = vpop.permute.xlu0 %2845
    %2847 = vrot.lane.b32.xlu0 %v2689, 32
    %v2848 = vpop.permute.xlu0 %2847
    %2849 = vrot.lane.b32.xlu0 %v2690, 32
    %v2850 = vpop.permute.xlu0 %2849
    %v2851 = vadd.f32 %v2530, %v2692
    %v2852 = vadd.f32 %v2531, %v2694
    %v2853 = vadd.f32 %v2532, %v2696
    %v2854 = vadd.f32 %v2533, %v2698
    %v2855 = vadd.f32 %v2534, %v2700
    %v2856 = vadd.f32 %v2535, %v2702
    %v2857 = vadd.f32 %v2536, %v2704
    %v2858 = vadd.f32 %v2537, %v2706
    %v2859 = vadd.f32 %v2538, %v2708
    %v2860 = vadd.f32 %v2539, %v2710
    %v2861 = vadd.f32 %v2540, %v2712
    %v2862 = vadd.f32 %v2541, %v2714
    %v2863 = vadd.f32 %v2542, %v2716
    %v2864 = vadd.f32 %v2543, %v2718
    %v2865 = vadd.f32 %v2544, %v2720
    %v2866 = vadd.f32 %v2545, %v2722
    %v2867 = vadd.f32 %v2546, %v2724
    %v2868 = vadd.f32 %v2547, %v2726
    %v2869 = vadd.f32 %v2548, %v2728
    %v2870 = vadd.f32 %v2549, %v2730
    %v2871 = vadd.f32 %v2550, %v2732
    %v2872 = vadd.f32 %v2551, %v2734
    %v2873 = vadd.f32 %v2552, %v2736
    %v2874 = vadd.f32 %v2553, %v2738
    %v2875 = vadd.f32 %v2554, %v2740
    %v2876 = vadd.f32 %v2555, %v2742
    %v2877 = vadd.f32 %v2556, %v2744
    %v2878 = vadd.f32 %v2557, %v2746
    %v2879 = vadd.f32 %v2558, %v2748
    %v2880 = vadd.f32 %v2559, %v2750
    %v2881 = vadd.f32 %v2560, %v2752
    %v2882 = vadd.f32 %v2561, %v2754
    %v2883 = vadd.f32 %v2562, %v2756
    %v2884 = vadd.f32 %v2563, %v2758
    %v2885 = vadd.f32 %v2564, %v2760
    %v2886 = vadd.f32 %v2565, %v2762
    %v2887 = vadd.f32 %v2566, %v2764
    %v2888 = vadd.f32 %v2567, %v2766
    %v2889 = vadd.f32 %v2568, %v2768
    %v2890 = vadd.f32 %v2569, %v2770
    %v2891 = vadd.f32 %v2570, %v2772
    %v2892 = vadd.f32 %v2571, %v2774
    %v2893 = vadd.f32 %v2572, %v2776
    %v2894 = vadd.f32 %v2573, %v2778
    %v2895 = vadd.f32 %v2574, %v2780
    %v2896 = vadd.f32 %v2575, %v2782
    %v2897 = vadd.f32 %v2576, %v2784
    %v2898 = vadd.f32 %v2577, %v2786
    %v2899 = vadd.f32 %v2578, %v2788
    %v2900 = vadd.f32 %v2579, %v2790
    %v2901 = vadd.f32 %v2580, %v2792
    %v2902 = vadd.f32 %v2581, %v2794
    %v2903 = vadd.f32 %v2582, %v2796
    %v2904 = vadd.f32 %v2583, %v2798
    %v2905 = vadd.f32 %v2584, %v2800
    %v2906 = vadd.f32 %v2585, %v2802
    %v2907 = vadd.f32 %v2586, %v2804
    %v2908 = vadd.f32 %v2587, %v2806
    %v2909 = vadd.f32 %v2588, %v2808
    %v2910 = vadd.f32 %v2589, %v2810
    %v2911 = vadd.f32 %v2590, %v2812
    %v2912 = vadd.f32 %v2591, %v2814
    %v2913 = vadd.f32 %v2592, %v2816
    %v2914 = vadd.f32 %v2593, %v2818
    %v2915 = vadd.f32 %v2594, %v2820
    %v2916 = vadd.f32 %v2595, %v2822
    %v2917 = vadd.f32 %v2596, %v2824
    %v2918 = vadd.f32 %v2597, %v2826
    %v2919 = vadd.f32 %v2598, %v2828
    %v2920 = vadd.f32 %v2599, %v2830
    %v2921 = vadd.f32 %v2600, %v2832
    %v2922 = vadd.f32 %v2601, %v2834
    %v2923 = vadd.f32 %v2602, %v2836
    %v2924 = vadd.f32 %v2603, %v2838
    %v2925 = vadd.f32 %v2604, %v2840
    %v2926 = vadd.f32 %v2605, %v2842
    %v2927 = vadd.f32 %v2606, %v2844
    %v2928 = vadd.f32 %v2607, %v2846
    %v2929 = vadd.f32 %v2608, %v2848
    %v2930 = vadd.f32 %v2609, %v2850
    %2931 = vmatprep.subr.mxu0 0.0
    %2932 = vmatpush1.xpose.msra.mxu0 %v2930
    %2933 = vmatprep.subr.mxu0 0.0
    %2934 = vmatpush1.xpose.msra.mxu0 %v2929
    %2935 = vmatprep.subr.mxu0 0.0
    %2936 = vmatpush1.xpose.msra.mxu0 %v2928
    %2937 = vmatprep.subr.mxu0 0.0
    %2938 = vmatpush1.xpose.msra.mxu0 %v2927
    %2939 = vmatprep.subr.mxu0 0.0
    %2940 = vmatpush1.xpose.msra.mxu0 %v2926
    %2941 = vmatprep.subr.mxu0 0.0
    %2942 = vmatpush1.xpose.msra.mxu0 %v2925
    %2943 = vmatprep.subr.mxu0 0.0
    %2944 = vmatpush1.xpose.msra.mxu0 %v2924
    %2945 = vmatprep.subr.mxu0 0.0
    %2946 = vmatpush1.xpose.msra.mxu0 %v2923
    %2947 = vmatprep.subr.mxu0 0.0
    %2948 = vmatpush1.xpose.msra.mxu0 %v2922
    %2949 = vmatprep.subr.mxu0 0.0
    %2950 = vmatpush1.xpose.msra.mxu0 %v2921
    %2951 = vmatprep.subr.mxu0 0.0
    %2952 = vmatpush1.xpose.msra.mxu0 %v2920
    %2953 = vmatprep.subr.mxu0 0.0
    %2954 = vmatpush1.xpose.msra.mxu0 %v2919
    %2955 = vmatprep.subr.mxu0 0.0
    %2956 = vmatpush1.xpose.msra.mxu0 %v2918
    %2957 = vmatprep.subr.mxu0 0.0
    %2958 = vmatpush1.xpose.msra.mxu0 %v2917
    %2959 = vmatprep.subr.mxu0 0.0
    %2960 = vmatpush1.xpose.msra.mxu0 %v2916
    %2961 = vmatprep.subr.mxu0 0.0
    %2962 = vmatpush1.xpose.msra.mxu0 %v2915
    %2963 = vmatprep.subr.mxu0 0.0
    %2964 = vmatpush2.xpose.msra.mxu0 0.0
    %2965 = vmatprep.subr.mxu0 0.0
    %2966 = vmatpush2.xpose.msra.mxu0 0.0
    %2967 = vmatprep.subr.mxu0 0.0
    %2968 = vmatpush2.xpose.msra.mxu0 0.0
    %2969 = vmatprep.subr.mxu0 0.0
    %2970 = vmatpush2.xpose.msra.mxu0 0.0
    %2971 = vmatprep.subr.mxu0 0.0
    %2972 = vmatpush2.xpose.msra.mxu0 0.0
    %2973 = vmatprep.subr.mxu0 0.0
    %2974 = vmatpush2.xpose.msra.mxu0 0.0
    %2975 = vmatprep.subr.mxu0 0.0
    %2976 = vmatpush2.xpose.msra.mxu0 0.0
    %2977 = vmatprep.subr.mxu0 0.0
    %2978 = vmatpush2.xpose.msra.mxu0 0.0
    %2979 = vmatprep.subr.mxu0 0.0
    %2980 = vmatpush2.xpose.msra.mxu0 0.0
    %2981 = vmatprep.subr.mxu0 0.0
    %2982 = vmatpush2.xpose.msra.mxu0 0.0
    %2983 = vmatprep.subr.mxu0 0.0
    %2984 = vmatpush2.xpose.msra.mxu0 0.0
    %2985 = vmatprep.subr.mxu0 0.0
    %2986 = vmatpush2.xpose.msra.mxu0 0.0
    %2987 = vmatprep.subr.mxu0 0.0
    %2988 = vmatpush2.xpose.msra.mxu0 0.0
    %2989 = vmatprep.subr.mxu0 0.0
    %2990 = vmatpush2.xpose.msra.mxu0 0.0
    %2991 = vmatprep.subr.mxu0 0.0
    %2992 = vmatpush2.xpose.msra.mxu0 0.0
    %2993 = vmatprep.subr.mxu0 0.0
    %2994 = vmatpush2.xpose.msra.mxu0 0.0
    %2995 = vmatprep.mubr.f32.mxu0 0.0
    %2996 = vmatmul.mubr.f32.gmra.mxu0 %v2851
    %v2997 = vpop.f32.mrf.mxu0
    %v2998 = vadd.f32 0.0, %v2997
    %v2999 = vpop.f32.mrf.mxu0
    %3000 = vmatprep.mubr.f32.mxu0 0.0
    %3001 = vmatmul.mubr.f32.gmra.mxu0 %v2852
    %v3002 = vpop.f32.mrf.mxu0
    %v3003 = vadd.f32 0.0, %v3002
    %v3004 = vpop.f32.mrf.mxu0
    %3005 = vmatprep.mubr.f32.mxu0 0.0
    %3006 = vmatmul.mubr.f32.gmra.mxu0 %v2853
    %v3007 = vpop.f32.mrf.mxu0
    %v3008 = vadd.f32 0.0, %v3007
    %v3009 = vpop.f32.mrf.mxu0
    %3010 = vmatprep.mubr.f32.mxu0 0.0
    %3011 = vmatmul.mubr.f32.gmra.mxu0 %v2854
    %v3012 = vpop.f32.mrf.mxu0
    %v3013 = vadd.f32 0.0, %v3012
    %v3014 = vpop.f32.mrf.mxu0
    %3015 = vmatprep.mubr.f32.mxu0 0.0
    %3016 = vmatmul.mubr.f32.gmra.mxu0 %v2855
    %v3017 = vpop.f32.mrf.mxu0
    %v3018 = vadd.f32 0.0, %v3017
    %v3019 = vpop.f32.mrf.mxu0
    %3020 = vmatprep.mubr.f32.mxu0 0.0
    %3021 = vmatmul.mubr.f32.gmra.mxu0 %v2856
    %v3022 = vpop.f32.mrf.mxu0
    %v3023 = vadd.f32 0.0, %v3022
    %v3024 = vpop.f32.mrf.mxu0
    %3025 = vmatprep.mubr.f32.mxu0 0.0
    %3026 = vmatmul.mubr.f32.gmra.mxu0 %v2857
    %v3027 = vpop.f32.mrf.mxu0
    %v3028 = vadd.f32 0.0, %v3027
    %v3029 = vpop.f32.mrf.mxu0
    %3030 = vmatprep.mubr.f32.mxu0 0.0
    %3031 = vmatmul.mubr.f32.gmra.mxu0 %v2858
    %v3032 = vpop.f32.mrf.mxu0
    %v3033 = vadd.f32 0.0, %v3032
    %v3034 = vpop.f32.mrf.mxu0
    %3035 = vmatprep.mubr.f32.mxu0 0.0
    %3036 = vmatmul.mubr.f32.gmra.mxu0 %v2859
    %v3037 = vpop.f32.mrf.mxu0
    %v3038 = vadd.f32 0.0, %v3037
    %v3039 = vpop.f32.mrf.mxu0
    %3040 = vmatprep.mubr.f32.mxu0 0.0
    %3041 = vmatmul.mubr.f32.gmra.mxu0 %v2860
    %v3042 = vpop.f32.mrf.mxu0
    %v3043 = vadd.f32 0.0, %v3042
    %v3044 = vpop.f32.mrf.mxu0
    %3045 = vmatprep.mubr.f32.mxu0 0.0
    %3046 = vmatmul.mubr.f32.gmra.mxu0 %v2861
    %v3047 = vpop.f32.mrf.mxu0
    %v3048 = vadd.f32 0.0, %v3047
    %v3049 = vpop.f32.mrf.mxu0
    %3050 = vmatprep.mubr.f32.mxu0 0.0
    %3051 = vmatmul.mubr.f32.gmra.mxu0 %v2862
    %v3052 = vpop.f32.mrf.mxu0
    %v3053 = vadd.f32 0.0, %v3052
    %v3054 = vpop.f32.mrf.mxu0
    %3055 = vmatprep.mubr.f32.mxu0 0.0
    %3056 = vmatmul.mubr.f32.gmra.mxu0 %v2863
    %v3057 = vpop.f32.mrf.mxu0
    %v3058 = vadd.f32 0.0, %v3057
    %v3059 = vpop.f32.mrf.mxu0
    %3060 = vmatprep.mubr.f32.mxu0 0.0
    %3061 = vmatmul.mubr.f32.gmra.mxu0 %v2864
    %v3062 = vpop.f32.mrf.mxu0
    %v3063 = vadd.f32 0.0, %v3062
    %v3064 = vpop.f32.mrf.mxu0
    %3065 = vmatprep.mubr.f32.mxu0 0.0
    %3066 = vmatmul.mubr.f32.gmra.mxu0 %v2865
    %v3067 = vpop.f32.mrf.mxu0
    %v3068 = vadd.f32 0.0, %v3067
    %v3069 = vpop.f32.mrf.mxu0
    %3070 = vmatprep.mubr.f32.mxu0 0.0
    %3071 = vmatmul.mubr.f32.gmra.mxu0 %v2866
    %v3072 = vpop.f32.mrf.mxu0
    %v3073 = vadd.f32 0.0, %v3072
    %v3074 = vpop.f32.mrf.mxu0
    %3075 = vmatprep.mubr.f32.mxu0 0.0
    %3076 = vmatmul.mubr.f32.gmra.mxu0 %v2867
    %v3077 = vpop.f32.mrf.mxu0
    %v3078 = vadd.f32 0.0, %v3077
    %v3079 = vpop.f32.mrf.mxu0
    %3080 = vmatprep.mubr.f32.mxu0 0.0
    %3081 = vmatmul.mubr.f32.gmra.mxu0 %v2868
    %v3082 = vpop.f32.mrf.mxu0
    %v3083 = vadd.f32 0.0, %v3082
    %v3084 = vpop.f32.mrf.mxu0
    %3085 = vmatprep.mubr.f32.mxu0 0.0
    %3086 = vmatmul.mubr.f32.gmra.mxu0 %v2869
    %v3087 = vpop.f32.mrf.mxu0
    %v3088 = vadd.f32 0.0, %v3087
    %v3089 = vpop.f32.mrf.mxu0
    %3090 = vmatprep.mubr.f32.mxu0 0.0
    %3091 = vmatmul.mubr.f32.gmra.mxu0 %v2870
    %v3092 = vpop.f32.mrf.mxu0
    %v3093 = vadd.f32 0.0, %v3092
    %v3094 = vpop.f32.mrf.mxu0
    %3095 = vmatprep.mubr.f32.mxu0 0.0
    %3096 = vmatmul.mubr.f32.gmra.mxu0 %v2871
    %v3097 = vpop.f32.mrf.mxu0
    %v3098 = vadd.f32 0.0, %v3097
    %v3099 = vpop.f32.mrf.mxu0
    %3100 = vmatprep.mubr.f32.mxu0 0.0
    %3101 = vmatmul.mubr.f32.gmra.mxu0 %v2872
    %v3102 = vpop.f32.mrf.mxu0
    %v3103 = vadd.f32 0.0, %v3102
    %v3104 = vpop.f32.mrf.mxu0
    %3105 = vmatprep.mubr.f32.mxu0 0.0
    %3106 = vmatmul.mubr.f32.gmra.mxu0 %v2873
    %v3107 = vpop.f32.mrf.mxu0
    %v3108 = vadd.f32 0.0, %v3107
    %v3109 = vpop.f32.mrf.mxu0
    %3110 = vmatprep.mubr.f32.mxu0 0.0
    %3111 = vmatmul.mubr.f32.gmra.mxu0 %v2874
    %v3112 = vpop.f32.mrf.mxu0
    %v3113 = vadd.f32 0.0, %v3112
    %v3114 = vpop.f32.mrf.mxu0
    %3115 = vmatprep.mubr.f32.mxu0 0.0
    %3116 = vmatmul.mubr.f32.gmra.mxu0 %v2875
    %v3117 = vpop.f32.mrf.mxu0
    %v3118 = vadd.f32 0.0, %v3117
    %v3119 = vpop.f32.mrf.mxu0
    %3120 = vmatprep.mubr.f32.mxu0 0.0
    %3121 = vmatmul.mubr.f32.gmra.mxu0 %v2876
    %v3122 = vpop.f32.mrf.mxu0
    %v3123 = vadd.f32 0.0, %v3122
    %v3124 = vpop.f32.mrf.mxu0
    %3125 = vmatprep.mubr.f32.mxu0 0.0
    %3126 = vmatmul.mubr.f32.gmra.mxu0 %v2877
    %v3127 = vpop.f32.mrf.mxu0
    %v3128 = vadd.f32 0.0, %v3127
    %v3129 = vpop.f32.mrf.mxu0
    %3130 = vmatprep.mubr.f32.mxu0 0.0
    %3131 = vmatmul.mubr.f32.gmra.mxu0 %v2878
    %v3132 = vpop.f32.mrf.mxu0
    %v3133 = vadd.f32 0.0, %v3132
    %v3134 = vpop.f32.mrf.mxu0
    %3135 = vmatprep.mubr.f32.mxu0 0.0
    %3136 = vmatmul.mubr.f32.gmra.mxu0 %v2879
    %v3137 = vpop.f32.mrf.mxu0
    %v3138 = vadd.f32 0.0, %v3137
    %v3139 = vpop.f32.mrf.mxu0
    %3140 = vmatprep.mubr.f32.mxu0 0.0
    %3141 = vmatmul.mubr.f32.gmra.mxu0 %v2880
    %v3142 = vpop.f32.mrf.mxu0
    %v3143 = vadd.f32 0.0, %v3142
    %v3144 = vpop.f32.mrf.mxu0
    %3145 = vmatprep.mubr.f32.mxu0 0.0
    %3146 = vmatmul.mubr.f32.gmra.mxu0 %v2881
    %v3147 = vpop.f32.mrf.mxu0
    %v3148 = vadd.f32 0.0, %v3147
    %v3149 = vpop.f32.mrf.mxu0
    %3150 = vmatprep.mubr.f32.mxu0 0.0
    %3151 = vmatmul.mubr.f32.gmra.mxu0 %v2882
    %v3152 = vpop.f32.mrf.mxu0
    %v3153 = vadd.f32 0.0, %v3152
    %v3154 = vpop.f32.mrf.mxu0
    %3155 = vmatprep.mubr.f32.mxu0 0.0
    %3156 = vmatmul.mubr.f32.gmra.mxu0 %v2883
    %v3157 = vpop.f32.mrf.mxu0
    %v3158 = vadd.f32 0.0, %v3157
    %v3159 = vpop.f32.mrf.mxu0
    %3160 = vmatprep.mubr.f32.mxu0 0.0
    %3161 = vmatmul.mubr.f32.gmra.mxu0 %v2884
    %v3162 = vpop.f32.mrf.mxu0
    %v3163 = vadd.f32 0.0, %v3162
    %v3164 = vpop.f32.mrf.mxu0
    %3165 = vmatprep.mubr.f32.mxu0 0.0
    %3166 = vmatmul.mubr.f32.gmra.mxu0 %v2885
    %v3167 = vpop.f32.mrf.mxu0
    %v3168 = vadd.f32 0.0, %v3167
    %v3169 = vpop.f32.mrf.mxu0
    %3170 = vmatprep.mubr.f32.mxu0 0.0
    %3171 = vmatmul.mubr.f32.gmra.mxu0 %v2886
    %v3172 = vpop.f32.mrf.mxu0
    %v3173 = vadd.f32 0.0, %v3172
    %v3174 = vpop.f32.mrf.mxu0
    %3175 = vmatprep.mubr.f32.mxu0 0.0
    %3176 = vmatmul.mubr.f32.gmra.mxu0 %v2887
    %v3177 = vpop.f32.mrf.mxu0
    %v3178 = vadd.f32 0.0, %v3177
    %v3179 = vpop.f32.mrf.mxu0
    %3180 = vmatprep.mubr.f32.mxu0 0.0
    %3181 = vmatmul.mubr.f32.gmra.mxu0 %v2888
    %v3182 = vpop.f32.mrf.mxu0
    %v3183 = vadd.f32 0.0, %v3182
    %v3184 = vpop.f32.mrf.mxu0
    %3185 = vmatprep.mubr.f32.mxu0 0.0
    %3186 = vmatmul.mubr.f32.gmra.mxu0 %v2889
    %v3187 = vpop.f32.mrf.mxu0
    %v3188 = vadd.f32 0.0, %v3187
    %v3189 = vpop.f32.mrf.mxu0
    %3190 = vmatprep.mubr.f32.mxu0 0.0
    %3191 = vmatmul.mubr.f32.gmra.mxu0 %v2890
    %v3192 = vpop.f32.mrf.mxu0
    %v3193 = vadd.f32 0.0, %v3192
    %v3194 = vpop.f32.mrf.mxu0
    %3195 = vmatprep.mubr.f32.mxu0 0.0
    %3196 = vmatmul.mubr.f32.gmra.mxu0 %v2891
    %v3197 = vpop.f32.mrf.mxu0
    %v3198 = vadd.f32 0.0, %v3197
    %v3199 = vpop.f32.mrf.mxu0
    %3200 = vmatprep.mubr.f32.mxu0 0.0
    %3201 = vmatmul.mubr.f32.gmra.mxu0 %v2892
    %v3202 = vpop.f32.mrf.mxu0
    %v3203 = vadd.f32 0.0, %v3202
    %v3204 = vpop.f32.mrf.mxu0
    %3205 = vmatprep.mubr.f32.mxu0 0.0
    %3206 = vmatmul.mubr.f32.gmra.mxu0 %v2893
    %v3207 = vpop.f32.mrf.mxu0
    %v3208 = vadd.f32 0.0, %v3207
    %v3209 = vpop.f32.mrf.mxu0
    %3210 = vmatprep.mubr.f32.mxu0 0.0
    %3211 = vmatmul.mubr.f32.gmra.mxu0 %v2894
    %v3212 = vpop.f32.mrf.mxu0
    %v3213 = vadd.f32 0.0, %v3212
    %v3214 = vpop.f32.mrf.mxu0
    %3215 = vmatprep.mubr.f32.mxu0 0.0
    %3216 = vmatmul.mubr.f32.gmra.mxu0 %v2895
    %v3217 = vpop.f32.mrf.mxu0
    %v3218 = vadd.f32 0.0, %v3217
    %v3219 = vpop.f32.mrf.mxu0
    %3220 = vmatprep.mubr.f32.mxu0 0.0
    %3221 = vmatmul.mubr.f32.gmra.mxu0 %v2896
    %v3222 = vpop.f32.mrf.mxu0
    %v3223 = vadd.f32 0.0, %v3222
    %v3224 = vpop.f32.mrf.mxu0
    %3225 = vmatprep.mubr.f32.mxu0 0.0
    %3226 = vmatmul.mubr.f32.gmra.mxu0 %v2897
    %v3227 = vpop.f32.mrf.mxu0
    %v3228 = vadd.f32 0.0, %v3227
    %v3229 = vpop.f32.mrf.mxu0
    %3230 = vmatprep.mubr.f32.mxu0 0.0
    %3231 = vmatmul.mubr.f32.gmra.mxu0 %v2898
    %v3232 = vpop.f32.mrf.mxu0
    %v3233 = vadd.f32 0.0, %v3232
    %v3234 = vpop.f32.mrf.mxu0
    %3235 = vmatprep.mubr.f32.mxu0 0.0
    %3236 = vmatmul.mubr.f32.gmra.mxu0 %v2899
    %v3237 = vpop.f32.mrf.mxu0
    %v3238 = vadd.f32 0.0, %v3237
    %v3239 = vpop.f32.mrf.mxu0
    %3240 = vmatprep.mubr.f32.mxu0 0.0
    %3241 = vmatmul.mubr.f32.gmra.mxu0 %v2900
    %v3242 = vpop.f32.mrf.mxu0
    %v3243 = vadd.f32 0.0, %v3242
    %v3244 = vpop.f32.mrf.mxu0
    %3245 = vmatprep.mubr.f32.mxu0 0.0
    %3246 = vmatmul.mubr.f32.gmra.mxu0 %v2901
    %v3247 = vpop.f32.mrf.mxu0
    %v3248 = vadd.f32 0.0, %v3247
    %v3249 = vpop.f32.mrf.mxu0
    %3250 = vmatprep.mubr.f32.mxu0 0.0
    %3251 = vmatmul.mubr.f32.gmra.mxu0 %v2902
    %v3252 = vpop.f32.mrf.mxu0
    %v3253 = vadd.f32 0.0, %v3252
    %v3254 = vpop.f32.mrf.mxu0
    %3255 = vmatprep.mubr.f32.mxu0 0.0
    %3256 = vmatmul.mubr.f32.gmra.mxu0 %v2903
    %v3257 = vpop.f32.mrf.mxu0
    %v3258 = vadd.f32 0.0, %v3257
    %v3259 = vpop.f32.mrf.mxu0
    %3260 = vmatprep.mubr.f32.mxu0 0.0
    %3261 = vmatmul.mubr.f32.gmra.mxu0 %v2904
    %v3262 = vpop.f32.mrf.mxu0
    %v3263 = vadd.f32 0.0, %v3262
    %v3264 = vpop.f32.mrf.mxu0
    %3265 = vmatprep.mubr.f32.mxu0 0.0
    %3266 = vmatmul.mubr.f32.gmra.mxu0 %v2905
    %v3267 = vpop.f32.mrf.mxu0
    %v3268 = vadd.f32 0.0, %v3267
    %v3269 = vpop.f32.mrf.mxu0
    %3270 = vmatprep.mubr.f32.mxu0 0.0
    %3271 = vmatmul.mubr.f32.gmra.mxu0 %v2906
    %v3272 = vpop.f32.mrf.mxu0
    %v3273 = vadd.f32 0.0, %v3272
    %v3274 = vpop.f32.mrf.mxu0
    %3275 = vmatprep.mubr.f32.mxu0 0.0
    %3276 = vmatmul.mubr.f32.gmra.mxu0 %v2907
    %v3277 = vpop.f32.mrf.mxu0
    %v3278 = vadd.f32 0.0, %v3277
    %v3279 = vpop.f32.mrf.mxu0
    %3280 = vmatprep.mubr.f32.mxu0 0.0
    %3281 = vmatmul.mubr.f32.gmra.mxu0 %v2908
    %v3282 = vpop.f32.mrf.mxu0
    %v3283 = vadd.f32 0.0, %v3282
    %v3284 = vpop.f32.mrf.mxu0
    %3285 = vmatprep.mubr.f32.mxu0 0.0
    %3286 = vmatmul.mubr.f32.gmra.mxu0 %v2909
    %v3287 = vpop.f32.mrf.mxu0
    %v3288 = vadd.f32 0.0, %v3287
    %v3289 = vpop.f32.mrf.mxu0
    %3290 = vmatprep.mubr.f32.mxu0 0.0
    %3291 = vmatmul.mubr.f32.gmra.mxu0 %v2910
    %v3292 = vpop.f32.mrf.mxu0
    %v3293 = vadd.f32 0.0, %v3292
    %v3294 = vpop.f32.mrf.mxu0
    %3295 = vmatprep.mubr.f32.mxu0 0.0
    %3296 = vmatmul.mubr.f32.gmra.mxu0 %v2911
    %v3297 = vpop.f32.mrf.mxu0
    %v3298 = vadd.f32 0.0, %v3297
    %v3299 = vpop.f32.mrf.mxu0
    %3300 = vmatprep.mubr.f32.mxu0 0.0
    %3301 = vmatmul.mubr.f32.gmra.mxu0 %v2912
    %v3302 = vpop.f32.mrf.mxu0
    %v3303 = vadd.f32 0.0, %v3302
    %v3304 = vpop.f32.mrf.mxu0
    %3305 = vmatprep.mubr.f32.mxu0 0.0
    %3306 = vmatmul.mubr.f32.gmra.mxu0 %v2913
    %v3307 = vpop.f32.mrf.mxu0
    %v3308 = vadd.f32 0.0, %v3307
    %v3309 = vpop.f32.mrf.mxu0
    %3310 = vmatprep.mubr.f32.mxu0 0.0
    %3311 = vmatmul.mubr.f32.gmra.mxu0 %v2914
    %v3312 = vpop.f32.mrf.mxu0
    %v3313 = vadd.f32 0.0, %v3312
    %v3314 = vpop.f32.mrf.mxu0
    %3315 = vdwg.mxu0
    %v3316 = vld [vmem:[%s2] sm:$0x1]
    %v3317 = vld [vmem:[%s3] sm:$0x1]
    %v3318 = vadd.f32 %v2998, %v3003
    %v3319 = vadd.f32 %v3318, %v3008
    %v3320 = vadd.f32 %v3319, %v3013
    %v3321 = vadd.f32 %v3320, %v3018
    %v3322 = vadd.f32 %v3321, %v3023
    %v3323 = vadd.f32 %v3322, %v3028
    %v3324 = vadd.f32 %v3323, %v3033
    %v3325 = vadd.f32 %v3324, %v3038
    %v3326 = vadd.f32 %v3325, %v3043
    %v3327 = vadd.f32 %v3326, %v3048
    %v3328 = vadd.f32 %v3327, %v3053
    %v3329 = vadd.f32 %v3328, %v3058
    %v3330 = vadd.f32 %v3329, %v3063
    %v3331 = vadd.f32 %v3330, %v3068
    %v3332 = vadd.f32 %v3331, %v3073
    %v3333 = vadd.f32 %v3332, %v3078
    %v3334 = vadd.f32 %v3333, %v3083
    %v3335 = vadd.f32 %v3334, %v3088
    %v3336 = vadd.f32 %v3335, %v3093
    %v3337 = vadd.f32 %v3336, %v3098
    %v3338 = vadd.f32 %v3337, %v3103
    %v3339 = vadd.f32 %v3338, %v3108
    %v3340 = vadd.f32 %v3339, %v3113
    %v3341 = vadd.f32 %v3340, %v3118
    %v3342 = vadd.f32 %v3341, %v3123
    %v3343 = vadd.f32 %v3342, %v3128
    %v3344 = vadd.f32 %v3343, %v3133
    %v3345 = vadd.f32 %v3344, %v3138
    %v3346 = vadd.f32 %v3345, %v3143
    %v3347 = vadd.f32 %v3346, %v3148
    %v3348 = vadd.f32 %v3347, %v3153
    %v3349 = vadd.f32 %v3348, %v3158
    %v3350 = vadd.f32 %v3349, %v3163
    %v3351 = vadd.f32 %v3350, %v3168
    %v3352 = vadd.f32 %v3351, %v3173
    %v3353 = vadd.f32 %v3352, %v3178
    %v3354 = vadd.f32 %v3353, %v3183
    %v3355 = vadd.f32 %v3354, %v3188
    %v3356 = vadd.f32 %v3355, %v3193
    %v3357 = vadd.f32 %v3356, %v3198
    %v3358 = vadd.f32 %v3357, %v3203
    %v3359 = vadd.f32 %v3358, %v3208
    %v3360 = vadd.f32 %v3359, %v3213
    %v3361 = vadd.f32 %v3360, %v3218
    %v3362 = vadd.f32 %v3361, %v3223
    %v3363 = vadd.f32 %v3362, %v3228
    %v3364 = vadd.f32 %v3363, %v3233
    %v3365 = vadd.f32 %v3364, %v3238
    %v3366 = vadd.f32 %v3365, %v3243
    %v3367 = vadd.f32 %v3366, %v3248
    %v3368 = vadd.f32 %v3367, %v3253
    %v3369 = vadd.f32 %v3368, %v3258
    %v3370 = vadd.f32 %v3369, %v3263
    %v3371 = vadd.f32 %v3370, %v3268
    %v3372 = vadd.f32 %v3371, %v3273
    %v3373 = vadd.f32 %v3372, %v3278
    %v3374 = vadd.f32 %v3373, %v3283
    %v3375 = vadd.f32 %v3374, %v3288
    %v3376 = vadd.f32 %v3375, %v3293
    %v3377 = vadd.f32 %v3376, %v3298
    %v3378 = vadd.f32 %v3377, %v3303
    %v3379 = vadd.f32 %v3378, %v3308
    %v3380 = vadd.f32 %v3379, %v3313
    %v3381 = vrot.slane %v3380, 4
    %v3382 = vadd.f32 %v3380, %v3381
    %v3383 = vrot.slane %v3382, 2
    %v3384 = vadd.f32 %v3382, %v3383
    %v3385 = vrot.slane %v3384, 1
    %v3386 = vadd.f32 %v3384, %v3385
    %v3387 = vmul.f32 %v3386, 0.001953125
    %v3388 = vmul.f32 %v2998, %v2998
    %v3389 = vmul.f32 %v3003, %v3003
    %v3390 = vmul.f32 %v3008, %v3008
    %v3391 = vmul.f32 %v3013, %v3013
    %v3392 = vmul.f32 %v3018, %v3018
    %v3393 = vmul.f32 %v3023, %v3023
    %v3394 = vmul.f32 %v3028, %v3028
    %v3395 = vmul.f32 %v3033, %v3033
    %v3396 = vmul.f32 %v3038, %v3038
    %v3397 = vmul.f32 %v3043, %v3043
    %v3398 = vmul.f32 %v3048, %v3048
    %v3399 = vmul.f32 %v3053, %v3053
    %v3400 = vmul.f32 %v3058, %v3058
    %v3401 = vmul.f32 %v3063, %v3063
    %v3402 = vmul.f32 %v3068, %v3068
    %v3403 = vmul.f32 %v3073, %v3073
    %v3404 = vmul.f32 %v3078, %v3078
    %v3405 = vmul.f32 %v3083, %v3083
    %v3406 = vmul.f32 %v3088, %v3088
    %v3407 = vmul.f32 %v3093, %v3093
    %v3408 = vmul.f32 %v3098, %v3098
    %v3409 = vmul.f32 %v3103, %v3103
    %v3410 = vmul.f32 %v3108, %v3108
    %v3411 = vmul.f32 %v3113, %v3113
    %v3412 = vmul.f32 %v3118, %v3118
    %v3413 = vmul.f32 %v3123, %v3123
    %v3414 = vmul.f32 %v3128, %v3128
    %v3415 = vmul.f32 %v3133, %v3133
    %v3416 = vmul.f32 %v3138, %v3138
    %v3417 = vmul.f32 %v3143, %v3143
    %v3418 = vmul.f32 %v3148, %v3148
    %v3419 = vmul.f32 %v3153, %v3153
    %v3420 = vmul.f32 %v3158, %v3158
    %v3421 = vmul.f32 %v3163, %v3163
    %v3422 = vmul.f32 %v3168, %v3168
    %v3423 = vmul.f32 %v3173, %v3173
    %v3424 = vmul.f32 %v3178, %v3178
    %v3425 = vmul.f32 %v3183, %v3183
    %v3426 = vmul.f32 %v3188, %v3188
    %v3427 = vmul.f32 %v3193, %v3193
    %v3428 = vmul.f32 %v3198, %v3198
    %v3429 = vmul.f32 %v3203, %v3203
    %v3430 = vmul.f32 %v3208, %v3208
    %v3431 = vmul.f32 %v3213, %v3213
    %v3432 = vmul.f32 %v3218, %v3218
    %v3433 = vmul.f32 %v3223, %v3223
    %v3434 = vmul.f32 %v3228, %v3228
    %v3435 = vmul.f32 %v3233, %v3233
    %v3436 = vmul.f32 %v3238, %v3238
    %v3437 = vmul.f32 %v3243, %v3243
    %v3438 = vmul.f32 %v3248, %v3248
    %v3439 = vmul.f32 %v3253, %v3253
    %v3440 = vmul.f32 %v3258, %v3258
    %v3441 = vmul.f32 %v3263, %v3263
    %v3442 = vmul.f32 %v3268, %v3268
    %v3443 = vmul.f32 %v3273, %v3273
    %v3444 = vmul.f32 %v3278, %v3278
    %v3445 = vmul.f32 %v3283, %v3283
    %v3446 = vmul.f32 %v3288, %v3288
    %v3447 = vmul.f32 %v3293, %v3293
    %v3448 = vmul.f32 %v3298, %v3298
    %v3449 = vmul.f32 %v3303, %v3303
    %v3450 = vmul.f32 %v3308, %v3308
    %v3451 = vmul.f32 %v3313, %v3313
    %v3452 = vadd.f32 %v3388, %v3389
    %v3453 = vadd.f32 %v3452, %v3390
    %v3454 = vadd.f32 %v3453, %v3391
    %v3455 = vadd.f32 %v3454, %v3392
    %v3456 = vadd.f32 %v3455, %v3393
    %v3457 = vadd.f32 %v3456, %v3394
    %v3458 = vadd.f32 %v3457, %v3395
    %v3459 = vadd.f32 %v3458, %v3396
    %v3460 = vadd.f32 %v3459, %v3397
    %v3461 = vadd.f32 %v3460, %v3398
    %v3462 = vadd.f32 %v3461, %v3399
    %v3463 = vadd.f32 %v3462, %v3400
    %v3464 = vadd.f32 %v3463, %v3401
    %v3465 = vadd.f32 %v3464, %v3402
    %v3466 = vadd.f32 %v3465, %v3403
    %v3467 = vadd.f32 %v3466, %v3404
    %v3468 = vadd.f32 %v3467, %v3405
    %v3469 = vadd.f32 %v3468, %v3406
    %v3470 = vadd.f32 %v3469, %v3407
    %v3471 = vadd.f32 %v3470, %v3408
    %v3472 = vadd.f32 %v3471, %v3409
    %v3473 = vadd.f32 %v3472, %v3410
    %v3474 = vadd.f32 %v3473, %v3411
    %v3475 = vadd.f32 %v3474, %v3412
    %v3476 = vadd.f32 %v3475, %v3413
    %v3477 = vadd.f32 %v3476, %v3414
    %v3478 = vadd.f32 %v3477, %v3415
    %v3479 = vadd.f32 %v3478, %v3416
    %v3480 = vadd.f32 %v3479, %v3417
    %v3481 = vadd.f32 %v3480, %v3418
    %v3482 = vadd.f32 %v3481, %v3419
    %v3483 = vadd.f32 %v3482, %v3420
    %v3484 = vadd.f32 %v3483, %v3421
    %v3485 = vadd.f32 %v3484, %v3422
    %v3486 = vadd.f32 %v3485, %v3423
    %v3487 = vadd.f32 %v3486, %v3424
    %v3488 = vadd.f32 %v3487, %v3425
    %v3489 = vadd.f32 %v3488, %v3426
    %v3490 = vadd.f32 %v3489, %v3427
    %v3491 = vadd.f32 %v3490, %v3428
    %v3492 = vadd.f32 %v3491, %v3429
    %v3493 = vadd.f32 %v3492, %v3430
    %v3494 = vadd.f32 %v3493, %v3431
    %v3495 = vadd.f32 %v3494, %v3432
    %v3496 = vadd.f32 %v3495, %v3433
    %v3497 = vadd.f32 %v3496, %v3434
    %v3498 = vadd.f32 %v3497, %v3435
    %v3499 = vadd.f32 %v3498, %v3436
    %v3500 = vadd.f32 %v3499, %v3437
    %v3501 = vadd.f32 %v3500, %v3438
    %v3502 = vadd.f32 %v3501, %v3439
    %v3503 = vadd.f32 %v3502, %v3440
    %v3504 = vadd.f32 %v3503, %v3441
    %v3505 = vadd.f32 %v3504, %v3442
    %v3506 = vadd.f32 %v3505, %v3443
    %v3507 = vadd.f32 %v3506, %v3444
    %v3508 = vadd.f32 %v3507, %v3445
    %v3509 = vadd.f32 %v3508, %v3446
    %v3510 = vadd.f32 %v3509, %v3447
    %v3511 = vadd.f32 %v3510, %v3448
    %v3512 = vadd.f32 %v3511, %v3449
    %v3513 = vadd.f32 %v3512, %v3450
    %v3514 = vadd.f32 %v3513, %v3451
    %v3515 = vrot.slane %v3514, 4
    %v3516 = vadd.f32 %v3514, %v3515
    %v3517 = vrot.slane %v3516, 2
    %v3518 = vadd.f32 %v3516, %v3517
    %v3519 = vrot.slane %v3518, 1
    %v3520 = vadd.f32 %v3518, %v3519
    %v3521 = vmul.f32 %v3520, 0.001953125
    %v3522 = vmul.f32 %v3387, %v3387
    %v3523 = vsub.f32 %v3521, %v3522
    %v3524 = vadd.f32 %v3523, 1e-05
    %v3525 = vrsqrt.pop %v3524
    %v3526 = vmul.f32 %v3316, %v3525
    %v3528 = vlaneseq
    %v3529 = vshrl.u32 %v3528, 7
    %v3530 = vsub.s32 0, %v3529
    %v3531 = vrot.slane %v3526, %v3530
    %v3533 = vmul.f32 %v2998, %v3531
    %v3534 = vmul.f32 %v3003, %v3531
    %v3535 = vmul.f32 %v3008, %v3531
    %v3536 = vmul.f32 %v3013, %v3531
    %v3537 = vmul.f32 %v3018, %v3531
    %v3538 = vmul.f32 %v3023, %v3531
    %v3539 = vmul.f32 %v3028, %v3531
    %v3540 = vmul.f32 %v3033, %v3531
    %v3541 = vmul.f32 %v3038, %v3531
    %v3542 = vmul.f32 %v3043, %v3531
    %v3543 = vmul.f32 %v3048, %v3531
    %v3544 = vmul.f32 %v3053, %v3531
    %v3545 = vmul.f32 %v3058, %v3531
    %v3546 = vmul.f32 %v3063, %v3531
    %v3547 = vmul.f32 %v3068, %v3531
    %v3548 = vmul.f32 %v3073, %v3531
    %v3549 = vmul.f32 %v3078, %v3531
    %v3550 = vmul.f32 %v3083, %v3531
    %v3551 = vmul.f32 %v3088, %v3531
    %v3552 = vmul.f32 %v3093, %v3531
    %v3553 = vmul.f32 %v3098, %v3531
    %v3554 = vmul.f32 %v3103, %v3531
    %v3555 = vmul.f32 %v3108, %v3531
    %v3556 = vmul.f32 %v3113, %v3531
    %v3557 = vmul.f32 %v3118, %v3531
    %v3558 = vmul.f32 %v3123, %v3531
    %v3559 = vmul.f32 %v3128, %v3531
    %v3560 = vmul.f32 %v3133, %v3531
    %v3561 = vmul.f32 %v3138, %v3531
    %v3562 = vmul.f32 %v3143, %v3531
    %v3563 = vmul.f32 %v3148, %v3531
    %v3564 = vmul.f32 %v3153, %v3531
    %v3565 = vmul.f32 %v3158, %v3531
    %v3566 = vmul.f32 %v3163, %v3531
    %v3567 = vmul.f32 %v3168, %v3531
    %v3568 = vmul.f32 %v3173, %v3531
    %v3569 = vmul.f32 %v3178, %v3531
    %v3570 = vmul.f32 %v3183, %v3531
    %v3571 = vmul.f32 %v3188, %v3531
    %v3572 = vmul.f32 %v3193, %v3531
    %v3573 = vmul.f32 %v3198, %v3531
    %v3574 = vmul.f32 %v3203, %v3531
    %v3575 = vmul.f32 %v3208, %v3531
    %v3576 = vmul.f32 %v3213, %v3531
    %v3577 = vmul.f32 %v3218, %v3531
    %v3578 = vmul.f32 %v3223, %v3531
    %v3579 = vmul.f32 %v3228, %v3531
    %v3580 = vmul.f32 %v3233, %v3531
    %v3581 = vmul.f32 %v3238, %v3531
    %v3582 = vmul.f32 %v3243, %v3531
    %v3583 = vmul.f32 %v3248, %v3531
    %v3584 = vmul.f32 %v3253, %v3531
    %v3585 = vmul.f32 %v3258, %v3531
    %v3586 = vmul.f32 %v3263, %v3531
    %v3587 = vmul.f32 %v3268, %v3531
    %v3588 = vmul.f32 %v3273, %v3531
    %v3589 = vmul.f32 %v3278, %v3531
    %v3590 = vmul.f32 %v3283, %v3531
    %v3591 = vmul.f32 %v3288, %v3531
    %v3592 = vmul.f32 %v3293, %v3531
    %v3593 = vmul.f32 %v3298, %v3531
    %v3594 = vmul.f32 %v3303, %v3531
    %v3595 = vmul.f32 %v3308, %v3531
    %v3596 = vmul.f32 %v3313, %v3531
    %v3597 = vmul.f32 %v3387, %v3526
    %v3598 = vsub.f32 %v3317, %v3597
    %v3600 = vlaneseq
    %v3601 = vshrl.u32 %v3600, 7
    %v3602 = vsub.s32 0, %v3601
    %v3603 = vrot.slane %v3598, %v3602
    %v3605 = vadd.f32 %v3533, %v3603
    %v3606 = vadd.f32 %v3534, %v3603
    %v3607 = vadd.f32 %v3535, %v3603
    %v3608 = vadd.f32 %v3536, %v3603
    %v3609 = vadd.f32 %v3537, %v3603
    %v3610 = vadd.f32 %v3538, %v3603
    %v3611 = vadd.f32 %v3539, %v3603
    %v3612 = vadd.f32 %v3540, %v3603
    %v3613 = vadd.f32 %v3541, %v3603
    %v3614 = vadd.f32 %v3542, %v3603
    %v3615 = vadd.f32 %v3543, %v3603
    %v3616 = vadd.f32 %v3544, %v3603
    %v3617 = vadd.f32 %v3545, %v3603
    %v3618 = vadd.f32 %v3546, %v3603
    %v3619 = vadd.f32 %v3547, %v3603
    %v3620 = vadd.f32 %v3548, %v3603
    %v3621 = vadd.f32 %v3549, %v3603
    %v3622 = vadd.f32 %v3550, %v3603
    %v3623 = vadd.f32 %v3551, %v3603
    %v3624 = vadd.f32 %v3552, %v3603
    %v3625 = vadd.f32 %v3553, %v3603
    %v3626 = vadd.f32 %v3554, %v3603
    %v3627 = vadd.f32 %v3555, %v3603
    %v3628 = vadd.f32 %v3556, %v3603
    %v3629 = vadd.f32 %v3557, %v3603
    %v3630 = vadd.f32 %v3558, %v3603
    %v3631 = vadd.f32 %v3559, %v3603
    %v3632 = vadd.f32 %v3560, %v3603
    %v3633 = vadd.f32 %v3561, %v3603
    %v3634 = vadd.f32 %v3562, %v3603
    %v3635 = vadd.f32 %v3563, %v3603
    %v3636 = vadd.f32 %v3564, %v3603
    %v3637 = vadd.f32 %v3565, %v3603
    %v3638 = vadd.f32 %v3566, %v3603
    %v3639 = vadd.f32 %v3567, %v3603
    %v3640 = vadd.f32 %v3568, %v3603
    %v3641 = vadd.f32 %v3569, %v3603
    %v3642 = vadd.f32 %v3570, %v3603
    %v3643 = vadd.f32 %v3571, %v3603
    %v3644 = vadd.f32 %v3572, %v3603
    %v3645 = vadd.f32 %v3573, %v3603
    %v3646 = vadd.f32 %v3574, %v3603
    %v3647 = vadd.f32 %v3575, %v3603
    %v3648 = vadd.f32 %v3576, %v3603
    %v3649 = vadd.f32 %v3577, %v3603
    %v3650 = vadd.f32 %v3578, %v3603
    %v3651 = vadd.f32 %v3579, %v3603
    %v3652 = vadd.f32 %v3580, %v3603
    %v3653 = vadd.f32 %v3581, %v3603
    %v3654 = vadd.f32 %v3582, %v3603
    %v3655 = vadd.f32 %v3583, %v3603
    %v3656 = vadd.f32 %v3584, %v3603
    %v3657 = vadd.f32 %v3585, %v3603
    %v3658 = vadd.f32 %v3586, %v3603
    %v3659 = vadd.f32 %v3587, %v3603
    %v3660 = vadd.f32 %v3588, %v3603
    %v3661 = vadd.f32 %v3589, %v3603
    %v3662 = vadd.f32 %v3590, %v3603
    %v3663 = vadd.f32 %v3591, %v3603
    %v3664 = vadd.f32 %v3592, %v3603
    %v3665 = vadd.f32 %v3593, %v3603
    %v3666 = vadd.f32 %v3594, %v3603
    %v3667 = vadd.f32 %v3595, %v3603
    %v3668 = vadd.f32 %v3596, %v3603
    %v3669 = vmax.f32 %v3605, 0.0
    %v3670 = vmax.f32 %v3606, 0.0
    %v3671 = vmax.f32 %v3607, 0.0
    %v3672 = vmax.f32 %v3608, 0.0
    %v3673 = vmax.f32 %v3609, 0.0
    %v3674 = vmax.f32 %v3610, 0.0
    %v3675 = vmax.f32 %v3611, 0.0
    %v3676 = vmax.f32 %v3612, 0.0
    %v3677 = vmax.f32 %v3613, 0.0
    %v3678 = vmax.f32 %v3614, 0.0
    %v3679 = vmax.f32 %v3615, 0.0
    %v3680 = vmax.f32 %v3616, 0.0
    %v3681 = vmax.f32 %v3617, 0.0
    %v3682 = vmax.f32 %v3618, 0.0
    %v3683 = vmax.f32 %v3619, 0.0
    %v3684 = vmax.f32 %v3620, 0.0
    %v3685 = vmax.f32 %v3621, 0.0
    %v3686 = vmax.f32 %v3622, 0.0
    %v3687 = vmax.f32 %v3623, 0.0
    %v3688 = vmax.f32 %v3624, 0.0
    %v3689 = vmax.f32 %v3625, 0.0
    %v3690 = vmax.f32 %v3626, 0.0
    %v3691 = vmax.f32 %v3627, 0.0
    %v3692 = vmax.f32 %v3628, 0.0
    %v3693 = vmax.f32 %v3629, 0.0
    %v3694 = vmax.f32 %v3630, 0.0
    %v3695 = vmax.f32 %v3631, 0.0
    %v3696 = vmax.f32 %v3632, 0.0
    %v3697 = vmax.f32 %v3633, 0.0
    %v3698 = vmax.f32 %v3634, 0.0
    %v3699 = vmax.f32 %v3635, 0.0
    %v3700 = vmax.f32 %v3636, 0.0
    %v3701 = vmax.f32 %v3637, 0.0
    %v3702 = vmax.f32 %v3638, 0.0
    %v3703 = vmax.f32 %v3639, 0.0
    %v3704 = vmax.f32 %v3640, 0.0
    %v3705 = vmax.f32 %v3641, 0.0
    %v3706 = vmax.f32 %v3642, 0.0
    %v3707 = vmax.f32 %v3643, 0.0
    %v3708 = vmax.f32 %v3644, 0.0
    %v3709 = vmax.f32 %v3645, 0.0
    %v3710 = vmax.f32 %v3646, 0.0
    %v3711 = vmax.f32 %v3647, 0.0
    %v3712 = vmax.f32 %v3648, 0.0
    %v3713 = vmax.f32 %v3649, 0.0
    %v3714 = vmax.f32 %v3650, 0.0
    %v3715 = vmax.f32 %v3651, 0.0
    %v3716 = vmax.f32 %v3652, 0.0
    %v3717 = vmax.f32 %v3653, 0.0
    %v3718 = vmax.f32 %v3654, 0.0
    %v3719 = vmax.f32 %v3655, 0.0
    %v3720 = vmax.f32 %v3656, 0.0
    %v3721 = vmax.f32 %v3657, 0.0
    %v3722 = vmax.f32 %v3658, 0.0
    %v3723 = vmax.f32 %v3659, 0.0
    %v3724 = vmax.f32 %v3660, 0.0
    %v3725 = vmax.f32 %v3661, 0.0
    %v3726 = vmax.f32 %v3662, 0.0
    %v3727 = vmax.f32 %v3663, 0.0
    %v3728 = vmax.f32 %v3664, 0.0
    %v3729 = vmax.f32 %v3665, 0.0
    %v3730 = vmax.f32 %v3666, 0.0
    %v3731 = vmax.f32 %v3667, 0.0
    %v3732 = vmax.f32 %v3668, 0.0
    %3733 = vst [vmem:[%s217 + $0x1] sm:$0xff] %v3669
    %3734 = vst [vmem:[%s217 + $0x9] sm:$0xff] %v3670
    %3735 = vst [vmem:[%s217 + $0x19] sm:$0xff] %v3671
    %3736 = vst [vmem:[%s217 + $0x21] sm:$0xff] %v3672
    %3737 = vst [vmem:[%s217 + $0x31] sm:$0xff] %v3673
    %3738 = vst [vmem:[%s217 + $0x39] sm:$0xff] %v3674
    %3739 = vst [vmem:[%s217 + $0x49] sm:$0xff] %v3675
    %3740 = vst [vmem:[%s217 + $0x51] sm:$0xff] %v3676
    %3741 = vst [vmem:[%s217 + $0x61] sm:$0xff] %v3677
    %3742 = vst [vmem:[%s217 + $0x69] sm:$0xff] %v3678
    %3743 = vst [vmem:[%s217 + $0x79] sm:$0xff] %v3679
    %3744 = vst [vmem:[%s217 + $0x81] sm:$0xff] %v3680
    %3745 = vst [vmem:[%s217 + $0x91] sm:$0xff] %v3681
    %3746 = vst [vmem:[%s217 + $0x99] sm:$0xff] %v3682
    %3747 = vst [vmem:[%s217 + $0xa9] sm:$0xff] %v3683
    %3748 = vst [vmem:[%s217 + $0xb1] sm:$0xff] %v3684
    %3749 = vst [vmem:[%s217 + $0xc1] sm:$0xff] %v3685
    %3750 = vst [vmem:[%s217 + $0xc9] sm:$0xff] %v3686
    %3751 = vst [vmem:[%s217 + $0xd9] sm:$0xff] %v3687
    %3752 = vst [vmem:[%s217 + $0xe1] sm:$0xff] %v3688
    %3753 = vst [vmem:[%s217 + $0xf1] sm:$0xff] %v3689
    %3754 = vst [vmem:[%s217 + $0xf9] sm:$0xff] %v3690
    %3755 = vst [vmem:[%s217 + $0x109] sm:$0xff] %v3691
    %3756 = vst [vmem:[%s217 + $0x111] sm:$0xff] %v3692
    %3757 = vst [vmem:[%s217 + $0x121] sm:$0xff] %v3693
    %3758 = vst [vmem:[%s217 + $0x129] sm:$0xff] %v3694
    %3759 = vst [vmem:[%s217 + $0x139] sm:$0xff] %v3695
    %3760 = vst [vmem:[%s217 + $0x141] sm:$0xff] %v3696
    %3761 = vst [vmem:[%s217 + $0x151] sm:$0xff] %v3697
    %3762 = vst [vmem:[%s217 + $0x159] sm:$0xff] %v3698
    %3763 = vst [vmem:[%s217 + $0x169] sm:$0xff] %v3699
    %3764 = vst [vmem:[%s217 + $0x171] sm:$0xff] %v3700
    %3765 = vst [vmem:[%s217 + $0x1b1] sm:$0xff] %v3701
    %3766 = vst [vmem:[%s217 + $0x1b9] sm:$0xff] %v3702
    %3767 = vst [vmem:[%s217 + $0x1c9] sm:$0xff] %v3703
    %3768 = vst [vmem:[%s217 + $0x1d1] sm:$0xff] %v3704
    %3769 = vst [vmem:[%s217 + $0x1e1] sm:$0xff] %v3705
    %3770 = vst [vmem:[%s217 + $0x1e9] sm:$0xff] %v3706
    %3771 = vst [vmem:[%s217 + $0x1f9] sm:$0xff] %v3707
    %3772 = vst [vmem:[%s217 + $0x201] sm:$0xff] %v3708
    %3773 = vst [vmem:[%s217 + $0x211] sm:$0xff] %v3709
    %3774 = vst [vmem:[%s217 + $0x219] sm:$0xff] %v3710
    %3775 = vst [vmem:[%s217 + $0x229] sm:$0xff] %v3711
    %3776 = vst [vmem:[%s217 + $0x231] sm:$0xff] %v3712
    %3777 = vst [vmem:[%s217 + $0x241] sm:$0xff] %v3713
    %3778 = vst [vmem:[%s217 + $0x249] sm:$0xff] %v3714
    %3779 = vst [vmem:[%s217 + $0x259] sm:$0xff] %v3715
    %3780 = vst [vmem:[%s217 + $0x261] sm:$0xff] %v3716
    %3781 = vst [vmem:[%s217 + $0x271] sm:$0xff] %v3717
    %3782 = vst [vmem:[%s217 + $0x279] sm:$0xff] %v3718
    %3783 = vst [vmem:[%s217 + $0x289] sm:$0xff] %v3719
    %3784 = vst [vmem:[%s217 + $0x291] sm:$0xff] %v3720
    %3785 = vst [vmem:[%s217 + $0x2a1] sm:$0xff] %v3721
    %3786 = vst [vmem:[%s217 + $0x2a9] sm:$0xff] %v3722
    %3787 = vst [vmem:[%s217 + $0x2b9] sm:$0xff] %v3723
    %3788 = vst [vmem:[%s217 + $0x2c1] sm:$0xff] %v3724
    %3789 = vst [vmem:[%s217 + $0x2d1] sm:$0xff] %v3725
    %3790 = vst [vmem:[%s217 + $0x2d9] sm:$0xff] %v3726
    %3791 = vst [vmem:[%s217 + $0x2e9] sm:$0xff] %v3727
    %3792 = vst [vmem:[%s217 + $0x2f1] sm:$0xff] %v3728
    %3793 = vst [vmem:[%s217 + $0x301] sm:$0xff] %v3729
    %3794 = vst [vmem:[%s217 + $0x309] sm:$0xff] %v3730
    %3795 = vst [vmem:[%s217 + $0x319] sm:$0xff] %v3731
    %3796 = vst [vmem:[%s217 + $0x321] sm:$0xff] %v3732
    %v3797 = vld [vmem:[#allocation2] sm:$0xff]
    %v3798 = vld [vmem:[#allocation2 + $0x8] sm:$0xff]
    %v3799 = vld [vmem:[#allocation2 + $0x18] sm:$0xff]
    %v3800 = vld [vmem:[#allocation2 + $0x20] sm:$0xff]
    %v3801 = vld [vmem:[#allocation2 + $0x30] sm:$0xff]
    %v3802 = vld [vmem:[#allocation2 + $0x38] sm:$0xff]
    %v3803 = vld [vmem:[#allocation2 + $0x48] sm:$0xff]
    %v3804 = vld [vmem:[#allocation2 + $0x50] sm:$0xff]
    %v3805 = vld [vmem:[#allocation2 + $0x60] sm:$0xff]
    %v3806 = vld [vmem:[#allocation2 + $0x68] sm:$0xff]
    %v3807 = vld [vmem:[#allocation2 + $0x78] sm:$0xff]
    %v3808 = vld [vmem:[#allocation2 + $0x80] sm:$0xff]
    %v3809 = vld [vmem:[#allocation2 + $0x90] sm:$0xff]
    %v3810 = vld [vmem:[#allocation2 + $0x98] sm:$0xff]
    %v3811 = vld [vmem:[#allocation2 + $0xa8] sm:$0xff]
    %v3812 = vld [vmem:[#allocation2 + $0xb0] sm:$0xff]
    %v3813 = vld [vmem:[#allocation2 + $0xc0] sm:$0xff]
    %v3814 = vld [vmem:[#allocation2 + $0xc8] sm:$0xff]
    %v3815 = vld [vmem:[#allocation2 + $0xd8] sm:$0xff]
    %v3816 = vld [vmem:[#allocation2 + $0xe0] sm:$0xff]
    %v3817 = vld [vmem:[#allocation2 + $0xf0] sm:$0xff]
    %v3818 = vld [vmem:[#allocation2 + $0xf8] sm:$0xff]
    %v3819 = vld [vmem:[#allocation2 + $0x108] sm:$0xff]
    %v3820 = vld [vmem:[#allocation2 + $0x110] sm:$0xff]
    %v3821 = vld [vmem:[#allocation2 + $0x120] sm:$0xff]
    %v3822 = vld [vmem:[#allocation2 + $0x128] sm:$0xff]
    %v3823 = vld [vmem:[#allocation2 + $0x138] sm:$0xff]
    %v3824 = vld [vmem:[#allocation2 + $0x140] sm:$0xff]
    %v3825 = vld [vmem:[#allocation2 + $0x150] sm:$0xff]
    %v3826 = vld [vmem:[#allocation2 + $0x158] sm:$0xff]
    %v3827 = vld [vmem:[#allocation2 + $0x168] sm:$0xff]
    %v3828 = vld [vmem:[#allocation2 + $0x170] sm:$0xff]
    %v3829 = vld [vmem:[#allocation2 + $0x1b0] sm:$0xff]
    %v3830 = vld [vmem:[#allocation2 + $0x1b8] sm:$0xff]
    %v3831 = vld [vmem:[#allocation2 + $0x1c8] sm:$0xff]
    %v3832 = vld [vmem:[#allocation2 + $0x1d0] sm:$0xff]
    %v3833 = vld [vmem:[#allocation2 + $0x1e0] sm:$0xff]
    %v3834 = vld [vmem:[#allocation2 + $0x1e8] sm:$0xff]
    %v3835 = vld [vmem:[#allocation2 + $0x1f8] sm:$0xff]
    %v3836 = vld [vmem:[#allocation2 + $0x200] sm:$0xff]
    %v3837 = vld [vmem:[#allocation2 + $0x210] sm:$0xff]
    %v3838 = vld [vmem:[#allocation2 + $0x218] sm:$0xff]
    %v3839 = vld [vmem:[#allocation2 + $0x228] sm:$0xff]
    %v3840 = vld [vmem:[#allocation2 + $0x230] sm:$0xff]
    %v3841 = vld [vmem:[#allocation2 + $0x240] sm:$0xff]
    %v3842 = vld [vmem:[#allocation2 + $0x248] sm:$0xff]
    %v3843 = vld [vmem:[#allocation2 + $0x258] sm:$0xff]
    %v3844 = vld [vmem:[#allocation2 + $0x260] sm:$0xff]
    %v3845 = vld [vmem:[#allocation2 + $0x270] sm:$0xff]
    %v3846 = vld [vmem:[#allocation2 + $0x278] sm:$0xff]
    %v3847 = vld [vmem:[#allocation2 + $0x288] sm:$0xff]
    %v3848 = vld [vmem:[#allocation2 + $0x290] sm:$0xff]
    %v3849 = vld [vmem:[#allocation2 + $0x2a0] sm:$0xff]
    %v3850 = vld [vmem:[#allocation2 + $0x2a8] sm:$0xff]
    %v3851 = vld [vmem:[#allocation2 + $0x2b8] sm:$0xff]
    %v3852 = vld [vmem:[#allocation2 + $0x2c0] sm:$0xff]
    %v3853 = vld [vmem:[#allocation2 + $0x2d0] sm:$0xff]
    %v3854 = vld [vmem:[#allocation2 + $0x2d8] sm:$0xff]
    %v3855 = vld [vmem:[#allocation2 + $0x2e8] sm:$0xff]
    %v3856 = vld [vmem:[#allocation2 + $0x2f0] sm:$0xff]
    %v3857 = vld [vmem:[#allocation2 + $0x300] sm:$0xff]
    %v3858 = vld [vmem:[#allocation2 + $0x308] sm:$0xff]
    %v3859 = vld [vmem:[#allocation2 + $0x318] sm:$0xff]
    %v3860 = vld [vmem:[#allocation2 + $0x320] sm:$0xff]
    %v3861 = vld [vmem:[#allocation8] sm:$0xff]
    %v3862 = vld [vmem:[#allocation8 + $0x8] sm:$0xff]
    %v3863 = vld [vmem:[#allocation8 + $0x10] sm:$0xff]
    %v3864 = vld [vmem:[#allocation8 + $0x18] sm:$0xff]
    %v3865 = vld [vmem:[#allocation8 + $0x20] sm:$0xff]
    %v3866 = vld [vmem:[#allocation8 + $0x28] sm:$0xff]
    %v3867 = vld [vmem:[#allocation8 + $0x30] sm:$0xff]
    %v3868 = vld [vmem:[#allocation8 + $0x38] sm:$0xff]
    %v3869 = vld [vmem:[#allocation8 + $0x40] sm:$0xff]
    %v3870 = vld [vmem:[#allocation8 + $0x48] sm:$0xff]
    %v3871 = vld [vmem:[#allocation8 + $0x50] sm:$0xff]
    %v3872 = vld [vmem:[#allocation8 + $0x58] sm:$0xff]
    %v3873 = vld [vmem:[#allocation8 + $0x60] sm:$0xff]
    %v3874 = vld [vmem:[#allocation8 + $0x68] sm:$0xff]
    %v3875 = vld [vmem:[#allocation8 + $0x70] sm:$0xff]
    %v3876 = vld [vmem:[#allocation8 + $0x78] sm:$0xff]
    %v3877 = vld [vmem:[#allocation2 + $0x1] sm:$0xff]
    %v3878 = vld [vmem:[#allocation2 + $0x9] sm:$0xff]
    %v3879 = vld [vmem:[#allocation2 + $0x19] sm:$0xff]
    %v3880 = vld [vmem:[#allocation2 + $0x21] sm:$0xff]
    %v3881 = vld [vmem:[#allocation2 + $0x31] sm:$0xff]
    %v3882 = vld [vmem:[#allocation2 + $0x39] sm:$0xff]
    %v3883 = vld [vmem:[#allocation2 + $0x49] sm:$0xff]
    %v3884 = vld [vmem:[#allocation2 + $0x51] sm:$0xff]
    %v3885 = vld [vmem:[#allocation2 + $0x61] sm:$0xff]
    %v3886 = vld [vmem:[#allocation2 + $0x69] sm:$0xff]
    %v3887 = vld [vmem:[#allocation2 + $0x79] sm:$0xff]
    %v3888 = vld [vmem:[#allocation2 + $0x81] sm:$0xff]
    %v3889 = vld [vmem:[#allocation2 + $0x91] sm:$0xff]
    %v3890 = vld [vmem:[#allocation2 + $0x99] sm:$0xff]
    %v3891 = vld [vmem:[#allocation2 + $0xa9] sm:$0xff]
    %v3892 = vld [vmem:[#allocation2 + $0xb1] sm:$0xff]
    %v3893 = vld [vmem:[#allocation2 + $0xc1] sm:$0xff]
    %v3894 = vld [vmem:[#allocation2 + $0xc9] sm:$0xff]
    %v3895 = vld [vmem:[#allocation2 + $0xd9] sm:$0xff]
    %v3896 = vld [vmem:[#allocation2 + $0xe1] sm:$0xff]
    %v3897 = vld [vmem:[#allocation2 + $0xf1] sm:$0xff]
    %v3898 = vld [vmem:[#allocation2 + $0xf9] sm:$0xff]
    %v3899 = vld [vmem:[#allocation2 + $0x109] sm:$0xff]
    %v3900 = vld [vmem:[#allocation2 + $0x111] sm:$0xff]
    %v3901 = vld [vmem:[#allocation2 + $0x121] sm:$0xff]
    %v3902 = vld [vmem:[#allocation2 + $0x129] sm:$0xff]
    %v3903 = vld [vmem:[#allocation2 + $0x139] sm:$0xff]
    %v3904 = vld [vmem:[#allocation2 + $0x141] sm:$0xff]
    %v3905 = vld [vmem:[#allocation2 + $0x151] sm:$0xff]
    %v3906 = vld [vmem:[#allocation2 + $0x159] sm:$0xff]
    %v3907 = vld [vmem:[#allocation2 + $0x169] sm:$0xff]
    %v3908 = vld [vmem:[#allocation2 + $0x171] sm:$0xff]
    %v3909 = vld [vmem:[#allocation2 + $0x1b1] sm:$0xff]
    %v3910 = vld [vmem:[#allocation2 + $0x1b9] sm:$0xff]
    %v3911 = vld [vmem:[#allocation2 + $0x1c9] sm:$0xff]
    %v3912 = vld [vmem:[#allocation2 + $0x1d1] sm:$0xff]
    %v3913 = vld [vmem:[#allocation2 + $0x1e1] sm:$0xff]
    %v3914 = vld [vmem:[#allocation2 + $0x1e9] sm:$0xff]
    %v3915 = vld [vmem:[#allocation2 + $0x1f9] sm:$0xff]
    %v3916 = vld [vmem:[#allocation2 + $0x201] sm:$0xff]
    %v3917 = vld [vmem:[#allocation2 + $0x211] sm:$0xff]
    %v3918 = vld [vmem:[#allocation2 + $0x219] sm:$0xff]
    %v3919 = vld [vmem:[#allocation2 + $0x229] sm:$0xff]
    %v3920 = vld [vmem:[#allocation2 + $0x231] sm:$0xff]
    %v3921 = vld [vmem:[#allocation2 + $0x241] sm:$0xff]
    %v3922 = vld [vmem:[#allocation2 + $0x249] sm:$0xff]
    %v3923 = vld [vmem:[#allocation2 + $0x259] sm:$0xff]
    %v3924 = vld [vmem:[#allocation2 + $0x261] sm:$0xff]
    %v3925 = vld [vmem:[#allocation2 + $0x271] sm:$0xff]
    %v3926 = vld [vmem:[#allocation2 + $0x279] sm:$0xff]
    %v3927 = vld [vmem:[#allocation2 + $0x289] sm:$0xff]
    %v3928 = vld [vmem:[#allocation2 + $0x291] sm:$0xff]
    %v3929 = vld [vmem:[#allocation2 + $0x2a1] sm:$0xff]
    %v3930 = vld [vmem:[#allocation2 + $0x2a9] sm:$0xff]
    %v3931 = vld [vmem:[#allocation2 + $0x2b9] sm:$0xff]
    %v3932 = vld [vmem:[#allocation2 + $0x2c1] sm:$0xff]
    %v3933 = vld [vmem:[#allocation2 + $0x2d1] sm:$0xff]
    %v3934 = vld [vmem:[#allocation2 + $0x2d9] sm:$0xff]
    %v3935 = vld [vmem:[#allocation2 + $0x2e9] sm:$0xff]
    %v3936 = vld [vmem:[#allocation2 + $0x2f1] sm:$0xff]
    %v3937 = vld [vmem:[#allocation2 + $0x301] sm:$0xff]
    %v3938 = vld [vmem:[#allocation2 + $0x309] sm:$0xff]
    %v3939 = vld [vmem:[#allocation2 + $0x319] sm:$0xff]
    %v3940 = vld [vmem:[#allocation2 + $0x321] sm:$0xff]
    %s3941 = scalar_lea.vmem [#allocation8], 128
    %v3942 = vld [vmem:[%s3941] sm:$0xff]
    %v3943 = vld [vmem:[%s3941 + $0x8] sm:$0xff]
    %v3944 = vld [vmem:[%s3941 + $0x10] sm:$0xff]
    %v3945 = vld [vmem:[%s3941 + $0x18] sm:$0xff]
    %v3946 = vld [vmem:[%s3941 + $0x20] sm:$0xff]
    %v3947 = vld [vmem:[%s3941 + $0x28] sm:$0xff]
    %v3948 = vld [vmem:[%s3941 + $0x30] sm:$0xff]
    %v3949 = vld [vmem:[%s3941 + $0x38] sm:$0xff]
    %v3950 = vld [vmem:[%s3941 + $0x40] sm:$0xff]
    %v3951 = vld [vmem:[%s3941 + $0x48] sm:$0xff]
    %v3952 = vld [vmem:[%s3941 + $0x50] sm:$0xff]
    %v3953 = vld [vmem:[%s3941 + $0x58] sm:$0xff]
    %v3954 = vld [vmem:[%s3941 + $0x60] sm:$0xff]
    %v3955 = vld [vmem:[%s3941 + $0x68] sm:$0xff]
    %v3956 = vld [vmem:[%s3941 + $0x70] sm:$0xff]
    %v3957 = vld [vmem:[%s3941 + $0x78] sm:$0xff]
    %3958 = vrot.lane.b32.xlu0 %v3877, 4
    %v3959 = vpop.permute.xlu0 %3958
    %3960 = vrot.lane.b32.xlu0 %v3878, 4
    %v3961 = vpop.permute.xlu0 %3960
    %3962 = vrot.lane.b32.xlu0 %v3879, 4
    %v3963 = vpop.permute.xlu0 %3962
    %3964 = vrot.lane.b32.xlu0 %v3880, 4
    %v3965 = vpop.permute.xlu0 %3964
    %3966 = vrot.lane.b32.xlu0 %v3881, 4
    %v3967 = vpop.permute.xlu0 %3966
    %3968 = vrot.lane.b32.xlu0 %v3882, 4
    %v3969 = vpop.permute.xlu0 %3968
    %3970 = vrot.lane.b32.xlu0 %v3883, 4
    %v3971 = vpop.permute.xlu0 %3970
    %3972 = vrot.lane.b32.xlu0 %v3884, 4
    %v3973 = vpop.permute.xlu0 %3972
    %3974 = vrot.lane.b32.xlu0 %v3885, 4
    %v3975 = vpop.permute.xlu0 %3974
    %3976 = vrot.lane.b32.xlu0 %v3886, 4
    %v3977 = vpop.permute.xlu0 %3976
    %3978 = vrot.lane.b32.xlu0 %v3887, 4
    %v3979 = vpop.permute.xlu0 %3978
    %3980 = vrot.lane.b32.xlu0 %v3888, 4
    %v3981 = vpop.permute.xlu0 %3980
    %3982 = vrot.lane.b32.xlu0 %v3889, 4
    %v3983 = vpop.permute.xlu0 %3982
    %3984 = vrot.lane.b32.xlu0 %v3890, 4
    %v3985 = vpop.permute.xlu0 %3984
    %3986 = vrot.lane.b32.xlu0 %v3891, 4
    %v3987 = vpop.permute.xlu0 %3986
    %3988 = vrot.lane.b32.xlu0 %v3892, 4
    %v3989 = vpop.permute.xlu0 %3988
    %3990 = vrot.lane.b32.xlu0 %v3893, 4
    %v3991 = vpop.permute.xlu0 %3990
    %3992 = vrot.lane.b32.xlu0 %v3894, 4
    %v3993 = vpop.permute.xlu0 %3992
    %3994 = vrot.lane.b32.xlu0 %v3895, 4
    %v3995 = vpop.permute.xlu0 %3994
    %3996 = vrot.lane.b32.xlu0 %v3896, 4
    %v3997 = vpop.permute.xlu0 %3996
    %3998 = vrot.lane.b32.xlu0 %v3897, 4
    %v3999 = vpop.permute.xlu0 %3998
    %4000 = vrot.lane.b32.xlu0 %v3898, 4
    %v4001 = vpop.permute.xlu0 %4000
    %4002 = vrot.lane.b32.xlu0 %v3899, 4
    %v4003 = vpop.permute.xlu0 %4002
    %4004 = vrot.lane.b32.xlu0 %v3900, 4
    %v4005 = vpop.permute.xlu0 %4004
    %4006 = vrot.lane.b32.xlu0 %v3901, 4
    %v4007 = vpop.permute.xlu0 %4006
    %4008 = vrot.lane.b32.xlu0 %v3902, 4
    %v4009 = vpop.permute.xlu0 %4008
    %4010 = vrot.lane.b32.xlu0 %v3903, 4
    %v4011 = vpop.permute.xlu0 %4010
    %4012 = vrot.lane.b32.xlu0 %v3904, 4
    %v4013 = vpop.permute.xlu0 %4012
    %4014 = vrot.lane.b32.xlu0 %v3905, 4
    %v4015 = vpop.permute.xlu0 %4014
    %4016 = vrot.lane.b32.xlu0 %v3906, 4
    %v4017 = vpop.permute.xlu0 %4016
    %4018 = vrot.lane.b32.xlu0 %v3907, 4
    %v4019 = vpop.permute.xlu0 %4018
    %4020 = vrot.lane.b32.xlu0 %v3908, 4
    %v4021 = vpop.permute.xlu0 %4020
    %4022 = vrot.lane.b32.xlu0 %v3909, 4
    %v4023 = vpop.permute.xlu0 %4022
    %4024 = vrot.lane.b32.xlu0 %v3910, 4
    %v4025 = vpop.permute.xlu0 %4024
    %4026 = vrot.lane.b32.xlu0 %v3911, 4
    %v4027 = vpop.permute.xlu0 %4026
    %4028 = vrot.lane.b32.xlu0 %v3912, 4
    %v4029 = vpop.permute.xlu0 %4028
    %4030 = vrot.lane.b32.xlu0 %v3913, 4
    %v4031 = vpop.permute.xlu0 %4030
    %4032 = vrot.lane.b32.xlu0 %v3914, 4
    %v4033 = vpop.permute.xlu0 %4032
    %4034 = vrot.lane.b32.xlu0 %v3915, 4
    %v4035 = vpop.permute.xlu0 %4034
    %4036 = vrot.lane.b32.xlu0 %v3916, 4
    %v4037 = vpop.permute.xlu0 %4036
    %4038 = vrot.lane.b32.xlu0 %v3917, 4
    %v4039 = vpop.permute.xlu0 %4038
    %4040 = vrot.lane.b32.xlu0 %v3918, 4
    %v4041 = vpop.permute.xlu0 %4040
    %4042 = vrot.lane.b32.xlu0 %v3919, 4
    %v4043 = vpop.permute.xlu0 %4042
    %4044 = vrot.lane.b32.xlu0 %v3920, 4
    %v4045 = vpop.permute.xlu0 %4044
    %4046 = vrot.lane.b32.xlu0 %v3921, 4
    %v4047 = vpop.permute.xlu0 %4046
    %4048 = vrot.lane.b32.xlu0 %v3922, 4
    %v4049 = vpop.permute.xlu0 %4048
    %4050 = vrot.lane.b32.xlu0 %v3923, 4
    %v4051 = vpop.permute.xlu0 %4050
    %4052 = vrot.lane.b32.xlu0 %v3924, 4
    %v4053 = vpop.permute.xlu0 %4052
    %4054 = vrot.lane.b32.xlu0 %v3925, 4
    %v4055 = vpop.permute.xlu0 %4054
    %4056 = vrot.lane.b32.xlu0 %v3926, 4
    %v4057 = vpop.permute.xlu0 %4056
    %4058 = vrot.lane.b32.xlu0 %v3927, 4
    %v4059 = vpop.permute.xlu0 %4058
    %4060 = vrot.lane.b32.xlu0 %v3928, 4
    %v4061 = vpop.permute.xlu0 %4060
    %4062 = vrot.lane.b32.xlu0 %v3929, 4
    %v4063 = vpop.permute.xlu0 %4062
    %4064 = vrot.lane.b32.xlu0 %v3930, 4
    %v4065 = vpop.permute.xlu0 %4064
    %4066 = vrot.lane.b32.xlu0 %v3931, 4
    %v4067 = vpop.permute.xlu0 %4066
    %4068 = vrot.lane.b32.xlu0 %v3932, 4
    %v4069 = vpop.permute.xlu0 %4068
    %4070 = vrot.lane.b32.xlu0 %v3933, 4
    %v4071 = vpop.permute.xlu0 %4070
    %4072 = vrot.lane.b32.xlu0 %v3934, 4
    %v4073 = vpop.permute.xlu0 %4072
    %4074 = vrot.lane.b32.xlu0 %v3935, 4
    %v4075 = vpop.permute.xlu0 %4074
    %4076 = vrot.lane.b32.xlu0 %v3936, 4
    %v4077 = vpop.permute.xlu0 %4076
    %4078 = vrot.lane.b32.xlu0 %v3937, 4
    %v4079 = vpop.permute.xlu0 %4078
    %4080 = vrot.lane.b32.xlu0 %v3938, 4
    %v4081 = vpop.permute.xlu0 %4080
    %4082 = vrot.lane.b32.xlu0 %v3939, 4
    %v4083 = vpop.permute.xlu0 %4082
    %4084 = vrot.lane.b32.xlu0 %v3940, 4
    %v4085 = vpop.permute.xlu0 %4084
    %4086 = vrot.lane.b32.xlu0 %v3942, 4
    %v4087 = vpop.permute.xlu0 %4086
    %4088 = vrot.lane.b32.xlu0 %v3943, 4
    %v4089 = vpop.permute.xlu0 %4088
    %4090 = vrot.lane.b32.xlu0 %v3944, 4
    %v4091 = vpop.permute.xlu0 %4090
    %4092 = vrot.lane.b32.xlu0 %v3945, 4
    %v4093 = vpop.permute.xlu0 %4092
    %4094 = vrot.lane.b32.xlu0 %v3946, 4
    %v4095 = vpop.permute.xlu0 %4094
    %4096 = vrot.lane.b32.xlu0 %v3947, 4
    %v4097 = vpop.permute.xlu0 %4096
    %4098 = vrot.lane.b32.xlu0 %v3948, 4
    %v4099 = vpop.permute.xlu0 %4098
    %4100 = vrot.lane.b32.xlu0 %v3949, 4
    %v4101 = vpop.permute.xlu0 %4100
    %4102 = vrot.lane.b32.xlu0 %v3950, 4
    %v4103 = vpop.permute.xlu0 %4102
    %4104 = vrot.lane.b32.xlu0 %v3951, 4
    %v4105 = vpop.permute.xlu0 %4104
    %4106 = vrot.lane.b32.xlu0 %v3952, 4
    %v4107 = vpop.permute.xlu0 %4106
    %4108 = vrot.lane.b32.xlu0 %v3953, 4
    %v4109 = vpop.permute.xlu0 %4108
    %4110 = vrot.lane.b32.xlu0 %v3954, 4
    %v4111 = vpop.permute.xlu0 %4110
    %4112 = vrot.lane.b32.xlu0 %v3955, 4
    %v4113 = vpop.permute.xlu0 %4112
    %4114 = vrot.lane.b32.xlu0 %v3956, 4
    %v4115 = vpop.permute.xlu0 %4114
    %4116 = vrot.lane.b32.xlu0 %v3957, 4
    %v4117 = vpop.permute.xlu0 %4116
    %v4118 = vadd.f32 %v3797, %v3959
    %v4119 = vadd.f32 %v3798, %v3961
    %v4120 = vadd.f32 %v3799, %v3963
    %v4121 = vadd.f32 %v3800, %v3965
    %v4122 = vadd.f32 %v3801, %v3967
    %v4123 = vadd.f32 %v3802, %v3969
    %v4124 = vadd.f32 %v3803, %v3971
    %v4125 = vadd.f32 %v3804, %v3973
    %v4126 = vadd.f32 %v3805, %v3975
    %v4127 = vadd.f32 %v3806, %v3977
    %v4128 = vadd.f32 %v3807, %v3979
    %v4129 = vadd.f32 %v3808, %v3981
    %v4130 = vadd.f32 %v3809, %v3983
    %v4131 = vadd.f32 %v3810, %v3985
    %v4132 = vadd.f32 %v3811, %v3987
    %v4133 = vadd.f32 %v3812, %v3989
    %v4134 = vadd.f32 %v3813, %v3991
    %v4135 = vadd.f32 %v3814, %v3993
    %v4136 = vadd.f32 %v3815, %v3995
    %v4137 = vadd.f32 %v3816, %v3997
    %v4138 = vadd.f32 %v3817, %v3999
    %v4139 = vadd.f32 %v3818, %v4001
    %v4140 = vadd.f32 %v3819, %v4003
    %v4141 = vadd.f32 %v3820, %v4005
    %v4142 = vadd.f32 %v3821, %v4007
    %v4143 = vadd.f32 %v3822, %v4009
    %v4144 = vadd.f32 %v3823, %v4011
    %v4145 = vadd.f32 %v3824, %v4013
    %v4146 = vadd.f32 %v3825, %v4015
    %v4147 = vadd.f32 %v3826, %v4017
    %v4148 = vadd.f32 %v3827, %v4019
    %v4149 = vadd.f32 %v3828, %v4021
    %v4150 = vadd.f32 %v3829, %v4023
    %v4151 = vadd.f32 %v3830, %v4025
    %v4152 = vadd.f32 %v3831, %v4027
    %v4153 = vadd.f32 %v3832, %v4029
    %v4154 = vadd.f32 %v3833, %v4031
    %v4155 = vadd.f32 %v3834, %v4033
    %v4156 = vadd.f32 %v3835, %v4035
    %v4157 = vadd.f32 %v3836, %v4037
    %v4158 = vadd.f32 %v3837, %v4039
    %v4159 = vadd.f32 %v3838, %v4041
    %v4160 = vadd.f32 %v3839, %v4043
    %v4161 = vadd.f32 %v3840, %v4045
    %v4162 = vadd.f32 %v3841, %v4047
    %v4163 = vadd.f32 %v3842, %v4049
    %v4164 = vadd.f32 %v3843, %v4051
    %v4165 = vadd.f32 %v3844, %v4053
    %v4166 = vadd.f32 %v3845, %v4055
    %v4167 = vadd.f32 %v3846, %v4057
    %v4168 = vadd.f32 %v3847, %v4059
    %v4169 = vadd.f32 %v3848, %v4061
    %v4170 = vadd.f32 %v3849, %v4063
    %v4171 = vadd.f32 %v3850, %v4065
    %v4172 = vadd.f32 %v3851, %v4067
    %v4173 = vadd.f32 %v3852, %v4069
    %v4174 = vadd.f32 %v3853, %v4071
    %v4175 = vadd.f32 %v3854, %v4073
    %v4176 = vadd.f32 %v3855, %v4075
    %v4177 = vadd.f32 %v3856, %v4077
    %v4178 = vadd.f32 %v3857, %v4079
    %v4179 = vadd.f32 %v3858, %v4081
    %v4180 = vadd.f32 %v3859, %v4083
    %v4181 = vadd.f32 %v3860, %v4085
    %v4182 = vadd.f32 %v3861, %v4087
    %v4183 = vadd.f32 %v3862, %v4089
    %v4184 = vadd.f32 %v3863, %v4091
    %v4185 = vadd.f32 %v3864, %v4093
    %v4186 = vadd.f32 %v3865, %v4095
    %v4187 = vadd.f32 %v3866, %v4097
    %v4188 = vadd.f32 %v3867, %v4099
    %v4189 = vadd.f32 %v3868, %v4101
    %v4190 = vadd.f32 %v3869, %v4103
    %v4191 = vadd.f32 %v3870, %v4105
    %v4192 = vadd.f32 %v3871, %v4107
    %v4193 = vadd.f32 %v3872, %v4109
    %v4194 = vadd.f32 %v3873, %v4111
    %v4195 = vadd.f32 %v3874, %v4113
    %v4196 = vadd.f32 %v3875, %v4115
    %v4197 = vadd.f32 %v3876, %v4117
    %v4198 = vld [vmem:[#allocation2 + $0x2] sm:$0xff]
    %v4199 = vld [vmem:[#allocation2 + $0xa] sm:$0xff]
    %v4200 = vld [vmem:[#allocation2 + $0x1a] sm:$0xff]
    %v4201 = vld [vmem:[#allocation2 + $0x22] sm:$0xff]
    %v4202 = vld [vmem:[#allocation2 + $0x32] sm:$0xff]
    %v4203 = vld [vmem:[#allocation2 + $0x3a] sm:$0xff]
    %v4204 = vld [vmem:[#allocation2 + $0x4a] sm:$0xff]
    %v4205 = vld [vmem:[#allocation2 + $0x52] sm:$0xff]
    %v4206 = vld [vmem:[#allocation2 + $0x62] sm:$0xff]
    %v4207 = vld [vmem:[#allocation2 + $0x6a] sm:$0xff]
    %v4208 = vld [vmem:[#allocation2 + $0x7a] sm:$0xff]
    %v4209 = vld [vmem:[#allocation2 + $0x82] sm:$0xff]
    %v4210 = vld [vmem:[#allocation2 + $0x92] sm:$0xff]
    %v4211 = vld [vmem:[#allocation2 + $0x9a] sm:$0xff]
    %v4212 = vld [vmem:[#allocation2 + $0xaa] sm:$0xff]
    %v4213 = vld [vmem:[#allocation2 + $0xb2] sm:$0xff]
    %v4214 = vld [vmem:[#allocation2 + $0xc2] sm:$0xff]
    %v4215 = vld [vmem:[#allocation2 + $0xca] sm:$0xff]
    %v4216 = vld [vmem:[#allocation2 + $0xda] sm:$0xff]
    %v4217 = vld [vmem:[#allocation2 + $0xe2] sm:$0xff]
    %v4218 = vld [vmem:[#allocation2 + $0xf2] sm:$0xff]
    %v4219 = vld [vmem:[#allocation2 + $0xfa] sm:$0xff]
    %v4220 = vld [vmem:[#allocation2 + $0x10a] sm:$0xff]
    %v4221 = vld [vmem:[#allocation2 + $0x112] sm:$0xff]
    %v4222 = vld [vmem:[#allocation2 + $0x122] sm:$0xff]
    %v4223 = vld [vmem:[#allocation2 + $0x12a] sm:$0xff]
    %v4224 = vld [vmem:[#allocation2 + $0x13a] sm:$0xff]
    %v4225 = vld [vmem:[#allocation2 + $0x142] sm:$0xff]
    %v4226 = vld [vmem:[#allocation2 + $0x152] sm:$0xff]
    %v4227 = vld [vmem:[#allocation2 + $0x15a] sm:$0xff]
    %v4228 = vld [vmem:[#allocation2 + $0x16a] sm:$0xff]
    %v4229 = vld [vmem:[#allocation2 + $0x172] sm:$0xff]
    %v4230 = vld [vmem:[#allocation2 + $0x1b2] sm:$0xff]
    %v4231 = vld [vmem:[#allocation2 + $0x1ba] sm:$0xff]
    %v4232 = vld [vmem:[#allocation2 + $0x1ca] sm:$0xff]
    %v4233 = vld [vmem:[#allocation2 + $0x1d2] sm:$0xff]
    %v4234 = vld [vmem:[#allocation2 + $0x1e2] sm:$0xff]
    %v4235 = vld [vmem:[#allocation2 + $0x1ea] sm:$0xff]
    %v4236 = vld [vmem:[#allocation2 + $0x1fa] sm:$0xff]
    %v4237 = vld [vmem:[#allocation2 + $0x202] sm:$0xff]
    %v4238 = vld [vmem:[#allocation2 + $0x212] sm:$0xff]
    %v4239 = vld [vmem:[#allocation2 + $0x21a] sm:$0xff]
    %v4240 = vld [vmem:[#allocation2 + $0x22a] sm:$0xff]
    %v4241 = vld [vmem:[#allocation2 + $0x232] sm:$0xff]
    %v4242 = vld [vmem:[#allocation2 + $0x242] sm:$0xff]
    %v4243 = vld [vmem:[#allocation2 + $0x24a] sm:$0xff]
    %v4244 = vld [vmem:[#allocation2 + $0x25a] sm:$0xff]
    %v4245 = vld [vmem:[#allocation2 + $0x262] sm:$0xff]
    %v4246 = vld [vmem:[#allocation2 + $0x272] sm:$0xff]
    %v4247 = vld [vmem:[#allocation2 + $0x27a] sm:$0xff]
    %v4248 = vld [vmem:[#allocation2 + $0x28a] sm:$0xff]
    %v4249 = vld [vmem:[#allocation2 + $0x292] sm:$0xff]
    %v4250 = vld [vmem:[#allocation2 + $0x2a2] sm:$0xff]
    %v4251 = vld [vmem:[#allocation2 + $0x2aa] sm:$0xff]
    %v4252 = vld [vmem:[#allocation2 + $0x2ba] sm:$0xff]
    %v4253 = vld [vmem:[#allocation2 + $0x2c2] sm:$0xff]
    %v4254 = vld [vmem:[#allocation2 + $0x2d2] sm:$0xff]
    %v4255 = vld [vmem:[#allocation2 + $0x2da] sm:$0xff]
    %v4256 = vld [vmem:[#allocation2 + $0x2ea] sm:$0xff]
    %v4257 = vld [vmem:[#allocation2 + $0x2f2] sm:$0xff]
    %v4258 = vld [vmem:[#allocation2 + $0x302] sm:$0xff]
    %v4259 = vld [vmem:[#allocation2 + $0x30a] sm:$0xff]
    %v4260 = vld [vmem:[#allocation2 + $0x31a] sm:$0xff]
    %v4261 = vld [vmem:[#allocation2 + $0x322] sm:$0xff]
    %s4262 = scalar_lea.vmem [#allocation8], 256
    %v4263 = vld [vmem:[%s4262] sm:$0xff]
    %v4264 = vld [vmem:[%s4262 + $0x8] sm:$0xff]
    %v4265 = vld [vmem:[%s4262 + $0x10] sm:$0xff]
    %v4266 = vld [vmem:[%s4262 + $0x18] sm:$0xff]
    %v4267 = vld [vmem:[%s4262 + $0x20] sm:$0xff]
    %v4268 = vld [vmem:[%s4262 + $0x28] sm:$0xff]
    %v4269 = vld [vmem:[%s4262 + $0x30] sm:$0xff]
    %v4270 = vld [vmem:[%s4262 + $0x38] sm:$0xff]
    %v4271 = vld [vmem:[%s4262 + $0x40] sm:$0xff]
    %v4272 = vld [vmem:[%s4262 + $0x48] sm:$0xff]
    %v4273 = vld [vmem:[%s4262 + $0x50] sm:$0xff]
    %v4274 = vld [vmem:[%s4262 + $0x58] sm:$0xff]
    %v4275 = vld [vmem:[%s4262 + $0x60] sm:$0xff]
    %v4276 = vld [vmem:[%s4262 + $0x68] sm:$0xff]
    %v4277 = vld [vmem:[%s4262 + $0x70] sm:$0xff]
    %v4278 = vld [vmem:[%s4262 + $0x78] sm:$0xff]
    %4279 = vrot.lane.b32.xlu0 %v4198, 8
    %v4280 = vpop.permute.xlu0 %4279
    %4281 = vrot.lane.b32.xlu0 %v4199, 8
    %v4282 = vpop.permute.xlu0 %4281
    %4283 = vrot.lane.b32.xlu0 %v4200, 8
    %v4284 = vpop.permute.xlu0 %4283
    %4285 = vrot.lane.b32.xlu0 %v4201, 8
    %v4286 = vpop.permute.xlu0 %4285
    %4287 = vrot.lane.b32.xlu0 %v4202, 8
    %v4288 = vpop.permute.xlu0 %4287
    %4289 = vrot.lane.b32.xlu0 %v4203, 8
    %v4290 = vpop.permute.xlu0 %4289
    %4291 = vrot.lane.b32.xlu0 %v4204, 8
    %v4292 = vpop.permute.xlu0 %4291
    %4293 = vrot.lane.b32.xlu0 %v4205, 8
    %v4294 = vpop.permute.xlu0 %4293
    %4295 = vrot.lane.b32.xlu0 %v4206, 8
    %v4296 = vpop.permute.xlu0 %4295
    %4297 = vrot.lane.b32.xlu0 %v4207, 8
    %v4298 = vpop.permute.xlu0 %4297
    %4299 = vrot.lane.b32.xlu0 %v4208, 8
    %v4300 = vpop.permute.xlu0 %4299
    %4301 = vrot.lane.b32.xlu0 %v4209, 8
    %v4302 = vpop.permute.xlu0 %4301
    %4303 = vrot.lane.b32.xlu0 %v4210, 8
    %v4304 = vpop.permute.xlu0 %4303
    %4305 = vrot.lane.b32.xlu0 %v4211, 8
    %v4306 = vpop.permute.xlu0 %4305
    %4307 = vrot.lane.b32.xlu0 %v4212, 8
    %v4308 = vpop.permute.xlu0 %4307
    %4309 = vrot.lane.b32.xlu0 %v4213, 8
    %v4310 = vpop.permute.xlu0 %4309
    %4311 = vrot.lane.b32.xlu0 %v4214, 8
    %v4312 = vpop.permute.xlu0 %4311
    %4313 = vrot.lane.b32.xlu0 %v4215, 8
    %v4314 = vpop.permute.xlu0 %4313
    %4315 = vrot.lane.b32.xlu0 %v4216, 8
    %v4316 = vpop.permute.xlu0 %4315
    %4317 = vrot.lane.b32.xlu0 %v4217, 8
    %v4318 = vpop.permute.xlu0 %4317
    %4319 = vrot.lane.b32.xlu0 %v4218, 8
    %v4320 = vpop.permute.xlu0 %4319
    %4321 = vrot.lane.b32.xlu0 %v4219, 8
    %v4322 = vpop.permute.xlu0 %4321
    %4323 = vrot.lane.b32.xlu0 %v4220, 8
    %v4324 = vpop.permute.xlu0 %4323
    %4325 = vrot.lane.b32.xlu0 %v4221, 8
    %v4326 = vpop.permute.xlu0 %4325
    %4327 = vrot.lane.b32.xlu0 %v4222, 8
    %v4328 = vpop.permute.xlu0 %4327
    %4329 = vrot.lane.b32.xlu0 %v4223, 8
    %v4330 = vpop.permute.xlu0 %4329
    %4331 = vrot.lane.b32.xlu0 %v4224, 8
    %v4332 = vpop.permute.xlu0 %4331
    %4333 = vrot.lane.b32.xlu0 %v4225, 8
    %v4334 = vpop.permute.xlu0 %4333
    %4335 = vrot.lane.b32.xlu0 %v4226, 8
    %v4336 = vpop.permute.xlu0 %4335
    %4337 = vrot.lane.b32.xlu0 %v4227, 8
    %v4338 = vpop.permute.xlu0 %4337
    %4339 = vrot.lane.b32.xlu0 %v4228, 8
    %v4340 = vpop.permute.xlu0 %4339
    %4341 = vrot.lane.b32.xlu0 %v4229, 8
    %v4342 = vpop.permute.xlu0 %4341
    %4343 = vrot.lane.b32.xlu0 %v4230, 8
    %v4344 = vpop.permute.xlu0 %4343
    %4345 = vrot.lane.b32.xlu0 %v4231, 8
    %v4346 = vpop.permute.xlu0 %4345
    %4347 = vrot.lane.b32.xlu0 %v4232, 8
    %v4348 = vpop.permute.xlu0 %4347
    %4349 = vrot.lane.b32.xlu0 %v4233, 8
    %v4350 = vpop.permute.xlu0 %4349
    %4351 = vrot.lane.b32.xlu0 %v4234, 8
    %v4352 = vpop.permute.xlu0 %4351
    %4353 = vrot.lane.b32.xlu0 %v4235, 8
    %v4354 = vpop.permute.xlu0 %4353
    %4355 = vrot.lane.b32.xlu0 %v4236, 8
    %v4356 = vpop.permute.xlu0 %4355
    %4357 = vrot.lane.b32.xlu0 %v4237, 8
    %v4358 = vpop.permute.xlu0 %4357
    %4359 = vrot.lane.b32.xlu0 %v4238, 8
    %v4360 = vpop.permute.xlu0 %4359
    %4361 = vrot.lane.b32.xlu0 %v4239, 8
    %v4362 = vpop.permute.xlu0 %4361
    %4363 = vrot.lane.b32.xlu0 %v4240, 8
    %v4364 = vpop.permute.xlu0 %4363
    %4365 = vrot.lane.b32.xlu0 %v4241, 8
    %v4366 = vpop.permute.xlu0 %4365
    %4367 = vrot.lane.b32.xlu0 %v4242, 8
    %v4368 = vpop.permute.xlu0 %4367
    %4369 = vrot.lane.b32.xlu0 %v4243, 8
    %v4370 = vpop.permute.xlu0 %4369
    %4371 = vrot.lane.b32.xlu0 %v4244, 8
    %v4372 = vpop.permute.xlu0 %4371
    %4373 = vrot.lane.b32.xlu0 %v4245, 8
    %v4374 = vpop.permute.xlu0 %4373
    %4375 = vrot.lane.b32.xlu0 %v4246, 8
    %v4376 = vpop.permute.xlu0 %4375
    %4377 = vrot.lane.b32.xlu0 %v4247, 8
    %v4378 = vpop.permute.xlu0 %4377
    %4379 = vrot.lane.b32.xlu0 %v4248, 8
    %v4380 = vpop.permute.xlu0 %4379
    %4381 = vrot.lane.b32.xlu0 %v4249, 8
    %v4382 = vpop.permute.xlu0 %4381
    %4383 = vrot.lane.b32.xlu0 %v4250, 8
    %v4384 = vpop.permute.xlu0 %4383
    %4385 = vrot.lane.b32.xlu0 %v4251, 8
    %v4386 = vpop.permute.xlu0 %4385
    %4387 = vrot.lane.b32.xlu0 %v4252, 8
    %v4388 = vpop.permute.xlu0 %4387
    %4389 = vrot.lane.b32.xlu0 %v4253, 8
    %v4390 = vpop.permute.xlu0 %4389
    %4391 = vrot.lane.b32.xlu0 %v4254, 8
    %v4392 = vpop.permute.xlu0 %4391
    %4393 = vrot.lane.b32.xlu0 %v4255, 8
    %v4394 = vpop.permute.xlu0 %4393
    %4395 = vrot.lane.b32.xlu0 %v4256, 8
    %v4396 = vpop.permute.xlu0 %4395
    %4397 = vrot.lane.b32.xlu0 %v4257, 8
    %v4398 = vpop.permute.xlu0 %4397
    %4399 = vrot.lane.b32.xlu0 %v4258, 8
    %v4400 = vpop.permute.xlu0 %4399
    %4401 = vrot.lane.b32.xlu0 %v4259, 8
    %v4402 = vpop.permute.xlu0 %4401
    %4403 = vrot.lane.b32.xlu0 %v4260, 8
    %v4404 = vpop.permute.xlu0 %4403
    %4405 = vrot.lane.b32.xlu0 %v4261, 8
    %v4406 = vpop.permute.xlu0 %4405
    %4407 = vrot.lane.b32.xlu0 %v4263, 8
    %v4408 = vpop.permute.xlu0 %4407
    %4409 = vrot.lane.b32.xlu0 %v4264, 8
    %v4410 = vpop.permute.xlu0 %4409
    %4411 = vrot.lane.b32.xlu0 %v4265, 8
    %v4412 = vpop.permute.xlu0 %4411
    %4413 = vrot.lane.b32.xlu0 %v4266, 8
    %v4414 = vpop.permute.xlu0 %4413
    %4415 = vrot.lane.b32.xlu0 %v4267, 8
    %v4416 = vpop.permute.xlu0 %4415
    %4417 = vrot.lane.b32.xlu0 %v4268, 8
    %v4418 = vpop.permute.xlu0 %4417
    %4419 = vrot.lane.b32.xlu0 %v4269, 8
    %v4420 = vpop.permute.xlu0 %4419
    %4421 = vrot.lane.b32.xlu0 %v4270, 8
    %v4422 = vpop.permute.xlu0 %4421
    %4423 = vrot.lane.b32.xlu0 %v4271, 8
    %v4424 = vpop.permute.xlu0 %4423
    %4425 = vrot.lane.b32.xlu0 %v4272, 8
    %v4426 = vpop.permute.xlu0 %4425
    %4427 = vrot.lane.b32.xlu0 %v4273, 8
    %v4428 = vpop.permute.xlu0 %4427
    %4429 = vrot.lane.b32.xlu0 %v4274, 8
    %v4430 = vpop.permute.xlu0 %4429
    %4431 = vrot.lane.b32.xlu0 %v4275, 8
    %v4432 = vpop.permute.xlu0 %4431
    %4433 = vrot.lane.b32.xlu0 %v4276, 8
    %v4434 = vpop.permute.xlu0 %4433
    %4435 = vrot.lane.b32.xlu0 %v4277, 8
    %v4436 = vpop.permute.xlu0 %4435
    %4437 = vrot.lane.b32.xlu0 %v4278, 8
    %v4438 = vpop.permute.xlu0 %4437
    %v4439 = vadd.f32 %v4118, %v4280
    %v4440 = vadd.f32 %v4119, %v4282
    %v4441 = vadd.f32 %v4120, %v4284
    %v4442 = vadd.f32 %v4121, %v4286
    %v4443 = vadd.f32 %v4122, %v4288
    %v4444 = vadd.f32 %v4123, %v4290
    %v4445 = vadd.f32 %v4124, %v4292
    %v4446 = vadd.f32 %v4125, %v4294
    %v4447 = vadd.f32 %v4126, %v4296
    %v4448 = vadd.f32 %v4127, %v4298
    %v4449 = vadd.f32 %v4128, %v4300
    %v4450 = vadd.f32 %v4129, %v4302
    %v4451 = vadd.f32 %v4130, %v4304
    %v4452 = vadd.f32 %v4131, %v4306
    %v4453 = vadd.f32 %v4132, %v4308
    %v4454 = vadd.f32 %v4133, %v4310
    %v4455 = vadd.f32 %v4134, %v4312
    %v4456 = vadd.f32 %v4135, %v4314
    %v4457 = vadd.f32 %v4136, %v4316
    %v4458 = vadd.f32 %v4137, %v4318
    %v4459 = vadd.f32 %v4138, %v4320
    %v4460 = vadd.f32 %v4139, %v4322
    %v4461 = vadd.f32 %v4140, %v4324
    %v4462 = vadd.f32 %v4141, %v4326
    %v4463 = vadd.f32 %v4142, %v4328
    %v4464 = vadd.f32 %v4143, %v4330
    %v4465 = vadd.f32 %v4144, %v4332
    %v4466 = vadd.f32 %v4145, %v4334
    %v4467 = vadd.f32 %v4146, %v4336
    %v4468 = vadd.f32 %v4147, %v4338
    %v4469 = vadd.f32 %v4148, %v4340
    %v4470 = vadd.f32 %v4149, %v4342
    %v4471 = vadd.f32 %v4150, %v4344
    %v4472 = vadd.f32 %v4151, %v4346
    %v4473 = vadd.f32 %v4152, %v4348
    %v4474 = vadd.f32 %v4153, %v4350
    %v4475 = vadd.f32 %v4154, %v4352
    %v4476 = vadd.f32 %v4155, %v4354
    %v4477 = vadd.f32 %v4156, %v4356
    %v4478 = vadd.f32 %v4157, %v4358
    %v4479 = vadd.f32 %v4158, %v4360
    %v4480 = vadd.f32 %v4159, %v4362
    %v4481 = vadd.f32 %v4160, %v4364
    %v4482 = vadd.f32 %v4161, %v4366
    %v4483 = vadd.f32 %v4162, %v4368
    %v4484 = vadd.f32 %v4163, %v4370
    %v4485 = vadd.f32 %v4164, %v4372
    %v4486 = vadd.f32 %v4165, %v4374
    %v4487 = vadd.f32 %v4166, %v4376
    %v4488 = vadd.f32 %v4167, %v4378
    %v4489 = vadd.f32 %v4168, %v4380
    %v4490 = vadd.f32 %v4169, %v4382
    %v4491 = vadd.f32 %v4170, %v4384
    %v4492 = vadd.f32 %v4171, %v4386
    %v4493 = vadd.f32 %v4172, %v4388
    %v4494 = vadd.f32 %v4173, %v4390
    %v4495 = vadd.f32 %v4174, %v4392
    %v4496 = vadd.f32 %v4175, %v4394
    %v4497 = vadd.f32 %v4176, %v4396
    %v4498 = vadd.f32 %v4177, %v4398
    %v4499 = vadd.f32 %v4178, %v4400
    %v4500 = vadd.f32 %v4179, %v4402
    %v4501 = vadd.f32 %v4180, %v4404
    %v4502 = vadd.f32 %v4181, %v4406
    %v4503 = vadd.f32 %v4182, %v4408
    %v4504 = vadd.f32 %v4183, %v4410
    %v4505 = vadd.f32 %v4184, %v4412
    %v4506 = vadd.f32 %v4185, %v4414
    %v4507 = vadd.f32 %v4186, %v4416
    %v4508 = vadd.f32 %v4187, %v4418
    %v4509 = vadd.f32 %v4188, %v4420
    %v4510 = vadd.f32 %v4189, %v4422
    %v4511 = vadd.f32 %v4190, %v4424
    %v4512 = vadd.f32 %v4191, %v4426
    %v4513 = vadd.f32 %v4192, %v4428
    %v4514 = vadd.f32 %v4193, %v4430
    %v4515 = vadd.f32 %v4194, %v4432
    %v4516 = vadd.f32 %v4195, %v4434
    %v4517 = vadd.f32 %v4196, %v4436
    %v4518 = vadd.f32 %v4197, %v4438
    %v4519 = vld [vmem:[%s217] sm:$0xff]
    %v4520 = vld [vmem:[%s217 + $0x8] sm:$0xff]
    %v4521 = vld [vmem:[%s217 + $0x18] sm:$0xff]
    %v4522 = vld [vmem:[%s217 + $0x20] sm:$0xff]
    %v4523 = vld [vmem:[%s217 + $0x30] sm:$0xff]
    %v4524 = vld [vmem:[%s217 + $0x38] sm:$0xff]
    %v4525 = vld [vmem:[%s217 + $0x48] sm:$0xff]
    %v4526 = vld [vmem:[%s217 + $0x50] sm:$0xff]
    %v4527 = vld [vmem:[%s217 + $0x60] sm:$0xff]
    %v4528 = vld [vmem:[%s217 + $0x68] sm:$0xff]
    %v4529 = vld [vmem:[%s217 + $0x78] sm:$0xff]
    %v4530 = vld [vmem:[%s217 + $0x80] sm:$0xff]
    %v4531 = vld [vmem:[%s217 + $0x90] sm:$0xff]
    %v4532 = vld [vmem:[%s217 + $0x98] sm:$0xff]
    %v4533 = vld [vmem:[%s217 + $0xa8] sm:$0xff]
    %v4534 = vld [vmem:[%s217 + $0xb0] sm:$0xff]
    %v4535 = vld [vmem:[%s217 + $0xc0] sm:$0xff]
    %v4536 = vld [vmem:[%s217 + $0xc8] sm:$0xff]
    %v4537 = vld [vmem:[%s217 + $0xd8] sm:$0xff]
    %v4538 = vld [vmem:[%s217 + $0xe0] sm:$0xff]
    %v4539 = vld [vmem:[%s217 + $0xf0] sm:$0xff]
    %v4540 = vld [vmem:[%s217 + $0xf8] sm:$0xff]
    %v4541 = vld [vmem:[%s217 + $0x108] sm:$0xff]
    %v4542 = vld [vmem:[%s217 + $0x110] sm:$0xff]
    %v4543 = vld [vmem:[%s217 + $0x120] sm:$0xff]
    %v4544 = vld [vmem:[%s217 + $0x128] sm:$0xff]
    %v4545 = vld [vmem:[%s217 + $0x138] sm:$0xff]
    %v4546 = vld [vmem:[%s217 + $0x140] sm:$0xff]
    %v4547 = vld [vmem:[%s217 + $0x150] sm:$0xff]
    %v4548 = vld [vmem:[%s217 + $0x158] sm:$0xff]
    %v4549 = vld [vmem:[%s217 + $0x168] sm:$0xff]
    %v4550 = vld [vmem:[%s217 + $0x170] sm:$0xff]
    %v4551 = vld [vmem:[%s217 + $0x1b0] sm:$0xff]
    %v4552 = vld [vmem:[%s217 + $0x1b8] sm:$0xff]
    %v4553 = vld [vmem:[%s217 + $0x1c8] sm:$0xff]
    %v4554 = vld [vmem:[%s217 + $0x1d0] sm:$0xff]
    %v4555 = vld [vmem:[%s217 + $0x1e0] sm:$0xff]
    %v4556 = vld [vmem:[%s217 + $0x1e8] sm:$0xff]
    %v4557 = vld [vmem:[%s217 + $0x1f8] sm:$0xff]
    %v4558 = vld [vmem:[%s217 + $0x200] sm:$0xff]
    %v4559 = vld [vmem:[%s217 + $0x210] sm:$0xff]
    %v4560 = vld [vmem:[%s217 + $0x218] sm:$0xff]
    %v4561 = vld [vmem:[%s217 + $0x228] sm:$0xff]
    %v4562 = vld [vmem:[%s217 + $0x230] sm:$0xff]
    %v4563 = vld [vmem:[%s217 + $0x240] sm:$0xff]
    %v4564 = vld [vmem:[%s217 + $0x248] sm:$0xff]
    %v4565 = vld [vmem:[%s217 + $0x258] sm:$0xff]
    %v4566 = vld [vmem:[%s217 + $0x260] sm:$0xff]
    %v4567 = vld [vmem:[%s217 + $0x270] sm:$0xff]
    %v4568 = vld [vmem:[%s217 + $0x278] sm:$0xff]
    %v4569 = vld [vmem:[%s217 + $0x288] sm:$0xff]
    %v4570 = vld [vmem:[%s217 + $0x290] sm:$0xff]
    %v4571 = vld [vmem:[%s217 + $0x2a0] sm:$0xff]
    %v4572 = vld [vmem:[%s217 + $0x2a8] sm:$0xff]
    %v4573 = vld [vmem:[%s217 + $0x2b8] sm:$0xff]
    %v4574 = vld [vmem:[%s217 + $0x2c0] sm:$0xff]
    %v4575 = vld [vmem:[%s217 + $0x2d0] sm:$0xff]
    %v4576 = vld [vmem:[%s217 + $0x2d8] sm:$0xff]
    %v4577 = vld [vmem:[%s217 + $0x2e8] sm:$0xff]
    %v4578 = vld [vmem:[%s217 + $0x2f0] sm:$0xff]
    %v4579 = vld [vmem:[%s217 + $0x300] sm:$0xff]
    %v4580 = vld [vmem:[%s217 + $0x308] sm:$0xff]
    %v4581 = vld [vmem:[%s217 + $0x318] sm:$0xff]
    %v4582 = vld [vmem:[%s217 + $0x320] sm:$0xff]
    %s4583 = scalar_lea.vmem [#allocation8], 384
    %v4584 = vld [vmem:[%s4583] sm:$0xff]
    %v4585 = vld [vmem:[%s4583 + $0x8] sm:$0xff]
    %v4586 = vld [vmem:[%s4583 + $0x10] sm:$0xff]
    %v4587 = vld [vmem:[%s4583 + $0x18] sm:$0xff]
    %v4588 = vld [vmem:[%s4583 + $0x20] sm:$0xff]
    %v4589 = vld [vmem:[%s4583 + $0x28] sm:$0xff]
    %v4590 = vld [vmem:[%s4583 + $0x30] sm:$0xff]
    %v4591 = vld [vmem:[%s4583 + $0x38] sm:$0xff]
    %v4592 = vld [vmem:[%s4583 + $0x40] sm:$0xff]
    %v4593 = vld [vmem:[%s4583 + $0x48] sm:$0xff]
    %v4594 = vld [vmem:[%s4583 + $0x50] sm:$0xff]
    %v4595 = vld [vmem:[%s4583 + $0x58] sm:$0xff]
    %v4596 = vld [vmem:[%s4583 + $0x60] sm:$0xff]
    %v4597 = vld [vmem:[%s4583 + $0x68] sm:$0xff]
    %v4598 = vld [vmem:[%s4583 + $0x70] sm:$0xff]
    %v4599 = vld [vmem:[%s4583 + $0x78] sm:$0xff]
    %4600 = vrot.lane.b32.xlu0 %v4519, 12
    %v4601 = vpop.permute.xlu0 %4600
    %4602 = vrot.lane.b32.xlu0 %v4520, 12
    %v4603 = vpop.permute.xlu0 %4602
    %4604 = vrot.lane.b32.xlu0 %v4521, 12
    %v4605 = vpop.permute.xlu0 %4604
    %4606 = vrot.lane.b32.xlu0 %v4522, 12
    %v4607 = vpop.permute.xlu0 %4606
    %4608 = vrot.lane.b32.xlu0 %v4523, 12
    %v4609 = vpop.permute.xlu0 %4608
    %4610 = vrot.lane.b32.xlu0 %v4524, 12
    %v4611 = vpop.permute.xlu0 %4610
    %4612 = vrot.lane.b32.xlu0 %v4525, 12
    %v4613 = vpop.permute.xlu0 %4612
    %4614 = vrot.lane.b32.xlu0 %v4526, 12
    %v4615 = vpop.permute.xlu0 %4614
    %4616 = vrot.lane.b32.xlu0 %v4527, 12
    %v4617 = vpop.permute.xlu0 %4616
    %4618 = vrot.lane.b32.xlu0 %v4528, 12
    %v4619 = vpop.permute.xlu0 %4618
    %4620 = vrot.lane.b32.xlu0 %v4529, 12
    %v4621 = vpop.permute.xlu0 %4620
    %4622 = vrot.lane.b32.xlu0 %v4530, 12
    %v4623 = vpop.permute.xlu0 %4622
    %4624 = vrot.lane.b32.xlu0 %v4531, 12
    %v4625 = vpop.permute.xlu0 %4624
    %4626 = vrot.lane.b32.xlu0 %v4532, 12
    %v4627 = vpop.permute.xlu0 %4626
    %4628 = vrot.lane.b32.xlu0 %v4533, 12
    %v4629 = vpop.permute.xlu0 %4628
    %4630 = vrot.lane.b32.xlu0 %v4534, 12
    %v4631 = vpop.permute.xlu0 %4630
    %4632 = vrot.lane.b32.xlu0 %v4535, 12
    %v4633 = vpop.permute.xlu0 %4632
    %4634 = vrot.lane.b32.xlu0 %v4536, 12
    %v4635 = vpop.permute.xlu0 %4634
    %4636 = vrot.lane.b32.xlu0 %v4537, 12
    %v4637 = vpop.permute.xlu0 %4636
    %4638 = vrot.lane.b32.xlu0 %v4538, 12
    %v4639 = vpop.permute.xlu0 %4638
    %4640 = vrot.lane.b32.xlu0 %v4539, 12
    %v4641 = vpop.permute.xlu0 %4640
    %4642 = vrot.lane.b32.xlu0 %v4540, 12
    %v4643 = vpop.permute.xlu0 %4642
    %4644 = vrot.lane.b32.xlu0 %v4541, 12
    %v4645 = vpop.permute.xlu0 %4644
    %4646 = vrot.lane.b32.xlu0 %v4542, 12
    %v4647 = vpop.permute.xlu0 %4646
    %4648 = vrot.lane.b32.xlu0 %v4543, 12
    %v4649 = vpop.permute.xlu0 %4648
    %4650 = vrot.lane.b32.xlu0 %v4544, 12
    %v4651 = vpop.permute.xlu0 %4650
    %4652 = vrot.lane.b32.xlu0 %v4545, 12
    %v4653 = vpop.permute.xlu0 %4652
    %4654 = vrot.lane.b32.xlu0 %v4546, 12
    %v4655 = vpop.permute.xlu0 %4654
    %4656 = vrot.lane.b32.xlu0 %v4547, 12
    %v4657 = vpop.permute.xlu0 %4656
    %4658 = vrot.lane.b32.xlu0 %v4548, 12
    %v4659 = vpop.permute.xlu0 %4658
    %4660 = vrot.lane.b32.xlu0 %v4549, 12
    %v4661 = vpop.permute.xlu0 %4660
    %4662 = vrot.lane.b32.xlu0 %v4550, 12
    %v4663 = vpop.permute.xlu0 %4662
    %4664 = vrot.lane.b32.xlu0 %v4551, 12
    %v4665 = vpop.permute.xlu0 %4664
    %4666 = vrot.lane.b32.xlu0 %v4552, 12
    %v4667 = vpop.permute.xlu0 %4666
    %4668 = vrot.lane.b32.xlu0 %v4553, 12
    %v4669 = vpop.permute.xlu0 %4668
    %4670 = vrot.lane.b32.xlu0 %v4554, 12
    %v4671 = vpop.permute.xlu0 %4670
    %4672 = vrot.lane.b32.xlu0 %v4555, 12
    %v4673 = vpop.permute.xlu0 %4672
    %4674 = vrot.lane.b32.xlu0 %v4556, 12
    %v4675 = vpop.permute.xlu0 %4674
    %4676 = vrot.lane.b32.xlu0 %v4557, 12
    %v4677 = vpop.permute.xlu0 %4676
    %4678 = vrot.lane.b32.xlu0 %v4558, 12
    %v4679 = vpop.permute.xlu0 %4678
    %4680 = vrot.lane.b32.xlu0 %v4559, 12
    %v4681 = vpop.permute.xlu0 %4680
    %4682 = vrot.lane.b32.xlu0 %v4560, 12
    %v4683 = vpop.permute.xlu0 %4682
    %4684 = vrot.lane.b32.xlu0 %v4561, 12
    %v4685 = vpop.permute.xlu0 %4684
    %4686 = vrot.lane.b32.xlu0 %v4562, 12
    %v4687 = vpop.permute.xlu0 %4686
    %4688 = vrot.lane.b32.xlu0 %v4563, 12
    %v4689 = vpop.permute.xlu0 %4688
    %4690 = vrot.lane.b32.xlu0 %v4564, 12
    %v4691 = vpop.permute.xlu0 %4690
    %4692 = vrot.lane.b32.xlu0 %v4565, 12
    %v4693 = vpop.permute.xlu0 %4692
    %4694 = vrot.lane.b32.xlu0 %v4566, 12
    %v4695 = vpop.permute.xlu0 %4694
    %4696 = vrot.lane.b32.xlu0 %v4567, 12
    %v4697 = vpop.permute.xlu0 %4696
    %4698 = vrot.lane.b32.xlu0 %v4568, 12
    %v4699 = vpop.permute.xlu0 %4698
    %4700 = vrot.lane.b32.xlu0 %v4569, 12
    %v4701 = vpop.permute.xlu0 %4700
    %4702 = vrot.lane.b32.xlu0 %v4570, 12
    %v4703 = vpop.permute.xlu0 %4702
    %4704 = vrot.lane.b32.xlu0 %v4571, 12
    %v4705 = vpop.permute.xlu0 %4704
    %4706 = vrot.lane.b32.xlu0 %v4572, 12
    %v4707 = vpop.permute.xlu0 %4706
    %4708 = vrot.lane.b32.xlu0 %v4573, 12
    %v4709 = vpop.permute.xlu0 %4708
    %4710 = vrot.lane.b32.xlu0 %v4574, 12
    %v4711 = vpop.permute.xlu0 %4710
    %4712 = vrot.lane.b32.xlu0 %v4575, 12
    %v4713 = vpop.permute.xlu0 %4712
    %4714 = vrot.lane.b32.xlu0 %v4576, 12
    %v4715 = vpop.permute.xlu0 %4714
    %4716 = vrot.lane.b32.xlu0 %v4577, 12
    %v4717 = vpop.permute.xlu0 %4716
    %4718 = vrot.lane.b32.xlu0 %v4578, 12
    %v4719 = vpop.permute.xlu0 %4718
    %4720 = vrot.lane.b32.xlu0 %v4579, 12
    %v4721 = vpop.permute.xlu0 %4720
    %4722 = vrot.lane.b32.xlu0 %v4580, 12
    %v4723 = vpop.permute.xlu0 %4722
    %4724 = vrot.lane.b32.xlu0 %v4581, 12
    %v4725 = vpop.permute.xlu0 %4724
    %4726 = vrot.lane.b32.xlu0 %v4582, 12
    %v4727 = vpop.permute.xlu0 %4726
    %4728 = vrot.lane.b32.xlu0 %v4584, 12
    %v4729 = vpop.permute.xlu0 %4728
    %4730 = vrot.lane.b32.xlu0 %v4585, 12
    %v4731 = vpop.permute.xlu0 %4730
    %4732 = vrot.lane.b32.xlu0 %v4586, 12
    %v4733 = vpop.permute.xlu0 %4732
    %4734 = vrot.lane.b32.xlu0 %v4587, 12
    %v4735 = vpop.permute.xlu0 %4734
    %4736 = vrot.lane.b32.xlu0 %v4588, 12
    %v4737 = vpop.permute.xlu0 %4736
    %4738 = vrot.lane.b32.xlu0 %v4589, 12
    %v4739 = vpop.permute.xlu0 %4738
    %4740 = vrot.lane.b32.xlu0 %v4590, 12
    %v4741 = vpop.permute.xlu0 %4740
    %4742 = vrot.lane.b32.xlu0 %v4591, 12
    %v4743 = vpop.permute.xlu0 %4742
    %4744 = vrot.lane.b32.xlu0 %v4592, 12
    %v4745 = vpop.permute.xlu0 %4744
    %4746 = vrot.lane.b32.xlu0 %v4593, 12
    %v4747 = vpop.permute.xlu0 %4746
    %4748 = vrot.lane.b32.xlu0 %v4594, 12
    %v4749 = vpop.permute.xlu0 %4748
    %4750 = vrot.lane.b32.xlu0 %v4595, 12
    %v4751 = vpop.permute.xlu0 %4750
    %4752 = vrot.lane.b32.xlu0 %v4596, 12
    %v4753 = vpop.permute.xlu0 %4752
    %4754 = vrot.lane.b32.xlu0 %v4597, 12
    %v4755 = vpop.permute.xlu0 %4754
    %4756 = vrot.lane.b32.xlu0 %v4598, 12
    %v4757 = vpop.permute.xlu0 %4756
    %4758 = vrot.lane.b32.xlu0 %v4599, 12
    %v4759 = vpop.permute.xlu0 %4758
    %v4760 = vadd.f32 %v4439, %v4601
    %v4761 = vadd.f32 %v4440, %v4603
    %v4762 = vadd.f32 %v4441, %v4605
    %v4763 = vadd.f32 %v4442, %v4607
    %v4764 = vadd.f32 %v4443, %v4609
    %v4765 = vadd.f32 %v4444, %v4611
    %v4766 = vadd.f32 %v4445, %v4613
    %v4767 = vadd.f32 %v4446, %v4615
    %v4768 = vadd.f32 %v4447, %v4617
    %v4769 = vadd.f32 %v4448, %v4619
    %v4770 = vadd.f32 %v4449, %v4621
    %v4771 = vadd.f32 %v4450, %v4623
    %v4772 = vadd.f32 %v4451, %v4625
    %v4773 = vadd.f32 %v4452, %v4627
    %v4774 = vadd.f32 %v4453, %v4629
    %v4775 = vadd.f32 %v4454, %v4631
    %v4776 = vadd.f32 %v4455, %v4633
    %v4777 = vadd.f32 %v4456, %v4635
    %v4778 = vadd.f32 %v4457, %v4637
    %v4779 = vadd.f32 %v4458, %v4639
    %v4780 = vadd.f32 %v4459, %v4641
    %v4781 = vadd.f32 %v4460, %v4643
    %v4782 = vadd.f32 %v4461, %v4645
    %v4783 = vadd.f32 %v4462, %v4647
    %v4784 = vadd.f32 %v4463, %v4649
    %v4785 = vadd.f32 %v4464, %v4651
    %v4786 = vadd.f32 %v4465, %v4653
    %v4787 = vadd.f32 %v4466, %v4655
    %v4788 = vadd.f32 %v4467, %v4657
    %v4789 = vadd.f32 %v4468, %v4659
    %v4790 = vadd.f32 %v4469, %v4661
    %v4791 = vadd.f32 %v4470, %v4663
    %v4792 = vadd.f32 %v4471, %v4665
    %v4793 = vadd.f32 %v4472, %v4667
    %v4794 = vadd.f32 %v4473, %v4669
    %v4795 = vadd.f32 %v4474, %v4671
    %v4796 = vadd.f32 %v4475, %v4673
    %v4797 = vadd.f32 %v4476, %v4675
    %v4798 = vadd.f32 %v4477, %v4677
    %v4799 = vadd.f32 %v4478, %v4679
    %v4800 = vadd.f32 %v4479, %v4681
    %v4801 = vadd.f32 %v4480, %v4683
    %v4802 = vadd.f32 %v4481, %v4685
    %v4803 = vadd.f32 %v4482, %v4687
    %v4804 = vadd.f32 %v4483, %v4689
    %v4805 = vadd.f32 %v4484, %v4691
    %v4806 = vadd.f32 %v4485, %v4693
    %v4807 = vadd.f32 %v4486, %v4695
    %v4808 = vadd.f32 %v4487, %v4697
    %v4809 = vadd.f32 %v4488, %v4699
    %v4810 = vadd.f32 %v4489, %v4701
    %v4811 = vadd.f32 %v4490, %v4703
    %v4812 = vadd.f32 %v4491, %v4705
    %v4813 = vadd.f32 %v4492, %v4707
    %v4814 = vadd.f32 %v4493, %v4709
    %v4815 = vadd.f32 %v4494, %v4711
    %v4816 = vadd.f32 %v4495, %v4713
    %v4817 = vadd.f32 %v4496, %v4715
    %v4818 = vadd.f32 %v4497, %v4717
    %v4819 = vadd.f32 %v4498, %v4719
    %v4820 = vadd.f32 %v4499, %v4721
    %v4821 = vadd.f32 %v4500, %v4723
    %v4822 = vadd.f32 %v4501, %v4725
    %v4823 = vadd.f32 %v4502, %v4727
    %v4824 = vadd.f32 %v4503, %v4729
    %v4825 = vadd.f32 %v4504, %v4731
    %v4826 = vadd.f32 %v4505, %v4733
    %v4827 = vadd.f32 %v4506, %v4735
    %v4828 = vadd.f32 %v4507, %v4737
    %v4829 = vadd.f32 %v4508, %v4739
    %v4830 = vadd.f32 %v4509, %v4741
    %v4831 = vadd.f32 %v4510, %v4743
    %v4832 = vadd.f32 %v4511, %v4745
    %v4833 = vadd.f32 %v4512, %v4747
    %v4834 = vadd.f32 %v4513, %v4749
    %v4835 = vadd.f32 %v4514, %v4751
    %v4836 = vadd.f32 %v4515, %v4753
    %v4837 = vadd.f32 %v4516, %v4755
    %v4838 = vadd.f32 %v4517, %v4757
    %v4839 = vadd.f32 %v4518, %v4759
    %v4840 = vld [vmem:[%s217 + $0x1] sm:$0xff]
    %v4841 = vld [vmem:[%s217 + $0x9] sm:$0xff]
    %v4842 = vld [vmem:[%s217 + $0x19] sm:$0xff]
    %v4843 = vld [vmem:[%s217 + $0x21] sm:$0xff]
    %v4844 = vld [vmem:[%s217 + $0x31] sm:$0xff]
    %v4845 = vld [vmem:[%s217 + $0x39] sm:$0xff]
    %v4846 = vld [vmem:[%s217 + $0x49] sm:$0xff]
    %v4847 = vld [vmem:[%s217 + $0x51] sm:$0xff]
    %v4848 = vld [vmem:[%s217 + $0x61] sm:$0xff]
    %v4849 = vld [vmem:[%s217 + $0x69] sm:$0xff]
    %v4850 = vld [vmem:[%s217 + $0x79] sm:$0xff]
    %v4851 = vld [vmem:[%s217 + $0x81] sm:$0xff]
    %v4852 = vld [vmem:[%s217 + $0x91] sm:$0xff]
    %v4853 = vld [vmem:[%s217 + $0x99] sm:$0xff]
    %v4854 = vld [vmem:[%s217 + $0xa9] sm:$0xff]
    %v4855 = vld [vmem:[%s217 + $0xb1] sm:$0xff]
    %v4856 = vld [vmem:[%s217 + $0xc1] sm:$0xff]
    %v4857 = vld [vmem:[%s217 + $0xc9] sm:$0xff]
    %v4858 = vld [vmem:[%s217 + $0xd9] sm:$0xff]
    %v4859 = vld [vmem:[%s217 + $0xe1] sm:$0xff]
    %v4860 = vld [vmem:[%s217 + $0xf1] sm:$0xff]
    %v4861 = vld [vmem:[%s217 + $0xf9] sm:$0xff]
    %v4862 = vld [vmem:[%s217 + $0x109] sm:$0xff]
    %v4863 = vld [vmem:[%s217 + $0x111] sm:$0xff]
    %v4864 = vld [vmem:[%s217 + $0x121] sm:$0xff]
    %v4865 = vld [vmem:[%s217 + $0x129] sm:$0xff]
    %v4866 = vld [vmem:[%s217 + $0x139] sm:$0xff]
    %v4867 = vld [vmem:[%s217 + $0x141] sm:$0xff]
    %v4868 = vld [vmem:[%s217 + $0x151] sm:$0xff]
    %v4869 = vld [vmem:[%s217 + $0x159] sm:$0xff]
    %v4870 = vld [vmem:[%s217 + $0x169] sm:$0xff]
    %v4871 = vld [vmem:[%s217 + $0x171] sm:$0xff]
    %v4872 = vld [vmem:[%s217 + $0x1b1] sm:$0xff]
    %v4873 = vld [vmem:[%s217 + $0x1b9] sm:$0xff]
    %v4874 = vld [vmem:[%s217 + $0x1c9] sm:$0xff]
    %v4875 = vld [vmem:[%s217 + $0x1d1] sm:$0xff]
    %v4876 = vld [vmem:[%s217 + $0x1e1] sm:$0xff]
    %v4877 = vld [vmem:[%s217 + $0x1e9] sm:$0xff]
    %v4878 = vld [vmem:[%s217 + $0x1f9] sm:$0xff]
    %v4879 = vld [vmem:[%s217 + $0x201] sm:$0xff]
    %v4880 = vld [vmem:[%s217 + $0x211] sm:$0xff]
    %v4881 = vld [vmem:[%s217 + $0x219] sm:$0xff]
    %v4882 = vld [vmem:[%s217 + $0x229] sm:$0xff]
    %v4883 = vld [vmem:[%s217 + $0x231] sm:$0xff]
    %v4884 = vld [vmem:[%s217 + $0x241] sm:$0xff]
    %v4885 = vld [vmem:[%s217 + $0x249] sm:$0xff]
    %v4886 = vld [vmem:[%s217 + $0x259] sm:$0xff]
    %v4887 = vld [vmem:[%s217 + $0x261] sm:$0xff]
    %v4888 = vld [vmem:[%s217 + $0x271] sm:$0xff]
    %v4889 = vld [vmem:[%s217 + $0x279] sm:$0xff]
    %v4890 = vld [vmem:[%s217 + $0x289] sm:$0xff]
    %v4891 = vld [vmem:[%s217 + $0x291] sm:$0xff]
    %v4892 = vld [vmem:[%s217 + $0x2a1] sm:$0xff]
    %v4893 = vld [vmem:[%s217 + $0x2a9] sm:$0xff]
    %v4894 = vld [vmem:[%s217 + $0x2b9] sm:$0xff]
    %v4895 = vld [vmem:[%s217 + $0x2c1] sm:$0xff]
    %v4896 = vld [vmem:[%s217 + $0x2d1] sm:$0xff]
    %v4897 = vld [vmem:[%s217 + $0x2d9] sm:$0xff]
    %v4898 = vld [vmem:[%s217 + $0x2e9] sm:$0xff]
    %v4899 = vld [vmem:[%s217 + $0x2f1] sm:$0xff]
    %v4900 = vld [vmem:[%s217 + $0x301] sm:$0xff]
    %v4901 = vld [vmem:[%s217 + $0x309] sm:$0xff]
    %v4902 = vld [vmem:[%s217 + $0x319] sm:$0xff]
    %v4903 = vld [vmem:[%s217 + $0x321] sm:$0xff]
    %s4904 = scalar_lea.vmem [#allocation8], 512
    %v4905 = vld [vmem:[%s4904] sm:$0xff]
    %v4906 = vld [vmem:[%s4904 + $0x8] sm:$0xff]
    %v4907 = vld [vmem:[%s4904 + $0x10] sm:$0xff]
    %v4908 = vld [vmem:[%s4904 + $0x18] sm:$0xff]
    %v4909 = vld [vmem:[%s4904 + $0x20] sm:$0xff]
    %v4910 = vld [vmem:[%s4904 + $0x28] sm:$0xff]
    %v4911 = vld [vmem:[%s4904 + $0x30] sm:$0xff]
    %v4912 = vld [vmem:[%s4904 + $0x38] sm:$0xff]
    %v4913 = vld [vmem:[%s4904 + $0x40] sm:$0xff]
    %v4914 = vld [vmem:[%s4904 + $0x48] sm:$0xff]
    %v4915 = vld [vmem:[%s4904 + $0x50] sm:$0xff]
    %v4916 = vld [vmem:[%s4904 + $0x58] sm:$0xff]
    %v4917 = vld [vmem:[%s4904 + $0x60] sm:$0xff]
    %v4918 = vld [vmem:[%s4904 + $0x68] sm:$0xff]
    %v4919 = vld [vmem:[%s4904 + $0x70] sm:$0xff]
    %v4920 = vld [vmem:[%s4904 + $0x78] sm:$0xff]
    %4921 = vrot.lane.b32.xlu0 %v4840, 16
    %v4922 = vpop.permute.xlu0 %4921
    %4923 = vrot.lane.b32.xlu0 %v4841, 16
    %v4924 = vpop.permute.xlu0 %4923
    %4925 = vrot.lane.b32.xlu0 %v4842, 16
    %v4926 = vpop.permute.xlu0 %4925
    %4927 = vrot.lane.b32.xlu0 %v4843, 16
    %v4928 = vpop.permute.xlu0 %4927
    %4929 = vrot.lane.b32.xlu0 %v4844, 16
    %v4930 = vpop.permute.xlu0 %4929
    %4931 = vrot.lane.b32.xlu0 %v4845, 16
    %v4932 = vpop.permute.xlu0 %4931
    %4933 = vrot.lane.b32.xlu0 %v4846, 16
    %v4934 = vpop.permute.xlu0 %4933
    %4935 = vrot.lane.b32.xlu0 %v4847, 16
    %v4936 = vpop.permute.xlu0 %4935
    %4937 = vrot.lane.b32.xlu0 %v4848, 16
    %v4938 = vpop.permute.xlu0 %4937
    %4939 = vrot.lane.b32.xlu0 %v4849, 16
    %v4940 = vpop.permute.xlu0 %4939
    %4941 = vrot.lane.b32.xlu0 %v4850, 16
    %v4942 = vpop.permute.xlu0 %4941
    %4943 = vrot.lane.b32.xlu0 %v4851, 16
    %v4944 = vpop.permute.xlu0 %4943
    %4945 = vrot.lane.b32.xlu0 %v4852, 16
    %v4946 = vpop.permute.xlu0 %4945
    %4947 = vrot.lane.b32.xlu0 %v4853, 16
    %v4948 = vpop.permute.xlu0 %4947
    %4949 = vrot.lane.b32.xlu0 %v4854, 16
    %v4950 = vpop.permute.xlu0 %4949
    %4951 = vrot.lane.b32.xlu0 %v4855, 16
    %v4952 = vpop.permute.xlu0 %4951
    %4953 = vrot.lane.b32.xlu0 %v4856, 16
    %v4954 = vpop.permute.xlu0 %4953
    %4955 = vrot.lane.b32.xlu0 %v4857, 16
    %v4956 = vpop.permute.xlu0 %4955
    %4957 = vrot.lane.b32.xlu0 %v4858, 16
    %v4958 = vpop.permute.xlu0 %4957
    %4959 = vrot.lane.b32.xlu0 %v4859, 16
    %v4960 = vpop.permute.xlu0 %4959
    %4961 = vrot.lane.b32.xlu0 %v4860, 16
    %v4962 = vpop.permute.xlu0 %4961
    %4963 = vrot.lane.b32.xlu0 %v4861, 16
    %v4964 = vpop.permute.xlu0 %4963
    %4965 = vrot.lane.b32.xlu0 %v4862, 16
    %v4966 = vpop.permute.xlu0 %4965
    %4967 = vrot.lane.b32.xlu0 %v4863, 16
    %v4968 = vpop.permute.xlu0 %4967
    %4969 = vrot.lane.b32.xlu0 %v4864, 16
    %v4970 = vpop.permute.xlu0 %4969
    %4971 = vrot.lane.b32.xlu0 %v4865, 16
    %v4972 = vpop.permute.xlu0 %4971
    %4973 = vrot.lane.b32.xlu0 %v4866, 16
    %v4974 = vpop.permute.xlu0 %4973
    %4975 = vrot.lane.b32.xlu0 %v4867, 16
    %v4976 = vpop.permute.xlu0 %4975
    %4977 = vrot.lane.b32.xlu0 %v4868, 16
    %v4978 = vpop.permute.xlu0 %4977
    %4979 = vrot.lane.b32.xlu0 %v4869, 16
    %v4980 = vpop.permute.xlu0 %4979
    %4981 = vrot.lane.b32.xlu0 %v4870, 16
    %v4982 = vpop.permute.xlu0 %4981
    %4983 = vrot.lane.b32.xlu0 %v4871, 16
    %v4984 = vpop.permute.xlu0 %4983
    %4985 = vrot.lane.b32.xlu0 %v4872, 16
    %v4986 = vpop.permute.xlu0 %4985
    %4987 = vrot.lane.b32.xlu0 %v4873, 16
    %v4988 = vpop.permute.xlu0 %4987
    %4989 = vrot.lane.b32.xlu0 %v4874, 16
    %v4990 = vpop.permute.xlu0 %4989
    %4991 = vrot.lane.b32.xlu0 %v4875, 16
    %v4992 = vpop.permute.xlu0 %4991
    %4993 = vrot.lane.b32.xlu0 %v4876, 16
    %v4994 = vpop.permute.xlu0 %4993
    %4995 = vrot.lane.b32.xlu0 %v4877, 16
    %v4996 = vpop.permute.xlu0 %4995
    %4997 = vrot.lane.b32.xlu0 %v4878, 16
    %v4998 = vpop.permute.xlu0 %4997
    %4999 = vrot.lane.b32.xlu0 %v4879, 16
    %v5000 = vpop.permute.xlu0 %4999
    %5001 = vrot.lane.b32.xlu0 %v4880, 16
    %v5002 = vpop.permute.xlu0 %5001
    %5003 = vrot.lane.b32.xlu0 %v4881, 16
    %v5004 = vpop.permute.xlu0 %5003
    %5005 = vrot.lane.b32.xlu0 %v4882, 16
    %v5006 = vpop.permute.xlu0 %5005
    %5007 = vrot.lane.b32.xlu0 %v4883, 16
    %v5008 = vpop.permute.xlu0 %5007
    %5009 = vrot.lane.b32.xlu0 %v4884, 16
    %v5010 = vpop.permute.xlu0 %5009
    %5011 = vrot.lane.b32.xlu0 %v4885, 16
    %v5012 = vpop.permute.xlu0 %5011
    %5013 = vrot.lane.b32.xlu0 %v4886, 16
    %v5014 = vpop.permute.xlu0 %5013
    %5015 = vrot.lane.b32.xlu0 %v4887, 16
    %v5016 = vpop.permute.xlu0 %5015
    %5017 = vrot.lane.b32.xlu0 %v4888, 16
    %v5018 = vpop.permute.xlu0 %5017
    %5019 = vrot.lane.b32.xlu0 %v4889, 16
    %v5020 = vpop.permute.xlu0 %5019
    %5021 = vrot.lane.b32.xlu0 %v4890, 16
    %v5022 = vpop.permute.xlu0 %5021
    %5023 = vrot.lane.b32.xlu0 %v4891, 16
    %v5024 = vpop.permute.xlu0 %5023
    %5025 = vrot.lane.b32.xlu0 %v4892, 16
    %v5026 = vpop.permute.xlu0 %5025
    %5027 = vrot.lane.b32.xlu0 %v4893, 16
    %v5028 = vpop.permute.xlu0 %5027
    %5029 = vrot.lane.b32.xlu0 %v4894, 16
    %v5030 = vpop.permute.xlu0 %5029
    %5031 = vrot.lane.b32.xlu0 %v4895, 16
    %v5032 = vpop.permute.xlu0 %5031
    %5033 = vrot.lane.b32.xlu0 %v4896, 16
    %v5034 = vpop.permute.xlu0 %5033
    %5035 = vrot.lane.b32.xlu0 %v4897, 16
    %v5036 = vpop.permute.xlu0 %5035
    %5037 = vrot.lane.b32.xlu0 %v4898, 16
    %v5038 = vpop.permute.xlu0 %5037
    %5039 = vrot.lane.b32.xlu0 %v4899, 16
    %v5040 = vpop.permute.xlu0 %5039
    %5041 = vrot.lane.b32.xlu0 %v4900, 16
    %v5042 = vpop.permute.xlu0 %5041
    %5043 = vrot.lane.b32.xlu0 %v4901, 16
    %v5044 = vpop.permute.xlu0 %5043
    %5045 = vrot.lane.b32.xlu0 %v4902, 16
    %v5046 = vpop.permute.xlu0 %5045
    %5047 = vrot.lane.b32.xlu0 %v4903, 16
    %v5048 = vpop.permute.xlu0 %5047
    %5049 = vrot.lane.b32.xlu0 %v4905, 16
    %v5050 = vpop.permute.xlu0 %5049
    %5051 = vrot.lane.b32.xlu0 %v4906, 16
    %v5052 = vpop.permute.xlu0 %5051
    %5053 = vrot.lane.b32.xlu0 %v4907, 16
    %v5054 = vpop.permute.xlu0 %5053
    %5055 = vrot.lane.b32.xlu0 %v4908, 16
    %v5056 = vpop.permute.xlu0 %5055
    %5057 = vrot.lane.b32.xlu0 %v4909, 16
    %v5058 = vpop.permute.xlu0 %5057
    %5059 = vrot.lane.b32.xlu0 %v4910, 16
    %v5060 = vpop.permute.xlu0 %5059
    %5061 = vrot.lane.b32.xlu0 %v4911, 16
    %v5062 = vpop.permute.xlu0 %5061
    %5063 = vrot.lane.b32.xlu0 %v4912, 16
    %v5064 = vpop.permute.xlu0 %5063
    %5065 = vrot.lane.b32.xlu0 %v4913, 16
    %v5066 = vpop.permute.xlu0 %5065
    %5067 = vrot.lane.b32.xlu0 %v4914, 16
    %v5068 = vpop.permute.xlu0 %5067
    %5069 = vrot.lane.b32.xlu0 %v4915, 16
    %v5070 = vpop.permute.xlu0 %5069
    %5071 = vrot.lane.b32.xlu0 %v4916, 16
    %v5072 = vpop.permute.xlu0 %5071
    %5073 = vrot.lane.b32.xlu0 %v4917, 16
    %v5074 = vpop.permute.xlu0 %5073
    %5075 = vrot.lane.b32.xlu0 %v4918, 16
    %v5076 = vpop.permute.xlu0 %5075
    %5077 = vrot.lane.b32.xlu0 %v4919, 16
    %v5078 = vpop.permute.xlu0 %5077
    %5079 = vrot.lane.b32.xlu0 %v4920, 16
    %v5080 = vpop.permute.xlu0 %5079
    %v5081 = vadd.f32 %v4760, %v4922
    %v5082 = vadd.f32 %v4761, %v4924
    %v5083 = vadd.f32 %v4762, %v4926
    %v5084 = vadd.f32 %v4763, %v4928
    %v5085 = vadd.f32 %v4764, %v4930
    %v5086 = vadd.f32 %v4765, %v4932
    %v5087 = vadd.f32 %v4766, %v4934
    %v5088 = vadd.f32 %v4767, %v4936
    %v5089 = vadd.f32 %v4768, %v4938
    %v5090 = vadd.f32 %v4769, %v4940
    %v5091 = vadd.f32 %v4770, %v4942
    %v5092 = vadd.f32 %v4771, %v4944
    %v5093 = vadd.f32 %v4772, %v4946
    %v5094 = vadd.f32 %v4773, %v4948
    %v5095 = vadd.f32 %v4774, %v4950
    %v5096 = vadd.f32 %v4775, %v4952
    %v5097 = vadd.f32 %v4776, %v4954
    %v5098 = vadd.f32 %v4777, %v4956
    %v5099 = vadd.f32 %v4778, %v4958
    %v5100 = vadd.f32 %v4779, %v4960
    %v5101 = vadd.f32 %v4780, %v4962
    %v5102 = vadd.f32 %v4781, %v4964
    %v5103 = vadd.f32 %v4782, %v4966
    %v5104 = vadd.f32 %v4783, %v4968
    %v5105 = vadd.f32 %v4784, %v4970
    %v5106 = vadd.f32 %v4785, %v4972
    %v5107 = vadd.f32 %v4786, %v4974
    %v5108 = vadd.f32 %v4787, %v4976
    %v5109 = vadd.f32 %v4788, %v4978
    %v5110 = vadd.f32 %v4789, %v4980
    %v5111 = vadd.f32 %v4790, %v4982
    %v5112 = vadd.f32 %v4791, %v4984
    %v5113 = vadd.f32 %v4792, %v4986
    %v5114 = vadd.f32 %v4793, %v4988
    %v5115 = vadd.f32 %v4794, %v4990
    %v5116 = vadd.f32 %v4795, %v4992
    %v5117 = vadd.f32 %v4796, %v4994
    %v5118 = vadd.f32 %v4797, %v4996
    %v5119 = vadd.f32 %v4798, %v4998
    %v5120 = vadd.f32 %v4799, %v5000
    %v5121 = vadd.f32 %v4800, %v5002
    %v5122 = vadd.f32 %v4801, %v5004
    %v5123 = vadd.f32 %v4802, %v5006
    %v5124 = vadd.f32 %v4803, %v5008
    %v5125 = vadd.f32 %v4804, %v5010
    %v5126 = vadd.f32 %v4805, %v5012
    %v5127 = vadd.f32 %v4806, %v5014
    %v5128 = vadd.f32 %v4807, %v5016
    %v5129 = vadd.f32 %v4808, %v5018
    %v5130 = vadd.f32 %v4809, %v5020
    %v5131 = vadd.f32 %v4810, %v5022
    %v5132 = vadd.f32 %v4811, %v5024
    %v5133 = vadd.f32 %v4812, %v5026
    %v5134 = vadd.f32 %v4813, %v5028
    %v5135 = vadd.f32 %v4814, %v5030
    %v5136 = vadd.f32 %v4815, %v5032
    %v5137 = vadd.f32 %v4816, %v5034
    %v5138 = vadd.f32 %v4817, %v5036
    %v5139 = vadd.f32 %v4818, %v5038
    %v5140 = vadd.f32 %v4819, %v5040
    %v5141 = vadd.f32 %v4820, %v5042
    %v5142 = vadd.f32 %v4821, %v5044
    %v5143 = vadd.f32 %v4822, %v5046
    %v5144 = vadd.f32 %v4823, %v5048
    %v5145 = vadd.f32 %v4824, %v5050
    %v5146 = vadd.f32 %v4825, %v5052
    %v5147 = vadd.f32 %v4826, %v5054
    %v5148 = vadd.f32 %v4827, %v5056
    %v5149 = vadd.f32 %v4828, %v5058
    %v5150 = vadd.f32 %v4829, %v5060
    %v5151 = vadd.f32 %v4830, %v5062
    %v5152 = vadd.f32 %v4831, %v5064
    %v5153 = vadd.f32 %v4832, %v5066
    %v5154 = vadd.f32 %v4833, %v5068
    %v5155 = vadd.f32 %v4834, %v5070
    %v5156 = vadd.f32 %v4835, %v5072
    %v5157 = vadd.f32 %v4836, %v5074
    %v5158 = vadd.f32 %v4837, %v5076
    %v5159 = vadd.f32 %v4838, %v5078
    %v5160 = vadd.f32 %v4839, %v5080
    %v5161 = vld [vmem:[%s217 + $0x2] sm:$0xff]
    %v5162 = vld [vmem:[%s217 + $0xa] sm:$0xff]
    %v5163 = vld [vmem:[%s217 + $0x1a] sm:$0xff]
    %v5164 = vld [vmem:[%s217 + $0x22] sm:$0xff]
    %v5165 = vld [vmem:[%s217 + $0x32] sm:$0xff]
    %v5166 = vld [vmem:[%s217 + $0x3a] sm:$0xff]
    %v5167 = vld [vmem:[%s217 + $0x4a] sm:$0xff]
    %v5168 = vld [vmem:[%s217 + $0x52] sm:$0xff]
    %v5169 = vld [vmem:[%s217 + $0x62] sm:$0xff]
    %v5170 = vld [vmem:[%s217 + $0x6a] sm:$0xff]
    %v5171 = vld [vmem:[%s217 + $0x7a] sm:$0xff]
    %v5172 = vld [vmem:[%s217 + $0x82] sm:$0xff]
    %v5173 = vld [vmem:[%s217 + $0x92] sm:$0xff]
    %v5174 = vld [vmem:[%s217 + $0x9a] sm:$0xff]
    %v5175 = vld [vmem:[%s217 + $0xaa] sm:$0xff]
    %v5176 = vld [vmem:[%s217 + $0xb2] sm:$0xff]
    %v5177 = vld [vmem:[%s217 + $0xc2] sm:$0xff]
    %v5178 = vld [vmem:[%s217 + $0xca] sm:$0xff]
    %v5179 = vld [vmem:[%s217 + $0xda] sm:$0xff]
    %v5180 = vld [vmem:[%s217 + $0xe2] sm:$0xff]
    %v5181 = vld [vmem:[%s217 + $0xf2] sm:$0xff]
    %v5182 = vld [vmem:[%s217 + $0xfa] sm:$0xff]
    %v5183 = vld [vmem:[%s217 + $0x10a] sm:$0xff]
    %v5184 = vld [vmem:[%s217 + $0x112] sm:$0xff]
    %v5185 = vld [vmem:[%s217 + $0x122] sm:$0xff]
    %v5186 = vld [vmem:[%s217 + $0x12a] sm:$0xff]
    %v5187 = vld [vmem:[%s217 + $0x13a] sm:$0xff]
    %v5188 = vld [vmem:[%s217 + $0x142] sm:$0xff]
    %v5189 = vld [vmem:[%s217 + $0x152] sm:$0xff]
    %v5190 = vld [vmem:[%s217 + $0x15a] sm:$0xff]
    %v5191 = vld [vmem:[%s217 + $0x16a] sm:$0xff]
    %v5192 = vld [vmem:[%s217 + $0x172] sm:$0xff]
    %v5193 = vld [vmem:[%s217 + $0x1b2] sm:$0xff]
    %v5194 = vld [vmem:[%s217 + $0x1ba] sm:$0xff]
    %v5195 = vld [vmem:[%s217 + $0x1ca] sm:$0xff]
    %v5196 = vld [vmem:[%s217 + $0x1d2] sm:$0xff]
    %v5197 = vld [vmem:[%s217 + $0x1e2] sm:$0xff]
    %v5198 = vld [vmem:[%s217 + $0x1ea] sm:$0xff]
    %v5199 = vld [vmem:[%s217 + $0x1fa] sm:$0xff]
    %v5200 = vld [vmem:[%s217 + $0x202] sm:$0xff]
    %v5201 = vld [vmem:[%s217 + $0x212] sm:$0xff]
    %v5202 = vld [vmem:[%s217 + $0x21a] sm:$0xff]
    %v5203 = vld [vmem:[%s217 + $0x22a] sm:$0xff]
    %v5204 = vld [vmem:[%s217 + $0x232] sm:$0xff]
    %v5205 = vld [vmem:[%s217 + $0x242] sm:$0xff]
    %v5206 = vld [vmem:[%s217 + $0x24a] sm:$0xff]
    %v5207 = vld [vmem:[%s217 + $0x25a] sm:$0xff]
    %v5208 = vld [vmem:[%s217 + $0x262] sm:$0xff]
    %v5209 = vld [vmem:[%s217 + $0x272] sm:$0xff]
    %v5210 = vld [vmem:[%s217 + $0x27a] sm:$0xff]
    %v5211 = vld [vmem:[%s217 + $0x28a] sm:$0xff]
    %v5212 = vld [vmem:[%s217 + $0x292] sm:$0xff]
    %v5213 = vld [vmem:[%s217 + $0x2a2] sm:$0xff]
    %v5214 = vld [vmem:[%s217 + $0x2aa] sm:$0xff]
    %v5215 = vld [vmem:[%s217 + $0x2ba] sm:$0xff]
    %v5216 = vld [vmem:[%s217 + $0x2c2] sm:$0xff]
    %v5217 = vld [vmem:[%s217 + $0x2d2] sm:$0xff]
    %v5218 = vld [vmem:[%s217 + $0x2da] sm:$0xff]
    %v5219 = vld [vmem:[%s217 + $0x2ea] sm:$0xff]
    %v5220 = vld [vmem:[%s217 + $0x2f2] sm:$0xff]
    %v5221 = vld [vmem:[%s217 + $0x302] sm:$0xff]
    %v5222 = vld [vmem:[%s217 + $0x30a] sm:$0xff]
    %v5223 = vld [vmem:[%s217 + $0x31a] sm:$0xff]
    %v5224 = vld [vmem:[%s217 + $0x322] sm:$0xff]
    %s5225 = scalar_lea.vmem [#allocation8], 640
    %v5226 = vld [vmem:[%s5225] sm:$0xff]
    %v5227 = vld [vmem:[%s5225 + $0x8] sm:$0xff]
    %v5228 = vld [vmem:[%s5225 + $0x10] sm:$0xff]
    %v5229 = vld [vmem:[%s5225 + $0x18] sm:$0xff]
    %v5230 = vld [vmem:[%s5225 + $0x20] sm:$0xff]
    %v5231 = vld [vmem:[%s5225 + $0x28] sm:$0xff]
    %v5232 = vld [vmem:[%s5225 + $0x30] sm:$0xff]
    %v5233 = vld [vmem:[%s5225 + $0x38] sm:$0xff]
    %v5234 = vld [vmem:[%s5225 + $0x40] sm:$0xff]
    %v5235 = vld [vmem:[%s5225 + $0x48] sm:$0xff]
    %v5236 = vld [vmem:[%s5225 + $0x50] sm:$0xff]
    %v5237 = vld [vmem:[%s5225 + $0x58] sm:$0xff]
    %v5238 = vld [vmem:[%s5225 + $0x60] sm:$0xff]
    %v5239 = vld [vmem:[%s5225 + $0x68] sm:$0xff]
    %v5240 = vld [vmem:[%s5225 + $0x70] sm:$0xff]
    %v5241 = vld [vmem:[%s5225 + $0x78] sm:$0xff]
    %5242 = vrot.lane.b32.xlu0 %v5161, 20
    %v5243 = vpop.permute.xlu0 %5242
    %5244 = vrot.lane.b32.xlu0 %v5162, 20
    %v5245 = vpop.permute.xlu0 %5244
    %5246 = vrot.lane.b32.xlu0 %v5163, 20
    %v5247 = vpop.permute.xlu0 %5246
    %5248 = vrot.lane.b32.xlu0 %v5164, 20
    %v5249 = vpop.permute.xlu0 %5248
    %5250 = vrot.lane.b32.xlu0 %v5165, 20
    %v5251 = vpop.permute.xlu0 %5250
    %5252 = vrot.lane.b32.xlu0 %v5166, 20
    %v5253 = vpop.permute.xlu0 %5252
    %5254 = vrot.lane.b32.xlu0 %v5167, 20
    %v5255 = vpop.permute.xlu0 %5254
    %5256 = vrot.lane.b32.xlu0 %v5168, 20
    %v5257 = vpop.permute.xlu0 %5256
    %5258 = vrot.lane.b32.xlu0 %v5169, 20
    %v5259 = vpop.permute.xlu0 %5258
    %5260 = vrot.lane.b32.xlu0 %v5170, 20
    %v5261 = vpop.permute.xlu0 %5260
    %5262 = vrot.lane.b32.xlu0 %v5171, 20
    %v5263 = vpop.permute.xlu0 %5262
    %5264 = vrot.lane.b32.xlu0 %v5172, 20
    %v5265 = vpop.permute.xlu0 %5264
    %5266 = vrot.lane.b32.xlu0 %v5173, 20
    %v5267 = vpop.permute.xlu0 %5266
    %5268 = vrot.lane.b32.xlu0 %v5174, 20
    %v5269 = vpop.permute.xlu0 %5268
    %5270 = vrot.lane.b32.xlu0 %v5175, 20
    %v5271 = vpop.permute.xlu0 %5270
    %5272 = vrot.lane.b32.xlu0 %v5176, 20
    %v5273 = vpop.permute.xlu0 %5272
    %5274 = vrot.lane.b32.xlu0 %v5177, 20
    %v5275 = vpop.permute.xlu0 %5274
    %5276 = vrot.lane.b32.xlu0 %v5178, 20
    %v5277 = vpop.permute.xlu0 %5276
    %5278 = vrot.lane.b32.xlu0 %v5179, 20
    %v5279 = vpop.permute.xlu0 %5278
    %5280 = vrot.lane.b32.xlu0 %v5180, 20
    %v5281 = vpop.permute.xlu0 %5280
    %5282 = vrot.lane.b32.xlu0 %v5181, 20
    %v5283 = vpop.permute.xlu0 %5282
    %5284 = vrot.lane.b32.xlu0 %v5182, 20
    %v5285 = vpop.permute.xlu0 %5284
    %5286 = vrot.lane.b32.xlu0 %v5183, 20
    %v5287 = vpop.permute.xlu0 %5286
    %5288 = vrot.lane.b32.xlu0 %v5184, 20
    %v5289 = vpop.permute.xlu0 %5288
    %5290 = vrot.lane.b32.xlu0 %v5185, 20
    %v5291 = vpop.permute.xlu0 %5290
    %5292 = vrot.lane.b32.xlu0 %v5186, 20
    %v5293 = vpop.permute.xlu0 %5292
    %5294 = vrot.lane.b32.xlu0 %v5187, 20
    %v5295 = vpop.permute.xlu0 %5294
    %5296 = vrot.lane.b32.xlu0 %v5188, 20
    %v5297 = vpop.permute.xlu0 %5296
    %5298 = vrot.lane.b32.xlu0 %v5189, 20
    %v5299 = vpop.permute.xlu0 %5298
    %5300 = vrot.lane.b32.xlu0 %v5190, 20
    %v5301 = vpop.permute.xlu0 %5300
    %5302 = vrot.lane.b32.xlu0 %v5191, 20
    %v5303 = vpop.permute.xlu0 %5302
    %5304 = vrot.lane.b32.xlu0 %v5192, 20
    %v5305 = vpop.permute.xlu0 %5304
    %5306 = vrot.lane.b32.xlu0 %v5193, 20
    %v5307 = vpop.permute.xlu0 %5306
    %5308 = vrot.lane.b32.xlu0 %v5194, 20
    %v5309 = vpop.permute.xlu0 %5308
    %5310 = vrot.lane.b32.xlu0 %v5195, 20
    %v5311 = vpop.permute.xlu0 %5310
    %5312 = vrot.lane.b32.xlu0 %v5196, 20
    %v5313 = vpop.permute.xlu0 %5312
    %5314 = vrot.lane.b32.xlu0 %v5197, 20
    %v5315 = vpop.permute.xlu0 %5314
    %5316 = vrot.lane.b32.xlu0 %v5198, 20
    %v5317 = vpop.permute.xlu0 %5316
    %5318 = vrot.lane.b32.xlu0 %v5199, 20
    %v5319 = vpop.permute.xlu0 %5318
    %5320 = vrot.lane.b32.xlu0 %v5200, 20
    %v5321 = vpop.permute.xlu0 %5320
    %5322 = vrot.lane.b32.xlu0 %v5201, 20
    %v5323 = vpop.permute.xlu0 %5322
    %5324 = vrot.lane.b32.xlu0 %v5202, 20
    %v5325 = vpop.permute.xlu0 %5324
    %5326 = vrot.lane.b32.xlu0 %v5203, 20
    %v5327 = vpop.permute.xlu0 %5326
    %5328 = vrot.lane.b32.xlu0 %v5204, 20
    %v5329 = vpop.permute.xlu0 %5328
    %5330 = vrot.lane.b32.xlu0 %v5205, 20
    %v5331 = vpop.permute.xlu0 %5330
    %5332 = vrot.lane.b32.xlu0 %v5206, 20
    %v5333 = vpop.permute.xlu0 %5332
    %5334 = vrot.lane.b32.xlu0 %v5207, 20
    %v5335 = vpop.permute.xlu0 %5334
    %5336 = vrot.lane.b32.xlu0 %v5208, 20
    %v5337 = vpop.permute.xlu0 %5336
    %5338 = vrot.lane.b32.xlu0 %v5209, 20
    %v5339 = vpop.permute.xlu0 %5338
    %5340 = vrot.lane.b32.xlu0 %v5210, 20
    %v5341 = vpop.permute.xlu0 %5340
    %5342 = vrot.lane.b32.xlu0 %v5211, 20
    %v5343 = vpop.permute.xlu0 %5342
    %5344 = vrot.lane.b32.xlu0 %v5212, 20
    %v5345 = vpop.permute.xlu0 %5344
    %5346 = vrot.lane.b32.xlu0 %v5213, 20
    %v5347 = vpop.permute.xlu0 %5346
    %5348 = vrot.lane.b32.xlu0 %v5214, 20
    %v5349 = vpop.permute.xlu0 %5348
    %5350 = vrot.lane.b32.xlu0 %v5215, 20
    %v5351 = vpop.permute.xlu0 %5350
    %5352 = vrot.lane.b32.xlu0 %v5216, 20
    %v5353 = vpop.permute.xlu0 %5352
    %5354 = vrot.lane.b32.xlu0 %v5217, 20
    %v5355 = vpop.permute.xlu0 %5354
    %5356 = vrot.lane.b32.xlu0 %v5218, 20
    %v5357 = vpop.permute.xlu0 %5356
    %5358 = vrot.lane.b32.xlu0 %v5219, 20
    %v5359 = vpop.permute.xlu0 %5358
    %5360 = vrot.lane.b32.xlu0 %v5220, 20
    %v5361 = vpop.permute.xlu0 %5360
    %5362 = vrot.lane.b32.xlu0 %v5221, 20
    %v5363 = vpop.permute.xlu0 %5362
    %5364 = vrot.lane.b32.xlu0 %v5222, 20
    %v5365 = vpop.permute.xlu0 %5364
    %5366 = vrot.lane.b32.xlu0 %v5223, 20
    %v5367 = vpop.permute.xlu0 %5366
    %5368 = vrot.lane.b32.xlu0 %v5224, 20
    %v5369 = vpop.permute.xlu0 %5368
    %5370 = vrot.lane.b32.xlu0 %v5226, 20
    %v5371 = vpop.permute.xlu0 %5370
    %5372 = vrot.lane.b32.xlu0 %v5227, 20
    %v5373 = vpop.permute.xlu0 %5372
    %5374 = vrot.lane.b32.xlu0 %v5228, 20
    %v5375 = vpop.permute.xlu0 %5374
    %5376 = vrot.lane.b32.xlu0 %v5229, 20
    %v5377 = vpop.permute.xlu0 %5376
    %5378 = vrot.lane.b32.xlu0 %v5230, 20
    %v5379 = vpop.permute.xlu0 %5378
    %5380 = vrot.lane.b32.xlu0 %v5231, 20
    %v5381 = vpop.permute.xlu0 %5380
    %5382 = vrot.lane.b32.xlu0 %v5232, 20
    %v5383 = vpop.permute.xlu0 %5382
    %5384 = vrot.lane.b32.xlu0 %v5233, 20
    %v5385 = vpop.permute.xlu0 %5384
    %5386 = vrot.lane.b32.xlu0 %v5234, 20
    %v5387 = vpop.permute.xlu0 %5386
    %5388 = vrot.lane.b32.xlu0 %v5235, 20
    %v5389 = vpop.permute.xlu0 %5388
    %5390 = vrot.lane.b32.xlu0 %v5236, 20
    %v5391 = vpop.permute.xlu0 %5390
    %5392 = vrot.lane.b32.xlu0 %v5237, 20
    %v5393 = vpop.permute.xlu0 %5392
    %5394 = vrot.lane.b32.xlu0 %v5238, 20
    %v5395 = vpop.permute.xlu0 %5394
    %5396 = vrot.lane.b32.xlu0 %v5239, 20
    %v5397 = vpop.permute.xlu0 %5396
    %5398 = vrot.lane.b32.xlu0 %v5240, 20
    %v5399 = vpop.permute.xlu0 %5398
    %5400 = vrot.lane.b32.xlu0 %v5241, 20
    %v5401 = vpop.permute.xlu0 %5400
    %v5402 = vadd.f32 %v5081, %v5243
    %v5403 = vadd.f32 %v5082, %v5245
    %v5404 = vadd.f32 %v5083, %v5247
    %v5405 = vadd.f32 %v5084, %v5249
    %v5406 = vadd.f32 %v5085, %v5251
    %v5407 = vadd.f32 %v5086, %v5253
    %v5408 = vadd.f32 %v5087, %v5255
    %v5409 = vadd.f32 %v5088, %v5257
    %v5410 = vadd.f32 %v5089, %v5259
    %v5411 = vadd.f32 %v5090, %v5261
    %v5412 = vadd.f32 %v5091, %v5263
    %v5413 = vadd.f32 %v5092, %v5265
    %v5414 = vadd.f32 %v5093, %v5267
    %v5415 = vadd.f32 %v5094, %v5269
    %v5416 = vadd.f32 %v5095, %v5271
    %v5417 = vadd.f32 %v5096, %v5273
    %v5418 = vadd.f32 %v5097, %v5275
    %v5419 = vadd.f32 %v5098, %v5277
    %v5420 = vadd.f32 %v5099, %v5279
    %v5421 = vadd.f32 %v5100, %v5281
    %v5422 = vadd.f32 %v5101, %v5283
    %v5423 = vadd.f32 %v5102, %v5285
    %v5424 = vadd.f32 %v5103, %v5287
    %v5425 = vadd.f32 %v5104, %v5289
    %v5426 = vadd.f32 %v5105, %v5291
    %v5427 = vadd.f32 %v5106, %v5293
    %v5428 = vadd.f32 %v5107, %v5295
    %v5429 = vadd.f32 %v5108, %v5297
    %v5430 = vadd.f32 %v5109, %v5299
    %v5431 = vadd.f32 %v5110, %v5301
    %v5432 = vadd.f32 %v5111, %v5303
    %v5433 = vadd.f32 %v5112, %v5305
    %v5434 = vadd.f32 %v5113, %v5307
    %v5435 = vadd.f32 %v5114, %v5309
    %v5436 = vadd.f32 %v5115, %v5311
    %v5437 = vadd.f32 %v5116, %v5313
    %v5438 = vadd.f32 %v5117, %v5315
    %v5439 = vadd.f32 %v5118, %v5317
    %v5440 = vadd.f32 %v5119, %v5319
    %v5441 = vadd.f32 %v5120, %v5321
    %v5442 = vadd.f32 %v5121, %v5323
    %v5443 = vadd.f32 %v5122, %v5325
    %v5444 = vadd.f32 %v5123, %v5327
    %v5445 = vadd.f32 %v5124, %v5329
    %v5446 = vadd.f32 %v5125, %v5331
    %v5447 = vadd.f32 %v5126, %v5333
    %v5448 = vadd.f32 %v5127, %v5335
    %v5449 = vadd.f32 %v5128, %v5337
    %v5450 = vadd.f32 %v5129, %v5339
    %v5451 = vadd.f32 %v5130, %v5341
    %v5452 = vadd.f32 %v5131, %v5343
    %v5453 = vadd.f32 %v5132, %v5345
    %v5454 = vadd.f32 %v5133, %v5347
    %v5455 = vadd.f32 %v5134, %v5349
    %v5456 = vadd.f32 %v5135, %v5351
    %v5457 = vadd.f32 %v5136, %v5353
    %v5458 = vadd.f32 %v5137, %v5355
    %v5459 = vadd.f32 %v5138, %v5357
    %v5460 = vadd.f32 %v5139, %v5359
    %v5461 = vadd.f32 %v5140, %v5361
    %v5462 = vadd.f32 %v5141, %v5363
    %v5463 = vadd.f32 %v5142, %v5365
    %v5464 = vadd.f32 %v5143, %v5367
    %v5465 = vadd.f32 %v5144, %v5369
    %v5466 = vadd.f32 %v5145, %v5371
    %v5467 = vadd.f32 %v5146, %v5373
    %v5468 = vadd.f32 %v5147, %v5375
    %v5469 = vadd.f32 %v5148, %v5377
    %v5470 = vadd.f32 %v5149, %v5379
    %v5471 = vadd.f32 %v5150, %v5381
    %v5472 = vadd.f32 %v5151, %v5383
    %v5473 = vadd.f32 %v5152, %v5385
    %v5474 = vadd.f32 %v5153, %v5387
    %v5475 = vadd.f32 %v5154, %v5389
    %v5476 = vadd.f32 %v5155, %v5391
    %v5477 = vadd.f32 %v5156, %v5393
    %v5478 = vadd.f32 %v5157, %v5395
    %v5479 = vadd.f32 %v5158, %v5397
    %v5480 = vadd.f32 %v5159, %v5399
    %v5481 = vadd.f32 %v5160, %v5401
    %v5482 = vld [vmem:[%s1967] sm:$0xff]
    %v5483 = vld [vmem:[%s1967 + $0x8] sm:$0xff]
    %v5484 = vld [vmem:[%s1967 + $0x18] sm:$0xff]
    %v5485 = vld [vmem:[%s1967 + $0x20] sm:$0xff]
    %v5486 = vld [vmem:[%s1967 + $0x30] sm:$0xff]
    %v5487 = vld [vmem:[%s1967 + $0x38] sm:$0xff]
    %v5488 = vld [vmem:[%s1967 + $0x48] sm:$0xff]
    %v5489 = vld [vmem:[%s1967 + $0x50] sm:$0xff]
    %v5490 = vld [vmem:[%s1967 + $0x60] sm:$0xff]
    %v5491 = vld [vmem:[%s1967 + $0x68] sm:$0xff]
    %v5492 = vld [vmem:[%s1967 + $0x78] sm:$0xff]
    %v5493 = vld [vmem:[%s1967 + $0x80] sm:$0xff]
    %v5494 = vld [vmem:[%s1967 + $0x90] sm:$0xff]
    %v5495 = vld [vmem:[%s1967 + $0x98] sm:$0xff]
    %v5496 = vld [vmem:[%s1967 + $0xa8] sm:$0xff]
    %v5497 = vld [vmem:[%s1967 + $0xb0] sm:$0xff]
    %v5498 = vld [vmem:[%s1967 + $0xc0] sm:$0xff]
    %v5499 = vld [vmem:[%s1967 + $0xc8] sm:$0xff]
    %v5500 = vld [vmem:[%s1967 + $0xd8] sm:$0xff]
    %v5501 = vld [vmem:[%s1967 + $0xe0] sm:$0xff]
    %v5502 = vld [vmem:[%s1967 + $0xf0] sm:$0xff]
    %v5503 = vld [vmem:[%s1967 + $0xf8] sm:$0xff]
    %v5504 = vld [vmem:[%s1967 + $0x108] sm:$0xff]
    %v5505 = vld [vmem:[%s1967 + $0x110] sm:$0xff]
    %v5506 = vld [vmem:[%s1967 + $0x120] sm:$0xff]
    %v5507 = vld [vmem:[%s1967 + $0x128] sm:$0xff]
    %v5508 = vld [vmem:[%s1967 + $0x138] sm:$0xff]
    %v5509 = vld [vmem:[%s1967 + $0x140] sm:$0xff]
    %v5510 = vld [vmem:[%s1967 + $0x150] sm:$0xff]
    %v5511 = vld [vmem:[%s1967 + $0x158] sm:$0xff]
    %v5512 = vld [vmem:[%s1967 + $0x168] sm:$0xff]
    %v5513 = vld [vmem:[%s1967 + $0x170] sm:$0xff]
    %v5514 = vld [vmem:[%s1967 + $0x1b0] sm:$0xff]
    %v5515 = vld [vmem:[%s1967 + $0x1b8] sm:$0xff]
    %v5516 = vld [vmem:[%s1967 + $0x1c8] sm:$0xff]
    %v5517 = vld [vmem:[%s1967 + $0x1d0] sm:$0xff]
    %v5518 = vld [vmem:[%s1967 + $0x1e0] sm:$0xff]
    %v5519 = vld [vmem:[%s1967 + $0x1e8] sm:$0xff]
    %v5520 = vld [vmem:[%s1967 + $0x1f8] sm:$0xff]
    %v5521 = vld [vmem:[%s1967 + $0x200] sm:$0xff]
    %v5522 = vld [vmem:[%s1967 + $0x210] sm:$0xff]
    %v5523 = vld [vmem:[%s1967 + $0x218] sm:$0xff]
    %v5524 = vld [vmem:[%s1967 + $0x228] sm:$0xff]
    %v5525 = vld [vmem:[%s1967 + $0x230] sm:$0xff]
    %v5526 = vld [vmem:[%s1967 + $0x240] sm:$0xff]
    %v5527 = vld [vmem:[%s1967 + $0x248] sm:$0xff]
    %v5528 = vld [vmem:[%s1967 + $0x258] sm:$0xff]
    %v5529 = vld [vmem:[%s1967 + $0x260] sm:$0xff]
    %v5530 = vld [vmem:[%s1967 + $0x270] sm:$0xff]
    %v5531 = vld [vmem:[%s1967 + $0x278] sm:$0xff]
    %v5532 = vld [vmem:[%s1967 + $0x288] sm:$0xff]
    %v5533 = vld [vmem:[%s1967 + $0x290] sm:$0xff]
    %v5534 = vld [vmem:[%s1967 + $0x2a0] sm:$0xff]
    %v5535 = vld [vmem:[%s1967 + $0x2a8] sm:$0xff]
    %v5536 = vld [vmem:[%s1967 + $0x2b8] sm:$0xff]
    %v5537 = vld [vmem:[%s1967 + $0x2c0] sm:$0xff]
    %v5538 = vld [vmem:[%s1967 + $0x2d0] sm:$0xff]
    %v5539 = vld [vmem:[%s1967 + $0x2d8] sm:$0xff]
    %v5540 = vld [vmem:[%s1967 + $0x2e8] sm:$0xff]
    %v5541 = vld [vmem:[%s1967 + $0x2f0] sm:$0xff]
    %v5542 = vld [vmem:[%s1967 + $0x300] sm:$0xff]
    %v5543 = vld [vmem:[%s1967 + $0x308] sm:$0xff]
    %v5544 = vld [vmem:[%s1967 + $0x318] sm:$0xff]
    %v5545 = vld [vmem:[%s1967 + $0x320] sm:$0xff]
    %s5546 = scalar_lea.vmem [#allocation8], 768
    %v5547 = vld [vmem:[%s5546] sm:$0xff]
    %v5548 = vld [vmem:[%s5546 + $0x8] sm:$0xff]
    %v5549 = vld [vmem:[%s5546 + $0x10] sm:$0xff]
    %v5550 = vld [vmem:[%s5546 + $0x18] sm:$0xff]
    %v5551 = vld [vmem:[%s5546 + $0x20] sm:$0xff]
    %v5552 = vld [vmem:[%s5546 + $0x28] sm:$0xff]
    %v5553 = vld [vmem:[%s5546 + $0x30] sm:$0xff]
    %v5554 = vld [vmem:[%s5546 + $0x38] sm:$0xff]
    %v5555 = vld [vmem:[%s5546 + $0x40] sm:$0xff]
    %v5556 = vld [vmem:[%s5546 + $0x48] sm:$0xff]
    %v5557 = vld [vmem:[%s5546 + $0x50] sm:$0xff]
    %v5558 = vld [vmem:[%s5546 + $0x58] sm:$0xff]
    %v5559 = vld [vmem:[%s5546 + $0x60] sm:$0xff]
    %v5560 = vld [vmem:[%s5546 + $0x68] sm:$0xff]
    %v5561 = vld [vmem:[%s5546 + $0x70] sm:$0xff]
    %v5562 = vld [vmem:[%s5546 + $0x78] sm:$0xff]
    %5563 = vrot.lane.b32.xlu0 %v5482, 24
    %v5564 = vpop.permute.xlu0 %5563
    %5565 = vrot.lane.b32.xlu0 %v5483, 24
    %v5566 = vpop.permute.xlu0 %5565
    %5567 = vrot.lane.b32.xlu0 %v5484, 24
    %v5568 = vpop.permute.xlu0 %5567
    %5569 = vrot.lane.b32.xlu0 %v5485, 24
    %v5570 = vpop.permute.xlu0 %5569
    %5571 = vrot.lane.b32.xlu0 %v5486, 24
    %v5572 = vpop.permute.xlu0 %5571
    %5573 = vrot.lane.b32.xlu0 %v5487, 24
    %v5574 = vpop.permute.xlu0 %5573
    %5575 = vrot.lane.b32.xlu0 %v5488, 24
    %v5576 = vpop.permute.xlu0 %5575
    %5577 = vrot.lane.b32.xlu0 %v5489, 24
    %v5578 = vpop.permute.xlu0 %5577
    %5579 = vrot.lane.b32.xlu0 %v5490, 24
    %v5580 = vpop.permute.xlu0 %5579
    %5581 = vrot.lane.b32.xlu0 %v5491, 24
    %v5582 = vpop.permute.xlu0 %5581
    %5583 = vrot.lane.b32.xlu0 %v5492, 24
    %v5584 = vpop.permute.xlu0 %5583
    %5585 = vrot.lane.b32.xlu0 %v5493, 24
    %v5586 = vpop.permute.xlu0 %5585
    %5587 = vrot.lane.b32.xlu0 %v5494, 24
    %v5588 = vpop.permute.xlu0 %5587
    %5589 = vrot.lane.b32.xlu0 %v5495, 24
    %v5590 = vpop.permute.xlu0 %5589
    %5591 = vrot.lane.b32.xlu0 %v5496, 24
    %v5592 = vpop.permute.xlu0 %5591
    %5593 = vrot.lane.b32.xlu0 %v5497, 24
    %v5594 = vpop.permute.xlu0 %5593
    %5595 = vrot.lane.b32.xlu0 %v5498, 24
    %v5596 = vpop.permute.xlu0 %5595
    %5597 = vrot.lane.b32.xlu0 %v5499, 24
    %v5598 = vpop.permute.xlu0 %5597
    %5599 = vrot.lane.b32.xlu0 %v5500, 24
    %v5600 = vpop.permute.xlu0 %5599
    %5601 = vrot.lane.b32.xlu0 %v5501, 24
    %v5602 = vpop.permute.xlu0 %5601
    %5603 = vrot.lane.b32.xlu0 %v5502, 24
    %v5604 = vpop.permute.xlu0 %5603
    %5605 = vrot.lane.b32.xlu0 %v5503, 24
    %v5606 = vpop.permute.xlu0 %5605
    %5607 = vrot.lane.b32.xlu0 %v5504, 24
    %v5608 = vpop.permute.xlu0 %5607
    %5609 = vrot.lane.b32.xlu0 %v5505, 24
    %v5610 = vpop.permute.xlu0 %5609
    %5611 = vrot.lane.b32.xlu0 %v5506, 24
    %v5612 = vpop.permute.xlu0 %5611
    %5613 = vrot.lane.b32.xlu0 %v5507, 24
    %v5614 = vpop.permute.xlu0 %5613
    %5615 = vrot.lane.b32.xlu0 %v5508, 24
    %v5616 = vpop.permute.xlu0 %5615
    %5617 = vrot.lane.b32.xlu0 %v5509, 24
    %v5618 = vpop.permute.xlu0 %5617
    %5619 = vrot.lane.b32.xlu0 %v5510, 24
    %v5620 = vpop.permute.xlu0 %5619
    %5621 = vrot.lane.b32.xlu0 %v5511, 24
    %v5622 = vpop.permute.xlu0 %5621
    %5623 = vrot.lane.b32.xlu0 %v5512, 24
    %v5624 = vpop.permute.xlu0 %5623
    %5625 = vrot.lane.b32.xlu0 %v5513, 24
    %v5626 = vpop.permute.xlu0 %5625
    %5627 = vrot.lane.b32.xlu0 %v5514, 24
    %v5628 = vpop.permute.xlu0 %5627
    %5629 = vrot.lane.b32.xlu0 %v5515, 24
    %v5630 = vpop.permute.xlu0 %5629
    %5631 = vrot.lane.b32.xlu0 %v5516, 24
    %v5632 = vpop.permute.xlu0 %5631
    %5633 = vrot.lane.b32.xlu0 %v5517, 24
    %v5634 = vpop.permute.xlu0 %5633
    %5635 = vrot.lane.b32.xlu0 %v5518, 24
    %v5636 = vpop.permute.xlu0 %5635
    %5637 = vrot.lane.b32.xlu0 %v5519, 24
    %v5638 = vpop.permute.xlu0 %5637
    %5639 = vrot.lane.b32.xlu0 %v5520, 24
    %v5640 = vpop.permute.xlu0 %5639
    %5641 = vrot.lane.b32.xlu0 %v5521, 24
    %v5642 = vpop.permute.xlu0 %5641
    %5643 = vrot.lane.b32.xlu0 %v5522, 24
    %v5644 = vpop.permute.xlu0 %5643
    %5645 = vrot.lane.b32.xlu0 %v5523, 24
    %v5646 = vpop.permute.xlu0 %5645
    %5647 = vrot.lane.b32.xlu0 %v5524, 24
    %v5648 = vpop.permute.xlu0 %5647
    %5649 = vrot.lane.b32.xlu0 %v5525, 24
    %v5650 = vpop.permute.xlu0 %5649
    %5651 = vrot.lane.b32.xlu0 %v5526, 24
    %v5652 = vpop.permute.xlu0 %5651
    %5653 = vrot.lane.b32.xlu0 %v5527, 24
    %v5654 = vpop.permute.xlu0 %5653
    %5655 = vrot.lane.b32.xlu0 %v5528, 24
    %v5656 = vpop.permute.xlu0 %5655
    %5657 = vrot.lane.b32.xlu0 %v5529, 24
    %v5658 = vpop.permute.xlu0 %5657
    %5659 = vrot.lane.b32.xlu0 %v5530, 24
    %v5660 = vpop.permute.xlu0 %5659
    %5661 = vrot.lane.b32.xlu0 %v5531, 24
    %v5662 = vpop.permute.xlu0 %5661
    %5663 = vrot.lane.b32.xlu0 %v5532, 24
    %v5664 = vpop.permute.xlu0 %5663
    %5665 = vrot.lane.b32.xlu0 %v5533, 24
    %v5666 = vpop.permute.xlu0 %5665
    %5667 = vrot.lane.b32.xlu0 %v5534, 24
    %v5668 = vpop.permute.xlu0 %5667
    %5669 = vrot.lane.b32.xlu0 %v5535, 24
    %v5670 = vpop.permute.xlu0 %5669
    %5671 = vrot.lane.b32.xlu0 %v5536, 24
    %v5672 = vpop.permute.xlu0 %5671
    %5673 = vrot.lane.b32.xlu0 %v5537, 24
    %v5674 = vpop.permute.xlu0 %5673
    %5675 = vrot.lane.b32.xlu0 %v5538, 24
    %v5676 = vpop.permute.xlu0 %5675
    %5677 = vrot.lane.b32.xlu0 %v5539, 24
    %v5678 = vpop.permute.xlu0 %5677
    %5679 = vrot.lane.b32.xlu0 %v5540, 24
    %v5680 = vpop.permute.xlu0 %5679
    %5681 = vrot.lane.b32.xlu0 %v5541, 24
    %v5682 = vpop.permute.xlu0 %5681
    %5683 = vrot.lane.b32.xlu0 %v5542, 24
    %v5684 = vpop.permute.xlu0 %5683
    %5685 = vrot.lane.b32.xlu0 %v5543, 24
    %v5686 = vpop.permute.xlu0 %5685
    %5687 = vrot.lane.b32.xlu0 %v5544, 24
    %v5688 = vpop.permute.xlu0 %5687
    %5689 = vrot.lane.b32.xlu0 %v5545, 24
    %v5690 = vpop.permute.xlu0 %5689
    %5691 = vrot.lane.b32.xlu0 %v5547, 24
    %v5692 = vpop.permute.xlu0 %5691
    %5693 = vrot.lane.b32.xlu0 %v5548, 24
    %v5694 = vpop.permute.xlu0 %5693
    %5695 = vrot.lane.b32.xlu0 %v5549, 24
    %v5696 = vpop.permute.xlu0 %5695
    %5697 = vrot.lane.b32.xlu0 %v5550, 24
    %v5698 = vpop.permute.xlu0 %5697
    %5699 = vrot.lane.b32.xlu0 %v5551, 24
    %v5700 = vpop.permute.xlu0 %5699
    %5701 = vrot.lane.b32.xlu0 %v5552, 24
    %v5702 = vpop.permute.xlu0 %5701
    %5703 = vrot.lane.b32.xlu0 %v5553, 24
    %v5704 = vpop.permute.xlu0 %5703
    %5705 = vrot.lane.b32.xlu0 %v5554, 24
    %v5706 = vpop.permute.xlu0 %5705
    %5707 = vrot.lane.b32.xlu0 %v5555, 24
    %v5708 = vpop.permute.xlu0 %5707
    %5709 = vrot.lane.b32.xlu0 %v5556, 24
    %v5710 = vpop.permute.xlu0 %5709
    %5711 = vrot.lane.b32.xlu0 %v5557, 24
    %v5712 = vpop.permute.xlu0 %5711
    %5713 = vrot.lane.b32.xlu0 %v5558, 24
    %v5714 = vpop.permute.xlu0 %5713
    %5715 = vrot.lane.b32.xlu0 %v5559, 24
    %v5716 = vpop.permute.xlu0 %5715
    %5717 = vrot.lane.b32.xlu0 %v5560, 24
    %v5718 = vpop.permute.xlu0 %5717
    %5719 = vrot.lane.b32.xlu0 %v5561, 24
    %v5720 = vpop.permute.xlu0 %5719
    %5721 = vrot.lane.b32.xlu0 %v5562, 24
    %v5722 = vpop.permute.xlu0 %5721
    %v5723 = vadd.f32 %v5402, %v5564
    %v5724 = vadd.f32 %v5403, %v5566
    %v5725 = vadd.f32 %v5404, %v5568
    %v5726 = vadd.f32 %v5405, %v5570
    %v5727 = vadd.f32 %v5406, %v5572
    %v5728 = vadd.f32 %v5407, %v5574
    %v5729 = vadd.f32 %v5408, %v5576
    %v5730 = vadd.f32 %v5409, %v5578
    %v5731 = vadd.f32 %v5410, %v5580
    %v5732 = vadd.f32 %v5411, %v5582
    %v5733 = vadd.f32 %v5412, %v5584
    %v5734 = vadd.f32 %v5413, %v5586
    %v5735 = vadd.f32 %v5414, %v5588
    %v5736 = vadd.f32 %v5415, %v5590
    %v5737 = vadd.f32 %v5416, %v5592
    %v5738 = vadd.f32 %v5417, %v5594
    %v5739 = vadd.f32 %v5418, %v5596
    %v5740 = vadd.f32 %v5419, %v5598
    %v5741 = vadd.f32 %v5420, %v5600
    %v5742 = vadd.f32 %v5421, %v5602
    %v5743 = vadd.f32 %v5422, %v5604
    %v5744 = vadd.f32 %v5423, %v5606
    %v5745 = vadd.f32 %v5424, %v5608
    %v5746 = vadd.f32 %v5425, %v5610
    %v5747 = vadd.f32 %v5426, %v5612
    %v5748 = vadd.f32 %v5427, %v5614
    %v5749 = vadd.f32 %v5428, %v5616
    %v5750 = vadd.f32 %v5429, %v5618
    %v5751 = vadd.f32 %v5430, %v5620
    %v5752 = vadd.f32 %v5431, %v5622
    %v5753 = vadd.f32 %v5432, %v5624
    %v5754 = vadd.f32 %v5433, %v5626
    %v5755 = vadd.f32 %v5434, %v5628
    %v5756 = vadd.f32 %v5435, %v5630
    %v5757 = vadd.f32 %v5436, %v5632
    %v5758 = vadd.f32 %v5437, %v5634
    %v5759 = vadd.f32 %v5438, %v5636
    %v5760 = vadd.f32 %v5439, %v5638
    %v5761 = vadd.f32 %v5440, %v5640
    %v5762 = vadd.f32 %v5441, %v5642
    %v5763 = vadd.f32 %v5442, %v5644
    %v5764 = vadd.f32 %v5443, %v5646
    %v5765 = vadd.f32 %v5444, %v5648
    %v5766 = vadd.f32 %v5445, %v5650
    %v5767 = vadd.f32 %v5446, %v5652
    %v5768 = vadd.f32 %v5447, %v5654
    %v5769 = vadd.f32 %v5448, %v5656
    %v5770 = vadd.f32 %v5449, %v5658
    %v5771 = vadd.f32 %v5450, %v5660
    %v5772 = vadd.f32 %v5451, %v5662
    %v5773 = vadd.f32 %v5452, %v5664
    %v5774 = vadd.f32 %v5453, %v5666
    %v5775 = vadd.f32 %v5454, %v5668
    %v5776 = vadd.f32 %v5455, %v5670
    %v5777 = vadd.f32 %v5456, %v5672
    %v5778 = vadd.f32 %v5457, %v5674
    %v5779 = vadd.f32 %v5458, %v5676
    %v5780 = vadd.f32 %v5459, %v5678
    %v5781 = vadd.f32 %v5460, %v5680
    %v5782 = vadd.f32 %v5461, %v5682
    %v5783 = vadd.f32 %v5462, %v5684
    %v5784 = vadd.f32 %v5463, %v5686
    %v5785 = vadd.f32 %v5464, %v5688
    %v5786 = vadd.f32 %v5465, %v5690
    %v5787 = vadd.f32 %v5466, %v5692
    %v5788 = vadd.f32 %v5467, %v5694
    %v5789 = vadd.f32 %v5468, %v5696
    %v5790 = vadd.f32 %v5469, %v5698
    %v5791 = vadd.f32 %v5470, %v5700
    %v5792 = vadd.f32 %v5471, %v5702
    %v5793 = vadd.f32 %v5472, %v5704
    %v5794 = vadd.f32 %v5473, %v5706
    %v5795 = vadd.f32 %v5474, %v5708
    %v5796 = vadd.f32 %v5475, %v5710
    %v5797 = vadd.f32 %v5476, %v5712
    %v5798 = vadd.f32 %v5477, %v5714
    %v5799 = vadd.f32 %v5478, %v5716
    %v5800 = vadd.f32 %v5479, %v5718
    %v5801 = vadd.f32 %v5480, %v5720
    %v5802 = vadd.f32 %v5481, %v5722
    %v5803 = vld [vmem:[%s1967 + $0x1] sm:$0xff]
    %v5804 = vld [vmem:[%s1967 + $0x9] sm:$0xff]
    %v5805 = vld [vmem:[%s1967 + $0x19] sm:$0xff]
    %v5806 = vld [vmem:[%s1967 + $0x21] sm:$0xff]
    %v5807 = vld [vmem:[%s1967 + $0x31] sm:$0xff]
    %v5808 = vld [vmem:[%s1967 + $0x39] sm:$0xff]
    %v5809 = vld [vmem:[%s1967 + $0x49] sm:$0xff]
    %v5810 = vld [vmem:[%s1967 + $0x51] sm:$0xff]
    %v5811 = vld [vmem:[%s1967 + $0x61] sm:$0xff]
    %v5812 = vld [vmem:[%s1967 + $0x69] sm:$0xff]
    %v5813 = vld [vmem:[%s1967 + $0x79] sm:$0xff]
    %v5814 = vld [vmem:[%s1967 + $0x81] sm:$0xff]
    %v5815 = vld [vmem:[%s1967 + $0x91] sm:$0xff]
    %v5816 = vld [vmem:[%s1967 + $0x99] sm:$0xff]
    %v5817 = vld [vmem:[%s1967 + $0xa9] sm:$0xff]
    %v5818 = vld [vmem:[%s1967 + $0xb1] sm:$0xff]
    %v5819 = vld [vmem:[%s1967 + $0xc1] sm:$0xff]
    %v5820 = vld [vmem:[%s1967 + $0xc9] sm:$0xff]
    %v5821 = vld [vmem:[%s1967 + $0xd9] sm:$0xff]
    %v5822 = vld [vmem:[%s1967 + $0xe1] sm:$0xff]
    %v5823 = vld [vmem:[%s1967 + $0xf1] sm:$0xff]
    %v5824 = vld [vmem:[%s1967 + $0xf9] sm:$0xff]
    %v5825 = vld [vmem:[%s1967 + $0x109] sm:$0xff]
    %v5826 = vld [vmem:[%s1967 + $0x111] sm:$0xff]
    %v5827 = vld [vmem:[%s1967 + $0x121] sm:$0xff]
    %v5828 = vld [vmem:[%s1967 + $0x129] sm:$0xff]
    %v5829 = vld [vmem:[%s1967 + $0x139] sm:$0xff]
    %v5830 = vld [vmem:[%s1967 + $0x141] sm:$0xff]
    %v5831 = vld [vmem:[%s1967 + $0x151] sm:$0xff]
    %v5832 = vld [vmem:[%s1967 + $0x159] sm:$0xff]
    %v5833 = vld [vmem:[%s1967 + $0x169] sm:$0xff]
    %v5834 = vld [vmem:[%s1967 + $0x171] sm:$0xff]
    %v5835 = vld [vmem:[%s1967 + $0x1b1] sm:$0xff]
    %v5836 = vld [vmem:[%s1967 + $0x1b9] sm:$0xff]
    %v5837 = vld [vmem:[%s1967 + $0x1c9] sm:$0xff]
    %v5838 = vld [vmem:[%s1967 + $0x1d1] sm:$0xff]
    %v5839 = vld [vmem:[%s1967 + $0x1e1] sm:$0xff]
    %v5840 = vld [vmem:[%s1967 + $0x1e9] sm:$0xff]
    %v5841 = vld [vmem:[%s1967 + $0x1f9] sm:$0xff]
    %v5842 = vld [vmem:[%s1967 + $0x201] sm:$0xff]
    %v5843 = vld [vmem:[%s1967 + $0x211] sm:$0xff]
    %v5844 = vld [vmem:[%s1967 + $0x219] sm:$0xff]
    %v5845 = vld [vmem:[%s1967 + $0x229] sm:$0xff]
    %v5846 = vld [vmem:[%s1967 + $0x231] sm:$0xff]
    %v5847 = vld [vmem:[%s1967 + $0x241] sm:$0xff]
    %v5848 = vld [vmem:[%s1967 + $0x249] sm:$0xff]
    %v5849 = vld [vmem:[%s1967 + $0x259] sm:$0xff]
    %v5850 = vld [vmem:[%s1967 + $0x261] sm:$0xff]
    %v5851 = vld [vmem:[%s1967 + $0x271] sm:$0xff]
    %v5852 = vld [vmem:[%s1967 + $0x279] sm:$0xff]
    %v5853 = vld [vmem:[%s1967 + $0x289] sm:$0xff]
    %v5854 = vld [vmem:[%s1967 + $0x291] sm:$0xff]
    %v5855 = vld [vmem:[%s1967 + $0x2a1] sm:$0xff]
    %v5856 = vld [vmem:[%s1967 + $0x2a9] sm:$0xff]
    %v5857 = vld [vmem:[%s1967 + $0x2b9] sm:$0xff]
    %v5858 = vld [vmem:[%s1967 + $0x2c1] sm:$0xff]
    %v5859 = vld [vmem:[%s1967 + $0x2d1] sm:$0xff]
    %v5860 = vld [vmem:[%s1967 + $0x2d9] sm:$0xff]
    %v5861 = vld [vmem:[%s1967 + $0x2e9] sm:$0xff]
    %v5862 = vld [vmem:[%s1967 + $0x2f1] sm:$0xff]
    %v5863 = vld [vmem:[%s1967 + $0x301] sm:$0xff]
    %v5864 = vld [vmem:[%s1967 + $0x309] sm:$0xff]
    %v5865 = vld [vmem:[%s1967 + $0x319] sm:$0xff]
    %v5866 = vld [vmem:[%s1967 + $0x321] sm:$0xff]
    %s5867 = scalar_lea.vmem [#allocation8], 896
    %v5868 = vld [vmem:[%s5867] sm:$0xff]
    %v5869 = vld [vmem:[%s5867 + $0x8] sm:$0xff]
    %v5870 = vld [vmem:[%s5867 + $0x10] sm:$0xff]
    %v5871 = vld [vmem:[%s5867 + $0x18] sm:$0xff]
    %v5872 = vld [vmem:[%s5867 + $0x20] sm:$0xff]
    %v5873 = vld [vmem:[%s5867 + $0x28] sm:$0xff]
    %v5874 = vld [vmem:[%s5867 + $0x30] sm:$0xff]
    %v5875 = vld [vmem:[%s5867 + $0x38] sm:$0xff]
    %v5876 = vld [vmem:[%s5867 + $0x40] sm:$0xff]
    %v5877 = vld [vmem:[%s5867 + $0x48] sm:$0xff]
    %v5878 = vld [vmem:[%s5867 + $0x50] sm:$0xff]
    %v5879 = vld [vmem:[%s5867 + $0x58] sm:$0xff]
    %v5880 = vld [vmem:[%s5867 + $0x60] sm:$0xff]
    %v5881 = vld [vmem:[%s5867 + $0x68] sm:$0xff]
    %v5882 = vld [vmem:[%s5867 + $0x70] sm:$0xff]
    %v5883 = vld [vmem:[%s5867 + $0x78] sm:$0xff]
    %5884 = vrot.lane.b32.xlu0 %v5803, 28
    %v5885 = vpop.permute.xlu0 %5884
    %5886 = vrot.lane.b32.xlu0 %v5804, 28
    %v5887 = vpop.permute.xlu0 %5886
    %5888 = vrot.lane.b32.xlu0 %v5805, 28
    %v5889 = vpop.permute.xlu0 %5888
    %5890 = vrot.lane.b32.xlu0 %v5806, 28
    %v5891 = vpop.permute.xlu0 %5890
    %5892 = vrot.lane.b32.xlu0 %v5807, 28
    %v5893 = vpop.permute.xlu0 %5892
    %5894 = vrot.lane.b32.xlu0 %v5808, 28
    %v5895 = vpop.permute.xlu0 %5894
    %5896 = vrot.lane.b32.xlu0 %v5809, 28
    %v5897 = vpop.permute.xlu0 %5896
    %5898 = vrot.lane.b32.xlu0 %v5810, 28
    %v5899 = vpop.permute.xlu0 %5898
    %5900 = vrot.lane.b32.xlu0 %v5811, 28
    %v5901 = vpop.permute.xlu0 %5900
    %5902 = vrot.lane.b32.xlu0 %v5812, 28
    %v5903 = vpop.permute.xlu0 %5902
    %5904 = vrot.lane.b32.xlu0 %v5813, 28
    %v5905 = vpop.permute.xlu0 %5904
    %5906 = vrot.lane.b32.xlu0 %v5814, 28
    %v5907 = vpop.permute.xlu0 %5906
    %5908 = vrot.lane.b32.xlu0 %v5815, 28
    %v5909 = vpop.permute.xlu0 %5908
    %5910 = vrot.lane.b32.xlu0 %v5816, 28
    %v5911 = vpop.permute.xlu0 %5910
    %5912 = vrot.lane.b32.xlu0 %v5817, 28
    %v5913 = vpop.permute.xlu0 %5912
    %5914 = vrot.lane.b32.xlu0 %v5818, 28
    %v5915 = vpop.permute.xlu0 %5914
    %5916 = vrot.lane.b32.xlu0 %v5819, 28
    %v5917 = vpop.permute.xlu0 %5916
    %5918 = vrot.lane.b32.xlu0 %v5820, 28
    %v5919 = vpop.permute.xlu0 %5918
    %5920 = vrot.lane.b32.xlu0 %v5821, 28
    %v5921 = vpop.permute.xlu0 %5920
    %5922 = vrot.lane.b32.xlu0 %v5822, 28
    %v5923 = vpop.permute.xlu0 %5922
    %5924 = vrot.lane.b32.xlu0 %v5823, 28
    %v5925 = vpop.permute.xlu0 %5924
    %5926 = vrot.lane.b32.xlu0 %v5824, 28
    %v5927 = vpop.permute.xlu0 %5926
    %5928 = vrot.lane.b32.xlu0 %v5825, 28
    %v5929 = vpop.permute.xlu0 %5928
    %5930 = vrot.lane.b32.xlu0 %v5826, 28
    %v5931 = vpop.permute.xlu0 %5930
    %5932 = vrot.lane.b32.xlu0 %v5827, 28
    %v5933 = vpop.permute.xlu0 %5932
    %5934 = vrot.lane.b32.xlu0 %v5828, 28
    %v5935 = vpop.permute.xlu0 %5934
    %5936 = vrot.lane.b32.xlu0 %v5829, 28
    %v5937 = vpop.permute.xlu0 %5936
    %5938 = vrot.lane.b32.xlu0 %v5830, 28
    %v5939 = vpop.permute.xlu0 %5938
    %5940 = vrot.lane.b32.xlu0 %v5831, 28
    %v5941 = vpop.permute.xlu0 %5940
    %5942 = vrot.lane.b32.xlu0 %v5832, 28
    %v5943 = vpop.permute.xlu0 %5942
    %5944 = vrot.lane.b32.xlu0 %v5833, 28
    %v5945 = vpop.permute.xlu0 %5944
    %5946 = vrot.lane.b32.xlu0 %v5834, 28
    %v5947 = vpop.permute.xlu0 %5946
    %5948 = vrot.lane.b32.xlu0 %v5835, 28
    %v5949 = vpop.permute.xlu0 %5948
    %5950 = vrot.lane.b32.xlu0 %v5836, 28
    %v5951 = vpop.permute.xlu0 %5950
    %5952 = vrot.lane.b32.xlu0 %v5837, 28
    %v5953 = vpop.permute.xlu0 %5952
    %5954 = vrot.lane.b32.xlu0 %v5838, 28
    %v5955 = vpop.permute.xlu0 %5954
    %5956 = vrot.lane.b32.xlu0 %v5839, 28
    %v5957 = vpop.permute.xlu0 %5956
    %5958 = vrot.lane.b32.xlu0 %v5840, 28
    %v5959 = vpop.permute.xlu0 %5958
    %5960 = vrot.lane.b32.xlu0 %v5841, 28
    %v5961 = vpop.permute.xlu0 %5960
    %5962 = vrot.lane.b32.xlu0 %v5842, 28
    %v5963 = vpop.permute.xlu0 %5962
    %5964 = vrot.lane.b32.xlu0 %v5843, 28
    %v5965 = vpop.permute.xlu0 %5964
    %5966 = vrot.lane.b32.xlu0 %v5844, 28
    %v5967 = vpop.permute.xlu0 %5966
    %5968 = vrot.lane.b32.xlu0 %v5845, 28
    %v5969 = vpop.permute.xlu0 %5968
    %5970 = vrot.lane.b32.xlu0 %v5846, 28
    %v5971 = vpop.permute.xlu0 %5970
    %5972 = vrot.lane.b32.xlu0 %v5847, 28
    %v5973 = vpop.permute.xlu0 %5972
    %5974 = vrot.lane.b32.xlu0 %v5848, 28
    %v5975 = vpop.permute.xlu0 %5974
    %5976 = vrot.lane.b32.xlu0 %v5849, 28
    %v5977 = vpop.permute.xlu0 %5976
    %5978 = vrot.lane.b32.xlu0 %v5850, 28
    %v5979 = vpop.permute.xlu0 %5978
    %5980 = vrot.lane.b32.xlu0 %v5851, 28
    %v5981 = vpop.permute.xlu0 %5980
    %5982 = vrot.lane.b32.xlu0 %v5852, 28
    %v5983 = vpop.permute.xlu0 %5982
    %5984 = vrot.lane.b32.xlu0 %v5853, 28
    %v5985 = vpop.permute.xlu0 %5984
    %5986 = vrot.lane.b32.xlu0 %v5854, 28
    %v5987 = vpop.permute.xlu0 %5986
    %5988 = vrot.lane.b32.xlu0 %v5855, 28
    %v5989 = vpop.permute.xlu0 %5988
    %5990 = vrot.lane.b32.xlu0 %v5856, 28
    %v5991 = vpop.permute.xlu0 %5990
    %5992 = vrot.lane.b32.xlu0 %v5857, 28
    %v5993 = vpop.permute.xlu0 %5992
    %5994 = vrot.lane.b32.xlu0 %v5858, 28
    %v5995 = vpop.permute.xlu0 %5994
    %5996 = vrot.lane.b32.xlu0 %v5859, 28
    %v5997 = vpop.permute.xlu0 %5996
    %5998 = vrot.lane.b32.xlu0 %v5860, 28
    %v5999 = vpop.permute.xlu0 %5998
    %6000 = vrot.lane.b32.xlu0 %v5861, 28
    %v6001 = vpop.permute.xlu0 %6000
    %6002 = vrot.lane.b32.xlu0 %v5862, 28
    %v6003 = vpop.permute.xlu0 %6002
    %6004 = vrot.lane.b32.xlu0 %v5863, 28
    %v6005 = vpop.permute.xlu0 %6004
    %6006 = vrot.lane.b32.xlu0 %v5864, 28
    %v6007 = vpop.permute.xlu0 %6006
    %6008 = vrot.lane.b32.xlu0 %v5865, 28
    %v6009 = vpop.permute.xlu0 %6008
    %6010 = vrot.lane.b32.xlu0 %v5866, 28
    %v6011 = vpop.permute.xlu0 %6010
    %6012 = vrot.lane.b32.xlu0 %v5868, 28
    %v6013 = vpop.permute.xlu0 %6012
    %6014 = vrot.lane.b32.xlu0 %v5869, 28
    %v6015 = vpop.permute.xlu0 %6014
    %6016 = vrot.lane.b32.xlu0 %v5870, 28
    %v6017 = vpop.permute.xlu0 %6016
    %6018 = vrot.lane.b32.xlu0 %v5871, 28
    %v6019 = vpop.permute.xlu0 %6018
    %6020 = vrot.lane.b32.xlu0 %v5872, 28
    %v6021 = vpop.permute.xlu0 %6020
    %6022 = vrot.lane.b32.xlu0 %v5873, 28
    %v6023 = vpop.permute.xlu0 %6022
    %6024 = vrot.lane.b32.xlu0 %v5874, 28
    %v6025 = vpop.permute.xlu0 %6024
    %6026 = vrot.lane.b32.xlu0 %v5875, 28
    %v6027 = vpop.permute.xlu0 %6026
    %6028 = vrot.lane.b32.xlu0 %v5876, 28
    %v6029 = vpop.permute.xlu0 %6028
    %6030 = vrot.lane.b32.xlu0 %v5877, 28
    %v6031 = vpop.permute.xlu0 %6030
    %6032 = vrot.lane.b32.xlu0 %v5878, 28
    %v6033 = vpop.permute.xlu0 %6032
    %6034 = vrot.lane.b32.xlu0 %v5879, 28
    %v6035 = vpop.permute.xlu0 %6034
    %6036 = vrot.lane.b32.xlu0 %v5880, 28
    %v6037 = vpop.permute.xlu0 %6036
    %6038 = vrot.lane.b32.xlu0 %v5881, 28
    %v6039 = vpop.permute.xlu0 %6038
    %6040 = vrot.lane.b32.xlu0 %v5882, 28
    %v6041 = vpop.permute.xlu0 %6040
    %6042 = vrot.lane.b32.xlu0 %v5883, 28
    %v6043 = vpop.permute.xlu0 %6042
    %v6044 = vadd.f32 %v5723, %v5885
    %v6045 = vadd.f32 %v5724, %v5887
    %v6046 = vadd.f32 %v5725, %v5889
    %v6047 = vadd.f32 %v5726, %v5891
    %v6048 = vadd.f32 %v5727, %v5893
    %v6049 = vadd.f32 %v5728, %v5895
    %v6050 = vadd.f32 %v5729, %v5897
    %v6051 = vadd.f32 %v5730, %v5899
    %v6052 = vadd.f32 %v5731, %v5901
    %v6053 = vadd.f32 %v5732, %v5903
    %v6054 = vadd.f32 %v5733, %v5905
    %v6055 = vadd.f32 %v5734, %v5907
    %v6056 = vadd.f32 %v5735, %v5909
    %v6057 = vadd.f32 %v5736, %v5911
    %v6058 = vadd.f32 %v5737, %v5913
    %v6059 = vadd.f32 %v5738, %v5915
    %v6060 = vadd.f32 %v5739, %v5917
    %v6061 = vadd.f32 %v5740, %v5919
    %v6062 = vadd.f32 %v5741, %v5921
    %v6063 = vadd.f32 %v5742, %v5923
    %v6064 = vadd.f32 %v5743, %v5925
    %v6065 = vadd.f32 %v5744, %v5927
    %v6066 = vadd.f32 %v5745, %v5929
    %v6067 = vadd.f32 %v5746, %v5931
    %v6068 = vadd.f32 %v5747, %v5933
    %v6069 = vadd.f32 %v5748, %v5935
    %v6070 = vadd.f32 %v5749, %v5937
    %v6071 = vadd.f32 %v5750, %v5939
    %v6072 = vadd.f32 %v5751, %v5941
    %v6073 = vadd.f32 %v5752, %v5943
    %v6074 = vadd.f32 %v5753, %v5945
    %v6075 = vadd.f32 %v5754, %v5947
    %v6076 = vadd.f32 %v5755, %v5949
    %v6077 = vadd.f32 %v5756, %v5951
    %v6078 = vadd.f32 %v5757, %v5953
    %v6079 = vadd.f32 %v5758, %v5955
    %v6080 = vadd.f32 %v5759, %v5957
    %v6081 = vadd.f32 %v5760, %v5959
    %v6082 = vadd.f32 %v5761, %v5961
    %v6083 = vadd.f32 %v5762, %v5963
    %v6084 = vadd.f32 %v5763, %v5965
    %v6085 = vadd.f32 %v5764, %v5967
    %v6086 = vadd.f32 %v5765, %v5969
    %v6087 = vadd.f32 %v5766, %v5971
    %v6088 = vadd.f32 %v5767, %v5973
    %v6089 = vadd.f32 %v5768, %v5975
    %v6090 = vadd.f32 %v5769, %v5977
    %v6091 = vadd.f32 %v5770, %v5979
    %v6092 = vadd.f32 %v5771, %v5981
    %v6093 = vadd.f32 %v5772, %v5983
    %v6094 = vadd.f32 %v5773, %v5985
    %v6095 = vadd.f32 %v5774, %v5987
    %v6096 = vadd.f32 %v5775, %v5989
    %v6097 = vadd.f32 %v5776, %v5991
    %v6098 = vadd.f32 %v5777, %v5993
    %v6099 = vadd.f32 %v5778, %v5995
    %v6100 = vadd.f32 %v5779, %v5997
    %v6101 = vadd.f32 %v5780, %v5999
    %v6102 = vadd.f32 %v5781, %v6001
    %v6103 = vadd.f32 %v5782, %v6003
    %v6104 = vadd.f32 %v5783, %v6005
    %v6105 = vadd.f32 %v5784, %v6007
    %v6106 = vadd.f32 %v5785, %v6009
    %v6107 = vadd.f32 %v5786, %v6011
    %v6108 = vadd.f32 %v5787, %v6013
    %v6109 = vadd.f32 %v5788, %v6015
    %v6110 = vadd.f32 %v5789, %v6017
    %v6111 = vadd.f32 %v5790, %v6019
    %v6112 = vadd.f32 %v5791, %v6021
    %v6113 = vadd.f32 %v5792, %v6023
    %v6114 = vadd.f32 %v5793, %v6025
    %v6115 = vadd.f32 %v5794, %v6027
    %v6116 = vadd.f32 %v5795, %v6029
    %v6117 = vadd.f32 %v5796, %v6031
    %v6118 = vadd.f32 %v5797, %v6033
    %v6119 = vadd.f32 %v5798, %v6035
    %v6120 = vadd.f32 %v5799, %v6037
    %v6121 = vadd.f32 %v5800, %v6039
    %v6122 = vadd.f32 %v5801, %v6041
    %v6123 = vadd.f32 %v5802, %v6043
    %v6124 = vld [vmem:[%s1967 + $0x2] sm:$0xff]
    %v6125 = vld [vmem:[%s1967 + $0xa] sm:$0xff]
    %v6126 = vld [vmem:[%s1967 + $0x1a] sm:$0xff]
    %v6127 = vld [vmem:[%s1967 + $0x22] sm:$0xff]
    %v6128 = vld [vmem:[%s1967 + $0x32] sm:$0xff]
    %v6129 = vld [vmem:[%s1967 + $0x3a] sm:$0xff]
    %v6130 = vld [vmem:[%s1967 + $0x4a] sm:$0xff]
    %v6131 = vld [vmem:[%s1967 + $0x52] sm:$0xff]
    %v6132 = vld [vmem:[%s1967 + $0x62] sm:$0xff]
    %v6133 = vld [vmem:[%s1967 + $0x6a] sm:$0xff]
    %v6134 = vld [vmem:[%s1967 + $0x7a] sm:$0xff]
    %v6135 = vld [vmem:[%s1967 + $0x82] sm:$0xff]
    %v6136 = vld [vmem:[%s1967 + $0x92] sm:$0xff]
    %v6137 = vld [vmem:[%s1967 + $0x9a] sm:$0xff]
    %v6138 = vld [vmem:[%s1967 + $0xaa] sm:$0xff]
    %v6139 = vld [vmem:[%s1967 + $0xb2] sm:$0xff]
    %v6140 = vld [vmem:[%s1967 + $0xc2] sm:$0xff]
    %v6141 = vld [vmem:[%s1967 + $0xca] sm:$0xff]
    %v6142 = vld [vmem:[%s1967 + $0xda] sm:$0xff]
    %v6143 = vld [vmem:[%s1967 + $0xe2] sm:$0xff]
    %v6144 = vld [vmem:[%s1967 + $0xf2] sm:$0xff]
    %v6145 = vld [vmem:[%s1967 + $0xfa] sm:$0xff]
    %v6146 = vld [vmem:[%s1967 + $0x10a] sm:$0xff]
    %v6147 = vld [vmem:[%s1967 + $0x112] sm:$0xff]
    %v6148 = vld [vmem:[%s1967 + $0x122] sm:$0xff]
    %v6149 = vld [vmem:[%s1967 + $0x12a] sm:$0xff]
    %v6150 = vld [vmem:[%s1967 + $0x13a] sm:$0xff]
    %v6151 = vld [vmem:[%s1967 + $0x142] sm:$0xff]
    %v6152 = vld [vmem:[%s1967 + $0x152] sm:$0xff]
    %v6153 = vld [vmem:[%s1967 + $0x15a] sm:$0xff]
    %v6154 = vld [vmem:[%s1967 + $0x16a] sm:$0xff]
    %v6155 = vld [vmem:[%s1967 + $0x172] sm:$0xff]
    %v6156 = vld [vmem:[%s1967 + $0x1b2] sm:$0xff]
    %v6157 = vld [vmem:[%s1967 + $0x1ba] sm:$0xff]
    %v6158 = vld [vmem:[%s1967 + $0x1ca] sm:$0xff]
    %v6159 = vld [vmem:[%s1967 + $0x1d2] sm:$0xff]
    %v6160 = vld [vmem:[%s1967 + $0x1e2] sm:$0xff]
    %v6161 = vld [vmem:[%s1967 + $0x1ea] sm:$0xff]
    %v6162 = vld [vmem:[%s1967 + $0x1fa] sm:$0xff]
    %v6163 = vld [vmem:[%s1967 + $0x202] sm:$0xff]
    %v6164 = vld [vmem:[%s1967 + $0x212] sm:$0xff]
    %v6165 = vld [vmem:[%s1967 + $0x21a] sm:$0xff]
    %v6166 = vld [vmem:[%s1967 + $0x22a] sm:$0xff]
    %v6167 = vld [vmem:[%s1967 + $0x232] sm:$0xff]
    %v6168 = vld [vmem:[%s1967 + $0x242] sm:$0xff]
    %v6169 = vld [vmem:[%s1967 + $0x24a] sm:$0xff]
    %v6170 = vld [vmem:[%s1967 + $0x25a] sm:$0xff]
    %v6171 = vld [vmem:[%s1967 + $0x262] sm:$0xff]
    %v6172 = vld [vmem:[%s1967 + $0x272] sm:$0xff]
    %v6173 = vld [vmem:[%s1967 + $0x27a] sm:$0xff]
    %v6174 = vld [vmem:[%s1967 + $0x28a] sm:$0xff]
    %v6175 = vld [vmem:[%s1967 + $0x292] sm:$0xff]
    %v6176 = vld [vmem:[%s1967 + $0x2a2] sm:$0xff]
    %v6177 = vld [vmem:[%s1967 + $0x2aa] sm:$0xff]
    %v6178 = vld [vmem:[%s1967 + $0x2ba] sm:$0xff]
    %v6179 = vld [vmem:[%s1967 + $0x2c2] sm:$0xff]
    %v6180 = vld [vmem:[%s1967 + $0x2d2] sm:$0xff]
    %v6181 = vld [vmem:[%s1967 + $0x2da] sm:$0xff]
    %v6182 = vld [vmem:[%s1967 + $0x2ea] sm:$0xff]
    %v6183 = vld [vmem:[%s1967 + $0x2f2] sm:$0xff]
    %v6184 = vld [vmem:[%s1967 + $0x302] sm:$0xff]
    %v6185 = vld [vmem:[%s1967 + $0x30a] sm:$0xff]
    %v6186 = vld [vmem:[%s1967 + $0x31a] sm:$0xff]
    %v6187 = vld [vmem:[%s1967 + $0x322] sm:$0xff]
    %s6188 = scalar_lea.vmem [#allocation8], 1024
    %v6189 = vld [vmem:[%s6188] sm:$0xff]
    %v6190 = vld [vmem:[%s6188 + $0x8] sm:$0xff]
    %v6191 = vld [vmem:[%s6188 + $0x10] sm:$0xff]
    %v6192 = vld [vmem:[%s6188 + $0x18] sm:$0xff]
    %v6193 = vld [vmem:[%s6188 + $0x20] sm:$0xff]
    %v6194 = vld [vmem:[%s6188 + $0x28] sm:$0xff]
    %v6195 = vld [vmem:[%s6188 + $0x30] sm:$0xff]
    %v6196 = vld [vmem:[%s6188 + $0x38] sm:$0xff]
    %v6197 = vld [vmem:[%s6188 + $0x40] sm:$0xff]
    %v6198 = vld [vmem:[%s6188 + $0x48] sm:$0xff]
    %v6199 = vld [vmem:[%s6188 + $0x50] sm:$0xff]
    %v6200 = vld [vmem:[%s6188 + $0x58] sm:$0xff]
    %v6201 = vld [vmem:[%s6188 + $0x60] sm:$0xff]
    %v6202 = vld [vmem:[%s6188 + $0x68] sm:$0xff]
    %v6203 = vld [vmem:[%s6188 + $0x70] sm:$0xff]
    %v6204 = vld [vmem:[%s6188 + $0x78] sm:$0xff]
    %6205 = vrot.lane.b32.xlu0 %v6124, 32
    %v6206 = vpop.permute.xlu0 %6205
    %6207 = vrot.lane.b32.xlu0 %v6125, 32
    %v6208 = vpop.permute.xlu0 %6207
    %6209 = vrot.lane.b32.xlu0 %v6126, 32
    %v6210 = vpop.permute.xlu0 %6209
    %6211 = vrot.lane.b32.xlu0 %v6127, 32
    %v6212 = vpop.permute.xlu0 %6211
    %6213 = vrot.lane.b32.xlu0 %v6128, 32
    %v6214 = vpop.permute.xlu0 %6213
    %6215 = vrot.lane.b32.xlu0 %v6129, 32
    %v6216 = vpop.permute.xlu0 %6215
    %6217 = vrot.lane.b32.xlu0 %v6130, 32
    %v6218 = vpop.permute.xlu0 %6217
    %6219 = vrot.lane.b32.xlu0 %v6131, 32
    %v6220 = vpop.permute.xlu0 %6219
    %6221 = vrot.lane.b32.xlu0 %v6132, 32
    %v6222 = vpop.permute.xlu0 %6221
    %6223 = vrot.lane.b32.xlu0 %v6133, 32
    %v6224 = vpop.permute.xlu0 %6223
    %6225 = vrot.lane.b32.xlu0 %v6134, 32
    %v6226 = vpop.permute.xlu0 %6225
    %6227 = vrot.lane.b32.xlu0 %v6135, 32
    %v6228 = vpop.permute.xlu0 %6227
    %6229 = vrot.lane.b32.xlu0 %v6136, 32
    %v6230 = vpop.permute.xlu0 %6229
    %6231 = vrot.lane.b32.xlu0 %v6137, 32
    %v6232 = vpop.permute.xlu0 %6231
    %6233 = vrot.lane.b32.xlu0 %v6138, 32
    %v6234 = vpop.permute.xlu0 %6233
    %6235 = vrot.lane.b32.xlu0 %v6139, 32
    %v6236 = vpop.permute.xlu0 %6235
    %6237 = vrot.lane.b32.xlu0 %v6140, 32
    %v6238 = vpop.permute.xlu0 %6237
    %6239 = vrot.lane.b32.xlu0 %v6141, 32
    %v6240 = vpop.permute.xlu0 %6239
    %6241 = vrot.lane.b32.xlu0 %v6142, 32
    %v6242 = vpop.permute.xlu0 %6241
    %6243 = vrot.lane.b32.xlu0 %v6143, 32
    %v6244 = vpop.permute.xlu0 %6243
    %6245 = vrot.lane.b32.xlu0 %v6144, 32
    %v6246 = vpop.permute.xlu0 %6245
    %6247 = vrot.lane.b32.xlu0 %v6145, 32
    %v6248 = vpop.permute.xlu0 %6247
    %6249 = vrot.lane.b32.xlu0 %v6146, 32
    %v6250 = vpop.permute.xlu0 %6249
    %6251 = vrot.lane.b32.xlu0 %v6147, 32
    %v6252 = vpop.permute.xlu0 %6251
    %6253 = vrot.lane.b32.xlu0 %v6148, 32
    %v6254 = vpop.permute.xlu0 %6253
    %6255 = vrot.lane.b32.xlu0 %v6149, 32
    %v6256 = vpop.permute.xlu0 %6255
    %6257 = vrot.lane.b32.xlu0 %v6150, 32
    %v6258 = vpop.permute.xlu0 %6257
    %6259 = vrot.lane.b32.xlu0 %v6151, 32
    %v6260 = vpop.permute.xlu0 %6259
    %6261 = vrot.lane.b32.xlu0 %v6152, 32
    %v6262 = vpop.permute.xlu0 %6261
    %6263 = vrot.lane.b32.xlu0 %v6153, 32
    %v6264 = vpop.permute.xlu0 %6263
    %6265 = vrot.lane.b32.xlu0 %v6154, 32
    %v6266 = vpop.permute.xlu0 %6265
    %6267 = vrot.lane.b32.xlu0 %v6155, 32
    %v6268 = vpop.permute.xlu0 %6267
    %6269 = vrot.lane.b32.xlu0 %v6156, 32
    %v6270 = vpop.permute.xlu0 %6269
    %6271 = vrot.lane.b32.xlu0 %v6157, 32
    %v6272 = vpop.permute.xlu0 %6271
    %6273 = vrot.lane.b32.xlu0 %v6158, 32
    %v6274 = vpop.permute.xlu0 %6273
    %6275 = vrot.lane.b32.xlu0 %v6159, 32
    %v6276 = vpop.permute.xlu0 %6275
    %6277 = vrot.lane.b32.xlu0 %v6160, 32
    %v6278 = vpop.permute.xlu0 %6277
    %6279 = vrot.lane.b32.xlu0 %v6161, 32
    %v6280 = vpop.permute.xlu0 %6279
    %6281 = vrot.lane.b32.xlu0 %v6162, 32
    %v6282 = vpop.permute.xlu0 %6281
    %6283 = vrot.lane.b32.xlu0 %v6163, 32
    %v6284 = vpop.permute.xlu0 %6283
    %6285 = vrot.lane.b32.xlu0 %v6164, 32
    %v6286 = vpop.permute.xlu0 %6285
    %6287 = vrot.lane.b32.xlu0 %v6165, 32
    %v6288 = vpop.permute.xlu0 %6287
    %6289 = vrot.lane.b32.xlu0 %v6166, 32
    %v6290 = vpop.permute.xlu0 %6289
    %6291 = vrot.lane.b32.xlu0 %v6167, 32
    %v6292 = vpop.permute.xlu0 %6291
    %6293 = vrot.lane.b32.xlu0 %v6168, 32
    %v6294 = vpop.permute.xlu0 %6293
    %6295 = vrot.lane.b32.xlu0 %v6169, 32
    %v6296 = vpop.permute.xlu0 %6295
    %6297 = vrot.lane.b32.xlu0 %v6170, 32
    %v6298 = vpop.permute.xlu0 %6297
    %6299 = vrot.lane.b32.xlu0 %v6171, 32
    %v6300 = vpop.permute.xlu0 %6299
    %6301 = vrot.lane.b32.xlu0 %v6172, 32
    %v6302 = vpop.permute.xlu0 %6301
    %6303 = vrot.lane.b32.xlu0 %v6173, 32
    %v6304 = vpop.permute.xlu0 %6303
    %6305 = vrot.lane.b32.xlu0 %v6174, 32
    %v6306 = vpop.permute.xlu0 %6305
    %6307 = vrot.lane.b32.xlu0 %v6175, 32
    %v6308 = vpop.permute.xlu0 %6307
    %6309 = vrot.lane.b32.xlu0 %v6176, 32
    %v6310 = vpop.permute.xlu0 %6309
    %6311 = vrot.lane.b32.xlu0 %v6177, 32
    %v6312 = vpop.permute.xlu0 %6311
    %6313 = vrot.lane.b32.xlu0 %v6178, 32
    %v6314 = vpop.permute.xlu0 %6313
    %6315 = vrot.lane.b32.xlu0 %v6179, 32
    %v6316 = vpop.permute.xlu0 %6315
    %6317 = vrot.lane.b32.xlu0 %v6180, 32
    %v6318 = vpop.permute.xlu0 %6317
    %6319 = vrot.lane.b32.xlu0 %v6181, 32
    %v6320 = vpop.permute.xlu0 %6319
    %6321 = vrot.lane.b32.xlu0 %v6182, 32
    %v6322 = vpop.permute.xlu0 %6321
    %6323 = vrot.lane.b32.xlu0 %v6183, 32
    %v6324 = vpop.permute.xlu0 %6323
    %6325 = vrot.lane.b32.xlu0 %v6184, 32
    %v6326 = vpop.permute.xlu0 %6325
    %6327 = vrot.lane.b32.xlu0 %v6185, 32
    %v6328 = vpop.permute.xlu0 %6327
    %6329 = vrot.lane.b32.xlu0 %v6186, 32
    %v6330 = vpop.permute.xlu0 %6329
    %6331 = vrot.lane.b32.xlu0 %v6187, 32
    %v6332 = vpop.permute.xlu0 %6331
    %6333 = vrot.lane.b32.xlu0 %v6189, 32
    %v6334 = vpop.permute.xlu0 %6333
    %6335 = vrot.lane.b32.xlu0 %v6190, 32
    %v6336 = vpop.permute.xlu0 %6335
    %6337 = vrot.lane.b32.xlu0 %v6191, 32
    %v6338 = vpop.permute.xlu0 %6337
    %6339 = vrot.lane.b32.xlu0 %v6192, 32
    %v6340 = vpop.permute.xlu0 %6339
    %6341 = vrot.lane.b32.xlu0 %v6193, 32
    %v6342 = vpop.permute.xlu0 %6341
    %6343 = vrot.lane.b32.xlu0 %v6194, 32
    %v6344 = vpop.permute.xlu0 %6343
    %6345 = vrot.lane.b32.xlu0 %v6195, 32
    %v6346 = vpop.permute.xlu0 %6345
    %6347 = vrot.lane.b32.xlu0 %v6196, 32
    %v6348 = vpop.permute.xlu0 %6347
    %6349 = vrot.lane.b32.xlu0 %v6197, 32
    %v6350 = vpop.permute.xlu0 %6349
    %6351 = vrot.lane.b32.xlu0 %v6198, 32
    %v6352 = vpop.permute.xlu0 %6351
    %6353 = vrot.lane.b32.xlu0 %v6199, 32
    %v6354 = vpop.permute.xlu0 %6353
    %6355 = vrot.lane.b32.xlu0 %v6200, 32
    %v6356 = vpop.permute.xlu0 %6355
    %6357 = vrot.lane.b32.xlu0 %v6201, 32
    %v6358 = vpop.permute.xlu0 %6357
    %6359 = vrot.lane.b32.xlu0 %v6202, 32
    %v6360 = vpop.permute.xlu0 %6359
    %6361 = vrot.lane.b32.xlu0 %v6203, 32
    %v6362 = vpop.permute.xlu0 %6361
    %6363 = vrot.lane.b32.xlu0 %v6204, 32
    %v6364 = vpop.permute.xlu0 %6363
    %v6365 = vadd.f32 %v6044, %v6206
    %v6366 = vadd.f32 %v6045, %v6208
    %v6367 = vadd.f32 %v6046, %v6210
    %v6368 = vadd.f32 %v6047, %v6212
    %v6369 = vadd.f32 %v6048, %v6214
    %v6370 = vadd.f32 %v6049, %v6216
    %v6371 = vadd.f32 %v6050, %v6218
    %v6372 = vadd.f32 %v6051, %v6220
    %v6373 = vadd.f32 %v6052, %v6222
    %v6374 = vadd.f32 %v6053, %v6224
    %v6375 = vadd.f32 %v6054, %v6226
    %v6376 = vadd.f32 %v6055, %v6228
    %v6377 = vadd.f32 %v6056, %v6230
    %v6378 = vadd.f32 %v6057, %v6232
    %v6379 = vadd.f32 %v6058, %v6234
    %v6380 = vadd.f32 %v6059, %v6236
    %v6381 = vadd.f32 %v6060, %v6238
    %v6382 = vadd.f32 %v6061, %v6240
    %v6383 = vadd.f32 %v6062, %v6242
    %v6384 = vadd.f32 %v6063, %v6244
    %v6385 = vadd.f32 %v6064, %v6246
    %v6386 = vadd.f32 %v6065, %v6248
    %v6387 = vadd.f32 %v6066, %v6250
    %v6388 = vadd.f32 %v6067, %v6252
    %v6389 = vadd.f32 %v6068, %v6254
    %v6390 = vadd.f32 %v6069, %v6256
    %v6391 = vadd.f32 %v6070, %v6258
    %v6392 = vadd.f32 %v6071, %v6260
    %v6393 = vadd.f32 %v6072, %v6262
    %v6394 = vadd.f32 %v6073, %v6264
    %v6395 = vadd.f32 %v6074, %v6266
    %v6396 = vadd.f32 %v6075, %v6268
    %v6397 = vadd.f32 %v6076, %v6270
    %v6398 = vadd.f32 %v6077, %v6272
    %v6399 = vadd.f32 %v6078, %v6274
    %v6400 = vadd.f32 %v6079, %v6276
    %v6401 = vadd.f32 %v6080, %v6278
    %v6402 = vadd.f32 %v6081, %v6280
    %v6403 = vadd.f32 %v6082, %v6282
    %v6404 = vadd.f32 %v6083, %v6284
    %v6405 = vadd.f32 %v6084, %v6286
    %v6406 = vadd.f32 %v6085, %v6288
    %v6407 = vadd.f32 %v6086, %v6290
    %v6408 = vadd.f32 %v6087, %v6292
    %v6409 = vadd.f32 %v6088, %v6294
    %v6410 = vadd.f32 %v6089, %v6296
    %v6411 = vadd.f32 %v6090, %v6298
    %v6412 = vadd.f32 %v6091, %v6300
    %v6413 = vadd.f32 %v6092, %v6302
    %v6414 = vadd.f32 %v6093, %v6304
    %v6415 = vadd.f32 %v6094, %v6306
    %v6416 = vadd.f32 %v6095, %v6308
    %v6417 = vadd.f32 %v6096, %v6310
    %v6418 = vadd.f32 %v6097, %v6312
    %v6419 = vadd.f32 %v6098, %v6314
    %v6420 = vadd.f32 %v6099, %v6316
    %v6421 = vadd.f32 %v6100, %v6318
    %v6422 = vadd.f32 %v6101, %v6320
    %v6423 = vadd.f32 %v6102, %v6322
    %v6424 = vadd.f32 %v6103, %v6324
    %v6425 = vadd.f32 %v6104, %v6326
    %v6426 = vadd.f32 %v6105, %v6328
    %v6427 = vadd.f32 %v6106, %v6330
    %v6428 = vadd.f32 %v6107, %v6332
    %v6429 = vadd.f32 %v6108, %v6334
    %v6430 = vadd.f32 %v6109, %v6336
    %v6431 = vadd.f32 %v6110, %v6338
    %v6432 = vadd.f32 %v6111, %v6340
    %v6433 = vadd.f32 %v6112, %v6342
    %v6434 = vadd.f32 %v6113, %v6344
    %v6435 = vadd.f32 %v6114, %v6346
    %v6436 = vadd.f32 %v6115, %v6348
    %v6437 = vadd.f32 %v6116, %v6350
    %v6438 = vadd.f32 %v6117, %v6352
    %v6439 = vadd.f32 %v6118, %v6354
    %v6440 = vadd.f32 %v6119, %v6356
    %v6441 = vadd.f32 %v6120, %v6358
    %v6442 = vadd.f32 %v6121, %v6360
    %v6443 = vadd.f32 %v6122, %v6362
    %v6444 = vadd.f32 %v6123, %v6364
    %6445 = vmatprep.subr.mxu0 0.0
    %6446 = vmatpush1.xpose.msra.mxu0 %v6444
    %6447 = vmatprep.subr.mxu0 0.0
    %6448 = vmatpush1.xpose.msra.mxu0 %v6443
    %6449 = vmatprep.subr.mxu0 0.0
    %6450 = vmatpush1.xpose.msra.mxu0 %v6442
    %6451 = vmatprep.subr.mxu0 0.0
    %6452 = vmatpush1.xpose.msra.mxu0 %v6441
    %6453 = vmatprep.subr.mxu0 0.0
    %6454 = vmatpush1.xpose.msra.mxu0 %v6440
    %6455 = vmatprep.subr.mxu0 0.0
    %6456 = vmatpush1.xpose.msra.mxu0 %v6439
    %6457 = vmatprep.subr.mxu0 0.0
    %6458 = vmatpush1.xpose.msra.mxu0 %v6438
    %6459 = vmatprep.subr.mxu0 0.0
    %6460 = vmatpush1.xpose.msra.mxu0 %v6437
    %6461 = vmatprep.subr.mxu0 0.0
    %6462 = vmatpush1.xpose.msra.mxu0 %v6436
    %6463 = vmatprep.subr.mxu0 0.0
    %6464 = vmatpush1.xpose.msra.mxu0 %v6435
    %6465 = vmatprep.subr.mxu0 0.0
    %6466 = vmatpush1.xpose.msra.mxu0 %v6434
    %6467 = vmatprep.subr.mxu0 0.0
    %6468 = vmatpush1.xpose.msra.mxu0 %v6433
    %6469 = vmatprep.subr.mxu0 0.0
    %6470 = vmatpush1.xpose.msra.mxu0 %v6432
    %6471 = vmatprep.subr.mxu0 0.0
    %6472 = vmatpush1.xpose.msra.mxu0 %v6431
    %6473 = vmatprep.subr.mxu0 0.0
    %6474 = vmatpush1.xpose.msra.mxu0 %v6430
    %6475 = vmatprep.subr.mxu0 0.0
    %6476 = vmatpush1.xpose.msra.mxu0 %v6429
    %6477 = vmatprep.subr.mxu0 0.0
    %6478 = vmatpush2.xpose.msra.mxu0 0.0
    %6479 = vmatprep.subr.mxu0 0.0
    %6480 = vmatpush2.xpose.msra.mxu0 0.0
    %6481 = vmatprep.subr.mxu0 0.0
    %6482 = vmatpush2.xpose.msra.mxu0 0.0
    %6483 = vmatprep.subr.mxu0 0.0
    %6484 = vmatpush2.xpose.msra.mxu0 0.0
    %6485 = vmatprep.subr.mxu0 0.0
    %6486 = vmatpush2.xpose.msra.mxu0 0.0
    %6487 = vmatprep.subr.mxu0 0.0
    %6488 = vmatpush2.xpose.msra.mxu0 0.0
    %6489 = vmatprep.subr.mxu0 0.0
    %6490 = vmatpush2.xpose.msra.mxu0 0.0
    %6491 = vmatprep.subr.mxu0 0.0
    %6492 = vmatpush2.xpose.msra.mxu0 0.0
    %6493 = vmatprep.subr.mxu0 0.0
    %6494 = vmatpush2.xpose.msra.mxu0 0.0
    %6495 = vmatprep.subr.mxu0 0.0
    %6496 = vmatpush2.xpose.msra.mxu0 0.0
    %6497 = vmatprep.subr.mxu0 0.0
    %6498 = vmatpush2.xpose.msra.mxu0 0.0
    %6499 = vmatprep.subr.mxu0 0.0
    %6500 = vmatpush2.xpose.msra.mxu0 0.0
    %6501 = vmatprep.subr.mxu0 0.0
    %6502 = vmatpush2.xpose.msra.mxu0 0.0
    %6503 = vmatprep.subr.mxu0 0.0
    %6504 = vmatpush2.xpose.msra.mxu0 0.0
    %6505 = vmatprep.subr.mxu0 0.0
    %6506 = vmatpush2.xpose.msra.mxu0 0.0
    %6507 = vmatprep.subr.mxu0 0.0
    %6508 = vmatpush2.xpose.msra.mxu0 0.0
    %6509 = vmatprep.mubr.f32.mxu0 0.0
    %6510 = vmatmul.mubr.f32.gmra.mxu0 %v6365
    %v6511 = vpop.f32.mrf.mxu0
    %v6512 = vadd.f32 0.0, %v6511
    %v6513 = vpop.f32.mrf.mxu0
    %6514 = vmatprep.mubr.f32.mxu0 0.0
    %6515 = vmatmul.mubr.f32.gmra.mxu0 %v6366
    %v6516 = vpop.f32.mrf.mxu0
    %v6517 = vadd.f32 0.0, %v6516
    %v6518 = vpop.f32.mrf.mxu0
    %6519 = vmatprep.mubr.f32.mxu0 0.0
    %6520 = vmatmul.mubr.f32.gmra.mxu0 %v6367
    %v6521 = vpop.f32.mrf.mxu0
    %v6522 = vadd.f32 0.0, %v6521
    %v6523 = vpop.f32.mrf.mxu0
    %6524 = vmatprep.mubr.f32.mxu0 0.0
    %6525 = vmatmul.mubr.f32.gmra.mxu0 %v6368
    %v6526 = vpop.f32.mrf.mxu0
    %v6527 = vadd.f32 0.0, %v6526
    %v6528 = vpop.f32.mrf.mxu0
    %6529 = vmatprep.mubr.f32.mxu0 0.0
    %6530 = vmatmul.mubr.f32.gmra.mxu0 %v6369
    %v6531 = vpop.f32.mrf.mxu0
    %v6532 = vadd.f32 0.0, %v6531
    %v6533 = vpop.f32.mrf.mxu0
    %6534 = vmatprep.mubr.f32.mxu0 0.0
    %6535 = vmatmul.mubr.f32.gmra.mxu0 %v6370
    %v6536 = vpop.f32.mrf.mxu0
    %v6537 = vadd.f32 0.0, %v6536
    %v6538 = vpop.f32.mrf.mxu0
    %6539 = vmatprep.mubr.f32.mxu0 0.0
    %6540 = vmatmul.mubr.f32.gmra.mxu0 %v6371
    %v6541 = vpop.f32.mrf.mxu0
    %v6542 = vadd.f32 0.0, %v6541
    %v6543 = vpop.f32.mrf.mxu0
    %6544 = vmatprep.mubr.f32.mxu0 0.0
    %6545 = vmatmul.mubr.f32.gmra.mxu0 %v6372
    %v6546 = vpop.f32.mrf.mxu0
    %v6547 = vadd.f32 0.0, %v6546
    %v6548 = vpop.f32.mrf.mxu0
    %6549 = vmatprep.mubr.f32.mxu0 0.0
    %6550 = vmatmul.mubr.f32.gmra.mxu0 %v6373
    %v6551 = vpop.f32.mrf.mxu0
    %v6552 = vadd.f32 0.0, %v6551
    %v6553 = vpop.f32.mrf.mxu0
    %6554 = vmatprep.mubr.f32.mxu0 0.0
    %6555 = vmatmul.mubr.f32.gmra.mxu0 %v6374
    %v6556 = vpop.f32.mrf.mxu0
    %v6557 = vadd.f32 0.0, %v6556
    %v6558 = vpop.f32.mrf.mxu0
    %6559 = vmatprep.mubr.f32.mxu0 0.0
    %6560 = vmatmul.mubr.f32.gmra.mxu0 %v6375
    %v6561 = vpop.f32.mrf.mxu0
    %v6562 = vadd.f32 0.0, %v6561
    %v6563 = vpop.f32.mrf.mxu0
    %6564 = vmatprep.mubr.f32.mxu0 0.0
    %6565 = vmatmul.mubr.f32.gmra.mxu0 %v6376
    %v6566 = vpop.f32.mrf.mxu0
    %v6567 = vadd.f32 0.0, %v6566
    %v6568 = vpop.f32.mrf.mxu0
    %6569 = vmatprep.mubr.f32.mxu0 0.0
    %6570 = vmatmul.mubr.f32.gmra.mxu0 %v6377
    %v6571 = vpop.f32.mrf.mxu0
    %v6572 = vadd.f32 0.0, %v6571
    %v6573 = vpop.f32.mrf.mxu0
    %6574 = vmatprep.mubr.f32.mxu0 0.0
    %6575 = vmatmul.mubr.f32.gmra.mxu0 %v6378
    %v6576 = vpop.f32.mrf.mxu0
    %v6577 = vadd.f32 0.0, %v6576
    %v6578 = vpop.f32.mrf.mxu0
    %6579 = vmatprep.mubr.f32.mxu0 0.0
    %6580 = vmatmul.mubr.f32.gmra.mxu0 %v6379
    %v6581 = vpop.f32.mrf.mxu0
    %v6582 = vadd.f32 0.0, %v6581
    %v6583 = vpop.f32.mrf.mxu0
    %6584 = vmatprep.mubr.f32.mxu0 0.0
    %6585 = vmatmul.mubr.f32.gmra.mxu0 %v6380
    %v6586 = vpop.f32.mrf.mxu0
    %v6587 = vadd.f32 0.0, %v6586
    %v6588 = vpop.f32.mrf.mxu0
    %6589 = vmatprep.mubr.f32.mxu0 0.0
    %6590 = vmatmul.mubr.f32.gmra.mxu0 %v6381
    %v6591 = vpop.f32.mrf.mxu0
    %v6592 = vadd.f32 0.0, %v6591
    %v6593 = vpop.f32.mrf.mxu0
    %6594 = vmatprep.mubr.f32.mxu0 0.0
    %6595 = vmatmul.mubr.f32.gmra.mxu0 %v6382
    %v6596 = vpop.f32.mrf.mxu0
    %v6597 = vadd.f32 0.0, %v6596
    %v6598 = vpop.f32.mrf.mxu0
    %6599 = vmatprep.mubr.f32.mxu0 0.0
    %6600 = vmatmul.mubr.f32.gmra.mxu0 %v6383
    %v6601 = vpop.f32.mrf.mxu0
    %v6602 = vadd.f32 0.0, %v6601
    %v6603 = vpop.f32.mrf.mxu0
    %6604 = vmatprep.mubr.f32.mxu0 0.0
    %6605 = vmatmul.mubr.f32.gmra.mxu0 %v6384
    %v6606 = vpop.f32.mrf.mxu0
    %v6607 = vadd.f32 0.0, %v6606
    %v6608 = vpop.f32.mrf.mxu0
    %6609 = vmatprep.mubr.f32.mxu0 0.0
    %6610 = vmatmul.mubr.f32.gmra.mxu0 %v6385
    %v6611 = vpop.f32.mrf.mxu0
    %v6612 = vadd.f32 0.0, %v6611
    %v6613 = vpop.f32.mrf.mxu0
    %6614 = vmatprep.mubr.f32.mxu0 0.0
    %6615 = vmatmul.mubr.f32.gmra.mxu0 %v6386
    %v6616 = vpop.f32.mrf.mxu0
    %v6617 = vadd.f32 0.0, %v6616
    %v6618 = vpop.f32.mrf.mxu0
    %6619 = vmatprep.mubr.f32.mxu0 0.0
    %6620 = vmatmul.mubr.f32.gmra.mxu0 %v6387
    %v6621 = vpop.f32.mrf.mxu0
    %v6622 = vadd.f32 0.0, %v6621
    %v6623 = vpop.f32.mrf.mxu0
    %6624 = vmatprep.mubr.f32.mxu0 0.0
    %6625 = vmatmul.mubr.f32.gmra.mxu0 %v6388
    %v6626 = vpop.f32.mrf.mxu0
    %v6627 = vadd.f32 0.0, %v6626
    %v6628 = vpop.f32.mrf.mxu0
    %6629 = vmatprep.mubr.f32.mxu0 0.0
    %6630 = vmatmul.mubr.f32.gmra.mxu0 %v6389
    %v6631 = vpop.f32.mrf.mxu0
    %v6632 = vadd.f32 0.0, %v6631
    %v6633 = vpop.f32.mrf.mxu0
    %6634 = vmatprep.mubr.f32.mxu0 0.0
    %6635 = vmatmul.mubr.f32.gmra.mxu0 %v6390
    %v6636 = vpop.f32.mrf.mxu0
    %v6637 = vadd.f32 0.0, %v6636
    %v6638 = vpop.f32.mrf.mxu0
    %6639 = vmatprep.mubr.f32.mxu0 0.0
    %6640 = vmatmul.mubr.f32.gmra.mxu0 %v6391
    %v6641 = vpop.f32.mrf.mxu0
    %v6642 = vadd.f32 0.0, %v6641
    %v6643 = vpop.f32.mrf.mxu0
    %6644 = vmatprep.mubr.f32.mxu0 0.0
    %6645 = vmatmul.mubr.f32.gmra.mxu0 %v6392
    %v6646 = vpop.f32.mrf.mxu0
    %v6647 = vadd.f32 0.0, %v6646
    %v6648 = vpop.f32.mrf.mxu0
    %6649 = vmatprep.mubr.f32.mxu0 0.0
    %6650 = vmatmul.mubr.f32.gmra.mxu0 %v6393
    %v6651 = vpop.f32.mrf.mxu0
    %v6652 = vadd.f32 0.0, %v6651
    %v6653 = vpop.f32.mrf.mxu0
    %6654 = vmatprep.mubr.f32.mxu0 0.0
    %6655 = vmatmul.mubr.f32.gmra.mxu0 %v6394
    %v6656 = vpop.f32.mrf.mxu0
    %v6657 = vadd.f32 0.0, %v6656
    %v6658 = vpop.f32.mrf.mxu0
    %6659 = vmatprep.mubr.f32.mxu0 0.0
    %6660 = vmatmul.mubr.f32.gmra.mxu0 %v6395
    %v6661 = vpop.f32.mrf.mxu0
    %v6662 = vadd.f32 0.0, %v6661
    %v6663 = vpop.f32.mrf.mxu0
    %6664 = vmatprep.mubr.f32.mxu0 0.0
    %6665 = vmatmul.mubr.f32.gmra.mxu0 %v6396
    %v6666 = vpop.f32.mrf.mxu0
    %v6667 = vadd.f32 0.0, %v6666
    %v6668 = vpop.f32.mrf.mxu0
    %6669 = vmatprep.mubr.f32.mxu0 0.0
    %6670 = vmatmul.mubr.f32.gmra.mxu0 %v6397
    %v6671 = vpop.f32.mrf.mxu0
    %v6672 = vadd.f32 0.0, %v6671
    %v6673 = vpop.f32.mrf.mxu0
    %6674 = vmatprep.mubr.f32.mxu0 0.0
    %6675 = vmatmul.mubr.f32.gmra.mxu0 %v6398
    %v6676 = vpop.f32.mrf.mxu0
    %v6677 = vadd.f32 0.0, %v6676
    %v6678 = vpop.f32.mrf.mxu0
    %6679 = vmatprep.mubr.f32.mxu0 0.0
    %6680 = vmatmul.mubr.f32.gmra.mxu0 %v6399
    %v6681 = vpop.f32.mrf.mxu0
    %v6682 = vadd.f32 0.0, %v6681
    %v6683 = vpop.f32.mrf.mxu0
    %6684 = vmatprep.mubr.f32.mxu0 0.0
    %6685 = vmatmul.mubr.f32.gmra.mxu0 %v6400
    %v6686 = vpop.f32.mrf.mxu0
    %v6687 = vadd.f32 0.0, %v6686
    %v6688 = vpop.f32.mrf.mxu0
    %6689 = vmatprep.mubr.f32.mxu0 0.0
    %6690 = vmatmul.mubr.f32.gmra.mxu0 %v6401
    %v6691 = vpop.f32.mrf.mxu0
    %v6692 = vadd.f32 0.0, %v6691
    %v6693 = vpop.f32.mrf.mxu0
    %6694 = vmatprep.mubr.f32.mxu0 0.0
    %6695 = vmatmul.mubr.f32.gmra.mxu0 %v6402
    %v6696 = vpop.f32.mrf.mxu0
    %v6697 = vadd.f32 0.0, %v6696
    %v6698 = vpop.f32.mrf.mxu0
    %6699 = vmatprep.mubr.f32.mxu0 0.0
    %6700 = vmatmul.mubr.f32.gmra.mxu0 %v6403
    %v6701 = vpop.f32.mrf.mxu0
    %v6702 = vadd.f32 0.0, %v6701
    %v6703 = vpop.f32.mrf.mxu0
    %6704 = vmatprep.mubr.f32.mxu0 0.0
    %6705 = vmatmul.mubr.f32.gmra.mxu0 %v6404
    %v6706 = vpop.f32.mrf.mxu0
    %v6707 = vadd.f32 0.0, %v6706
    %v6708 = vpop.f32.mrf.mxu0
    %6709 = vmatprep.mubr.f32.mxu0 0.0
    %6710 = vmatmul.mubr.f32.gmra.mxu0 %v6405
    %v6711 = vpop.f32.mrf.mxu0
    %v6712 = vadd.f32 0.0, %v6711
    %v6713 = vpop.f32.mrf.mxu0
    %6714 = vmatprep.mubr.f32.mxu0 0.0
    %6715 = vmatmul.mubr.f32.gmra.mxu0 %v6406
    %v6716 = vpop.f32.mrf.mxu0
    %v6717 = vadd.f32 0.0, %v6716
    %v6718 = vpop.f32.mrf.mxu0
    %6719 = vmatprep.mubr.f32.mxu0 0.0
    %6720 = vmatmul.mubr.f32.gmra.mxu0 %v6407
    %v6721 = vpop.f32.mrf.mxu0
    %v6722 = vadd.f32 0.0, %v6721
    %v6723 = vpop.f32.mrf.mxu0
    %6724 = vmatprep.mubr.f32.mxu0 0.0
    %6725 = vmatmul.mubr.f32.gmra.mxu0 %v6408
    %v6726 = vpop.f32.mrf.mxu0
    %v6727 = vadd.f32 0.0, %v6726
    %v6728 = vpop.f32.mrf.mxu0
    %6729 = vmatprep.mubr.f32.mxu0 0.0
    %6730 = vmatmul.mubr.f32.gmra.mxu0 %v6409
    %v6731 = vpop.f32.mrf.mxu0
    %v6732 = vadd.f32 0.0, %v6731
    %v6733 = vpop.f32.mrf.mxu0
    %6734 = vmatprep.mubr.f32.mxu0 0.0
    %6735 = vmatmul.mubr.f32.gmra.mxu0 %v6410
    %v6736 = vpop.f32.mrf.mxu0
    %v6737 = vadd.f32 0.0, %v6736
    %v6738 = vpop.f32.mrf.mxu0
    %6739 = vmatprep.mubr.f32.mxu0 0.0
    %6740 = vmatmul.mubr.f32.gmra.mxu0 %v6411
    %v6741 = vpop.f32.mrf.mxu0
    %v6742 = vadd.f32 0.0, %v6741
    %v6743 = vpop.f32.mrf.mxu0
    %6744 = vmatprep.mubr.f32.mxu0 0.0
    %6745 = vmatmul.mubr.f32.gmra.mxu0 %v6412
    %v6746 = vpop.f32.mrf.mxu0
    %v6747 = vadd.f32 0.0, %v6746
    %v6748 = vpop.f32.mrf.mxu0
    %6749 = vmatprep.mubr.f32.mxu0 0.0
    %6750 = vmatmul.mubr.f32.gmra.mxu0 %v6413
    %v6751 = vpop.f32.mrf.mxu0
    %v6752 = vadd.f32 0.0, %v6751
    %v6753 = vpop.f32.mrf.mxu0
    %6754 = vmatprep.mubr.f32.mxu0 0.0
    %6755 = vmatmul.mubr.f32.gmra.mxu0 %v6414
    %v6756 = vpop.f32.mrf.mxu0
    %v6757 = vadd.f32 0.0, %v6756
    %v6758 = vpop.f32.mrf.mxu0
    %6759 = vmatprep.mubr.f32.mxu0 0.0
    %6760 = vmatmul.mubr.f32.gmra.mxu0 %v6415
    %v6761 = vpop.f32.mrf.mxu0
    %v6762 = vadd.f32 0.0, %v6761
    %v6763 = vpop.f32.mrf.mxu0
    %6764 = vmatprep.mubr.f32.mxu0 0.0
    %6765 = vmatmul.mubr.f32.gmra.mxu0 %v6416
    %v6766 = vpop.f32.mrf.mxu0
    %v6767 = vadd.f32 0.0, %v6766
    %v6768 = vpop.f32.mrf.mxu0
    %6769 = vmatprep.mubr.f32.mxu0 0.0
    %6770 = vmatmul.mubr.f32.gmra.mxu0 %v6417
    %v6771 = vpop.f32.mrf.mxu0
    %v6772 = vadd.f32 0.0, %v6771
    %v6773 = vpop.f32.mrf.mxu0
    %6774 = vmatprep.mubr.f32.mxu0 0.0
    %6775 = vmatmul.mubr.f32.gmra.mxu0 %v6418
    %v6776 = vpop.f32.mrf.mxu0
    %v6777 = vadd.f32 0.0, %v6776
    %v6778 = vpop.f32.mrf.mxu0
    %6779 = vmatprep.mubr.f32.mxu0 0.0
    %6780 = vmatmul.mubr.f32.gmra.mxu0 %v6419
    %v6781 = vpop.f32.mrf.mxu0
    %v6782 = vadd.f32 0.0, %v6781
    %v6783 = vpop.f32.mrf.mxu0
    %6784 = vmatprep.mubr.f32.mxu0 0.0
    %6785 = vmatmul.mubr.f32.gmra.mxu0 %v6420
    %v6786 = vpop.f32.mrf.mxu0
    %v6787 = vadd.f32 0.0, %v6786
    %v6788 = vpop.f32.mrf.mxu0
    %6789 = vmatprep.mubr.f32.mxu0 0.0
    %6790 = vmatmul.mubr.f32.gmra.mxu0 %v6421
    %v6791 = vpop.f32.mrf.mxu0
    %v6792 = vadd.f32 0.0, %v6791
    %v6793 = vpop.f32.mrf.mxu0
    %6794 = vmatprep.mubr.f32.mxu0 0.0
    %6795 = vmatmul.mubr.f32.gmra.mxu0 %v6422
    %v6796 = vpop.f32.mrf.mxu0
    %v6797 = vadd.f32 0.0, %v6796
    %v6798 = vpop.f32.mrf.mxu0
    %6799 = vmatprep.mubr.f32.mxu0 0.0
    %6800 = vmatmul.mubr.f32.gmra.mxu0 %v6423
    %v6801 = vpop.f32.mrf.mxu0
    %v6802 = vadd.f32 0.0, %v6801
    %v6803 = vpop.f32.mrf.mxu0
    %6804 = vmatprep.mubr.f32.mxu0 0.0
    %6805 = vmatmul.mubr.f32.gmra.mxu0 %v6424
    %v6806 = vpop.f32.mrf.mxu0
    %v6807 = vadd.f32 0.0, %v6806
    %v6808 = vpop.f32.mrf.mxu0
    %6809 = vmatprep.mubr.f32.mxu0 0.0
    %6810 = vmatmul.mubr.f32.gmra.mxu0 %v6425
    %v6811 = vpop.f32.mrf.mxu0
    %v6812 = vadd.f32 0.0, %v6811
    %v6813 = vpop.f32.mrf.mxu0
    %6814 = vmatprep.mubr.f32.mxu0 0.0
    %6815 = vmatmul.mubr.f32.gmra.mxu0 %v6426
    %v6816 = vpop.f32.mrf.mxu0
    %v6817 = vadd.f32 0.0, %v6816
    %v6818 = vpop.f32.mrf.mxu0
    %6819 = vmatprep.mubr.f32.mxu0 0.0
    %6820 = vmatmul.mubr.f32.gmra.mxu0 %v6427
    %v6821 = vpop.f32.mrf.mxu0
    %v6822 = vadd.f32 0.0, %v6821
    %v6823 = vpop.f32.mrf.mxu0
    %6824 = vmatprep.mubr.f32.mxu0 0.0
    %6825 = vmatmul.mubr.f32.gmra.mxu0 %v6428
    %v6826 = vpop.f32.mrf.mxu0
    %v6827 = vadd.f32 0.0, %v6826
    %v6828 = vpop.f32.mrf.mxu0
    %6829 = vdwg.mxu0
    %v6830 = vld [vmem:[%s5] sm:$0x1]
    %v6831 = vld [vmem:[%s6] sm:$0x1]
    %v6832 = vadd.f32 %v6512, %v6517
    %v6833 = vadd.f32 %v6832, %v6522
    %v6834 = vadd.f32 %v6833, %v6527
    %v6835 = vadd.f32 %v6834, %v6532
    %v6836 = vadd.f32 %v6835, %v6537
    %v6837 = vadd.f32 %v6836, %v6542
    %v6838 = vadd.f32 %v6837, %v6547
    %v6839 = vadd.f32 %v6838, %v6552
    %v6840 = vadd.f32 %v6839, %v6557
    %v6841 = vadd.f32 %v6840, %v6562
    %v6842 = vadd.f32 %v6841, %v6567
    %v6843 = vadd.f32 %v6842, %v6572
    %v6844 = vadd.f32 %v6843, %v6577
    %v6845 = vadd.f32 %v6844, %v6582
    %v6846 = vadd.f32 %v6845, %v6587
    %v6847 = vadd.f32 %v6846, %v6592
    %v6848 = vadd.f32 %v6847, %v6597
    %v6849 = vadd.f32 %v6848, %v6602
    %v6850 = vadd.f32 %v6849, %v6607
    %v6851 = vadd.f32 %v6850, %v6612
    %v6852 = vadd.f32 %v6851, %v6617
    %v6853 = vadd.f32 %v6852, %v6622
    %v6854 = vadd.f32 %v6853, %v6627
    %v6855 = vadd.f32 %v6854, %v6632
    %v6856 = vadd.f32 %v6855, %v6637
    %v6857 = vadd.f32 %v6856, %v6642
    %v6858 = vadd.f32 %v6857, %v6647
    %v6859 = vadd.f32 %v6858, %v6652
    %v6860 = vadd.f32 %v6859, %v6657
    %v6861 = vadd.f32 %v6860, %v6662
    %v6862 = vadd.f32 %v6861, %v6667
    %v6863 = vadd.f32 %v6862, %v6672
    %v6864 = vadd.f32 %v6863, %v6677
    %v6865 = vadd.f32 %v6864, %v6682
    %v6866 = vadd.f32 %v6865, %v6687
    %v6867 = vadd.f32 %v6866, %v6692
    %v6868 = vadd.f32 %v6867, %v6697
    %v6869 = vadd.f32 %v6868, %v6702
    %v6870 = vadd.f32 %v6869, %v6707
    %v6871 = vadd.f32 %v6870, %v6712
    %v6872 = vadd.f32 %v6871, %v6717
    %v6873 = vadd.f32 %v6872, %v6722
    %v6874 = vadd.f32 %v6873, %v6727
    %v6875 = vadd.f32 %v6874, %v6732
    %v6876 = vadd.f32 %v6875, %v6737
    %v6877 = vadd.f32 %v6876, %v6742
    %v6878 = vadd.f32 %v6877, %v6747
    %v6879 = vadd.f32 %v6878, %v6752
    %v6880 = vadd.f32 %v6879, %v6757
    %v6881 = vadd.f32 %v6880, %v6762
    %v6882 = vadd.f32 %v6881, %v6767
    %v6883 = vadd.f32 %v6882, %v6772
    %v6884 = vadd.f32 %v6883, %v6777
    %v6885 = vadd.f32 %v6884, %v6782
    %v6886 = vadd.f32 %v6885, %v6787
    %v6887 = vadd.f32 %v6886, %v6792
    %v6888 = vadd.f32 %v6887, %v6797
    %v6889 = vadd.f32 %v6888, %v6802
    %v6890 = vadd.f32 %v6889, %v6807
    %v6891 = vadd.f32 %v6890, %v6812
    %v6892 = vadd.f32 %v6891, %v6817
    %v6893 = vadd.f32 %v6892, %v6822
    %v6894 = vadd.f32 %v6893, %v6827
    %v6895 = vrot.slane %v6894, 4
    %v6896 = vadd.f32 %v6894, %v6895
    %v6897 = vrot.slane %v6896, 2
    %v6898 = vadd.f32 %v6896, %v6897
    %v6899 = vrot.slane %v6898, 1
    %v6900 = vadd.f32 %v6898, %v6899
    %v6901 = vmul.f32 %v6900, 0.001953125
    %v6902 = vmul.f32 %v6512, %v6512
    %v6903 = vmul.f32 %v6517, %v6517
    %v6904 = vmul.f32 %v6522, %v6522
    %v6905 = vmul.f32 %v6527, %v6527
    %v6906 = vmul.f32 %v6532, %v6532
    %v6907 = vmul.f32 %v6537, %v6537
    %v6908 = vmul.f32 %v6542, %v6542
    %v6909 = vmul.f32 %v6547, %v6547
    %v6910 = vmul.f32 %v6552, %v6552
    %v6911 = vmul.f32 %v6557, %v6557
    %v6912 = vmul.f32 %v6562, %v6562
    %v6913 = vmul.f32 %v6567, %v6567
    %v6914 = vmul.f32 %v6572, %v6572
    %v6915 = vmul.f32 %v6577, %v6577
    %v6916 = vmul.f32 %v6582, %v6582
    %v6917 = vmul.f32 %v6587, %v6587
    %v6918 = vmul.f32 %v6592, %v6592
    %v6919 = vmul.f32 %v6597, %v6597
    %v6920 = vmul.f32 %v6602, %v6602
    %v6921 = vmul.f32 %v6607, %v6607
    %v6922 = vmul.f32 %v6612, %v6612
    %v6923 = vmul.f32 %v6617, %v6617
    %v6924 = vmul.f32 %v6622, %v6622
    %v6925 = vmul.f32 %v6627, %v6627
    %v6926 = vmul.f32 %v6632, %v6632
    %v6927 = vmul.f32 %v6637, %v6637
    %v6928 = vmul.f32 %v6642, %v6642
    %v6929 = vmul.f32 %v6647, %v6647
    %v6930 = vmul.f32 %v6652, %v6652
    %v6931 = vmul.f32 %v6657, %v6657
    %v6932 = vmul.f32 %v6662, %v6662
    %v6933 = vmul.f32 %v6667, %v6667
    %v6934 = vmul.f32 %v6672, %v6672
    %v6935 = vmul.f32 %v6677, %v6677
    %v6936 = vmul.f32 %v6682, %v6682
    %v6937 = vmul.f32 %v6687, %v6687
    %v6938 = vmul.f32 %v6692, %v6692
    %v6939 = vmul.f32 %v6697, %v6697
    %v6940 = vmul.f32 %v6702, %v6702
    %v6941 = vmul.f32 %v6707, %v6707
    %v6942 = vmul.f32 %v6712, %v6712
    %v6943 = vmul.f32 %v6717, %v6717
    %v6944 = vmul.f32 %v6722, %v6722
    %v6945 = vmul.f32 %v6727, %v6727
    %v6946 = vmul.f32 %v6732, %v6732
    %v6947 = vmul.f32 %v6737, %v6737
    %v6948 = vmul.f32 %v6742, %v6742
    %v6949 = vmul.f32 %v6747, %v6747
    %v6950 = vmul.f32 %v6752, %v6752
    %v6951 = vmul.f32 %v6757, %v6757
    %v6952 = vmul.f32 %v6762, %v6762
    %v6953 = vmul.f32 %v6767, %v6767
    %v6954 = vmul.f32 %v6772, %v6772
    %v6955 = vmul.f32 %v6777, %v6777
    %v6956 = vmul.f32 %v6782, %v6782
    %v6957 = vmul.f32 %v6787, %v6787
    %v6958 = vmul.f32 %v6792, %v6792
    %v6959 = vmul.f32 %v6797, %v6797
    %v6960 = vmul.f32 %v6802, %v6802
    %v6961 = vmul.f32 %v6807, %v6807
    %v6962 = vmul.f32 %v6812, %v6812
    %v6963 = vmul.f32 %v6817, %v6817
    %v6964 = vmul.f32 %v6822, %v6822
    %v6965 = vmul.f32 %v6827, %v6827
    %v6966 = vadd.f32 %v6902, %v6903
    %v6967 = vadd.f32 %v6966, %v6904
    %v6968 = vadd.f32 %v6967, %v6905
    %v6969 = vadd.f32 %v6968, %v6906
    %v6970 = vadd.f32 %v6969, %v6907
    %v6971 = vadd.f32 %v6970, %v6908
    %v6972 = vadd.f32 %v6971, %v6909
    %v6973 = vadd.f32 %v6972, %v6910
    %v6974 = vadd.f32 %v6973, %v6911
    %v6975 = vadd.f32 %v6974, %v6912
    %v6976 = vadd.f32 %v6975, %v6913
    %v6977 = vadd.f32 %v6976, %v6914
    %v6978 = vadd.f32 %v6977, %v6915
    %v6979 = vadd.f32 %v6978, %v6916
    %v6980 = vadd.f32 %v6979, %v6917
    %v6981 = vadd.f32 %v6980, %v6918
    %v6982 = vadd.f32 %v6981, %v6919
    %v6983 = vadd.f32 %v6982, %v6920
    %v6984 = vadd.f32 %v6983, %v6921
    %v6985 = vadd.f32 %v6984, %v6922
    %v6986 = vadd.f32 %v6985, %v6923
    %v6987 = vadd.f32 %v6986, %v6924
    %v6988 = vadd.f32 %v6987, %v6925
    %v6989 = vadd.f32 %v6988, %v6926
    %v6990 = vadd.f32 %v6989, %v6927
    %v6991 = vadd.f32 %v6990, %v6928
    %v6992 = vadd.f32 %v6991, %v6929
    %v6993 = vadd.f32 %v6992, %v6930
    %v6994 = vadd.f32 %v6993, %v6931
    %v6995 = vadd.f32 %v6994, %v6932
    %v6996 = vadd.f32 %v6995, %v6933
    %v6997 = vadd.f32 %v6996, %v6934
    %v6998 = vadd.f32 %v6997, %v6935
    %v6999 = vadd.f32 %v6998, %v6936
    %v7000 = vadd.f32 %v6999, %v6937
    %v7001 = vadd.f32 %v7000, %v6938
    %v7002 = vadd.f32 %v7001, %v6939
    %v7003 = vadd.f32 %v7002, %v6940
    %v7004 = vadd.f32 %v7003, %v6941
    %v7005 = vadd.f32 %v7004, %v6942
    %v7006 = vadd.f32 %v7005, %v6943
    %v7007 = vadd.f32 %v7006, %v6944
    %v7008 = vadd.f32 %v7007, %v6945
    %v7009 = vadd.f32 %v7008, %v6946
    %v7010 = vadd.f32 %v7009, %v6947
    %v7011 = vadd.f32 %v7010, %v6948
    %v7012 = vadd.f32 %v7011, %v6949
    %v7013 = vadd.f32 %v7012, %v6950
    %v7014 = vadd.f32 %v7013, %v6951
    %v7015 = vadd.f32 %v7014, %v6952
    %v7016 = vadd.f32 %v7015, %v6953
    %v7017 = vadd.f32 %v7016, %v6954
    %v7018 = vadd.f32 %v7017, %v6955
    %v7019 = vadd.f32 %v7018, %v6956
    %v7020 = vadd.f32 %v7019, %v6957
    %v7021 = vadd.f32 %v7020, %v6958
    %v7022 = vadd.f32 %v7021, %v6959
    %v7023 = vadd.f32 %v7022, %v6960
    %v7024 = vadd.f32 %v7023, %v6961
    %v7025 = vadd.f32 %v7024, %v6962
    %v7026 = vadd.f32 %v7025, %v6963
    %v7027 = vadd.f32 %v7026, %v6964
    %v7028 = vadd.f32 %v7027, %v6965
    %v7029 = vrot.slane %v7028, 4
    %v7030 = vadd.f32 %v7028, %v7029
    %v7031 = vrot.slane %v7030, 2
    %v7032 = vadd.f32 %v7030, %v7031
    %v7033 = vrot.slane %v7032, 1
    %v7034 = vadd.f32 %v7032, %v7033
    %v7035 = vmul.f32 %v7034, 0.001953125
    %v7036 = vmul.f32 %v6901, %v6901
    %v7037 = vsub.f32 %v7035, %v7036
    %v7038 = vadd.f32 %v7037, 1e-05
    %v7039 = vrsqrt.pop %v7038
    %v7040 = vmul.f32 %v6830, %v7039
    %v7042 = vlaneseq
    %v7043 = vshrl.u32 %v7042, 7
    %v7044 = vsub.s32 0, %v7043
    %v7045 = vrot.slane %v7040, %v7044
    %v7047 = vmul.f32 %v6512, %v7045
    %v7048 = vmul.f32 %v6517, %v7045
    %v7049 = vmul.f32 %v6522, %v7045
    %v7050 = vmul.f32 %v6527, %v7045
    %v7051 = vmul.f32 %v6532, %v7045
    %v7052 = vmul.f32 %v6537, %v7045
    %v7053 = vmul.f32 %v6542, %v7045
    %v7054 = vmul.f32 %v6547, %v7045
    %v7055 = vmul.f32 %v6552, %v7045
    %v7056 = vmul.f32 %v6557, %v7045
    %v7057 = vmul.f32 %v6562, %v7045
    %v7058 = vmul.f32 %v6567, %v7045
    %v7059 = vmul.f32 %v6572, %v7045
    %v7060 = vmul.f32 %v6577, %v7045
    %v7061 = vmul.f32 %v6582, %v7045
    %v7062 = vmul.f32 %v6587, %v7045
    %v7063 = vmul.f32 %v6592, %v7045
    %v7064 = vmul.f32 %v6597, %v7045
    %v7065 = vmul.f32 %v6602, %v7045
    %v7066 = vmul.f32 %v6607, %v7045
    %v7067 = vmul.f32 %v6612, %v7045
    %v7068 = vmul.f32 %v6617, %v7045
    %v7069 = vmul.f32 %v6622, %v7045
    %v7070 = vmul.f32 %v6627, %v7045
    %v7071 = vmul.f32 %v6632, %v7045
    %v7072 = vmul.f32 %v6637, %v7045
    %v7073 = vmul.f32 %v6642, %v7045
    %v7074 = vmul.f32 %v6647, %v7045
    %v7075 = vmul.f32 %v6652, %v7045
    %v7076 = vmul.f32 %v6657, %v7045
    %v7077 = vmul.f32 %v6662, %v7045
    %v7078 = vmul.f32 %v6667, %v7045
    %v7079 = vmul.f32 %v6672, %v7045
    %v7080 = vmul.f32 %v6677, %v7045
    %v7081 = vmul.f32 %v6682, %v7045
    %v7082 = vmul.f32 %v6687, %v7045
    %v7083 = vmul.f32 %v6692, %v7045
    %v7084 = vmul.f32 %v6697, %v7045
    %v7085 = vmul.f32 %v6702, %v7045
    %v7086 = vmul.f32 %v6707, %v7045
    %v7087 = vmul.f32 %v6712, %v7045
    %v7088 = vmul.f32 %v6717, %v7045
    %v7089 = vmul.f32 %v6722, %v7045
    %v7090 = vmul.f32 %v6727, %v7045
    %v7091 = vmul.f32 %v6732, %v7045
    %v7092 = vmul.f32 %v6737, %v7045
    %v7093 = vmul.f32 %v6742, %v7045
    %v7094 = vmul.f32 %v6747, %v7045
    %v7095 = vmul.f32 %v6752, %v7045
    %v7096 = vmul.f32 %v6757, %v7045
    %v7097 = vmul.f32 %v6762, %v7045
    %v7098 = vmul.f32 %v6767, %v7045
    %v7099 = vmul.f32 %v6772, %v7045
    %v7100 = vmul.f32 %v6777, %v7045
    %v7101 = vmul.f32 %v6782, %v7045
    %v7102 = vmul.f32 %v6787, %v7045
    %v7103 = vmul.f32 %v6792, %v7045
    %v7104 = vmul.f32 %v6797, %v7045
    %v7105 = vmul.f32 %v6802, %v7045
    %v7106 = vmul.f32 %v6807, %v7045
    %v7107 = vmul.f32 %v6812, %v7045
    %v7108 = vmul.f32 %v6817, %v7045
    %v7109 = vmul.f32 %v6822, %v7045
    %v7110 = vmul.f32 %v6827, %v7045
    %v7111 = vmul.f32 %v6901, %v7040
    %v7112 = vsub.f32 %v6831, %v7111
    %v7114 = vlaneseq
    %v7115 = vshrl.u32 %v7114, 7
    %v7116 = vsub.s32 0, %v7115
    %v7117 = vrot.slane %v7112, %v7116
    %v7119 = vadd.f32 %v7047, %v7117
    %v7120 = vadd.f32 %v7048, %v7117
    %v7121 = vadd.f32 %v7049, %v7117
    %v7122 = vadd.f32 %v7050, %v7117
    %v7123 = vadd.f32 %v7051, %v7117
    %v7124 = vadd.f32 %v7052, %v7117
    %v7125 = vadd.f32 %v7053, %v7117
    %v7126 = vadd.f32 %v7054, %v7117
    %v7127 = vadd.f32 %v7055, %v7117
    %v7128 = vadd.f32 %v7056, %v7117
    %v7129 = vadd.f32 %v7057, %v7117
    %v7130 = vadd.f32 %v7058, %v7117
    %v7131 = vadd.f32 %v7059, %v7117
    %v7132 = vadd.f32 %v7060, %v7117
    %v7133 = vadd.f32 %v7061, %v7117
    %v7134 = vadd.f32 %v7062, %v7117
    %v7135 = vadd.f32 %v7063, %v7117
    %v7136 = vadd.f32 %v7064, %v7117
    %v7137 = vadd.f32 %v7065, %v7117
    %v7138 = vadd.f32 %v7066, %v7117
    %v7139 = vadd.f32 %v7067, %v7117
    %v7140 = vadd.f32 %v7068, %v7117
    %v7141 = vadd.f32 %v7069, %v7117
    %v7142 = vadd.f32 %v7070, %v7117
    %v7143 = vadd.f32 %v7071, %v7117
    %v7144 = vadd.f32 %v7072, %v7117
    %v7145 = vadd.f32 %v7073, %v7117
    %v7146 = vadd.f32 %v7074, %v7117
    %v7147 = vadd.f32 %v7075, %v7117
    %v7148 = vadd.f32 %v7076, %v7117
    %v7149 = vadd.f32 %v7077, %v7117
    %v7150 = vadd.f32 %v7078, %v7117
    %v7151 = vadd.f32 %v7079, %v7117
    %v7152 = vadd.f32 %v7080, %v7117
    %v7153 = vadd.f32 %v7081, %v7117
    %v7154 = vadd.f32 %v7082, %v7117
    %v7155 = vadd.f32 %v7083, %v7117
    %v7156 = vadd.f32 %v7084, %v7117
    %v7157 = vadd.f32 %v7085, %v7117
    %v7158 = vadd.f32 %v7086, %v7117
    %v7159 = vadd.f32 %v7087, %v7117
    %v7160 = vadd.f32 %v7088, %v7117
    %v7161 = vadd.f32 %v7089, %v7117
    %v7162 = vadd.f32 %v7090, %v7117
    %v7163 = vadd.f32 %v7091, %v7117
    %v7164 = vadd.f32 %v7092, %v7117
    %v7165 = vadd.f32 %v7093, %v7117
    %v7166 = vadd.f32 %v7094, %v7117
    %v7167 = vadd.f32 %v7095, %v7117
    %v7168 = vadd.f32 %v7096, %v7117
    %v7169 = vadd.f32 %v7097, %v7117
    %v7170 = vadd.f32 %v7098, %v7117
    %v7171 = vadd.f32 %v7099, %v7117
    %v7172 = vadd.f32 %v7100, %v7117
    %v7173 = vadd.f32 %v7101, %v7117
    %v7174 = vadd.f32 %v7102, %v7117
    %v7175 = vadd.f32 %v7103, %v7117
    %v7176 = vadd.f32 %v7104, %v7117
    %v7177 = vadd.f32 %v7105, %v7117
    %v7178 = vadd.f32 %v7106, %v7117
    %v7179 = vadd.f32 %v7107, %v7117
    %v7180 = vadd.f32 %v7108, %v7117
    %v7181 = vadd.f32 %v7109, %v7117
    %v7182 = vadd.f32 %v7110, %v7117
    %v7183 = vld [vmem:[#allocation3] sm:$0xff]
    %v7184 = vld [vmem:[#allocation3 + $0x8] sm:$0xff]
    %v7185 = vld [vmem:[#allocation3 + $0x10] sm:$0xff]
    %v7186 = vld [vmem:[#allocation3 + $0x18] sm:$0xff]
    %v7187 = vld [vmem:[#allocation3 + $0x20] sm:$0xff]
    %v7188 = vld [vmem:[#allocation3 + $0x28] sm:$0xff]
    %v7189 = vld [vmem:[#allocation3 + $0x30] sm:$0xff]
    %v7190 = vld [vmem:[#allocation3 + $0x38] sm:$0xff]
    %v7191 = vld [vmem:[#allocation3 + $0x40] sm:$0xff]
    %v7192 = vld [vmem:[#allocation3 + $0x48] sm:$0xff]
    %v7193 = vld [vmem:[#allocation3 + $0x50] sm:$0xff]
    %v7194 = vld [vmem:[#allocation3 + $0x58] sm:$0xff]
    %v7195 = vld [vmem:[#allocation3 + $0x60] sm:$0xff]
    %v7196 = vld [vmem:[#allocation3 + $0x68] sm:$0xff]
    %v7197 = vld [vmem:[#allocation3 + $0x70] sm:$0xff]
    %v7198 = vld [vmem:[#allocation3 + $0x78] sm:$0xff]
    %v7199 = vld [vmem:[#allocation3 + $0x80] sm:$0xff]
    %v7200 = vld [vmem:[#allocation3 + $0x88] sm:$0xff]
    %v7201 = vld [vmem:[#allocation3 + $0x90] sm:$0xff]
    %v7202 = vld [vmem:[#allocation3 + $0x98] sm:$0xff]
    %v7203 = vld [vmem:[#allocation3 + $0xa0] sm:$0xff]
    %v7204 = vld [vmem:[#allocation3 + $0xa8] sm:$0xff]
    %v7205 = vld [vmem:[#allocation3 + $0xb0] sm:$0xff]
    %v7206 = vld [vmem:[#allocation3 + $0xb8] sm:$0xff]
    %v7207 = vld [vmem:[#allocation3 + $0xc0] sm:$0xff]
    %v7208 = vld [vmem:[#allocation3 + $0xc8] sm:$0xff]
    %v7209 = vld [vmem:[#allocation3 + $0xd0] sm:$0xff]
    %v7210 = vld [vmem:[#allocation3 + $0xd8] sm:$0xff]
    %v7211 = vld [vmem:[#allocation3 + $0xe0] sm:$0xff]
    %v7212 = vld [vmem:[#allocation3 + $0xe8] sm:$0xff]
    %v7213 = vld [vmem:[#allocation3 + $0xf0] sm:$0xff]
    %v7214 = vld [vmem:[#allocation3 + $0xf8] sm:$0xff]
    %v7215 = vld [vmem:[#allocation3 + $0x100] sm:$0xff]
    %v7216 = vld [vmem:[#allocation3 + $0x108] sm:$0xff]
    %v7217 = vld [vmem:[#allocation3 + $0x110] sm:$0xff]
    %v7218 = vld [vmem:[#allocation3 + $0x118] sm:$0xff]
    %v7219 = vld [vmem:[#allocation3 + $0x120] sm:$0xff]
    %v7220 = vld [vmem:[#allocation3 + $0x128] sm:$0xff]
    %v7221 = vld [vmem:[#allocation3 + $0x130] sm:$0xff]
    %v7222 = vld [vmem:[#allocation3 + $0x138] sm:$0xff]
    %v7223 = vld [vmem:[#allocation3 + $0x140] sm:$0xff]
    %v7224 = vld [vmem:[#allocation3 + $0x148] sm:$0xff]
    %v7225 = vld [vmem:[#allocation3 + $0x150] sm:$0xff]
    %v7226 = vld [vmem:[#allocation3 + $0x158] sm:$0xff]
    %v7227 = vld [vmem:[#allocation3 + $0x160] sm:$0xff]
    %v7228 = vld [vmem:[#allocation3 + $0x168] sm:$0xff]
    %v7229 = vld [vmem:[#allocation3 + $0x170] sm:$0xff]
    %v7230 = vld [vmem:[#allocation3 + $0x178] sm:$0xff]
    %v7231 = vld [vmem:[#allocation3 + $0x180] sm:$0xff]
    %v7232 = vld [vmem:[#allocation3 + $0x188] sm:$0xff]
    %v7233 = vld [vmem:[#allocation3 + $0x190] sm:$0xff]
    %v7234 = vld [vmem:[#allocation3 + $0x198] sm:$0xff]
    %v7235 = vld [vmem:[#allocation3 + $0x1a0] sm:$0xff]
    %v7236 = vld [vmem:[#allocation3 + $0x1a8] sm:$0xff]
    %v7237 = vld [vmem:[#allocation3 + $0x1b0] sm:$0xff]
    %v7238 = vld [vmem:[#allocation3 + $0x1b8] sm:$0xff]
    %v7239 = vld [vmem:[#allocation3 + $0x1c0] sm:$0xff]
    %v7240 = vld [vmem:[#allocation3 + $0x1c8] sm:$0xff]
    %v7241 = vld [vmem:[#allocation3 + $0x1d0] sm:$0xff]
    %v7242 = vld [vmem:[#allocation3 + $0x1d8] sm:$0xff]
    %v7243 = vld [vmem:[#allocation3 + $0x1e0] sm:$0xff]
    %v7244 = vld [vmem:[#allocation3 + $0x1e8] sm:$0xff]
    %v7245 = vld [vmem:[#allocation3 + $0x1f0] sm:$0xff]
    %v7246 = vld [vmem:[#allocation3 + $0x1f8] sm:$0xff]
    %v7247 = vadd.f32 %v7119, %v7183
    %v7248 = vadd.f32 %v7120, %v7184
    %v7249 = vadd.f32 %v7121, %v7185
    %v7250 = vadd.f32 %v7122, %v7186
    %v7251 = vadd.f32 %v7123, %v7187
    %v7252 = vadd.f32 %v7124, %v7188
    %v7253 = vadd.f32 %v7125, %v7189
    %v7254 = vadd.f32 %v7126, %v7190
    %v7255 = vadd.f32 %v7127, %v7191
    %v7256 = vadd.f32 %v7128, %v7192
    %v7257 = vadd.f32 %v7129, %v7193
    %v7258 = vadd.f32 %v7130, %v7194
    %v7259 = vadd.f32 %v7131, %v7195
    %v7260 = vadd.f32 %v7132, %v7196
    %v7261 = vadd.f32 %v7133, %v7197
    %v7262 = vadd.f32 %v7134, %v7198
    %v7263 = vadd.f32 %v7135, %v7199
    %v7264 = vadd.f32 %v7136, %v7200
    %v7265 = vadd.f32 %v7137, %v7201
    %v7266 = vadd.f32 %v7138, %v7202
    %v7267 = vadd.f32 %v7139, %v7203
    %v7268 = vadd.f32 %v7140, %v7204
    %v7269 = vadd.f32 %v7141, %v7205
    %v7270 = vadd.f32 %v7142, %v7206
    %v7271 = vadd.f32 %v7143, %v7207
    %v7272 = vadd.f32 %v7144, %v7208
    %v7273 = vadd.f32 %v7145, %v7209
    %v7274 = vadd.f32 %v7146, %v7210
    %v7275 = vadd.f32 %v7147, %v7211
    %v7276 = vadd.f32 %v7148, %v7212
    %v7277 = vadd.f32 %v7149, %v7213
    %v7278 = vadd.f32 %v7150, %v7214
    %v7279 = vadd.f32 %v7151, %v7215
    %v7280 = vadd.f32 %v7152, %v7216
    %v7281 = vadd.f32 %v7153, %v7217
    %v7282 = vadd.f32 %v7154, %v7218
    %v7283 = vadd.f32 %v7155, %v7219
    %v7284 = vadd.f32 %v7156, %v7220
    %v7285 = vadd.f32 %v7157, %v7221
    %v7286 = vadd.f32 %v7158, %v7222
    %v7287 = vadd.f32 %v7159, %v7223
    %v7288 = vadd.f32 %v7160, %v7224
    %v7289 = vadd.f32 %v7161, %v7225
    %v7290 = vadd.f32 %v7162, %v7226
    %v7291 = vadd.f32 %v7163, %v7227
    %v7292 = vadd.f32 %v7164, %v7228
    %v7293 = vadd.f32 %v7165, %v7229
    %v7294 = vadd.f32 %v7166, %v7230
    %v7295 = vadd.f32 %v7167, %v7231
    %v7296 = vadd.f32 %v7168, %v7232
    %v7297 = vadd.f32 %v7169, %v7233
    %v7298 = vadd.f32 %v7170, %v7234
    %v7299 = vadd.f32 %v7171, %v7235
    %v7300 = vadd.f32 %v7172, %v7236
    %v7301 = vadd.f32 %v7173, %v7237
    %v7302 = vadd.f32 %v7174, %v7238
    %v7303 = vadd.f32 %v7175, %v7239
    %v7304 = vadd.f32 %v7176, %v7240
    %v7305 = vadd.f32 %v7177, %v7241
    %v7306 = vadd.f32 %v7178, %v7242
    %v7307 = vadd.f32 %v7179, %v7243
    %v7308 = vadd.f32 %v7180, %v7244
    %v7309 = vadd.f32 %v7181, %v7245
    %v7310 = vadd.f32 %v7182, %v7246
    %7311 = vst [vmem:[#allocation9] sm:$0xff] %v7247
    %7312 = vst [vmem:[#allocation9 + $0x8] sm:$0xff] %v7248
    %7313 = vst [vmem:[#allocation9 + $0x10] sm:$0xff] %v7249
    %7314 = vst [vmem:[#allocation9 + $0x18] sm:$0xff] %v7250
    %7315 = vst [vmem:[#allocation9 + $0x20] sm:$0xff] %v7251
    %7316 = vst [vmem:[#allocation9 + $0x28] sm:$0xff] %v7252
    %7317 = vst [vmem:[#allocation9 + $0x30] sm:$0xff] %v7253
    %7318 = vst [vmem:[#allocation9 + $0x38] sm:$0xff] %v7254
    %7319 = vst [vmem:[#allocation9 + $0x40] sm:$0xff] %v7255
    %7320 = vst [vmem:[#allocation9 + $0x48] sm:$0xff] %v7256
    %7321 = vst [vmem:[#allocation9 + $0x50] sm:$0xff] %v7257
    %7322 = vst [vmem:[#allocation9 + $0x58] sm:$0xff] %v7258
    %7323 = vst [vmem:[#allocation9 + $0x60] sm:$0xff] %v7259
    %7324 = vst [vmem:[#allocation9 + $0x68] sm:$0xff] %v7260
    %7325 = vst [vmem:[#allocation9 + $0x70] sm:$0xff] %v7261
    %7326 = vst [vmem:[#allocation9 + $0x78] sm:$0xff] %v7262
    %7327 = vst [vmem:[#allocation9 + $0x80] sm:$0xff] %v7263
    %7328 = vst [vmem:[#allocation9 + $0x88] sm:$0xff] %v7264
    %7329 = vst [vmem:[#allocation9 + $0x90] sm:$0xff] %v7265
    %7330 = vst [vmem:[#allocation9 + $0x98] sm:$0xff] %v7266
    %7331 = vst [vmem:[#allocation9 + $0xa0] sm:$0xff] %v7267
    %7332 = vst [vmem:[#allocation9 + $0xa8] sm:$0xff] %v7268
    %7333 = vst [vmem:[#allocation9 + $0xb0] sm:$0xff] %v7269
    %7334 = vst [vmem:[#allocation9 + $0xb8] sm:$0xff] %v7270
    %7335 = vst [vmem:[#allocation9 + $0xc0] sm:$0xff] %v7271
    %7336 = vst [vmem:[#allocation9 + $0xc8] sm:$0xff] %v7272
    %7337 = vst [vmem:[#allocation9 + $0xd0] sm:$0xff] %v7273
    %7338 = vst [vmem:[#allocation9 + $0xd8] sm:$0xff] %v7274
    %7339 = vst [vmem:[#allocation9 + $0xe0] sm:$0xff] %v7275
    %7340 = vst [vmem:[#allocation9 + $0xe8] sm:$0xff] %v7276
    %7341 = vst [vmem:[#allocation9 + $0xf0] sm:$0xff] %v7277
    %7342 = vst [vmem:[#allocation9 + $0xf8] sm:$0xff] %v7278
    %7343 = vst [vmem:[#allocation9 + $0x100] sm:$0xff] %v7279
    %7344 = vst [vmem:[#allocation9 + $0x108] sm:$0xff] %v7280
    %7345 = vst [vmem:[#allocation9 + $0x110] sm:$0xff] %v7281
    %7346 = vst [vmem:[#allocation9 + $0x118] sm:$0xff] %v7282
    %7347 = vst [vmem:[#allocation9 + $0x120] sm:$0xff] %v7283
    %7348 = vst [vmem:[#allocation9 + $0x128] sm:$0xff] %v7284
    %7349 = vst [vmem:[#allocation9 + $0x130] sm:$0xff] %v7285
    %7350 = vst [vmem:[#allocation9 + $0x138] sm:$0xff] %v7286
    %7351 = vst [vmem:[#allocation9 + $0x140] sm:$0xff] %v7287
    %7352 = vst [vmem:[#allocation9 + $0x148] sm:$0xff] %v7288
    %7353 = vst [vmem:[#allocation9 + $0x150] sm:$0xff] %v7289
    %7354 = vst [vmem:[#allocation9 + $0x158] sm:$0xff] %v7290
    %7355 = vst [vmem:[#allocation9 + $0x160] sm:$0xff] %v7291
    %7356 = vst [vmem:[#allocation9 + $0x168] sm:$0xff] %v7292
    %7357 = vst [vmem:[#allocation9 + $0x170] sm:$0xff] %v7293
    %7358 = vst [vmem:[#allocation9 + $0x178] sm:$0xff] %v7294
    %7359 = vst [vmem:[#allocation9 + $0x180] sm:$0xff] %v7295
    %7360 = vst [vmem:[#allocation9 + $0x188] sm:$0xff] %v7296
    %7361 = vst [vmem:[#allocation9 + $0x190] sm:$0xff] %v7297
    %7362 = vst [vmem:[#allocation9 + $0x198] sm:$0xff] %v7298
    %7363 = vst [vmem:[#allocation9 + $0x1a0] sm:$0xff] %v7299
    %7364 = vst [vmem:[#allocation9 + $0x1a8] sm:$0xff] %v7300
    %7365 = vst [vmem:[#allocation9 + $0x1b0] sm:$0xff] %v7301
    %7366 = vst [vmem:[#allocation9 + $0x1b8] sm:$0xff] %v7302
    %7367 = vst [vmem:[#allocation9 + $0x1c0] sm:$0xff] %v7303
    %7368 = vst [vmem:[#allocation9 + $0x1c8] sm:$0xff] %v7304
    %7369 = vst [vmem:[#allocation9 + $0x1d0] sm:$0xff] %v7305
    %7370 = vst [vmem:[#allocation9 + $0x1d8] sm:$0xff] %v7306
    %7371 = vst [vmem:[#allocation9 + $0x1e0] sm:$0xff] %v7307
    %7372 = vst [vmem:[#allocation9 + $0x1e8] sm:$0xff] %v7308
    %7373 = vst [vmem:[#allocation9 + $0x1f0] sm:$0xff] %v7309
    %7374 = vst [vmem:[#allocation9 + $0x1f8] sm:$0xff] %v7310
    // Predicated region
    $region42: #{tpu_custom_call.1} parent=1 // pred_check
      _
    $region43: #{tpu_custom_call.1} parent=1 // pred_check_branch
      %7376 = sbr.rel (0) target = $region45
    $region44: #{tpu_custom_call.1} parent=1 // pred_region
      %s7378 = ssub.s32 8192, 8192
      %7379 = vsyncadd [#allocation5], %s7378
      %s7380 = sshll.u32 [#allocation9], 4
      %s7381 = int_to_ptr.vmem [resolvable:$true] %s7380
      %7386 = dma.vmem_to_hbm [thread:$0]  %s7381, 8192, %s7, [#allocation5], 128, 128, 8
    $region45: #{tpu_custom_call.1} parent=1 // pred_fallthru
      _
    // Predicated region
    $region46: #{tpu_custom_call.1} parent=1 // pred_check
      _
    $region47: #{tpu_custom_call.1} parent=1 // pred_check_branch
      %7388 = sbr.rel (0) target = $region49
    $region48: #{tpu_custom_call.1} parent=1 // pred_region
      %7389 = dma.done [#allocation5], 8192
    $region49: #{tpu_custom_call.1} parent=1 // pred_fallthru
      _
    %7390 = vsyncpa [#allocation4], 1
    %7391 = vsyncpa [#allocation7], 1
    %7392 = vsyncpa [#allocation5], 1

</llo_original>
